<compile_context>
chip_gen: v5e
topology: v5e:2x2
jax: 0.10.0
libtpu: 0.0.40
codegen_flags: <defaults>
</compile_context>

<pallas_src>
import jax
import jax.numpy as jnp
from jax.experimental import pallas as pl
from jax.experimental.pallas import tpu as pltpu


# ----------------------------------------------------------------------------
# Model dimensions (model_config: fcnet_hiddens=[1600, 512, 512, 7])
# ----------------------------------------------------------------------------
D_IN = 4 * 16 * 16          # flattened NCHW observation: [B, 4, 16, 16] -> 1024
H1, H2, H3 = 1600, 512, 512
NUM_OUTPUTS = 7             # logits width
H1_PAD = 1664               # 13 * 128, lane-aligned padding of the 1600-wide layer
HEAD_PAD = 128              # fused (logits | value) head padded to one lane-dense tile


def _round_up(n, m):
    return ((n + m - 1) // m) * m


# ----------------------------------------------------------------------------
# Pallas kernel: fused MLP forward (shared trunk + fused logits/value head)
# ----------------------------------------------------------------------------
def mlp_kernel(x_ref,
               w1_ref, b1_ref,
               w2_ref, b2_ref,
               w3_ref, b3_ref,
               wh_ref, bh_ref,
               out_ref):
    # in-kernel f32 -> bf16 cast of the activation tile (no wrapper-side pass)
    x = x_ref[...].astype(jnp.bfloat16)                              # [TB, D_IN]

    # layer 1: D_IN -> 1664 (logical 1600), ReLU
    h1 = jnp.dot(x, w1_ref[...], preferred_element_type=jnp.float32) + b1_ref[...]
    h1 = jnp.maximum(h1, 0.0).astype(jnp.bfloat16)

    # layer 2: 1664 -> 512, ReLU
    h2 = jnp.dot(h1, w2_ref[...], preferred_element_type=jnp.float32) + b2_ref[...]
    h2 = jnp.maximum(h2, 0.0).astype(jnp.bfloat16)

    # layer 3: 512 -> 512, ReLU   (shared trunk output; vf_share_layers=True)
    h3 = jnp.dot(h2, w3_ref[...], preferred_element_type=jnp.float32) + b3_ref[...]
    h3 = jnp.maximum(h3, 0.0).astype(jnp.bfloat16)

    # fused head: 512 -> 128  (cols 0:7 = logits, col 7 = value, rest zero-padding)
    head = jnp.dot(h3, wh_ref[...], preferred_element_type=jnp.float32) + bh_ref[...]
    out_ref[...] = head.astype(out_ref.dtype)                        # bf16 writeback


# ----------------------------------------------------------------------------
# Wrapper around pallas_call
# ----------------------------------------------------------------------------
def fused_mlp(x_flat, kparams):
    """x_flat: [B, D_IN] float32.  Returns (logits [B,7] f32, value [B] f32)."""
    B = x_flat.shape[0]

    # Batch tile: multiple of 16 (native bf16 (16,128) sublane packing).
    # Small/medium batches -> one tile; large batches -> TB=256 grid so each grid step
    # feeds full 256-wide MXU pushes while amortizing the ~0.35 us per-step overhead.
    if B <= 512:
        TB = _round_up(max(B, 16), 16)
    else:
        TB = 256
    B_pad = _round_up(B, TB)
    grid_steps = B_pad // TB
    grid = (grid_steps,)

    # only the (rare) batch pad remains in the wrapper; the bf16 cast is in-kernel
    x = x_flat
    if B_pad != B:
        x = jnp.pad(x, ((0, B_pad - B), (0, 0)))

    (w1, b1, w2, b2, w3, b3, wh, bh) = kparams

    def weight_spec(arr):
        # full-array block, constant index map -> VMEM-resident across the grid;
        # Buffered(1): never re-fetched, so skip the second pipeline buffer.
        return pl.BlockSpec(arr.shape, lambda i: (0, 0),
                            pipeline_mode=pl.Buffered(1))

    in_specs = [
        pl.BlockSpec((TB, D_IN), lambda i: (i, 0)),      # x tile, pipelined over batch
        weight_spec(w1), weight_spec(b1),
        weight_spec(w2), weight_spec(b2),
        weight_spec(w3), weight_spec(b3),
        weight_spec(wh), weight_spec(bh),
    ]
    out_spec = pl.BlockSpec((TB, HEAD_PAD), lambda i: (i, 0))
    out_shape = jax.ShapeDtypeStruct((B_pad, HEAD_PAD), jnp.bfloat16)

    # cost estimate (DMA/weight-bound at small B: let XLA schedule around it)
    flops = 2 * B_pad * (D_IN * H1_PAD + H1_PAD * H2 + H2 * H3 + H3 * HEAD_PAD)
    param_bytes = sum(int(p.size) * p.dtype.itemsize for p in kparams)
    bytes_accessed = param_bytes + B_pad * (D_IN * 4 + HEAD_PAD * 2)
    cost = pl.CostEstimate(flops=int(flops), transcendentals=0,
                           bytes_accessed=int(bytes_accessed))

    # Explicit VMEM budget: single-buffered weights + double-buffered x/out tiles +
    # f32 accumulators and bf16 copies of the intermediates + fixed headroom.
    x_tile_bytes = TB * D_IN * 4
    out_tile_bytes = TB * HEAD_PAD * 2
    act_bytes = TB * ((H1_PAD + H2 + H3) * (4 + 2) + HEAD_PAD * 4 + D_IN * 2)
    vmem_limit = param_bytes + 2 * (x_tile_bytes + out_tile_bytes) + act_bytes + (8 << 20)
    vmem_limit = min(int(vmem_limit), 48 << 20)   # stays under v7x's 64 MiB per core

    # Megacore sharding only pays off once the per-core duplicated weight fetch is
    # amortized over several grid steps; otherwise keep the grid on one core.
    dim_sem = ("parallel",) if grid_steps >= 4 else ("arbitrary",)

    out = pl.pallas_call(
        mlp_kernel,
        out_shape=out_shape,
        grid=grid,
        in_specs=in_specs,
        out_specs=out_spec,
        cost_estimate=cost,
        compiler_params=pltpu.CompilerParams(
            dimension_semantics=dim_sem,
            vmem_limit_bytes=vmem_limit),
    )(x, w1, b1, w2, b2, w3, b3, wh, bh)

    logits = out[:B, :NUM_OUTPUTS].astype(jnp.float32)
    value = out[:B, NUM_OUTPUTS].astype(jnp.float32)
    return logits, value


# ----------------------------------------------------------------------------
# Parameter init (logical, f32) and kernel-side packing (padded, bf16)
# ----------------------------------------------------------------------------
def init_params(key, d_in=D_IN):
    """Deterministic logical parameters matching the PyTorch fc-net shapes."""
    dims = [d_in, H1, H2, H3, NUM_OUTPUTS]
    params = {}
    for i in range(len(dims) - 1):
        key, kw = jax.random.split(key)
        fan_in, fan_out = dims[i], dims[i + 1]
        params[f"w{i+1}"] = (jax.random.normal(kw, (fan_in, fan_out), jnp.float32)
                             * (2.0 / fan_in) ** 0.5)
        params[f"b{i+1}"] = jnp.zeros((1, fan_out), jnp.float32)
    key, kv = jax.random.split(key)
    params["wv"] = jax.random.normal(kv, (H3, 1), jnp.float32) * (2.0 / H3) ** 0.5
    params["bv"] = jnp.zeros((1, 1), jnp.float32)
    return params


def prep_kernel_params(p):
    """Pad to lane-aligned shapes, fuse heads, cast weights to bf16 (biases f32)."""
    # layer 1: pad output dim 1600 -> 1664 (zero cols are inert through ReLU)
    w1 = jnp.pad(p["w1"], ((0, 0), (0, H1_PAD - H1))).astype(jnp.bfloat16)
    b1 = jnp.pad(p["b1"], ((0, 0), (0, H1_PAD - H1)))                       # f32
    # layer 2: pad input dim 1600 -> 1664 with zero rows
    w2 = jnp.pad(p["w2"], ((0, H1_PAD - H1), (0, 0))).astype(jnp.bfloat16)
    b2 = p["b2"]                                                            # f32
    w3 = p["w3"].astype(jnp.bfloat16)
    b3 = p["b3"]                                                            # f32
    # fused head: [512, 7] logits | [512, 1] value -> [512, 128] lane-dense
    wh = jnp.concatenate([p["w4"], p["wv"]], axis=1)                        # [512, 8]
    wh = jnp.pad(wh, ((0, 0), (0, HEAD_PAD - wh.shape[1]))).astype(jnp.bfloat16)
    bh = jnp.concatenate([p["b4"], p["bv"]], axis=1)                        # [1, 8]
    bh = jnp.pad(bh, ((0, 0), (0, HEAD_PAD - bh.shape[1])))                 # f32
    return (w1, b1, w2, b2, w3, b3, wh, bh)


# ----------------------------------------------------------------------------
# Model forward (mirrors dev_net.forward / value_function)
# ----------------------------------------------------------------------------
def dev_net_forward(obs_nchw, kparams):
    """input_dict['obs'].float() -> (fc_out, state=[]) and value_function()."""
    obs = obs_nchw.astype(jnp.float32)                  # .float()
    B = obs.shape[0]
    x_flat = obs.reshape(B, -1)                         # flatten NCHW (glue in JAX)
    logits, value = fused_mlp(x_flat, kparams)
    return logits, [], value.reshape(-1)                # value_function(): reshape [-1]


# pure-JAX reference with the same bf16 kernel math (tight tolerance check)
def _ref_forward_bf16(x_flat, kparams):
    w1, b1, w2, b2, w3, b3, wh, bh = kparams
    x = x_flat.astype(jnp.bfloat16)
    h1 = jnp.maximum(jnp.dot(x, w1, preferred_element_type=jnp.float32) + b1, 0.0)
    h2 = jnp.maximum(jnp.dot(h1.astype(jnp.bfloat16), w2,
                             preferred_element_type=jnp.float32) + b2, 0.0)
    h3 = jnp.maximum(jnp.dot(h2.astype(jnp.bfloat16), w3,
                             preferred_element_type=jnp.float32) + b3, 0.0)
    out = jnp.dot(h3.astype(jnp.bfloat16), wh, preferred_element_type=jnp.float32) + bh
    return out[:, :NUM_OUTPUTS], out[:, NUM_OUTPUTS]


# full-precision f32 reference (the true PyTorch-equivalent math) — bounds the
# bf16 weight-quantization deviation explicitly.
def _ref_forward_f32(x_flat, p):
    h = x_flat
    for i in range(3):
        h = jnp.maximum(jnp.dot(h, p[f"w{i+1}"]) + p[f"b{i+1}"], 0.0)
    logits = jnp.dot(h, p["w4"]) + p["b4"]
    value = (jnp.dot(h, p["wv"]) + p["bv"])[:, 0]
    return logits, value


if __name__ == "__main__":
    key = jax.random.PRNGKey(0)
    k_obs, k_par = jax.random.split(key)

    # small NCHW observation consistent with the vision-style obs space: [2, 4, 16, 16]
    obs = jax.random.normal(k_obs, (2, 4, 16, 16), jnp.float32)

    params = init_params(k_par)
    kparams = prep_kernel_params(params)

    logits, state, value = dev_net_forward(obs, kparams)
    jax.block_until_ready(logits)
    jax.block_until_ready(value)

    assert logits.shape == (2, NUM_OUTPUTS)
    assert value.shape == (2,)
    assert state == []

    # tight check vs. a pure-JAX reference using identical bf16 math
    ref_logits, ref_value = _ref_forward_bf16(obs.reshape(2, -1), kparams)
    assert bool(jnp.max(jnp.abs(logits - ref_logits)) < 5e-2)
    assert bool(jnp.max(jnp.abs(value - ref_value.reshape(-1))) < 5e-2)

    # loose check vs. the full-precision f32 model (bounds bf16 quantization drift)
    f32_logits, f32_value = _ref_forward_f32(obs.reshape(2, -1), params)
    assert bool(jnp.max(jnp.abs(logits - f32_logits)) < 1.5e-1)
    assert bool(jnp.max(jnp.abs(value - f32_value.reshape(-1))) < 1.5e-1)

    print("KERNEL_OK")
</pallas_src>

<mosaic_0001>
module attributes {stable_mosaic.version = 11 : i64} {
  func.func @mlp_kernel(%arg0: i32, %arg1: memref<16x1024xf32, #tpu.memory_space<vmem>>, %arg2: memref<1024x1664xbf16, #tpu.memory_space<vmem>>, %arg3: memref<1x1664xf32, #tpu.memory_space<vmem>>, %arg4: memref<1664x512xbf16, #tpu.memory_space<vmem>>, %arg5: memref<1x512xf32, #tpu.memory_space<vmem>>, %arg6: memref<512x512xbf16, #tpu.memory_space<vmem>>, %arg7: memref<1x512xf32, #tpu.memory_space<vmem>>, %arg8: memref<512x128xbf16, #tpu.memory_space<vmem>>, %arg9: memref<1x128xf32, #tpu.memory_space<vmem>>, %arg10: memref<16x128xbf16, #tpu.memory_space<vmem>>) attributes {dimension_semantics = [#tpu.dimension_semantics<arbitrary>], iteration_bounds = array<i64: 1>, scalar_prefetch = 0 : i64, scratch_operands = 0 : i64, tpu.core_type = #tpu.core_type<tc>, window_params = [{transform_indices = @transform_0, window_bounds = array<i64: 16, 1024>}, {pipeline_mode = #tpu.pipeline_mode<synchronous>, transform_indices = @transform_1, window_bounds = array<i64: 1024, 1664>}, {pipeline_mode = #tpu.pipeline_mode<synchronous>, transform_indices = @transform_2, window_bounds = array<i64: 1, 1664>}, {pipeline_mode = #tpu.pipeline_mode<synchronous>, transform_indices = @transform_3, window_bounds = array<i64: 1664, 512>}, {pipeline_mode = #tpu.pipeline_mode<synchronous>, transform_indices = @transform_4, window_bounds = array<i64: 1, 512>}, {pipeline_mode = #tpu.pipeline_mode<synchronous>, transform_indices = @transform_5, window_bounds = array<i64: 512, 512>}, {pipeline_mode = #tpu.pipeline_mode<synchronous>, transform_indices = @transform_6, window_bounds = array<i64: 1, 512>}, {pipeline_mode = #tpu.pipeline_mode<synchronous>, transform_indices = @transform_7, window_bounds = array<i64: 512, 128>}, {pipeline_mode = #tpu.pipeline_mode<synchronous>, transform_indices = @transform_8, window_bounds = array<i64: 1, 128>}, {transform_indices = @transform_9, window_bounds = array<i64: 16, 128>}]} {
    %c0 = arith.constant 0 : index
    %c0_0 = arith.constant 0 : index
    %0 = vector.load %arg1[%c0, %c0_0] : memref<16x1024xf32, #tpu.memory_space<vmem>>, vector<16x1024xf32>
    %1 = arith.truncf %0 : vector<16x1024xf32> to vector<16x1024xbf16>
    %c0_1 = arith.constant 0 : index
    %c0_2 = arith.constant 0 : index
    %2 = vector.load %arg2[%c0_1, %c0_2] : memref<1024x1664xbf16, #tpu.memory_space<vmem>>, vector<1024x1664xbf16>
    %cst = arith.constant dense<0.000000e+00> : vector<16x1664xf32>
    %3 = tpu.matmul %1, %2, %cst {dimension_numbers = #tpu.dot_dimension_numbers<[1], [0], [0], [1], [0, 0, 1, 1], [], []>} : vector<16x1024xbf16>, vector<1024x1664xbf16>, vector<16x1664xf32> -> vector<16x1664xf32>
    %c0_3 = arith.constant 0 : index
    %c0_4 = arith.constant 0 : index
    %4 = vector.load %arg3[%c0_3, %c0_4] : memref<1x1664xf32, #tpu.memory_space<vmem>>, vector<1x1664xf32>
    %5 = vector.broadcast %4 : vector<1x1664xf32> to vector<16x1664xf32>
    %6 = arith.addf %3, %5 : vector<16x1664xf32>
    %cst_5 = arith.constant 0.000000e+00 : f32
    %7 = vector.broadcast %cst_5 : f32 to vector<16x1664xf32>
    %8 = arith.maximumf %6, %7 : vector<16x1664xf32>
    %9 = arith.truncf %8 : vector<16x1664xf32> to vector<16x1664xbf16>
    %c0_6 = arith.constant 0 : index
    %c0_7 = arith.constant 0 : index
    %10 = vector.load %arg4[%c0_6, %c0_7] : memref<1664x512xbf16, #tpu.memory_space<vmem>>, vector<1664x512xbf16>
    %cst_8 = arith.constant dense<0.000000e+00> : vector<16x512xf32>
    %11 = tpu.matmul %9, %10, %cst_8 {dimension_numbers = #tpu.dot_dimension_numbers<[1], [0], [0], [1], [0, 0, 1, 1], [], []>} : vector<16x1664xbf16>, vector<1664x512xbf16>, vector<16x512xf32> -> vector<16x512xf32>
    %c0_9 = arith.constant 0 : index
    %c0_10 = arith.constant 0 : index
    %12 = vector.load %arg5[%c0_9, %c0_10] : memref<1x512xf32, #tpu.memory_space<vmem>>, vector<1x512xf32>
    %13 = vector.broadcast %12 : vector<1x512xf32> to vector<16x512xf32>
    %14 = arith.addf %11, %13 : vector<16x512xf32>
    %cst_11 = arith.constant 0.000000e+00 : f32
    %15 = vector.broadcast %cst_11 : f32 to vector<16x512xf32>
    %16 = arith.maximumf %14, %15 : vector<16x512xf32>
    %17 = arith.truncf %16 : vector<16x512xf32> to vector<16x512xbf16>
    %c0_12 = arith.constant 0 : index
    %c0_13 = arith.constant 0 : index
    %18 = vector.load %arg6[%c0_12, %c0_13] : memref<512x512xbf16, #tpu.memory_space<vmem>>, vector<512x512xbf16>
    %cst_14 = arith.constant dense<0.000000e+00> : vector<16x512xf32>
    %19 = tpu.matmul %17, %18, %cst_14 {dimension_numbers = #tpu.dot_dimension_numbers<[1], [0], [0], [1], [0, 0, 1, 1], [], []>} : vector<16x512xbf16>, vector<512x512xbf16>, vector<16x512xf32> -> vector<16x512xf32>
    %c0_15 = arith.constant 0 : index
    %c0_16 = arith.constant 0 : index
    %20 = vector.load %arg7[%c0_15, %c0_16] : memref<1x512xf32, #tpu.memory_space<vmem>>, vector<1x512xf32>
    %21 = vector.broadcast %20 : vector<1x512xf32> to vector<16x512xf32>
    %22 = arith.addf %19, %21 : vector<16x512xf32>
    %cst_17 = arith.constant 0.000000e+00 : f32
    %23 = vector.broadcast %cst_17 : f32 to vector<16x512xf32>
    %24 = arith.maximumf %22, %23 : vector<16x512xf32>
    %25 = arith.truncf %24 : vector<16x512xf32> to vector<16x512xbf16>
    %c0_18 = arith.constant 0 : index
    %c0_19 = arith.constant 0 : index
    %26 = vector.load %arg8[%c0_18, %c0_19] : memref<512x128xbf16, #tpu.memory_space<vmem>>, vector<512x128xbf16>
    %cst_20 = arith.constant dense<0.000000e+00> : vector<16x128xf32>
    %27 = tpu.matmul %25, %26, %cst_20 {dimension_numbers = #tpu.dot_dimension_numbers<[1], [0], [0], [1], [0, 0, 1, 1], [], []>} : vector<16x512xbf16>, vector<512x128xbf16>, vector<16x128xf32> -> vector<16x128xf32>
    %c0_21 = arith.constant 0 : index
    %c0_22 = arith.constant 0 : index
    %28 = vector.load %arg9[%c0_21, %c0_22] : memref<1x128xf32, #tpu.memory_space<vmem>>, vector<1x128xf32>
    %29 = vector.broadcast %28 : vector<1x128xf32> to vector<16x128xf32>
    %30 = arith.addf %27, %29 : vector<16x128xf32>
    %31 = arith.truncf %30 : vector<16x128xf32> to vector<16x128xbf16>
    %c0_23 = arith.constant 0 : index
    %c0_24 = arith.constant 0 : index
    %32 = vector.load %arg10[%c0_23, %c0_24] : memref<16x128xbf16, #tpu.memory_space<vmem>>, vector<16x128xbf16>
    tpu.vector_store %arg10[%c0_23, %c0_24], %31 {strides = array<i32>} : memref<16x128xbf16, #tpu.memory_space<vmem>>, vector<16x128xbf16>,
    return
  }
  func.func @transform_0(%arg0: i32) -> (i32, i32) {
    %c0_i32 = arith.constant 0 : i32
    %c0_i32_0 = arith.constant 0 : i32
    return %arg0, %c0_i32 : i32, i32
  }
  func.func @transform_1(%arg0: i32) -> (i32, i32) {
    %c0_i32 = arith.constant 0 : i32
    %c0_i32_0 = arith.constant 0 : i32
    %c0_i32_1 = arith.constant 0 : i32
    return %c0_i32, %c0_i32_0 : i32, i32
  }
  func.func @transform_2(%arg0: i32) -> (i32, i32) {
    %c0_i32 = arith.constant 0 : i32
    %c0_i32_0 = arith.constant 0 : i32
    %c0_i32_1 = arith.constant 0 : i32
    return %c0_i32, %c0_i32_0 : i32, i32
  }
  func.func @transform_3(%arg0: i32) -> (i32, i32) {
    %c0_i32 = arith.constant 0 : i32
    %c0_i32_0 = arith.constant 0 : i32
    %c0_i32_1 = arith.constant 0 : i32
    return %c0_i32, %c0_i32_0 : i32, i32
  }
  func.func @transform_4(%arg0: i32) -> (i32, i32) {
    %c0_i32 = arith.constant 0 : i32
    %c0_i32_0 = arith.constant 0 : i32
    %c0_i32_1 = arith.constant 0 : i32
    return %c0_i32, %c0_i32_0 : i32, i32
  }
  func.func @transform_5(%arg0: i32) -> (i32, i32) {
    %c0_i32 = arith.constant 0 : i32
    %c0_i32_0 = arith.constant 0 : i32
    %c0_i32_1 = arith.constant 0 : i32
    return %c0_i32, %c0_i32_0 : i32, i32
  }
  func.func @transform_6(%arg0: i32) -> (i32, i32) {
    %c0_i32 = arith.constant 0 : i32
    %c0_i32_0 = arith.constant 0 : i32
    %c0_i32_1 = arith.constant 0 : i32
    return %c0_i32, %c0_i32_0 : i32, i32
  }
  func.func @transform_7(%arg0: i32) -> (i32, i32) {
    %c0_i32 = arith.constant 0 : i32
    %c0_i32_0 = arith.constant 0 : i32
    %c0_i32_1 = arith.constant 0 : i32
    return %c0_i32, %c0_i32_0 : i32, i32
  }
  func.func @transform_8(%arg0: i32) -> (i32, i32) {
    %c0_i32 = arith.constant 0 : i32
    %c0_i32_0 = arith.constant 0 : i32
    %c0_i32_1 = arith.constant 0 : i32
    return %c0_i32, %c0_i32_0 : i32, i32
  }
  func.func @transform_9(%arg0: i32) -> (i32, i32) {
    %c0_i32 = arith.constant 0 : i32
    %c0_i32_0 = arith.constant 0 : i32
    return %arg0, %c0_i32 : i32, i32
  }
}

</mosaic_0001>

<llo_original>
// kernel: tpu_custom_call.1
$region0: #{tpu_custom_call.1}
  #allocation0 [shape = 'u32[]', space=smem, size = 0x4, offset = 0x4, fixed_abs, tag = 'smem constant byte address 0x4 - core index']
  #allocation1 [shape = 'u32[72,128]{1,0:T(1,128)}', space=vmem, size = 0x9000, scoped, tag = 'internal scratch']
  %s0 = inlined_call_operand.hbm [shape: f32[16,1024], index: 0, kind: input, shape index: {}]
  %s1 = inlined_call_operand.hbm [shape: bf16[1024,1664], index: 1, kind: input, shape index: {}]
  %s2 = inlined_call_operand.hbm [shape: f32[1,1664], index: 2, kind: input, shape index: {}]
  %s3 = inlined_call_operand.hbm [shape: bf16[1664,512], index: 3, kind: input, shape index: {}]
  %s4 = inlined_call_operand.hbm [shape: f32[1,512], index: 4, kind: input, shape index: {}]
  %s5 = inlined_call_operand.hbm [shape: bf16[512,512], index: 5, kind: input, shape index: {}]
  %s6 = inlined_call_operand.hbm [shape: f32[1,512], index: 6, kind: input, shape index: {}]
  %s7 = inlined_call_operand.hbm [shape: bf16[512,128], index: 7, kind: input, shape index: {}]
  %s8 = inlined_call_operand.hbm [shape: f32[1,128], index: 8, kind: input, shape index: {}]
  %s9 = inlined_call_operand.hbm [shape: bf16[16,128], index: 9, kind: output, shape index: {}]
  %s10 = sld [smem:[#allocation0]]
  $region82: #{tpu_custom_call.1} parent=0
    _
  %s12 = ssub.s32 1, %s10
  %s13 = scalar_select 0, %s12, %s10
  $region1: #{tpu_custom_call.1} parent=0
    #allocation2 [shape = 'u8[65536]{0}', space=vmem, size = 0x10000, scoped, tag = 'input window, operand 0, single buffered']
    #allocation3 [shape = 's32[1]{0}', space=sflag, size = 0x4, scoped, tag = 'scoped memory for tpu_custom_call.1']
    #allocation4 [shape = 's32[1]{0}', space=sflag, size = 0x4, scoped, tag = 'scoped memory for tpu_custom_call.1']
    #allocation5 [shape = 'u8[3407872]{0}', space=vmem, size = 0x340000, scoped, tag = 'input window, operand 1, single buffered']
    #allocation6 [shape = 's32[1]{0}', space=sflag, size = 0x4, scoped, tag = 'scoped memory for tpu_custom_call.1']
    #allocation7 [shape = 'u8[6656]{0}', space=vmem, size = 0x1c00, scoped, tag = 'input window, operand 2, single buffered']
    #allocation8 [shape = 'u8[1703936]{0}', space=vmem, size = 0x1a0000, scoped, tag = 'input window, operand 3, single buffered']
    #allocation9 [shape = 's32[1]{0}', space=sflag, size = 0x4, scoped, tag = 'scoped memory for tpu_custom_call.1']
    #allocation10 [shape = 'u8[2048]{0}', space=vmem, size = 0x800, scoped, tag = 'input window, operand 4, single buffered']
    #allocation11 [shape = 'u8[524288]{0}', space=vmem, size = 0x80000, scoped, tag = 'input window, operand 5, single buffered']
    #allocation12 [shape = 's32[1]{0}', space=sflag, size = 0x4, scoped, tag = 'scoped memory for tpu_custom_call.1']
    #allocation13 [shape = 'u8[2048]{0}', space=vmem, size = 0x800, scoped, tag = 'input window, operand 6, single buffered']
    #allocation14 [shape = 'u8[131072]{0}', space=vmem, size = 0x20000, scoped, tag = 'input window, operand 7, single buffered']
    #allocation15 [shape = 's32[1]{0}', space=sflag, size = 0x4, scoped, tag = 'scoped memory for tpu_custom_call.1']
    #allocation16 [shape = 'u8[512]{0}', space=vmem, size = 0x400, scoped, tag = 'input window, operand 8, single buffered']
    #allocation17 [shape = 'u8[4096]{0}', space=vmem, size = 0x1000, scoped, tag = 'output window, operand 0, single buffered']
    %14 = vsyncpa [#allocation3], 0
    %15 = vsyncpa [#allocation6], 0
    %16 = vsyncpa [#allocation9], 0
    %17 = vsyncpa [#allocation12], 0
    %18 = vsyncpa [#allocation15], 0
    %19 = vsyncpa [#allocation4], 0
    // Predicated region
    $region2: #{tpu_custom_call.1} parent=1 // pred_check
      _
    $region3: #{tpu_custom_call.1} parent=1 // pred_check_branch
      %21 = sbr.rel (0) target = $region5
    $region4: #{tpu_custom_call.1} parent=1 // pred_region
      %23 = vsyncadd [#allocation3], 0
      %s24 = sshll.u32 %s0, 4
      %s25 = int_to_ptr.hbm [resolvable:$true] %s24
      %s26 = sshll.u32 [#allocation2], 4
      %s27 = int_to_ptr.vmem [resolvable:$true] %s26
      %32 = dma.hbm_to_vmem [thread:$0]  %s25, 2048, %s27, [#allocation3], 1024, 1024, 64
    $region5: #{tpu_custom_call.1} parent=1 // pred_fallthru
      _
    // Predicated region
    $region6: #{tpu_custom_call.1} parent=1 // pred_check
      _
    $region7: #{tpu_custom_call.1} parent=1 // pred_check_branch
      %34 = sbr.rel (0) target = $region9
    $region8: #{tpu_custom_call.1} parent=1 // pred_region
      %36 = vsyncadd [#allocation6], 0
      %s37 = sshll.u32 %s1, 4
      %s38 = int_to_ptr.hbm [resolvable:$true] %s37
      %s39 = sshll.u32 [#allocation5], 4
      %s40 = int_to_ptr.vmem [resolvable:$true] %s39
      %45 = dma.hbm_to_vmem [thread:$0]  %s38, 106496, %s40, [#allocation6], 832, 832, 52
    $region9: #{tpu_custom_call.1} parent=1 // pred_fallthru
      _
    // Predicated region
    $region10: #{tpu_custom_call.1} parent=1 // pred_check
      _
    $region11: #{tpu_custom_call.1} parent=1 // pred_check_branch
      %47 = sbr.rel (0) target = $region13
    $region12: #{tpu_custom_call.1} parent=1 // pred_region
      %49 = vsyncadd [#allocation6], 0
      %s51 = sshll.u32 %s2, 4
      %s52 = int_to_ptr.hbm [resolvable:$true] %s51
      %s53 = sshll.u32 [#allocation7], 4
      %s54 = int_to_ptr.vmem [resolvable:$true] %s53
      %56 = dma.hbm_to_vmem [thread:$0]  %s52, 208, %s54, [#allocation6]
    $region13: #{tpu_custom_call.1} parent=1 // pred_fallthru
      _
    // Predicated region
    $region14: #{tpu_custom_call.1} parent=1 // pred_check
      _
    $region15: #{tpu_custom_call.1} parent=1 // pred_check_branch
      %58 = sbr.rel (0) target = $region17
    $region16: #{tpu_custom_call.1} parent=1 // pred_region
      %60 = vsyncadd [#allocation9], 0
      %s61 = sshll.u32 %s3, 4
      %s62 = int_to_ptr.hbm [resolvable:$true] %s61
      %s63 = sshll.u32 [#allocation8], 4
      %s64 = int_to_ptr.vmem [resolvable:$true] %s63
      %69 = dma.hbm_to_vmem [thread:$0]  %s62, 53248, %s64, [#allocation9], 256, 256, 16
    $region17: #{tpu_custom_call.1} parent=1 // pred_fallthru
      _
    // Predicated region
    $region18: #{tpu_custom_call.1} parent=1 // pred_check
      _
    $region19: #{tpu_custom_call.1} parent=1 // pred_check_branch
      %71 = sbr.rel (0) target = $region21
    $region20: #{tpu_custom_call.1} parent=1 // pred_region
      %73 = vsyncadd [#allocation9], 0
      %s75 = sshll.u32 %s4, 4
      %s76 = int_to_ptr.hbm [resolvable:$true] %s75
      %s77 = sshll.u32 [#allocation10], 4
      %s78 = int_to_ptr.vmem [resolvable:$true] %s77
      %80 = dma.hbm_to_vmem [thread:$0]  %s76, 64, %s78, [#allocation9]
    $region21: #{tpu_custom_call.1} parent=1 // pred_fallthru
      _
    // Predicated region
    $region22: #{tpu_custom_call.1} parent=1 // pred_check
      _
    $region23: #{tpu_custom_call.1} parent=1 // pred_check_branch
      %82 = sbr.rel (0) target = $region25
    $region24: #{tpu_custom_call.1} parent=1 // pred_region
      %84 = vsyncadd [#allocation12], 0
      %s85 = sshll.u32 %s5, 4
      %s86 = int_to_ptr.hbm [resolvable:$true] %s85
      %s87 = sshll.u32 [#allocation11], 4
      %s88 = int_to_ptr.vmem [resolvable:$true] %s87
      %93 = dma.hbm_to_vmem [thread:$0]  %s86, 16384, %s88, [#allocation12], 256, 256, 16
    $region25: #{tpu_custom_call.1} parent=1 // pred_fallthru
      _
    // Predicated region
    $region26: #{tpu_custom_call.1} parent=1 // pred_check
      _
    $region27: #{tpu_custom_call.1} parent=1 // pred_check_branch
      %95 = sbr.rel (0) target = $region29
    $region28: #{tpu_custom_call.1} parent=1 // pred_region
      %97 = vsyncadd [#allocation12], 0
      %s99 = sshll.u32 %s6, 4
      %s100 = int_to_ptr.hbm [resolvable:$true] %s99
      %s101 = sshll.u32 [#allocation13], 4
      %s102 = int_to_ptr.vmem [resolvable:$true] %s101
      %104 = dma.hbm_to_vmem [thread:$0]  %s100, 64, %s102, [#allocation12]
    $region29: #{tpu_custom_call.1} parent=1 // pred_fallthru
      _
    // Predicated region
    $region30: #{tpu_custom_call.1} parent=1 // pred_check
      _
    $region31: #{tpu_custom_call.1} parent=1 // pred_check_branch
      %106 = sbr.rel (0) target = $region33
    $region32: #{tpu_custom_call.1} parent=1 // pred_region
      %108 = vsyncadd [#allocation15], 0
      %s109 = sshll.u32 %s7, 4
      %s110 = int_to_ptr.hbm [resolvable:$true] %s109
      %s111 = sshll.u32 [#allocation14], 4
      %s112 = int_to_ptr.vmem [resolvable:$true] %s111
      %117 = dma.hbm_to_vmem [thread:$0]  %s110, 4096, %s112, [#allocation15], 64, 64, 4
    $region33: #{tpu_custom_call.1} parent=1 // pred_fallthru
      _
    // Predicated region
    $region34: #{tpu_custom_call.1} parent=1 // pred_check
      _
    $region35: #{tpu_custom_call.1} parent=1 // pred_check_branch
      %119 = sbr.rel (0) target = $region37
    $region36: #{tpu_custom_call.1} parent=1 // pred_region
      %121 = vsyncadd [#allocation15], 0
      %s123 = sshll.u32 %s8, 4
      %s124 = int_to_ptr.hbm [resolvable:$true] %s123
      %s125 = sshll.u32 [#allocation16], 4
      %s126 = int_to_ptr.vmem [resolvable:$true] %s125
      %128 = dma.hbm_to_vmem [thread:$0]  %s124, 16, %s126, [#allocation15]
    $region37: #{tpu_custom_call.1} parent=1 // pred_fallthru
      _
    // Predicated region
    $region38: #{tpu_custom_call.1} parent=1 // pred_check
      _
    $region39: #{tpu_custom_call.1} parent=1 // pred_check_branch
      %130 = sbr.rel (0) target = $region41
    $region40: #{tpu_custom_call.1} parent=1 // pred_region
      %132 = dma.done [#allocation3], 2048
    $region41: #{tpu_custom_call.1} parent=1 // pred_fallthru
      _
    // Predicated region
    $region42: #{tpu_custom_call.1} parent=1 // pred_check
      _
    $region43: #{tpu_custom_call.1} parent=1 // pred_check_branch
      %134 = sbr.rel (0) target = $region45
    $region44: #{tpu_custom_call.1} parent=1 // pred_region
      %136 = dma.done [#allocation6], 106496
    $region45: #{tpu_custom_call.1} parent=1 // pred_fallthru
      _
    // Predicated region
    $region46: #{tpu_custom_call.1} parent=1 // pred_check
      _
    $region47: #{tpu_custom_call.1} parent=1 // pred_check_branch
      %138 = sbr.rel (0) target = $region49
    $region48: #{tpu_custom_call.1} parent=1 // pred_region
      %140 = dma.done [#allocation6], 208
    $region49: #{tpu_custom_call.1} parent=1 // pred_fallthru
      _
    // Predicated region
    $region50: #{tpu_custom_call.1} parent=1 // pred_check
      _
    $region51: #{tpu_custom_call.1} parent=1 // pred_check_branch
      %142 = sbr.rel (0) target = $region53
    $region52: #{tpu_custom_call.1} parent=1 // pred_region
      %144 = dma.done [#allocation9], 53248
    $region53: #{tpu_custom_call.1} parent=1 // pred_fallthru
      _
    // Predicated region
    $region54: #{tpu_custom_call.1} parent=1 // pred_check
      _
    $region55: #{tpu_custom_call.1} parent=1 // pred_check_branch
      %146 = sbr.rel (0) target = $region57
    $region56: #{tpu_custom_call.1} parent=1 // pred_region
      %148 = dma.done [#allocation9], 64
    $region57: #{tpu_custom_call.1} parent=1 // pred_fallthru
      _
    // Predicated region
    $region58: #{tpu_custom_call.1} parent=1 // pred_check
      _
    $region59: #{tpu_custom_call.1} parent=1 // pred_check_branch
      %150 = sbr.rel (0) target = $region61
    $region60: #{tpu_custom_call.1} parent=1 // pred_region
      %152 = dma.done [#allocation12], 16384
    $region61: #{tpu_custom_call.1} parent=1 // pred_fallthru
      _
    // Predicated region
    $region62: #{tpu_custom_call.1} parent=1 // pred_check
      _
    $region63: #{tpu_custom_call.1} parent=1 // pred_check_branch
      %154 = sbr.rel (0) target = $region65
    $region64: #{tpu_custom_call.1} parent=1 // pred_region
      %156 = dma.done [#allocation12], 64
    $region65: #{tpu_custom_call.1} parent=1 // pred_fallthru
      _
    // Predicated region
    $region66: #{tpu_custom_call.1} parent=1 // pred_check
      _
    $region67: #{tpu_custom_call.1} parent=1 // pred_check_branch
      %158 = sbr.rel (0) target = $region69
    $region68: #{tpu_custom_call.1} parent=1 // pred_region
      %160 = dma.done [#allocation15], 4096
    $region69: #{tpu_custom_call.1} parent=1 // pred_fallthru
      _
    // Predicated region
    $region70: #{tpu_custom_call.1} parent=1 // pred_check
      _
    $region71: #{tpu_custom_call.1} parent=1 // pred_check_branch
      %162 = sbr.rel (0) target = $region73
    $region72: #{tpu_custom_call.1} parent=1 // pred_region
      %164 = dma.done [#allocation15], 16
    $region73: #{tpu_custom_call.1} parent=1 // pred_fallthru
      _
    %v165 = vld [vmem:[#allocation2] sm:$0xff]
    %v166 = vld [vmem:[#allocation2 + $0x8] sm:$0xff]
    %v167 = vld [vmem:[#allocation2 + $0x10] sm:$0xff]
    %v168 = vld [vmem:[#allocation2 + $0x18] sm:$0xff]
    %v169 = vld [vmem:[#allocation2 + $0x20] sm:$0xff]
    %v170 = vld [vmem:[#allocation2 + $0x28] sm:$0xff]
    %v171 = vld [vmem:[#allocation2 + $0x30] sm:$0xff]
    %v172 = vld [vmem:[#allocation2 + $0x38] sm:$0xff]
    %v173 = vld [vmem:[#allocation2 + $0x40] sm:$0xff]
    %v174 = vld [vmem:[#allocation2 + $0x48] sm:$0xff]
    %v175 = vld [vmem:[#allocation2 + $0x50] sm:$0xff]
    %v176 = vld [vmem:[#allocation2 + $0x58] sm:$0xff]
    %v177 = vld [vmem:[#allocation2 + $0x60] sm:$0xff]
    %v178 = vld [vmem:[#allocation2 + $0x68] sm:$0xff]
    %v179 = vld [vmem:[#allocation2 + $0x70] sm:$0xff]
    %v180 = vld [vmem:[#allocation2 + $0x78] sm:$0xff]
    %v181 = vpack.c.bf16 %v173, %v165
    %v182 = vpack.c.bf16 %v174, %v166
    %v183 = vpack.c.bf16 %v175, %v167
    %v184 = vpack.c.bf16 %v176, %v168
    %v185 = vpack.c.bf16 %v177, %v169
    %v186 = vpack.c.bf16 %v178, %v170
    %v187 = vpack.c.bf16 %v179, %v171
    %v188 = vpack.c.bf16 %v180, %v172
    %v189 = vld [vmem:[#allocation5] sm:$0xff]
    %v190 = vld [vmem:[#allocation5 + $0x8] sm:$0xff]
    %v191 = vld [vmem:[#allocation5 + $0x10] sm:$0xff]
    %v192 = vld [vmem:[#allocation5 + $0x18] sm:$0xff]
    %v193 = vld [vmem:[#allocation5 + $0x20] sm:$0xff]
    %v194 = vld [vmem:[#allocation5 + $0x28] sm:$0xff]
    %v195 = vld [vmem:[#allocation5 + $0x30] sm:$0xf]
    %v196 = vld [vmem:[#allocation5 + $0x34] sm:$0xff]
    %v197 = vld [vmem:[#allocation5 + $0x3c] sm:$0xff]
    %v198 = vld [vmem:[#allocation5 + $0x44] sm:$0xff]
    %v199 = vld [vmem:[#allocation5 + $0x4c] sm:$0xff]
    %v200 = vld [vmem:[#allocation5 + $0x54] sm:$0xff]
    %v201 = vld [vmem:[#allocation5 + $0x5c] sm:$0xff]
    %v202 = vld [vmem:[#allocation5 + $0x64] sm:$0xf]
    %v203 = vld [vmem:[#allocation5 + $0x68] sm:$0xff]
    %v204 = vld [vmem:[#allocation5 + $0x70] sm:$0xff]
    %v205 = vld [vmem:[#allocation5 + $0x78] sm:$0xff]
    %v206 = vld [vmem:[#allocation5 + $0x80] sm:$0xff]
    %v207 = vld [vmem:[#allocation5 + $0x88] sm:$0xff]
    %v208 = vld [vmem:[#allocation5 + $0x90] sm:$0xff]
    %v209 = vld [vmem:[#allocation5 + $0x98] sm:$0xf]
    %v210 = vld [vmem:[#allocation5 + $0x9c] sm:$0xff]
    %v211 = vld [vmem:[#allocation5 + $0xa4] sm:$0xff]
    %v212 = vld [vmem:[#allocation5 + $0xac] sm:$0xff]
    %v213 = vld [vmem:[#allocation5 + $0xb4] sm:$0xff]
    %v214 = vld [vmem:[#allocation5 + $0xbc] sm:$0xff]
    %v215 = vld [vmem:[#allocation5 + $0xc4] sm:$0xff]
    %v216 = vld [vmem:[#allocation5 + $0xcc] sm:$0xf]
    %v217 = vld [vmem:[#allocation5 + $0xd0] sm:$0xff]
    %v218 = vld [vmem:[#allocation5 + $0xd8] sm:$0xff]
    %v219 = vld [vmem:[#allocation5 + $0xe0] sm:$0xff]
    %v220 = vld [vmem:[#allocation5 + $0xe8] sm:$0xff]
    %v221 = vld [vmem:[#allocation5 + $0xf0] sm:$0xff]
    %v222 = vld [vmem:[#allocation5 + $0xf8] sm:$0xff]
    %v223 = vld [vmem:[#allocation5 + $0x100] sm:$0xf]
    %v224 = vld [vmem:[#allocation5 + $0x104] sm:$0xff]
    %v225 = vld [vmem:[#allocation5 + $0x10c] sm:$0xff]
    %v226 = vld [vmem:[#allocation5 + $0x114] sm:$0xff]
    %v227 = vld [vmem:[#allocation5 + $0x11c] sm:$0xff]
    %v228 = vld [vmem:[#allocation5 + $0x124] sm:$0xff]
    %v229 = vld [vmem:[#allocation5 + $0x12c] sm:$0xff]
    %v230 = vld [vmem:[#allocation5 + $0x134] sm:$0xf]
    %v231 = vld [vmem:[#allocation5 + $0x138] sm:$0xff]
    %v232 = vld [vmem:[#allocation5 + $0x140] sm:$0xff]
    %v233 = vld [vmem:[#allocation5 + $0x148] sm:$0xff]
    %v234 = vld [vmem:[#allocation5 + $0x150] sm:$0xff]
    %v235 = vld [vmem:[#allocation5 + $0x158] sm:$0xff]
    %v236 = vld [vmem:[#allocation5 + $0x160] sm:$0xff]
    %v237 = vld [vmem:[#allocation5 + $0x168] sm:$0xf]
    %v238 = vld [vmem:[#allocation5 + $0x16c] sm:$0xff]
    %v239 = vld [vmem:[#allocation5 + $0x174] sm:$0xff]
    %v240 = vld [vmem:[#allocation5 + $0x17c] sm:$0xff]
    %v241 = vld [vmem:[#allocation5 + $0x184] sm:$0xff]
    %v242 = vld [vmem:[#allocation5 + $0x18c] sm:$0xff]
    %v243 = vld [vmem:[#allocation5 + $0x194] sm:$0xff]
    %v244 = vld [vmem:[#allocation5 + $0x19c] sm:$0xf]
    %v245 = vld [vmem:[#allocation5 + $0x1a0] sm:$0xff]
    %v246 = vld [vmem:[#allocation5 + $0x1a8] sm:$0xff]
    %v247 = vld [vmem:[#allocation5 + $0x1b0] sm:$0xff]
    %v248 = vld [vmem:[#allocation5 + $0x1b8] sm:$0xff]
    %v249 = vld [vmem:[#allocation5 + $0x1c0] sm:$0xff]
    %v250 = vld [vmem:[#allocation5 + $0x1c8] sm:$0xff]
    %v251 = vld [vmem:[#allocation5 + $0x1d0] sm:$0xf]
    %v252 = vld [vmem:[#allocation5 + $0x1d4] sm:$0xff]
    %v253 = vld [vmem:[#allocation5 + $0x1dc] sm:$0xff]
    %v254 = vld [vmem:[#allocation5 + $0x1e4] sm:$0xff]
    %v255 = vld [vmem:[#allocation5 + $0x1ec] sm:$0xff]
    %v256 = vld [vmem:[#allocation5 + $0x1f4] sm:$0xff]
    %v257 = vld [vmem:[#allocation5 + $0x1fc] sm:$0xff]
    %v258 = vld [vmem:[#allocation5 + $0x204] sm:$0xf]
    %v259 = vld [vmem:[#allocation5 + $0x208] sm:$0xff]
    %v260 = vld [vmem:[#allocation5 + $0x210] sm:$0xff]
    %v261 = vld [vmem:[#allocation5 + $0x218] sm:$0xff]
    %v262 = vld [vmem:[#allocation5 + $0x220] sm:$0xff]
    %v263 = vld [vmem:[#allocation5 + $0x228] sm:$0xff]
    %v264 = vld [vmem:[#allocation5 + $0x230] sm:$0xff]
    %v265 = vld [vmem:[#allocation5 + $0x238] sm:$0xf]
    %v266 = vld [vmem:[#allocation5 + $0x23c] sm:$0xff]
    %v267 = vld [vmem:[#allocation5 + $0x244] sm:$0xff]
    %v268 = vld [vmem:[#allocation5 + $0x24c] sm:$0xff]
    %v269 = vld [vmem:[#allocation5 + $0x254] sm:$0xff]
    %v270 = vld [vmem:[#allocation5 + $0x25c] sm:$0xff]
    %v271 = vld [vmem:[#allocation5 + $0x264] sm:$0xff]
    %v272 = vld [vmem:[#allocation5 + $0x26c] sm:$0xf]
    %v273 = vld [vmem:[#allocation5 + $0x270] sm:$0xff]
    %v274 = vld [vmem:[#allocation5 + $0x278] sm:$0xff]
    %v275 = vld [vmem:[#allocation5 + $0x280] sm:$0xff]
    %v276 = vld [vmem:[#allocation5 + $0x288] sm:$0xff]
    %v277 = vld [vmem:[#allocation5 + $0x290] sm:$0xff]
    %v278 = vld [vmem:[#allocation5 + $0x298] sm:$0xff]
    %v279 = vld [vmem:[#allocation5 + $0x2a0] sm:$0xf]
    %v280 = vld [vmem:[#allocation5 + $0x2a4] sm:$0xff]
    %v281 = vld [vmem:[#allocation5 + $0x2ac] sm:$0xff]
    %v282 = vld [vmem:[#allocation5 + $0x2b4] sm:$0xff]
    %v283 = vld [vmem:[#allocation5 + $0x2bc] sm:$0xff]
    %v284 = vld [vmem:[#allocation5 + $0x2c4] sm:$0xff]
    %v285 = vld [vmem:[#allocation5 + $0x2cc] sm:$0xff]
    %v286 = vld [vmem:[#allocation5 + $0x2d4] sm:$0xf]
    %v287 = vld [vmem:[#allocation5 + $0x2d8] sm:$0xff]
    %v288 = vld [vmem:[#allocation5 + $0x2e0] sm:$0xff]
    %v289 = vld [vmem:[#allocation5 + $0x2e8] sm:$0xff]
    %v290 = vld [vmem:[#allocation5 + $0x2f0] sm:$0xff]
    %v291 = vld [vmem:[#allocation5 + $0x2f8] sm:$0xff]
    %v292 = vld [vmem:[#allocation5 + $0x300] sm:$0xff]
    %v293 = vld [vmem:[#allocation5 + $0x308] sm:$0xf]
    %v294 = vld [vmem:[#allocation5 + $0x30c] sm:$0xff]
    %v295 = vld [vmem:[#allocation5 + $0x314] sm:$0xff]
    %v296 = vld [vmem:[#allocation5 + $0x31c] sm:$0xff]
    %v297 = vld [vmem:[#allocation5 + $0x324] sm:$0xff]
    %v298 = vld [vmem:[#allocation5 + $0x32c] sm:$0xff]
    %v299 = vld [vmem:[#allocation5 + $0x334] sm:$0xff]
    %v300 = vld [vmem:[#allocation5 + $0x33c] sm:$0xf]
    %v301 = vld [vmem:[#allocation5 + $0x340] sm:$0xff]
    %v302 = vld [vmem:[#allocation5 + $0x348] sm:$0xff]
    %v303 = vld [vmem:[#allocation5 + $0x350] sm:$0xff]
    %v304 = vld [vmem:[#allocation5 + $0x358] sm:$0xff]
    %v305 = vld [vmem:[#allocation5 + $0x360] sm:$0xff]
    %v306 = vld [vmem:[#allocation5 + $0x368] sm:$0xff]
    %v307 = vld [vmem:[#allocation5 + $0x370] sm:$0xf]
    %v308 = vld [vmem:[#allocation5 + $0x374] sm:$0xff]
    %v309 = vld [vmem:[#allocation5 + $0x37c] sm:$0xff]
    %v310 = vld [vmem:[#allocation5 + $0x384] sm:$0xff]
    %v311 = vld [vmem:[#allocation5 + $0x38c] sm:$0xff]
    %v312 = vld [vmem:[#allocation5 + $0x394] sm:$0xff]
    %v313 = vld [vmem:[#allocation5 + $0x39c] sm:$0xff]
    %v314 = vld [vmem:[#allocation5 + $0x3a4] sm:$0xf]
    %v315 = vld [vmem:[#allocation5 + $0x3a8] sm:$0xff]
    %v316 = vld [vmem:[#allocation5 + $0x3b0] sm:$0xff]
    %v317 = vld [vmem:[#allocation5 + $0x3b8] sm:$0xff]
    %v318 = vld [vmem:[#allocation5 + $0x3c0] sm:$0xff]
    %v319 = vld [vmem:[#allocation5 + $0x3c8] sm:$0xff]
    %v320 = vld [vmem:[#allocation5 + $0x3d0] sm:$0xff]
    %v321 = vld [vmem:[#allocation5 + $0x3d8] sm:$0xf]
    %v322 = vld [vmem:[#allocation5 + $0x3dc] sm:$0xff]
    %v323 = vld [vmem:[#allocation5 + $0x3e4] sm:$0xff]
    %v324 = vld [vmem:[#allocation5 + $0x3ec] sm:$0xff]
    %v325 = vld [vmem:[#allocation5 + $0x3f4] sm:$0xff]
    %v326 = vld [vmem:[#allocation5 + $0x3fc] sm:$0xff]
    %v327 = vld [vmem:[#allocation5 + $0x404] sm:$0xff]
    %v328 = vld [vmem:[#allocation5 + $0x40c] sm:$0xf]
    %v329 = vld [vmem:[#allocation5 + $0x410] sm:$0xff]
    %v330 = vld [vmem:[#allocation5 + $0x418] sm:$0xff]
    %v331 = vld [vmem:[#allocation5 + $0x420] sm:$0xff]
    %v332 = vld [vmem:[#allocation5 + $0x428] sm:$0xff]
    %v333 = vld [vmem:[#allocation5 + $0x430] sm:$0xff]
    %v334 = vld [vmem:[#allocation5 + $0x438] sm:$0xff]
    %v335 = vld [vmem:[#allocation5 + $0x440] sm:$0xf]
    %v336 = vld [vmem:[#allocation5 + $0x444] sm:$0xff]
    %v337 = vld [vmem:[#allocation5 + $0x44c] sm:$0xff]
    %v338 = vld [vmem:[#allocation5 + $0x454] sm:$0xff]
    %v339 = vld [vmem:[#allocation5 + $0x45c] sm:$0xff]
    %v340 = vld [vmem:[#allocation5 + $0x464] sm:$0xff]
    %v341 = vld [vmem:[#allocation5 + $0x46c] sm:$0xff]
    %v342 = vld [vmem:[#allocation5 + $0x474] sm:$0xf]
    %v343 = vld [vmem:[#allocation5 + $0x478] sm:$0xff]
    %v344 = vld [vmem:[#allocation5 + $0x480] sm:$0xff]
    %v345 = vld [vmem:[#allocation5 + $0x488] sm:$0xff]
    %v346 = vld [vmem:[#allocation5 + $0x490] sm:$0xff]
    %v347 = vld [vmem:[#allocation5 + $0x498] sm:$0xff]
    %v348 = vld [vmem:[#allocation5 + $0x4a0] sm:$0xff]
    %v349 = vld [vmem:[#allocation5 + $0x4a8] sm:$0xf]
    %v350 = vld [vmem:[#allocation5 + $0x4ac] sm:$0xff]
    %v351 = vld [vmem:[#allocation5 + $0x4b4] sm:$0xff]
    %v352 = vld [vmem:[#allocation5 + $0x4bc] sm:$0xff]
    %v353 = vld [vmem:[#allocation5 + $0x4c4] sm:$0xff]
    %v354 = vld [vmem:[#allocation5 + $0x4cc] sm:$0xff]
    %v355 = vld [vmem:[#allocation5 + $0x4d4] sm:$0xff]
    %v356 = vld [vmem:[#allocation5 + $0x4dc] sm:$0xf]
    %v357 = vld [vmem:[#allocation5 + $0x4e0] sm:$0xff]
    %v358 = vld [vmem:[#allocation5 + $0x4e8] sm:$0xff]
    %v359 = vld [vmem:[#allocation5 + $0x4f0] sm:$0xff]
    %v360 = vld [vmem:[#allocation5 + $0x4f8] sm:$0xff]
    %v361 = vld [vmem:[#allocation5 + $0x500] sm:$0xff]
    %v362 = vld [vmem:[#allocation5 + $0x508] sm:$0xff]
    %v363 = vld [vmem:[#allocation5 + $0x510] sm:$0xf]
    %v364 = vld [vmem:[#allocation5 + $0x514] sm:$0xff]
    %v365 = vld [vmem:[#allocation5 + $0x51c] sm:$0xff]
    %v366 = vld [vmem:[#allocation5 + $0x524] sm:$0xff]
    %v367 = vld [vmem:[#allocation5 + $0x52c] sm:$0xff]
    %v368 = vld [vmem:[#allocation5 + $0x534] sm:$0xff]
    %v369 = vld [vmem:[#allocation5 + $0x53c] sm:$0xff]
    %v370 = vld [vmem:[#allocation5 + $0x544] sm:$0xf]
    %v371 = vld [vmem:[#allocation5 + $0x548] sm:$0xff]
    %v372 = vld [vmem:[#allocation5 + $0x550] sm:$0xff]
    %v373 = vld [vmem:[#allocation5 + $0x558] sm:$0xff]
    %v374 = vld [vmem:[#allocation5 + $0x560] sm:$0xff]
    %v375 = vld [vmem:[#allocation5 + $0x568] sm:$0xff]
    %v376 = vld [vmem:[#allocation5 + $0x570] sm:$0xff]
    %v377 = vld [vmem:[#allocation5 + $0x578] sm:$0xf]
    %v378 = vld [vmem:[#allocation5 + $0x57c] sm:$0xff]
    %v379 = vld [vmem:[#allocation5 + $0x584] sm:$0xff]
    %v380 = vld [vmem:[#allocation5 + $0x58c] sm:$0xff]
    %v381 = vld [vmem:[#allocation5 + $0x594] sm:$0xff]
    %v382 = vld [vmem:[#allocation5 + $0x59c] sm:$0xff]
    %v383 = vld [vmem:[#allocation5 + $0x5a4] sm:$0xff]
    %v384 = vld [vmem:[#allocation5 + $0x5ac] sm:$0xf]
    %v385 = vld [vmem:[#allocation5 + $0x5b0] sm:$0xff]
    %v386 = vld [vmem:[#allocation5 + $0x5b8] sm:$0xff]
    %v387 = vld [vmem:[#allocation5 + $0x5c0] sm:$0xff]
    %v388 = vld [vmem:[#allocation5 + $0x5c8] sm:$0xff]
    %v389 = vld [vmem:[#allocation5 + $0x5d0] sm:$0xff]
    %v390 = vld [vmem:[#allocation5 + $0x5d8] sm:$0xff]
    %v391 = vld [vmem:[#allocation5 + $0x5e0] sm:$0xf]
    %v392 = vld [vmem:[#allocation5 + $0x5e4] sm:$0xff]
    %v393 = vld [vmem:[#allocation5 + $0x5ec] sm:$0xff]
    %v394 = vld [vmem:[#allocation5 + $0x5f4] sm:$0xff]
    %v395 = vld [vmem:[#allocation5 + $0x5fc] sm:$0xff]
    %v396 = vld [vmem:[#allocation5 + $0x604] sm:$0xff]
    %v397 = vld [vmem:[#allocation5 + $0x60c] sm:$0xff]
    %v398 = vld [vmem:[#allocation5 + $0x614] sm:$0xf]
    %v399 = vld [vmem:[#allocation5 + $0x618] sm:$0xff]
    %v400 = vld [vmem:[#allocation5 + $0x620] sm:$0xff]
    %v401 = vld [vmem:[#allocation5 + $0x628] sm:$0xff]
    %v402 = vld [vmem:[#allocation5 + $0x630] sm:$0xff]
    %v403 = vld [vmem:[#allocation5 + $0x638] sm:$0xff]
    %v404 = vld [vmem:[#allocation5 + $0x640] sm:$0xff]
    %v405 = vld [vmem:[#allocation5 + $0x648] sm:$0xf]
    %v406 = vld [vmem:[#allocation5 + $0x64c] sm:$0xff]
    %v407 = vld [vmem:[#allocation5 + $0x654] sm:$0xff]
    %v408 = vld [vmem:[#allocation5 + $0x65c] sm:$0xff]
    %v409 = vld [vmem:[#allocation5 + $0x664] sm:$0xff]
    %v410 = vld [vmem:[#allocation5 + $0x66c] sm:$0xff]
    %v411 = vld [vmem:[#allocation5 + $0x674] sm:$0xff]
    %v412 = vld [vmem:[#allocation5 + $0x67c] sm:$0xf]
    %v413 = vld [vmem:[#allocation5 + $0x680] sm:$0xff]
    %v414 = vld [vmem:[#allocation5 + $0x688] sm:$0xff]
    %v415 = vld [vmem:[#allocation5 + $0x690] sm:$0xff]
    %v416 = vld [vmem:[#allocation5 + $0x698] sm:$0xff]
    %v417 = vld [vmem:[#allocation5 + $0x6a0] sm:$0xff]
    %v418 = vld [vmem:[#allocation5 + $0x6a8] sm:$0xff]
    %v419 = vld [vmem:[#allocation5 + $0x6b0] sm:$0xf]
    %v420 = vld [vmem:[#allocation5 + $0x6b4] sm:$0xff]
    %v421 = vld [vmem:[#allocation5 + $0x6bc] sm:$0xff]
    %v422 = vld [vmem:[#allocation5 + $0x6c4] sm:$0xff]
    %v423 = vld [vmem:[#allocation5 + $0x6cc] sm:$0xff]
    %v424 = vld [vmem:[#allocation5 + $0x6d4] sm:$0xff]
    %v425 = vld [vmem:[#allocation5 + $0x6dc] sm:$0xff]
    %v426 = vld [vmem:[#allocation5 + $0x6e4] sm:$0xf]
    %v427 = vld [vmem:[#allocation5 + $0x6e8] sm:$0xff]
    %v428 = vld [vmem:[#allocation5 + $0x6f0] sm:$0xff]
    %v429 = vld [vmem:[#allocation5 + $0x6f8] sm:$0xff]
    %v430 = vld [vmem:[#allocation5 + $0x700] sm:$0xff]
    %v431 = vld [vmem:[#allocation5 + $0x708] sm:$0xff]
    %v432 = vld [vmem:[#allocation5 + $0x710] sm:$0xff]
    %v433 = vld [vmem:[#allocation5 + $0x718] sm:$0xf]
    %v434 = vld [vmem:[#allocation5 + $0x71c] sm:$0xff]
    %v435 = vld [vmem:[#allocation5 + $0x724] sm:$0xff]
    %v436 = vld [vmem:[#allocation5 + $0x72c] sm:$0xff]
    %v437 = vld [vmem:[#allocation5 + $0x734] sm:$0xff]
    %v438 = vld [vmem:[#allocation5 + $0x73c] sm:$0xff]
    %v439 = vld [vmem:[#allocation5 + $0x744] sm:$0xff]
    %v440 = vld [vmem:[#allocation5 + $0x74c] sm:$0xf]
    %v441 = vld [vmem:[#allocation5 + $0x750] sm:$0xff]
    %v442 = vld [vmem:[#allocation5 + $0x758] sm:$0xff]
    %v443 = vld [vmem:[#allocation5 + $0x760] sm:$0xff]
    %v444 = vld [vmem:[#allocation5 + $0x768] sm:$0xff]
    %v445 = vld [vmem:[#allocation5 + $0x770] sm:$0xff]
    %v446 = vld [vmem:[#allocation5 + $0x778] sm:$0xff]
    %v447 = vld [vmem:[#allocation5 + $0x780] sm:$0xf]
    %v448 = vld [vmem:[#allocation5 + $0x784] sm:$0xff]
    %v449 = vld [vmem:[#allocation5 + $0x78c] sm:$0xff]
    %v450 = vld [vmem:[#allocation5 + $0x794] sm:$0xff]
    %v451 = vld [vmem:[#allocation5 + $0x79c] sm:$0xff]
    %v452 = vld [vmem:[#allocation5 + $0x7a4] sm:$0xff]
    %v453 = vld [vmem:[#allocation5 + $0x7ac] sm:$0xff]
    %v454 = vld [vmem:[#allocation5 + $0x7b4] sm:$0xf]
    %v455 = vld [vmem:[#allocation5 + $0x7b8] sm:$0xff]
    %v456 = vld [vmem:[#allocation5 + $0x7c0] sm:$0xff]
    %v457 = vld [vmem:[#allocation5 + $0x7c8] sm:$0xff]
    %v458 = vld [vmem:[#allocation5 + $0x7d0] sm:$0xff]
    %v459 = vld [vmem:[#allocation5 + $0x7d8] sm:$0xff]
    %v460 = vld [vmem:[#allocation5 + $0x7e0] sm:$0xff]
    %v461 = vld [vmem:[#allocation5 + $0x7e8] sm:$0xf]
    %v462 = vld [vmem:[#allocation5 + $0x7ec] sm:$0xff]
    %v463 = vld [vmem:[#allocation5 + $0x7f4] sm:$0xff]
    %v464 = vld [vmem:[#allocation5 + $0x7fc] sm:$0xff]
    %v465 = vld [vmem:[#allocation5 + $0x804] sm:$0xff]
    %v466 = vld [vmem:[#allocation5 + $0x80c] sm:$0xff]
    %v467 = vld [vmem:[#allocation5 + $0x814] sm:$0xff]
    %v468 = vld [vmem:[#allocation5 + $0x81c] sm:$0xf]
    %v469 = vld [vmem:[#allocation5 + $0x820] sm:$0xff]
    %v470 = vld [vmem:[#allocation5 + $0x828] sm:$0xff]
    %v471 = vld [vmem:[#allocation5 + $0x830] sm:$0xff]
    %v472 = vld [vmem:[#allocation5 + $0x838] sm:$0xff]
    %v473 = vld [vmem:[#allocation5 + $0x840] sm:$0xff]
    %v474 = vld [vmem:[#allocation5 + $0x848] sm:$0xff]
    %v475 = vld [vmem:[#allocation5 + $0x850] sm:$0xf]
    %v476 = vld [vmem:[#allocation5 + $0x854] sm:$0xff]
    %v477 = vld [vmem:[#allocation5 + $0x85c] sm:$0xff]
    %v478 = vld [vmem:[#allocation5 + $0x864] sm:$0xff]
    %v479 = vld [vmem:[#allocation5 + $0x86c] sm:$0xff]
    %v480 = vld [vmem:[#allocation5 + $0x874] sm:$0xff]
    %v481 = vld [vmem:[#allocation5 + $0x87c] sm:$0xff]
    %v482 = vld [vmem:[#allocation5 + $0x884] sm:$0xf]
    %v483 = vld [vmem:[#allocation5 + $0x888] sm:$0xff]
    %v484 = vld [vmem:[#allocation5 + $0x890] sm:$0xff]
    %v485 = vld [vmem:[#allocation5 + $0x898] sm:$0xff]
    %v486 = vld [vmem:[#allocation5 + $0x8a0] sm:$0xff]
    %v487 = vld [vmem:[#allocation5 + $0x8a8] sm:$0xff]
    %v488 = vld [vmem:[#allocation5 + $0x8b0] sm:$0xff]
    %v489 = vld [vmem:[#allocation5 + $0x8b8] sm:$0xf]
    %v490 = vld [vmem:[#allocation5 + $0x8bc] sm:$0xff]
    %v491 = vld [vmem:[#allocation5 + $0x8c4] sm:$0xff]
    %v492 = vld [vmem:[#allocation5 + $0x8cc] sm:$0xff]
    %v493 = vld [vmem:[#allocation5 + $0x8d4] sm:$0xff]
    %v494 = vld [vmem:[#allocation5 + $0x8dc] sm:$0xff]
    %v495 = vld [vmem:[#allocation5 + $0x8e4] sm:$0xff]
    %v496 = vld [vmem:[#allocation5 + $0x8ec] sm:$0xf]
    %v497 = vld [vmem:[#allocation5 + $0x8f0] sm:$0xff]
    %v498 = vld [vmem:[#allocation5 + $0x8f8] sm:$0xff]
    %v499 = vld [vmem:[#allocation5 + $0x900] sm:$0xff]
    %v500 = vld [vmem:[#allocation5 + $0x908] sm:$0xff]
    %v501 = vld [vmem:[#allocation5 + $0x910] sm:$0xff]
    %v502 = vld [vmem:[#allocation5 + $0x918] sm:$0xff]
    %v503 = vld [vmem:[#allocation5 + $0x920] sm:$0xf]
    %v504 = vld [vmem:[#allocation5 + $0x924] sm:$0xff]
    %v505 = vld [vmem:[#allocation5 + $0x92c] sm:$0xff]
    %v506 = vld [vmem:[#allocation5 + $0x934] sm:$0xff]
    %v507 = vld [vmem:[#allocation5 + $0x93c] sm:$0xff]
    %v508 = vld [vmem:[#allocation5 + $0x944] sm:$0xff]
    %v509 = vld [vmem:[#allocation5 + $0x94c] sm:$0xff]
    %v510 = vld [vmem:[#allocation5 + $0x954] sm:$0xf]
    %v511 = vld [vmem:[#allocation5 + $0x958] sm:$0xff]
    %v512 = vld [vmem:[#allocation5 + $0x960] sm:$0xff]
    %v513 = vld [vmem:[#allocation5 + $0x968] sm:$0xff]
    %v514 = vld [vmem:[#allocation5 + $0x970] sm:$0xff]
    %v515 = vld [vmem:[#allocation5 + $0x978] sm:$0xff]
    %v516 = vld [vmem:[#allocation5 + $0x980] sm:$0xff]
    %v517 = vld [vmem:[#allocation5 + $0x988] sm:$0xf]
    %v518 = vld [vmem:[#allocation5 + $0x98c] sm:$0xff]
    %v519 = vld [vmem:[#allocation5 + $0x994] sm:$0xff]
    %v520 = vld [vmem:[#allocation5 + $0x99c] sm:$0xff]
    %v521 = vld [vmem:[#allocation5 + $0x9a4] sm:$0xff]
    %v522 = vld [vmem:[#allocation5 + $0x9ac] sm:$0xff]
    %v523 = vld [vmem:[#allocation5 + $0x9b4] sm:$0xff]
    %v524 = vld [vmem:[#allocation5 + $0x9bc] sm:$0xf]
    %v525 = vld [vmem:[#allocation5 + $0x9c0] sm:$0xff]
    %v526 = vld [vmem:[#allocation5 + $0x9c8] sm:$0xff]
    %v527 = vld [vmem:[#allocation5 + $0x9d0] sm:$0xff]
    %v528 = vld [vmem:[#allocation5 + $0x9d8] sm:$0xff]
    %v529 = vld [vmem:[#allocation5 + $0x9e0] sm:$0xff]
    %v530 = vld [vmem:[#allocation5 + $0x9e8] sm:$0xff]
    %v531 = vld [vmem:[#allocation5 + $0x9f0] sm:$0xf]
    %v532 = vld [vmem:[#allocation5 + $0x9f4] sm:$0xff]
    %v533 = vld [vmem:[#allocation5 + $0x9fc] sm:$0xff]
    %v534 = vld [vmem:[#allocation5 + $0xa04] sm:$0xff]
    %v535 = vld [vmem:[#allocation5 + $0xa0c] sm:$0xff]
    %v536 = vld [vmem:[#allocation5 + $0xa14] sm:$0xff]
    %v537 = vld [vmem:[#allocation5 + $0xa1c] sm:$0xff]
    %v538 = vld [vmem:[#allocation5 + $0xa24] sm:$0xf]
    %v539 = vld [vmem:[#allocation5 + $0xa28] sm:$0xff]
    %v540 = vld [vmem:[#allocation5 + $0xa30] sm:$0xff]
    %v541 = vld [vmem:[#allocation5 + $0xa38] sm:$0xff]
    %v542 = vld [vmem:[#allocation5 + $0xa40] sm:$0xff]
    %v543 = vld [vmem:[#allocation5 + $0xa48] sm:$0xff]
    %v544 = vld [vmem:[#allocation5 + $0xa50] sm:$0xff]
    %v545 = vld [vmem:[#allocation5 + $0xa58] sm:$0xf]
    %v546 = vld [vmem:[#allocation5 + $0xa5c] sm:$0xff]
    %v547 = vld [vmem:[#allocation5 + $0xa64] sm:$0xff]
    %v548 = vld [vmem:[#allocation5 + $0xa6c] sm:$0xff]
    %v549 = vld [vmem:[#allocation5 + $0xa74] sm:$0xff]
    %v550 = vld [vmem:[#allocation5 + $0xa7c] sm:$0xff]
    %v551 = vld [vmem:[#allocation5 + $0xa84] sm:$0xff]
    %v552 = vld [vmem:[#allocation5 + $0xa8c] sm:$0xf]
    %v553 = vld [vmem:[#allocation5 + $0xa90] sm:$0xff]
    %v554 = vld [vmem:[#allocation5 + $0xa98] sm:$0xff]
    %v555 = vld [vmem:[#allocation5 + $0xaa0] sm:$0xff]
    %v556 = vld [vmem:[#allocation5 + $0xaa8] sm:$0xff]
    %v557 = vld [vmem:[#allocation5 + $0xab0] sm:$0xff]
    %v558 = vld [vmem:[#allocation5 + $0xab8] sm:$0xff]
    %v559 = vld [vmem:[#allocation5 + $0xac0] sm:$0xf]
    %v560 = vld [vmem:[#allocation5 + $0xac4] sm:$0xff]
    %v561 = vld [vmem:[#allocation5 + $0xacc] sm:$0xff]
    %v562 = vld [vmem:[#allocation5 + $0xad4] sm:$0xff]
    %v563 = vld [vmem:[#allocation5 + $0xadc] sm:$0xff]
    %v564 = vld [vmem:[#allocation5 + $0xae4] sm:$0xff]
    %v565 = vld [vmem:[#allocation5 + $0xaec] sm:$0xff]
    %v566 = vld [vmem:[#allocation5 + $0xaf4] sm:$0xf]
    %v567 = vld [vmem:[#allocation5 + $0xaf8] sm:$0xff]
    %v568 = vld [vmem:[#allocation5 + $0xb00] sm:$0xff]
    %v569 = vld [vmem:[#allocation5 + $0xb08] sm:$0xff]
    %v570 = vld [vmem:[#allocation5 + $0xb10] sm:$0xff]
    %v571 = vld [vmem:[#allocation5 + $0xb18] sm:$0xff]
    %v572 = vld [vmem:[#allocation5 + $0xb20] sm:$0xff]
    %v573 = vld [vmem:[#allocation5 + $0xb28] sm:$0xf]
    %v574 = vld [vmem:[#allocation5 + $0xb2c] sm:$0xff]
    %v575 = vld [vmem:[#allocation5 + $0xb34] sm:$0xff]
    %v576 = vld [vmem:[#allocation5 + $0xb3c] sm:$0xff]
    %v577 = vld [vmem:[#allocation5 + $0xb44] sm:$0xff]
    %v578 = vld [vmem:[#allocation5 + $0xb4c] sm:$0xff]
    %v579 = vld [vmem:[#allocation5 + $0xb54] sm:$0xff]
    %v580 = vld [vmem:[#allocation5 + $0xb5c] sm:$0xf]
    %v581 = vld [vmem:[#allocation5 + $0xb60] sm:$0xff]
    %v582 = vld [vmem:[#allocation5 + $0xb68] sm:$0xff]
    %v583 = vld [vmem:[#allocation5 + $0xb70] sm:$0xff]
    %v584 = vld [vmem:[#allocation5 + $0xb78] sm:$0xff]
    %v585 = vld [vmem:[#allocation5 + $0xb80] sm:$0xff]
    %v586 = vld [vmem:[#allocation5 + $0xb88] sm:$0xff]
    %v587 = vld [vmem:[#allocation5 + $0xb90] sm:$0xf]
    %v588 = vld [vmem:[#allocation5 + $0xb94] sm:$0xff]
    %v589 = vld [vmem:[#allocation5 + $0xb9c] sm:$0xff]
    %v590 = vld [vmem:[#allocation5 + $0xba4] sm:$0xff]
    %v591 = vld [vmem:[#allocation5 + $0xbac] sm:$0xff]
    %v592 = vld [vmem:[#allocation5 + $0xbb4] sm:$0xff]
    %v593 = vld [vmem:[#allocation5 + $0xbbc] sm:$0xff]
    %v594 = vld [vmem:[#allocation5 + $0xbc4] sm:$0xf]
    %v595 = vld [vmem:[#allocation5 + $0xbc8] sm:$0xff]
    %v596 = vld [vmem:[#allocation5 + $0xbd0] sm:$0xff]
    %v597 = vld [vmem:[#allocation5 + $0xbd8] sm:$0xff]
    %v598 = vld [vmem:[#allocation5 + $0xbe0] sm:$0xff]
    %v599 = vld [vmem:[#allocation5 + $0xbe8] sm:$0xff]
    %v600 = vld [vmem:[#allocation5 + $0xbf0] sm:$0xff]
    %v601 = vld [vmem:[#allocation5 + $0xbf8] sm:$0xf]
    %v602 = vld [vmem:[#allocation5 + $0xbfc] sm:$0xff]
    %v603 = vld [vmem:[#allocation5 + $0xc04] sm:$0xff]
    %v604 = vld [vmem:[#allocation5 + $0xc0c] sm:$0xff]
    %v605 = vld [vmem:[#allocation5 + $0xc14] sm:$0xff]
    %v606 = vld [vmem:[#allocation5 + $0xc1c] sm:$0xff]
    %v607 = vld [vmem:[#allocation5 + $0xc24] sm:$0xff]
    %v608 = vld [vmem:[#allocation5 + $0xc2c] sm:$0xf]
    %v609 = vld [vmem:[#allocation5 + $0xc30] sm:$0xff]
    %v610 = vld [vmem:[#allocation5 + $0xc38] sm:$0xff]
    %v611 = vld [vmem:[#allocation5 + $0xc40] sm:$0xff]
    %v612 = vld [vmem:[#allocation5 + $0xc48] sm:$0xff]
    %v613 = vld [vmem:[#allocation5 + $0xc50] sm:$0xff]
    %v614 = vld [vmem:[#allocation5 + $0xc58] sm:$0xff]
    %v615 = vld [vmem:[#allocation5 + $0xc60] sm:$0xf]
    %v616 = vld [vmem:[#allocation5 + $0xc64] sm:$0xff]
    %v617 = vld [vmem:[#allocation5 + $0xc6c] sm:$0xff]
    %v618 = vld [vmem:[#allocation5 + $0xc74] sm:$0xff]
    %v619 = vld [vmem:[#allocation5 + $0xc7c] sm:$0xff]
    %v620 = vld [vmem:[#allocation5 + $0xc84] sm:$0xff]
    %v621 = vld [vmem:[#allocation5 + $0xc8c] sm:$0xff]
    %v622 = vld [vmem:[#allocation5 + $0xc94] sm:$0xf]
    %v623 = vld [vmem:[#allocation5 + $0xc98] sm:$0xff]
    %v624 = vld [vmem:[#allocation5 + $0xca0] sm:$0xff]
    %v625 = vld [vmem:[#allocation5 + $0xca8] sm:$0xff]
    %v626 = vld [vmem:[#allocation5 + $0xcb0] sm:$0xff]
    %v627 = vld [vmem:[#allocation5 + $0xcb8] sm:$0xff]
    %v628 = vld [vmem:[#allocation5 + $0xcc0] sm:$0xff]
    %v629 = vld [vmem:[#allocation5 + $0xcc8] sm:$0xf]
    %v630 = vld [vmem:[#allocation5 + $0xccc] sm:$0xff]
    %v631 = vld [vmem:[#allocation5 + $0xcd4] sm:$0xff]
    %v632 = vld [vmem:[#allocation5 + $0xcdc] sm:$0xff]
    %v633 = vld [vmem:[#allocation5 + $0xce4] sm:$0xff]
    %v634 = vld [vmem:[#allocation5 + $0xcec] sm:$0xff]
    %v635 = vld [vmem:[#allocation5 + $0xcf4] sm:$0xff]
    %v636 = vld [vmem:[#allocation5 + $0xcfc] sm:$0xf]
    %v637 = vld [vmem:[#allocation5 + $0xd00] sm:$0xff]
    %v638 = vld [vmem:[#allocation5 + $0xd08] sm:$0xff]
    %v639 = vld [vmem:[#allocation5 + $0xd10] sm:$0xff]
    %v640 = vld [vmem:[#allocation5 + $0xd18] sm:$0xff]
    %v641 = vld [vmem:[#allocation5 + $0xd20] sm:$0xff]
    %v642 = vld [vmem:[#allocation5 + $0xd28] sm:$0xff]
    %v643 = vld [vmem:[#allocation5 + $0xd30] sm:$0xf]
    %v644 = vld [vmem:[#allocation5 + $0xd34] sm:$0xff]
    %v645 = vld [vmem:[#allocation5 + $0xd3c] sm:$0xff]
    %v646 = vld [vmem:[#allocation5 + $0xd44] sm:$0xff]
    %v647 = vld [vmem:[#allocation5 + $0xd4c] sm:$0xff]
    %v648 = vld [vmem:[#allocation5 + $0xd54] sm:$0xff]
    %v649 = vld [vmem:[#allocation5 + $0xd5c] sm:$0xff]
    %v650 = vld [vmem:[#allocation5 + $0xd64] sm:$0xf]
    %v651 = vld [vmem:[#allocation5 + $0xd68] sm:$0xff]
    %v652 = vld [vmem:[#allocation5 + $0xd70] sm:$0xff]
    %v653 = vld [vmem:[#allocation5 + $0xd78] sm:$0xff]
    %v654 = vld [vmem:[#allocation5 + $0xd80] sm:$0xff]
    %v655 = vld [vmem:[#allocation5 + $0xd88] sm:$0xff]
    %v656 = vld [vmem:[#allocation5 + $0xd90] sm:$0xff]
    %v657 = vld [vmem:[#allocation5 + $0xd98] sm:$0xf]
    %v658 = vld [vmem:[#allocation5 + $0xd9c] sm:$0xff]
    %v659 = vld [vmem:[#allocation5 + $0xda4] sm:$0xff]
    %v660 = vld [vmem:[#allocation5 + $0xdac] sm:$0xff]
    %v661 = vld [vmem:[#allocation5 + $0xdb4] sm:$0xff]
    %v662 = vld [vmem:[#allocation5 + $0xdbc] sm:$0xff]
    %v663 = vld [vmem:[#allocation5 + $0xdc4] sm:$0xff]
    %v664 = vld [vmem:[#allocation5 + $0xdcc] sm:$0xf]
    %v665 = vld [vmem:[#allocation5 + $0xdd0] sm:$0xff]
    %v666 = vld [vmem:[#allocation5 + $0xdd8] sm:$0xff]
    %v667 = vld [vmem:[#allocation5 + $0xde0] sm:$0xff]
    %v668 = vld [vmem:[#allocation5 + $0xde8] sm:$0xff]
    %v669 = vld [vmem:[#allocation5 + $0xdf0] sm:$0xff]
    %v670 = vld [vmem:[#allocation5 + $0xdf8] sm:$0xff]
    %v671 = vld [vmem:[#allocation5 + $0xe00] sm:$0xf]
    %v672 = vld [vmem:[#allocation5 + $0xe04] sm:$0xff]
    %v673 = vld [vmem:[#allocation5 + $0xe0c] sm:$0xff]
    %v674 = vld [vmem:[#allocation5 + $0xe14] sm:$0xff]
    %v675 = vld [vmem:[#allocation5 + $0xe1c] sm:$0xff]
    %v676 = vld [vmem:[#allocation5 + $0xe24] sm:$0xff]
    %v677 = vld [vmem:[#allocation5 + $0xe2c] sm:$0xff]
    %v678 = vld [vmem:[#allocation5 + $0xe34] sm:$0xf]
    %v679 = vld [vmem:[#allocation5 + $0xe38] sm:$0xff]
    %v680 = vld [vmem:[#allocation5 + $0xe40] sm:$0xff]
    %v681 = vld [vmem:[#allocation5 + $0xe48] sm:$0xff]
    %v682 = vld [vmem:[#allocation5 + $0xe50] sm:$0xff]
    %v683 = vld [vmem:[#allocation5 + $0xe58] sm:$0xff]
    %v684 = vld [vmem:[#allocation5 + $0xe60] sm:$0xff]
    %v685 = vld [vmem:[#allocation5 + $0xe68] sm:$0xf]
    %v686 = vld [vmem:[#allocation5 + $0xe6c] sm:$0xff]
    %v687 = vld [vmem:[#allocation5 + $0xe74] sm:$0xff]
    %v688 = vld [vmem:[#allocation5 + $0xe7c] sm:$0xff]
    %v689 = vld [vmem:[#allocation5 + $0xe84] sm:$0xff]
    %v690 = vld [vmem:[#allocation5 + $0xe8c] sm:$0xff]
    %v691 = vld [vmem:[#allocation5 + $0xe94] sm:$0xff]
    %v692 = vld [vmem:[#allocation5 + $0xe9c] sm:$0xf]
    %v693 = vld [vmem:[#allocation5 + $0xea0] sm:$0xff]
    %v694 = vld [vmem:[#allocation5 + $0xea8] sm:$0xff]
    %v695 = vld [vmem:[#allocation5 + $0xeb0] sm:$0xff]
    %v696 = vld [vmem:[#allocation5 + $0xeb8] sm:$0xff]
    %v697 = vld [vmem:[#allocation5 + $0xec0] sm:$0xff]
    %v698 = vld [vmem:[#allocation5 + $0xec8] sm:$0xff]
    %v699 = vld [vmem:[#allocation5 + $0xed0] sm:$0xf]
    %v700 = vld [vmem:[#allocation5 + $0xed4] sm:$0xff]
    %v701 = vld [vmem:[#allocation5 + $0xedc] sm:$0xff]
    %v702 = vld [vmem:[#allocation5 + $0xee4] sm:$0xff]
    %v703 = vld [vmem:[#allocation5 + $0xeec] sm:$0xff]
    %v704 = vld [vmem:[#allocation5 + $0xef4] sm:$0xff]
    %v705 = vld [vmem:[#allocation5 + $0xefc] sm:$0xff]
    %v706 = vld [vmem:[#allocation5 + $0xf04] sm:$0xf]
    %v707 = vld [vmem:[#allocation5 + $0xf08] sm:$0xff]
    %v708 = vld [vmem:[#allocation5 + $0xf10] sm:$0xff]
    %v709 = vld [vmem:[#allocation5 + $0xf18] sm:$0xff]
    %v710 = vld [vmem:[#allocation5 + $0xf20] sm:$0xff]
    %v711 = vld [vmem:[#allocation5 + $0xf28] sm:$0xff]
    %v712 = vld [vmem:[#allocation5 + $0xf30] sm:$0xff]
    %v713 = vld [vmem:[#allocation5 + $0xf38] sm:$0xf]
    %v714 = vld [vmem:[#allocation5 + $0xf3c] sm:$0xff]
    %v715 = vld [vmem:[#allocation5 + $0xf44] sm:$0xff]
    %v716 = vld [vmem:[#allocation5 + $0xf4c] sm:$0xff]
    %v717 = vld [vmem:[#allocation5 + $0xf54] sm:$0xff]
    %v718 = vld [vmem:[#allocation5 + $0xf5c] sm:$0xff]
    %v719 = vld [vmem:[#allocation5 + $0xf64] sm:$0xff]
    %v720 = vld [vmem:[#allocation5 + $0xf6c] sm:$0xf]
    %v721 = vld [vmem:[#allocation5 + $0xf70] sm:$0xff]
    %v722 = vld [vmem:[#allocation5 + $0xf78] sm:$0xff]
    %v723 = vld [vmem:[#allocation5 + $0xf80] sm:$0xff]
    %v724 = vld [vmem:[#allocation5 + $0xf88] sm:$0xff]
    %v725 = vld [vmem:[#allocation5 + $0xf90] sm:$0xff]
    %v726 = vld [vmem:[#allocation5 + $0xf98] sm:$0xff]
    %v727 = vld [vmem:[#allocation5 + $0xfa0] sm:$0xf]
    %v728 = vld [vmem:[#allocation5 + $0xfa4] sm:$0xff]
    %v729 = vld [vmem:[#allocation5 + $0xfac] sm:$0xff]
    %v730 = vld [vmem:[#allocation5 + $0xfb4] sm:$0xff]
    %v731 = vld [vmem:[#allocation5 + $0xfbc] sm:$0xff]
    %v732 = vld [vmem:[#allocation5 + $0xfc4] sm:$0xff]
    %v733 = vld [vmem:[#allocation5 + $0xfcc] sm:$0xff]
    %v734 = vld [vmem:[#allocation5 + $0xfd4] sm:$0xf]
    %v735 = vld [vmem:[#allocation5 + $0xfd8] sm:$0xff]
    %v736 = vld [vmem:[#allocation5 + $0xfe0] sm:$0xff]
    %v737 = vld [vmem:[#allocation5 + $0xfe8] sm:$0xff]
    %v738 = vld [vmem:[#allocation5 + $0xff0] sm:$0xff]
    %v739 = vld [vmem:[#allocation5 + $0xff8] sm:$0xff]
    %v740 = vld [vmem:[#allocation5 + $0x1000] sm:$0xff]
    %v741 = vld [vmem:[#allocation5 + $0x1008] sm:$0xf]
    %v742 = vld [vmem:[#allocation5 + $0x100c] sm:$0xff]
    %v743 = vld [vmem:[#allocation5 + $0x1014] sm:$0xff]
    %v744 = vld [vmem:[#allocation5 + $0x101c] sm:$0xff]
    %v745 = vld [vmem:[#allocation5 + $0x1024] sm:$0xff]
    %v746 = vld [vmem:[#allocation5 + $0x102c] sm:$0xff]
    %v747 = vld [vmem:[#allocation5 + $0x1034] sm:$0xff]
    %v748 = vld [vmem:[#allocation5 + $0x103c] sm:$0xf]
    %v749 = vld [vmem:[#allocation5 + $0x1040] sm:$0xff]
    %v750 = vld [vmem:[#allocation5 + $0x1048] sm:$0xff]
    %v751 = vld [vmem:[#allocation5 + $0x1050] sm:$0xff]
    %v752 = vld [vmem:[#allocation5 + $0x1058] sm:$0xff]
    %v753 = vld [vmem:[#allocation5 + $0x1060] sm:$0xff]
    %v754 = vld [vmem:[#allocation5 + $0x1068] sm:$0xff]
    %v755 = vld [vmem:[#allocation5 + $0x1070] sm:$0xf]
    %v756 = vld [vmem:[#allocation5 + $0x1074] sm:$0xff]
    %v757 = vld [vmem:[#allocation5 + $0x107c] sm:$0xff]
    %v758 = vld [vmem:[#allocation5 + $0x1084] sm:$0xff]
    %v759 = vld [vmem:[#allocation5 + $0x108c] sm:$0xff]
    %v760 = vld [vmem:[#allocation5 + $0x1094] sm:$0xff]
    %v761 = vld [vmem:[#allocation5 + $0x109c] sm:$0xff]
    %v762 = vld [vmem:[#allocation5 + $0x10a4] sm:$0xf]
    %v763 = vld [vmem:[#allocation5 + $0x10a8] sm:$0xff]
    %v764 = vld [vmem:[#allocation5 + $0x10b0] sm:$0xff]
    %v765 = vld [vmem:[#allocation5 + $0x10b8] sm:$0xff]
    %v766 = vld [vmem:[#allocation5 + $0x10c0] sm:$0xff]
    %v767 = vld [vmem:[#allocation5 + $0x10c8] sm:$0xff]
    %v768 = vld [vmem:[#allocation5 + $0x10d0] sm:$0xff]
    %v769 = vld [vmem:[#allocation5 + $0x10d8] sm:$0xf]
    %v770 = vld [vmem:[#allocation5 + $0x10dc] sm:$0xff]
    %v771 = vld [vmem:[#allocation5 + $0x10e4] sm:$0xff]
    %v772 = vld [vmem:[#allocation5 + $0x10ec] sm:$0xff]
    %v773 = vld [vmem:[#allocation5 + $0x10f4] sm:$0xff]
    %v774 = vld [vmem:[#allocation5 + $0x10fc] sm:$0xff]
    %v775 = vld [vmem:[#allocation5 + $0x1104] sm:$0xff]
    %v776 = vld [vmem:[#allocation5 + $0x110c] sm:$0xf]
    %v777 = vld [vmem:[#allocation5 + $0x1110] sm:$0xff]
    %v778 = vld [vmem:[#allocation5 + $0x1118] sm:$0xff]
    %v779 = vld [vmem:[#allocation5 + $0x1120] sm:$0xff]
    %v780 = vld [vmem:[#allocation5 + $0x1128] sm:$0xff]
    %v781 = vld [vmem:[#allocation5 + $0x1130] sm:$0xff]
    %v782 = vld [vmem:[#allocation5 + $0x1138] sm:$0xff]
    %v783 = vld [vmem:[#allocation5 + $0x1140] sm:$0xf]
    %v784 = vld [vmem:[#allocation5 + $0x1144] sm:$0xff]
    %v785 = vld [vmem:[#allocation5 + $0x114c] sm:$0xff]
    %v786 = vld [vmem:[#allocation5 + $0x1154] sm:$0xff]
    %v787 = vld [vmem:[#allocation5 + $0x115c] sm:$0xff]
    %v788 = vld [vmem:[#allocation5 + $0x1164] sm:$0xff]
    %v789 = vld [vmem:[#allocation5 + $0x116c] sm:$0xff]
    %v790 = vld [vmem:[#allocation5 + $0x1174] sm:$0xf]
    %v791 = vld [vmem:[#allocation5 + $0x1178] sm:$0xff]
    %v792 = vld [vmem:[#allocation5 + $0x1180] sm:$0xff]
    %v793 = vld [vmem:[#allocation5 + $0x1188] sm:$0xff]
    %v794 = vld [vmem:[#allocation5 + $0x1190] sm:$0xff]
    %v795 = vld [vmem:[#allocation5 + $0x1198] sm:$0xff]
    %v796 = vld [vmem:[#allocation5 + $0x11a0] sm:$0xff]
    %v797 = vld [vmem:[#allocation5 + $0x11a8] sm:$0xf]
    %v798 = vld [vmem:[#allocation5 + $0x11ac] sm:$0xff]
    %v799 = vld [vmem:[#allocation5 + $0x11b4] sm:$0xff]
    %v800 = vld [vmem:[#allocation5 + $0x11bc] sm:$0xff]
    %v801 = vld [vmem:[#allocation5 + $0x11c4] sm:$0xff]
    %v802 = vld [vmem:[#allocation5 + $0x11cc] sm:$0xff]
    %v803 = vld [vmem:[#allocation5 + $0x11d4] sm:$0xff]
    %v804 = vld [vmem:[#allocation5 + $0x11dc] sm:$0xf]
    %v805 = vld [vmem:[#allocation5 + $0x11e0] sm:$0xff]
    %v806 = vld [vmem:[#allocation5 + $0x11e8] sm:$0xff]
    %v807 = vld [vmem:[#allocation5 + $0x11f0] sm:$0xff]
    %v808 = vld [vmem:[#allocation5 + $0x11f8] sm:$0xff]
    %v809 = vld [vmem:[#allocation5 + $0x1200] sm:$0xff]
    %v810 = vld [vmem:[#allocation5 + $0x1208] sm:$0xff]
    %v811 = vld [vmem:[#allocation5 + $0x1210] sm:$0xf]
    %v812 = vld [vmem:[#allocation5 + $0x1214] sm:$0xff]
    %v813 = vld [vmem:[#allocation5 + $0x121c] sm:$0xff]
    %v814 = vld [vmem:[#allocation5 + $0x1224] sm:$0xff]
    %v815 = vld [vmem:[#allocation5 + $0x122c] sm:$0xff]
    %v816 = vld [vmem:[#allocation5 + $0x1234] sm:$0xff]
    %v817 = vld [vmem:[#allocation5 + $0x123c] sm:$0xff]
    %v818 = vld [vmem:[#allocation5 + $0x1244] sm:$0xf]
    %v819 = vld [vmem:[#allocation5 + $0x1248] sm:$0xff]
    %v820 = vld [vmem:[#allocation5 + $0x1250] sm:$0xff]
    %v821 = vld [vmem:[#allocation5 + $0x1258] sm:$0xff]
    %v822 = vld [vmem:[#allocation5 + $0x1260] sm:$0xff]
    %v823 = vld [vmem:[#allocation5 + $0x1268] sm:$0xff]
    %v824 = vld [vmem:[#allocation5 + $0x1270] sm:$0xff]
    %v825 = vld [vmem:[#allocation5 + $0x1278] sm:$0xf]
    %v826 = vld [vmem:[#allocation5 + $0x127c] sm:$0xff]
    %v827 = vld [vmem:[#allocation5 + $0x1284] sm:$0xff]
    %v828 = vld [vmem:[#allocation5 + $0x128c] sm:$0xff]
    %v829 = vld [vmem:[#allocation5 + $0x1294] sm:$0xff]
    %v830 = vld [vmem:[#allocation5 + $0x129c] sm:$0xff]
    %v831 = vld [vmem:[#allocation5 + $0x12a4] sm:$0xff]
    %v832 = vld [vmem:[#allocation5 + $0x12ac] sm:$0xf]
    %v833 = vld [vmem:[#allocation5 + $0x12b0] sm:$0xff]
    %v834 = vld [vmem:[#allocation5 + $0x12b8] sm:$0xff]
    %v835 = vld [vmem:[#allocation5 + $0x12c0] sm:$0xff]
    %v836 = vld [vmem:[#allocation5 + $0x12c8] sm:$0xff]
    %v837 = vld [vmem:[#allocation5 + $0x12d0] sm:$0xff]
    %v838 = vld [vmem:[#allocation5 + $0x12d8] sm:$0xff]
    %v839 = vld [vmem:[#allocation5 + $0x12e0] sm:$0xf]
    %v840 = vld [vmem:[#allocation5 + $0x12e4] sm:$0xff]
    %v841 = vld [vmem:[#allocation5 + $0x12ec] sm:$0xff]
    %v842 = vld [vmem:[#allocation5 + $0x12f4] sm:$0xff]
    %v843 = vld [vmem:[#allocation5 + $0x12fc] sm:$0xff]
    %v844 = vld [vmem:[#allocation5 + $0x1304] sm:$0xff]
    %v845 = vld [vmem:[#allocation5 + $0x130c] sm:$0xff]
    %v846 = vld [vmem:[#allocation5 + $0x1314] sm:$0xf]
    %v847 = vld [vmem:[#allocation5 + $0x1318] sm:$0xff]
    %v848 = vld [vmem:[#allocation5 + $0x1320] sm:$0xff]
    %v849 = vld [vmem:[#allocation5 + $0x1328] sm:$0xff]
    %v850 = vld [vmem:[#allocation5 + $0x1330] sm:$0xff]
    %v851 = vld [vmem:[#allocation5 + $0x1338] sm:$0xff]
    %v852 = vld [vmem:[#allocation5 + $0x1340] sm:$0xff]
    %v853 = vld [vmem:[#allocation5 + $0x1348] sm:$0xf]
    %v854 = vld [vmem:[#allocation5 + $0x134c] sm:$0xff]
    %v855 = vld [vmem:[#allocation5 + $0x1354] sm:$0xff]
    %v856 = vld [vmem:[#allocation5 + $0x135c] sm:$0xff]
    %v857 = vld [vmem:[#allocation5 + $0x1364] sm:$0xff]
    %v858 = vld [vmem:[#allocation5 + $0x136c] sm:$0xff]
    %v859 = vld [vmem:[#allocation5 + $0x1374] sm:$0xff]
    %v860 = vld [vmem:[#allocation5 + $0x137c] sm:$0xf]
    %v861 = vld [vmem:[#allocation5 + $0x1380] sm:$0xff]
    %v862 = vld [vmem:[#allocation5 + $0x1388] sm:$0xff]
    %v863 = vld [vmem:[#allocation5 + $0x1390] sm:$0xff]
    %v864 = vld [vmem:[#allocation5 + $0x1398] sm:$0xff]
    %v865 = vld [vmem:[#allocation5 + $0x13a0] sm:$0xff]
    %v866 = vld [vmem:[#allocation5 + $0x13a8] sm:$0xff]
    %v867 = vld [vmem:[#allocation5 + $0x13b0] sm:$0xf]
    %v868 = vld [vmem:[#allocation5 + $0x13b4] sm:$0xff]
    %v869 = vld [vmem:[#allocation5 + $0x13bc] sm:$0xff]
    %v870 = vld [vmem:[#allocation5 + $0x13c4] sm:$0xff]
    %v871 = vld [vmem:[#allocation5 + $0x13cc] sm:$0xff]
    %v872 = vld [vmem:[#allocation5 + $0x13d4] sm:$0xff]
    %v873 = vld [vmem:[#allocation5 + $0x13dc] sm:$0xff]
    %v874 = vld [vmem:[#allocation5 + $0x13e4] sm:$0xf]
    %v875 = vld [vmem:[#allocation5 + $0x13e8] sm:$0xff]
    %v876 = vld [vmem:[#allocation5 + $0x13f0] sm:$0xff]
    %v877 = vld [vmem:[#allocation5 + $0x13f8] sm:$0xff]
    %v878 = vld [vmem:[#allocation5 + $0x1400] sm:$0xff]
    %v879 = vld [vmem:[#allocation5 + $0x1408] sm:$0xff]
    %v880 = vld [vmem:[#allocation5 + $0x1410] sm:$0xff]
    %v881 = vld [vmem:[#allocation5 + $0x1418] sm:$0xf]
    %v882 = vld [vmem:[#allocation5 + $0x141c] sm:$0xff]
    %v883 = vld [vmem:[#allocation5 + $0x1424] sm:$0xff]
    %v884 = vld [vmem:[#allocation5 + $0x142c] sm:$0xff]
    %v885 = vld [vmem:[#allocation5 + $0x1434] sm:$0xff]
    %v886 = vld [vmem:[#allocation5 + $0x143c] sm:$0xff]
    %v887 = vld [vmem:[#allocation5 + $0x1444] sm:$0xff]
    %v888 = vld [vmem:[#allocation5 + $0x144c] sm:$0xf]
    %v889 = vld [vmem:[#allocation5 + $0x1450] sm:$0xff]
    %v890 = vld [vmem:[#allocation5 + $0x1458] sm:$0xff]
    %v891 = vld [vmem:[#allocation5 + $0x1460] sm:$0xff]
    %v892 = vld [vmem:[#allocation5 + $0x1468] sm:$0xff]
    %v893 = vld [vmem:[#allocation5 + $0x1470] sm:$0xff]
    %v894 = vld [vmem:[#allocation5 + $0x1478] sm:$0xff]
    %v895 = vld [vmem:[#allocation5 + $0x1480] sm:$0xf]
    %v896 = vld [vmem:[#allocation5 + $0x1484] sm:$0xff]
    %v897 = vld [vmem:[#allocation5 + $0x148c] sm:$0xff]
    %v898 = vld [vmem:[#allocation5 + $0x1494] sm:$0xff]
    %v899 = vld [vmem:[#allocation5 + $0x149c] sm:$0xff]
    %v900 = vld [vmem:[#allocation5 + $0x14a4] sm:$0xff]
    %v901 = vld [vmem:[#allocation5 + $0x14ac] sm:$0xff]
    %v902 = vld [vmem:[#allocation5 + $0x14b4] sm:$0xf]
    %v903 = vld [vmem:[#allocation5 + $0x14b8] sm:$0xff]
    %v904 = vld [vmem:[#allocation5 + $0x14c0] sm:$0xff]
    %v905 = vld [vmem:[#allocation5 + $0x14c8] sm:$0xff]
    %v906 = vld [vmem:[#allocation5 + $0x14d0] sm:$0xff]
    %v907 = vld [vmem:[#allocation5 + $0x14d8] sm:$0xff]
    %v908 = vld [vmem:[#allocation5 + $0x14e0] sm:$0xff]
    %v909 = vld [vmem:[#allocation5 + $0x14e8] sm:$0xf]
    %v910 = vld [vmem:[#allocation5 + $0x14ec] sm:$0xff]
    %v911 = vld [vmem:[#allocation5 + $0x14f4] sm:$0xff]
    %v912 = vld [vmem:[#allocation5 + $0x14fc] sm:$0xff]
    %v913 = vld [vmem:[#allocation5 + $0x1504] sm:$0xff]
    %v914 = vld [vmem:[#allocation5 + $0x150c] sm:$0xff]
    %v915 = vld [vmem:[#allocation5 + $0x1514] sm:$0xff]
    %v916 = vld [vmem:[#allocation5 + $0x151c] sm:$0xf]
    %v917 = vld [vmem:[#allocation5 + $0x1520] sm:$0xff]
    %v918 = vld [vmem:[#allocation5 + $0x1528] sm:$0xff]
    %v919 = vld [vmem:[#allocation5 + $0x1530] sm:$0xff]
    %v920 = vld [vmem:[#allocation5 + $0x1538] sm:$0xff]
    %v921 = vld [vmem:[#allocation5 + $0x1540] sm:$0xff]
    %v922 = vld [vmem:[#allocation5 + $0x1548] sm:$0xff]
    %v923 = vld [vmem:[#allocation5 + $0x1550] sm:$0xf]
    %v924 = vld [vmem:[#allocation5 + $0x1554] sm:$0xff]
    %v925 = vld [vmem:[#allocation5 + $0x155c] sm:$0xff]
    %v926 = vld [vmem:[#allocation5 + $0x1564] sm:$0xff]
    %v927 = vld [vmem:[#allocation5 + $0x156c] sm:$0xff]
    %v928 = vld [vmem:[#allocation5 + $0x1574] sm:$0xff]
    %v929 = vld [vmem:[#allocation5 + $0x157c] sm:$0xff]
    %v930 = vld [vmem:[#allocation5 + $0x1584] sm:$0xf]
    %v931 = vld [vmem:[#allocation5 + $0x1588] sm:$0xff]
    %v932 = vld [vmem:[#allocation5 + $0x1590] sm:$0xff]
    %v933 = vld [vmem:[#allocation5 + $0x1598] sm:$0xff]
    %v934 = vld [vmem:[#allocation5 + $0x15a0] sm:$0xff]
    %v935 = vld [vmem:[#allocation5 + $0x15a8] sm:$0xff]
    %v936 = vld [vmem:[#allocation5 + $0x15b0] sm:$0xff]
    %v937 = vld [vmem:[#allocation5 + $0x15b8] sm:$0xf]
    %v938 = vld [vmem:[#allocation5 + $0x15bc] sm:$0xff]
    %v939 = vld [vmem:[#allocation5 + $0x15c4] sm:$0xff]
    %v940 = vld [vmem:[#allocation5 + $0x15cc] sm:$0xff]
    %v941 = vld [vmem:[#allocation5 + $0x15d4] sm:$0xff]
    %v942 = vld [vmem:[#allocation5 + $0x15dc] sm:$0xff]
    %v943 = vld [vmem:[#allocation5 + $0x15e4] sm:$0xff]
    %v944 = vld [vmem:[#allocation5 + $0x15ec] sm:$0xf]
    %v945 = vld [vmem:[#allocation5 + $0x15f0] sm:$0xff]
    %v946 = vld [vmem:[#allocation5 + $0x15f8] sm:$0xff]
    %v947 = vld [vmem:[#allocation5 + $0x1600] sm:$0xff]
    %v948 = vld [vmem:[#allocation5 + $0x1608] sm:$0xff]
    %v949 = vld [vmem:[#allocation5 + $0x1610] sm:$0xff]
    %v950 = vld [vmem:[#allocation5 + $0x1618] sm:$0xff]
    %v951 = vld [vmem:[#allocation5 + $0x1620] sm:$0xf]
    %v952 = vld [vmem:[#allocation5 + $0x1624] sm:$0xff]
    %v953 = vld [vmem:[#allocation5 + $0x162c] sm:$0xff]
    %v954 = vld [vmem:[#allocation5 + $0x1634] sm:$0xff]
    %v955 = vld [vmem:[#allocation5 + $0x163c] sm:$0xff]
    %v956 = vld [vmem:[#allocation5 + $0x1644] sm:$0xff]
    %v957 = vld [vmem:[#allocation5 + $0x164c] sm:$0xff]
    %v958 = vld [vmem:[#allocation5 + $0x1654] sm:$0xf]
    %v959 = vld [vmem:[#allocation5 + $0x1658] sm:$0xff]
    %v960 = vld [vmem:[#allocation5 + $0x1660] sm:$0xff]
    %v961 = vld [vmem:[#allocation5 + $0x1668] sm:$0xff]
    %v962 = vld [vmem:[#allocation5 + $0x1670] sm:$0xff]
    %v963 = vld [vmem:[#allocation5 + $0x1678] sm:$0xff]
    %v964 = vld [vmem:[#allocation5 + $0x1680] sm:$0xff]
    %v965 = vld [vmem:[#allocation5 + $0x1688] sm:$0xf]
    %v966 = vld [vmem:[#allocation5 + $0x168c] sm:$0xff]
    %v967 = vld [vmem:[#allocation5 + $0x1694] sm:$0xff]
    %v968 = vld [vmem:[#allocation5 + $0x169c] sm:$0xff]
    %v969 = vld [vmem:[#allocation5 + $0x16a4] sm:$0xff]
    %v970 = vld [vmem:[#allocation5 + $0x16ac] sm:$0xff]
    %v971 = vld [vmem:[#allocation5 + $0x16b4] sm:$0xff]
    %v972 = vld [vmem:[#allocation5 + $0x16bc] sm:$0xf]
    %v973 = vld [vmem:[#allocation5 + $0x16c0] sm:$0xff]
    %v974 = vld [vmem:[#allocation5 + $0x16c8] sm:$0xff]
    %v975 = vld [vmem:[#allocation5 + $0x16d0] sm:$0xff]
    %v976 = vld [vmem:[#allocation5 + $0x16d8] sm:$0xff]
    %v977 = vld [vmem:[#allocation5 + $0x16e0] sm:$0xff]
    %v978 = vld [vmem:[#allocation5 + $0x16e8] sm:$0xff]
    %v979 = vld [vmem:[#allocation5 + $0x16f0] sm:$0xf]
    %v980 = vld [vmem:[#allocation5 + $0x16f4] sm:$0xff]
    %v981 = vld [vmem:[#allocation5 + $0x16fc] sm:$0xff]
    %v982 = vld [vmem:[#allocation5 + $0x1704] sm:$0xff]
    %v983 = vld [vmem:[#allocation5 + $0x170c] sm:$0xff]
    %v984 = vld [vmem:[#allocation5 + $0x1714] sm:$0xff]
    %v985 = vld [vmem:[#allocation5 + $0x171c] sm:$0xff]
    %v986 = vld [vmem:[#allocation5 + $0x1724] sm:$0xf]
    %v987 = vld [vmem:[#allocation5 + $0x1728] sm:$0xff]
    %v988 = vld [vmem:[#allocation5 + $0x1730] sm:$0xff]
    %v989 = vld [vmem:[#allocation5 + $0x1738] sm:$0xff]
    %v990 = vld [vmem:[#allocation5 + $0x1740] sm:$0xff]
    %v991 = vld [vmem:[#allocation5 + $0x1748] sm:$0xff]
    %v992 = vld [vmem:[#allocation5 + $0x1750] sm:$0xff]
    %v993 = vld [vmem:[#allocation5 + $0x1758] sm:$0xf]
    %v994 = vld [vmem:[#allocation5 + $0x175c] sm:$0xff]
    %v995 = vld [vmem:[#allocation5 + $0x1764] sm:$0xff]
    %v996 = vld [vmem:[#allocation5 + $0x176c] sm:$0xff]
    %v997 = vld [vmem:[#allocation5 + $0x1774] sm:$0xff]
    %v998 = vld [vmem:[#allocation5 + $0x177c] sm:$0xff]
    %v999 = vld [vmem:[#allocation5 + $0x1784] sm:$0xff]
    %v1000 = vld [vmem:[#allocation5 + $0x178c] sm:$0xf]
    %v1001 = vld [vmem:[#allocation5 + $0x1790] sm:$0xff]
    %v1002 = vld [vmem:[#allocation5 + $0x1798] sm:$0xff]
    %v1003 = vld [vmem:[#allocation5 + $0x17a0] sm:$0xff]
    %v1004 = vld [vmem:[#allocation5 + $0x17a8] sm:$0xff]
    %v1005 = vld [vmem:[#allocation5 + $0x17b0] sm:$0xff]
    %v1006 = vld [vmem:[#allocation5 + $0x17b8] sm:$0xff]
    %v1007 = vld [vmem:[#allocation5 + $0x17c0] sm:$0xf]
    %v1008 = vld [vmem:[#allocation5 + $0x17c4] sm:$0xff]
    %v1009 = vld [vmem:[#allocation5 + $0x17cc] sm:$0xff]
    %v1010 = vld [vmem:[#allocation5 + $0x17d4] sm:$0xff]
    %v1011 = vld [vmem:[#allocation5 + $0x17dc] sm:$0xff]
    %v1012 = vld [vmem:[#allocation5 + $0x17e4] sm:$0xff]
    %v1013 = vld [vmem:[#allocation5 + $0x17ec] sm:$0xff]
    %v1014 = vld [vmem:[#allocation5 + $0x17f4] sm:$0xf]
    %v1015 = vld [vmem:[#allocation5 + $0x17f8] sm:$0xff]
    %v1016 = vld [vmem:[#allocation5 + $0x1800] sm:$0xff]
    %v1017 = vld [vmem:[#allocation5 + $0x1808] sm:$0xff]
    %v1018 = vld [vmem:[#allocation5 + $0x1810] sm:$0xff]
    %v1019 = vld [vmem:[#allocation5 + $0x1818] sm:$0xff]
    %v1020 = vld [vmem:[#allocation5 + $0x1820] sm:$0xff]
    %v1021 = vld [vmem:[#allocation5 + $0x1828] sm:$0xf]
    %v1022 = vld [vmem:[#allocation5 + $0x182c] sm:$0xff]
    %v1023 = vld [vmem:[#allocation5 + $0x1834] sm:$0xff]
    %v1024 = vld [vmem:[#allocation5 + $0x183c] sm:$0xff]
    %v1025 = vld [vmem:[#allocation5 + $0x1844] sm:$0xff]
    %v1026 = vld [vmem:[#allocation5 + $0x184c] sm:$0xff]
    %v1027 = vld [vmem:[#allocation5 + $0x1854] sm:$0xff]
    %v1028 = vld [vmem:[#allocation5 + $0x185c] sm:$0xf]
    %v1029 = vld [vmem:[#allocation5 + $0x1860] sm:$0xff]
    %v1030 = vld [vmem:[#allocation5 + $0x1868] sm:$0xff]
    %v1031 = vld [vmem:[#allocation5 + $0x1870] sm:$0xff]
    %v1032 = vld [vmem:[#allocation5 + $0x1878] sm:$0xff]
    %v1033 = vld [vmem:[#allocation5 + $0x1880] sm:$0xff]
    %v1034 = vld [vmem:[#allocation5 + $0x1888] sm:$0xff]
    %v1035 = vld [vmem:[#allocation5 + $0x1890] sm:$0xf]
    %v1036 = vld [vmem:[#allocation5 + $0x1894] sm:$0xff]
    %v1037 = vld [vmem:[#allocation5 + $0x189c] sm:$0xff]
    %v1038 = vld [vmem:[#allocation5 + $0x18a4] sm:$0xff]
    %v1039 = vld [vmem:[#allocation5 + $0x18ac] sm:$0xff]
    %v1040 = vld [vmem:[#allocation5 + $0x18b4] sm:$0xff]
    %v1041 = vld [vmem:[#allocation5 + $0x18bc] sm:$0xff]
    %v1042 = vld [vmem:[#allocation5 + $0x18c4] sm:$0xf]
    %v1043 = vld [vmem:[#allocation5 + $0x18c8] sm:$0xff]
    %v1044 = vld [vmem:[#allocation5 + $0x18d0] sm:$0xff]
    %v1045 = vld [vmem:[#allocation5 + $0x18d8] sm:$0xff]
    %v1046 = vld [vmem:[#allocation5 + $0x18e0] sm:$0xff]
    %v1047 = vld [vmem:[#allocation5 + $0x18e8] sm:$0xff]
    %v1048 = vld [vmem:[#allocation5 + $0x18f0] sm:$0xff]
    %v1049 = vld [vmem:[#allocation5 + $0x18f8] sm:$0xf]
    %v1050 = vld [vmem:[#allocation5 + $0x18fc] sm:$0xff]
    %v1051 = vld [vmem:[#allocation5 + $0x1904] sm:$0xff]
    %v1052 = vld [vmem:[#allocation5 + $0x190c] sm:$0xff]
    %v1053 = vld [vmem:[#allocation5 + $0x1914] sm:$0xff]
    %v1054 = vld [vmem:[#allocation5 + $0x191c] sm:$0xff]
    %v1055 = vld [vmem:[#allocation5 + $0x1924] sm:$0xff]
    %v1056 = vld [vmem:[#allocation5 + $0x192c] sm:$0xf]
    %v1057 = vld [vmem:[#allocation5 + $0x1930] sm:$0xff]
    %v1058 = vld [vmem:[#allocation5 + $0x1938] sm:$0xff]
    %v1059 = vld [vmem:[#allocation5 + $0x1940] sm:$0xff]
    %v1060 = vld [vmem:[#allocation5 + $0x1948] sm:$0xff]
    %v1061 = vld [vmem:[#allocation5 + $0x1950] sm:$0xff]
    %v1062 = vld [vmem:[#allocation5 + $0x1958] sm:$0xff]
    %v1063 = vld [vmem:[#allocation5 + $0x1960] sm:$0xf]
    %v1064 = vld [vmem:[#allocation5 + $0x1964] sm:$0xff]
    %v1065 = vld [vmem:[#allocation5 + $0x196c] sm:$0xff]
    %v1066 = vld [vmem:[#allocation5 + $0x1974] sm:$0xff]
    %v1067 = vld [vmem:[#allocation5 + $0x197c] sm:$0xff]
    %v1068 = vld [vmem:[#allocation5 + $0x1984] sm:$0xff]
    %v1069 = vld [vmem:[#allocation5 + $0x198c] sm:$0xff]
    %v1070 = vld [vmem:[#allocation5 + $0x1994] sm:$0xf]
    %v1071 = vld [vmem:[#allocation5 + $0x1998] sm:$0xff]
    %v1072 = vld [vmem:[#allocation5 + $0x19a0] sm:$0xff]
    %v1073 = vld [vmem:[#allocation5 + $0x19a8] sm:$0xff]
    %v1074 = vld [vmem:[#allocation5 + $0x19b0] sm:$0xff]
    %v1075 = vld [vmem:[#allocation5 + $0x19b8] sm:$0xff]
    %v1076 = vld [vmem:[#allocation5 + $0x19c0] sm:$0xff]
    %v1077 = vld [vmem:[#allocation5 + $0x19c8] sm:$0xf]
    %v1078 = vld [vmem:[#allocation5 + $0x19cc] sm:$0xff]
    %v1079 = vld [vmem:[#allocation5 + $0x19d4] sm:$0xff]
    %v1080 = vld [vmem:[#allocation5 + $0x19dc] sm:$0xff]
    %v1081 = vld [vmem:[#allocation5 + $0x19e4] sm:$0xff]
    %v1082 = vld [vmem:[#allocation5 + $0x19ec] sm:$0xff]
    %v1083 = vld [vmem:[#allocation5 + $0x19f4] sm:$0xff]
    %v1084 = vld [vmem:[#allocation5 + $0x19fc] sm:$0xf]
    %v1085 = vld [vmem:[#allocation7] sm:$0xff]
    %v1086 = vld [vmem:[#allocation7 + $0x8] sm:$0x1f]
    %v1089 = vperm.slane %v1085, 0
    %v1090 = vperm.slane %v1085, 1
    %v1091 = vperm.slane %v1085, 2
    %v1092 = vperm.slane %v1085, 3
    %v1093 = vperm.slane %v1085, 4
    %v1094 = vperm.slane %v1085, 5
    %v1095 = vperm.slane %v1085, 6
    %v1096 = vperm.slane %v1085, 7
    %v1097 = vperm.slane %v1086, 0
    %v1098 = vperm.slane %v1086, 1
    %v1099 = vperm.slane %v1086, 2
    %v1100 = vperm.slane %v1086, 3
    %v1101 = vperm.slane %v1086, 4
    %v2011 = vunpack.c.l.b16 %v189
    %v2012 = vunpack.c.h.b16 %v189
    %v2013 = vunpack.c.l.b16 %v190
    %v2014 = vunpack.c.h.b16 %v190
    %v2015 = vunpack.c.l.b16 %v191
    %v2016 = vunpack.c.h.b16 %v191
    %v2017 = vunpack.c.l.b16 %v192
    %v2018 = vunpack.c.h.b16 %v192
    %v2019 = vunpack.c.l.b16 %v193
    %v2020 = vunpack.c.h.b16 %v193
    %v2021 = vunpack.c.l.b16 %v194
    %v2022 = vunpack.c.h.b16 %v194
    %v2023 = vunpack.c.l.b16 %v195
    %v2024 = vunpack.c.l.b16 %v196
    %v2025 = vunpack.c.h.b16 %v196
    %v2026 = vunpack.c.l.b16 %v197
    %v2027 = vunpack.c.h.b16 %v197
    %v2028 = vunpack.c.l.b16 %v198
    %v2029 = vunpack.c.h.b16 %v198
    %v2030 = vunpack.c.l.b16 %v199
    %v2031 = vunpack.c.h.b16 %v199
    %v2032 = vunpack.c.l.b16 %v200
    %v2033 = vunpack.c.h.b16 %v200
    %v2034 = vunpack.c.l.b16 %v201
    %v2035 = vunpack.c.h.b16 %v201
    %v2036 = vunpack.c.l.b16 %v202
    %v2037 = vunpack.c.l.b16 %v203
    %v2038 = vunpack.c.h.b16 %v203
    %v2039 = vunpack.c.l.b16 %v204
    %v2040 = vunpack.c.h.b16 %v204
    %v2041 = vunpack.c.l.b16 %v205
    %v2042 = vunpack.c.h.b16 %v205
    %v2043 = vunpack.c.l.b16 %v206
    %v2044 = vunpack.c.h.b16 %v206
    %v2045 = vunpack.c.l.b16 %v207
    %v2046 = vunpack.c.h.b16 %v207
    %v2047 = vunpack.c.l.b16 %v208
    %v2048 = vunpack.c.h.b16 %v208
    %v2049 = vunpack.c.l.b16 %v209
    %v2050 = vunpack.c.l.b16 %v210
    %v2051 = vunpack.c.h.b16 %v210
    %v2052 = vunpack.c.l.b16 %v211
    %v2053 = vunpack.c.h.b16 %v211
    %v2054 = vunpack.c.l.b16 %v212
    %v2055 = vunpack.c.h.b16 %v212
    %v2056 = vunpack.c.l.b16 %v213
    %v2057 = vunpack.c.h.b16 %v213
    %v2058 = vunpack.c.l.b16 %v214
    %v2059 = vunpack.c.h.b16 %v214
    %v2060 = vunpack.c.l.b16 %v215
    %v2061 = vunpack.c.h.b16 %v215
    %v2062 = vunpack.c.l.b16 %v216
    %v2063 = vunpack.c.l.b16 %v217
    %v2064 = vunpack.c.h.b16 %v217
    %v2065 = vunpack.c.l.b16 %v218
    %v2066 = vunpack.c.h.b16 %v218
    %v2067 = vunpack.c.l.b16 %v219
    %v2068 = vunpack.c.h.b16 %v219
    %v2069 = vunpack.c.l.b16 %v220
    %v2070 = vunpack.c.h.b16 %v220
    %v2071 = vunpack.c.l.b16 %v221
    %v2072 = vunpack.c.h.b16 %v221
    %v2073 = vunpack.c.l.b16 %v222
    %v2074 = vunpack.c.h.b16 %v222
    %v2075 = vunpack.c.l.b16 %v223
    %v2076 = vunpack.c.l.b16 %v224
    %v2077 = vunpack.c.h.b16 %v224
    %v2078 = vunpack.c.l.b16 %v225
    %v2079 = vunpack.c.h.b16 %v225
    %v2080 = vunpack.c.l.b16 %v226
    %v2081 = vunpack.c.h.b16 %v226
    %v2082 = vunpack.c.l.b16 %v227
    %v2083 = vunpack.c.h.b16 %v227
    %v2084 = vunpack.c.l.b16 %v228
    %v2085 = vunpack.c.h.b16 %v228
    %v2086 = vunpack.c.l.b16 %v229
    %v2087 = vunpack.c.h.b16 %v229
    %v2088 = vunpack.c.l.b16 %v230
    %v2089 = vunpack.c.l.b16 %v231
    %v2090 = vunpack.c.h.b16 %v231
    %v2091 = vunpack.c.l.b16 %v232
    %v2092 = vunpack.c.h.b16 %v232
    %v2093 = vunpack.c.l.b16 %v233
    %v2094 = vunpack.c.h.b16 %v233
    %v2095 = vunpack.c.l.b16 %v234
    %v2096 = vunpack.c.h.b16 %v234
    %v2097 = vunpack.c.l.b16 %v235
    %v2098 = vunpack.c.h.b16 %v235
    %v2099 = vunpack.c.l.b16 %v236
    %v2100 = vunpack.c.h.b16 %v236
    %v2101 = vunpack.c.l.b16 %v237
    %v2102 = vunpack.c.l.b16 %v238
    %v2103 = vunpack.c.h.b16 %v238
    %v2104 = vunpack.c.l.b16 %v239
    %v2105 = vunpack.c.h.b16 %v239
    %v2106 = vunpack.c.l.b16 %v240
    %v2107 = vunpack.c.h.b16 %v240
    %v2108 = vunpack.c.l.b16 %v241
    %v2109 = vunpack.c.h.b16 %v241
    %v2110 = vunpack.c.l.b16 %v242
    %v2111 = vunpack.c.h.b16 %v242
    %v2112 = vunpack.c.l.b16 %v243
    %v2113 = vunpack.c.h.b16 %v243
    %v2114 = vunpack.c.l.b16 %v244
    %v2115 = vunpack.c.l.b16 %v245
    %v2116 = vunpack.c.h.b16 %v245
    %v2117 = vunpack.c.l.b16 %v246
    %v2118 = vunpack.c.h.b16 %v246
    %v2119 = vunpack.c.l.b16 %v247
    %v2120 = vunpack.c.h.b16 %v247
    %v2121 = vunpack.c.l.b16 %v248
    %v2122 = vunpack.c.h.b16 %v248
    %v2123 = vunpack.c.l.b16 %v249
    %v2124 = vunpack.c.h.b16 %v249
    %v2125 = vunpack.c.l.b16 %v250
    %v2126 = vunpack.c.h.b16 %v250
    %v2127 = vunpack.c.l.b16 %v251
    %v2128 = vunpack.c.l.b16 %v252
    %v2129 = vunpack.c.h.b16 %v252
    %v2130 = vunpack.c.l.b16 %v253
    %v2131 = vunpack.c.h.b16 %v253
    %v2132 = vunpack.c.l.b16 %v254
    %v2133 = vunpack.c.h.b16 %v254
    %v2134 = vunpack.c.l.b16 %v255
    %v2135 = vunpack.c.h.b16 %v255
    %v2136 = vunpack.c.l.b16 %v256
    %v2137 = vunpack.c.h.b16 %v256
    %v2138 = vunpack.c.l.b16 %v257
    %v2139 = vunpack.c.h.b16 %v257
    %v2140 = vunpack.c.l.b16 %v258
    %v2141 = vunpack.c.l.b16 %v259
    %v2142 = vunpack.c.h.b16 %v259
    %v2143 = vunpack.c.l.b16 %v260
    %v2144 = vunpack.c.h.b16 %v260
    %v2145 = vunpack.c.l.b16 %v261
    %v2146 = vunpack.c.h.b16 %v261
    %v2147 = vunpack.c.l.b16 %v262
    %v2148 = vunpack.c.h.b16 %v262
    %v2149 = vunpack.c.l.b16 %v263
    %v2150 = vunpack.c.h.b16 %v263
    %v2151 = vunpack.c.l.b16 %v264
    %v2152 = vunpack.c.h.b16 %v264
    %v2153 = vunpack.c.l.b16 %v265
    %v2154 = vunpack.c.l.b16 %v266
    %v2155 = vunpack.c.h.b16 %v266
    %v2156 = vunpack.c.l.b16 %v267
    %v2157 = vunpack.c.h.b16 %v267
    %v2158 = vunpack.c.l.b16 %v268
    %v2159 = vunpack.c.h.b16 %v268
    %v2160 = vunpack.c.l.b16 %v269
    %v2161 = vunpack.c.h.b16 %v269
    %v2162 = vunpack.c.l.b16 %v270
    %v2163 = vunpack.c.h.b16 %v270
    %v2164 = vunpack.c.l.b16 %v271
    %v2165 = vunpack.c.h.b16 %v271
    %v2166 = vunpack.c.l.b16 %v272
    %v2167 = vunpack.c.l.b16 %v273
    %v2168 = vunpack.c.h.b16 %v273
    %v2169 = vunpack.c.l.b16 %v274
    %v2170 = vunpack.c.h.b16 %v274
    %v2171 = vunpack.c.l.b16 %v275
    %v2172 = vunpack.c.h.b16 %v275
    %v2173 = vunpack.c.l.b16 %v276
    %v2174 = vunpack.c.h.b16 %v276
    %v2175 = vunpack.c.l.b16 %v277
    %v2176 = vunpack.c.h.b16 %v277
    %v2177 = vunpack.c.l.b16 %v278
    %v2178 = vunpack.c.h.b16 %v278
    %v2179 = vunpack.c.l.b16 %v279
    %v2180 = vunpack.c.l.b16 %v280
    %v2181 = vunpack.c.h.b16 %v280
    %v2182 = vunpack.c.l.b16 %v281
    %v2183 = vunpack.c.h.b16 %v281
    %v2184 = vunpack.c.l.b16 %v282
    %v2185 = vunpack.c.h.b16 %v282
    %v2186 = vunpack.c.l.b16 %v283
    %v2187 = vunpack.c.h.b16 %v283
    %v2188 = vunpack.c.l.b16 %v284
    %v2189 = vunpack.c.h.b16 %v284
    %v2190 = vunpack.c.l.b16 %v285
    %v2191 = vunpack.c.h.b16 %v285
    %v2192 = vunpack.c.l.b16 %v286
    %v2193 = vunpack.c.l.b16 %v287
    %v2194 = vunpack.c.h.b16 %v287
    %v2195 = vunpack.c.l.b16 %v288
    %v2196 = vunpack.c.h.b16 %v288
    %v2197 = vunpack.c.l.b16 %v289
    %v2198 = vunpack.c.h.b16 %v289
    %v2199 = vunpack.c.l.b16 %v290
    %v2200 = vunpack.c.h.b16 %v290
    %v2201 = vunpack.c.l.b16 %v291
    %v2202 = vunpack.c.h.b16 %v291
    %v2203 = vunpack.c.l.b16 %v292
    %v2204 = vunpack.c.h.b16 %v292
    %v2205 = vunpack.c.l.b16 %v293
    %v2206 = vunpack.c.l.b16 %v294
    %v2207 = vunpack.c.h.b16 %v294
    %v2208 = vunpack.c.l.b16 %v295
    %v2209 = vunpack.c.h.b16 %v295
    %v2210 = vunpack.c.l.b16 %v296
    %v2211 = vunpack.c.h.b16 %v296
    %v2212 = vunpack.c.l.b16 %v297
    %v2213 = vunpack.c.h.b16 %v297
    %v2214 = vunpack.c.l.b16 %v298
    %v2215 = vunpack.c.h.b16 %v298
    %v2216 = vunpack.c.l.b16 %v299
    %v2217 = vunpack.c.h.b16 %v299
    %v2218 = vunpack.c.l.b16 %v300
    %v2219 = vunpack.c.l.b16 %v301
    %v2220 = vunpack.c.h.b16 %v301
    %v2221 = vunpack.c.l.b16 %v302
    %v2222 = vunpack.c.h.b16 %v302
    %v2223 = vunpack.c.l.b16 %v303
    %v2224 = vunpack.c.h.b16 %v303
    %v2225 = vunpack.c.l.b16 %v304
    %v2226 = vunpack.c.h.b16 %v304
    %v2227 = vunpack.c.l.b16 %v305
    %v2228 = vunpack.c.h.b16 %v305
    %v2229 = vunpack.c.l.b16 %v306
    %v2230 = vunpack.c.h.b16 %v306
    %v2231 = vunpack.c.l.b16 %v307
    %v2232 = vunpack.c.l.b16 %v308
    %v2233 = vunpack.c.h.b16 %v308
    %v2234 = vunpack.c.l.b16 %v309
    %v2235 = vunpack.c.h.b16 %v309
    %v2236 = vunpack.c.l.b16 %v310
    %v2237 = vunpack.c.h.b16 %v310
    %v2238 = vunpack.c.l.b16 %v311
    %v2239 = vunpack.c.h.b16 %v311
    %v2240 = vunpack.c.l.b16 %v312
    %v2241 = vunpack.c.h.b16 %v312
    %v2242 = vunpack.c.l.b16 %v313
    %v2243 = vunpack.c.h.b16 %v313
    %v2244 = vunpack.c.l.b16 %v314
    %v2245 = vunpack.c.l.b16 %v315
    %v2246 = vunpack.c.h.b16 %v315
    %v2247 = vunpack.c.l.b16 %v316
    %v2248 = vunpack.c.h.b16 %v316
    %v2249 = vunpack.c.l.b16 %v317
    %v2250 = vunpack.c.h.b16 %v317
    %v2251 = vunpack.c.l.b16 %v318
    %v2252 = vunpack.c.h.b16 %v318
    %v2253 = vunpack.c.l.b16 %v319
    %v2254 = vunpack.c.h.b16 %v319
    %v2255 = vunpack.c.l.b16 %v320
    %v2256 = vunpack.c.h.b16 %v320
    %v2257 = vunpack.c.l.b16 %v321
    %v2258 = vunpack.c.l.b16 %v322
    %v2259 = vunpack.c.h.b16 %v322
    %v2260 = vunpack.c.l.b16 %v323
    %v2261 = vunpack.c.h.b16 %v323
    %v2262 = vunpack.c.l.b16 %v324
    %v2263 = vunpack.c.h.b16 %v324
    %v2264 = vunpack.c.l.b16 %v325
    %v2265 = vunpack.c.h.b16 %v325
    %v2266 = vunpack.c.l.b16 %v326
    %v2267 = vunpack.c.h.b16 %v326
    %v2268 = vunpack.c.l.b16 %v327
    %v2269 = vunpack.c.h.b16 %v327
    %v2270 = vunpack.c.l.b16 %v328
    %v2271 = vunpack.c.l.b16 %v329
    %v2272 = vunpack.c.h.b16 %v329
    %v2273 = vunpack.c.l.b16 %v330
    %v2274 = vunpack.c.h.b16 %v330
    %v2275 = vunpack.c.l.b16 %v331
    %v2276 = vunpack.c.h.b16 %v331
    %v2277 = vunpack.c.l.b16 %v332
    %v2278 = vunpack.c.h.b16 %v332
    %v2279 = vunpack.c.l.b16 %v333
    %v2280 = vunpack.c.h.b16 %v333
    %v2281 = vunpack.c.l.b16 %v334
    %v2282 = vunpack.c.h.b16 %v334
    %v2283 = vunpack.c.l.b16 %v335
    %v2284 = vunpack.c.l.b16 %v336
    %v2285 = vunpack.c.h.b16 %v336
    %v2286 = vunpack.c.l.b16 %v337
    %v2287 = vunpack.c.h.b16 %v337
    %v2288 = vunpack.c.l.b16 %v338
    %v2289 = vunpack.c.h.b16 %v338
    %v2290 = vunpack.c.l.b16 %v339
    %v2291 = vunpack.c.h.b16 %v339
    %v2292 = vunpack.c.l.b16 %v340
    %v2293 = vunpack.c.h.b16 %v340
    %v2294 = vunpack.c.l.b16 %v341
    %v2295 = vunpack.c.h.b16 %v341
    %v2296 = vunpack.c.l.b16 %v342
    %v2297 = vunpack.c.l.b16 %v343
    %v2298 = vunpack.c.h.b16 %v343
    %v2299 = vunpack.c.l.b16 %v344
    %v2300 = vunpack.c.h.b16 %v344
    %v2301 = vunpack.c.l.b16 %v345
    %v2302 = vunpack.c.h.b16 %v345
    %v2303 = vunpack.c.l.b16 %v346
    %v2304 = vunpack.c.h.b16 %v346
    %v2305 = vunpack.c.l.b16 %v347
    %v2306 = vunpack.c.h.b16 %v347
    %v2307 = vunpack.c.l.b16 %v348
    %v2308 = vunpack.c.h.b16 %v348
    %v2309 = vunpack.c.l.b16 %v349
    %v2310 = vunpack.c.l.b16 %v350
    %v2311 = vunpack.c.h.b16 %v350
    %v2312 = vunpack.c.l.b16 %v351
    %v2313 = vunpack.c.h.b16 %v351
    %v2314 = vunpack.c.l.b16 %v352
    %v2315 = vunpack.c.h.b16 %v352
    %v2316 = vunpack.c.l.b16 %v353
    %v2317 = vunpack.c.h.b16 %v353
    %v2318 = vunpack.c.l.b16 %v354
    %v2319 = vunpack.c.h.b16 %v354
    %v2320 = vunpack.c.l.b16 %v355
    %v2321 = vunpack.c.h.b16 %v355
    %v2322 = vunpack.c.l.b16 %v356
    %v2323 = vunpack.c.l.b16 %v357
    %v2324 = vunpack.c.h.b16 %v357
    %v2325 = vunpack.c.l.b16 %v358
    %v2326 = vunpack.c.h.b16 %v358
    %v2327 = vunpack.c.l.b16 %v359
    %v2328 = vunpack.c.h.b16 %v359
    %v2329 = vunpack.c.l.b16 %v360
    %v2330 = vunpack.c.h.b16 %v360
    %v2331 = vunpack.c.l.b16 %v361
    %v2332 = vunpack.c.h.b16 %v361
    %v2333 = vunpack.c.l.b16 %v362
    %v2334 = vunpack.c.h.b16 %v362
    %v2335 = vunpack.c.l.b16 %v363
    %v2336 = vunpack.c.l.b16 %v364
    %v2337 = vunpack.c.h.b16 %v364
    %v2338 = vunpack.c.l.b16 %v365
    %v2339 = vunpack.c.h.b16 %v365
    %v2340 = vunpack.c.l.b16 %v366
    %v2341 = vunpack.c.h.b16 %v366
    %v2342 = vunpack.c.l.b16 %v367
    %v2343 = vunpack.c.h.b16 %v367
    %v2344 = vunpack.c.l.b16 %v368
    %v2345 = vunpack.c.h.b16 %v368
    %v2346 = vunpack.c.l.b16 %v369
    %v2347 = vunpack.c.h.b16 %v369
    %v2348 = vunpack.c.l.b16 %v370
    %v2349 = vunpack.c.l.b16 %v371
    %v2350 = vunpack.c.h.b16 %v371
    %v2351 = vunpack.c.l.b16 %v372
    %v2352 = vunpack.c.h.b16 %v372
    %v2353 = vunpack.c.l.b16 %v373
    %v2354 = vunpack.c.h.b16 %v373
    %v2355 = vunpack.c.l.b16 %v374
    %v2356 = vunpack.c.h.b16 %v374
    %v2357 = vunpack.c.l.b16 %v375
    %v2358 = vunpack.c.h.b16 %v375
    %v2359 = vunpack.c.l.b16 %v376
    %v2360 = vunpack.c.h.b16 %v376
    %v2361 = vunpack.c.l.b16 %v377
    %v2362 = vunpack.c.l.b16 %v378
    %v2363 = vunpack.c.h.b16 %v378
    %v2364 = vunpack.c.l.b16 %v379
    %v2365 = vunpack.c.h.b16 %v379
    %v2366 = vunpack.c.l.b16 %v380
    %v2367 = vunpack.c.h.b16 %v380
    %v2368 = vunpack.c.l.b16 %v381
    %v2369 = vunpack.c.h.b16 %v381
    %v2370 = vunpack.c.l.b16 %v382
    %v2371 = vunpack.c.h.b16 %v382
    %v2372 = vunpack.c.l.b16 %v383
    %v2373 = vunpack.c.h.b16 %v383
    %v2374 = vunpack.c.l.b16 %v384
    %v2375 = vunpack.c.l.b16 %v385
    %v2376 = vunpack.c.h.b16 %v385
    %v2377 = vunpack.c.l.b16 %v386
    %v2378 = vunpack.c.h.b16 %v386
    %v2379 = vunpack.c.l.b16 %v387
    %v2380 = vunpack.c.h.b16 %v387
    %v2381 = vunpack.c.l.b16 %v388
    %v2382 = vunpack.c.h.b16 %v388
    %v2383 = vunpack.c.l.b16 %v389
    %v2384 = vunpack.c.h.b16 %v389
    %v2385 = vunpack.c.l.b16 %v390
    %v2386 = vunpack.c.h.b16 %v390
    %v2387 = vunpack.c.l.b16 %v391
    %v2388 = vunpack.c.l.b16 %v392
    %v2389 = vunpack.c.h.b16 %v392
    %v2390 = vunpack.c.l.b16 %v393
    %v2391 = vunpack.c.h.b16 %v393
    %v2392 = vunpack.c.l.b16 %v394
    %v2393 = vunpack.c.h.b16 %v394
    %v2394 = vunpack.c.l.b16 %v395
    %v2395 = vunpack.c.h.b16 %v395
    %v2396 = vunpack.c.l.b16 %v396
    %v2397 = vunpack.c.h.b16 %v396
    %v2398 = vunpack.c.l.b16 %v397
    %v2399 = vunpack.c.h.b16 %v397
    %v2400 = vunpack.c.l.b16 %v398
    %v2401 = vunpack.c.l.b16 %v399
    %v2402 = vunpack.c.h.b16 %v399
    %v2403 = vunpack.c.l.b16 %v400
    %v2404 = vunpack.c.h.b16 %v400
    %v2405 = vunpack.c.l.b16 %v401
    %v2406 = vunpack.c.h.b16 %v401
    %v2407 = vunpack.c.l.b16 %v402
    %v2408 = vunpack.c.h.b16 %v402
    %v2409 = vunpack.c.l.b16 %v403
    %v2410 = vunpack.c.h.b16 %v403
    %v2411 = vunpack.c.l.b16 %v404
    %v2412 = vunpack.c.h.b16 %v404
    %v2413 = vunpack.c.l.b16 %v405
    %v2414 = vunpack.c.l.b16 %v406
    %v2415 = vunpack.c.h.b16 %v406
    %v2416 = vunpack.c.l.b16 %v407
    %v2417 = vunpack.c.h.b16 %v407
    %v2418 = vunpack.c.l.b16 %v408
    %v2419 = vunpack.c.h.b16 %v408
    %v2420 = vunpack.c.l.b16 %v409
    %v2421 = vunpack.c.h.b16 %v409
    %v2422 = vunpack.c.l.b16 %v410
    %v2423 = vunpack.c.h.b16 %v410
    %v2424 = vunpack.c.l.b16 %v411
    %v2425 = vunpack.c.h.b16 %v411
    %v2426 = vunpack.c.l.b16 %v412
    %v2427 = vunpack.c.l.b16 %v413
    %v2428 = vunpack.c.h.b16 %v413
    %v2429 = vunpack.c.l.b16 %v414
    %v2430 = vunpack.c.h.b16 %v414
    %v2431 = vunpack.c.l.b16 %v415
    %v2432 = vunpack.c.h.b16 %v415
    %v2433 = vunpack.c.l.b16 %v416
    %v2434 = vunpack.c.h.b16 %v416
    %v2435 = vunpack.c.l.b16 %v417
    %v2436 = vunpack.c.h.b16 %v417
    %v2437 = vunpack.c.l.b16 %v418
    %v2438 = vunpack.c.h.b16 %v418
    %v2439 = vunpack.c.l.b16 %v419
    %v2440 = vunpack.c.l.b16 %v420
    %v2441 = vunpack.c.h.b16 %v420
    %v2442 = vunpack.c.l.b16 %v421
    %v2443 = vunpack.c.h.b16 %v421
    %v2444 = vunpack.c.l.b16 %v422
    %v2445 = vunpack.c.h.b16 %v422
    %v2446 = vunpack.c.l.b16 %v423
    %v2447 = vunpack.c.h.b16 %v423
    %v2448 = vunpack.c.l.b16 %v424
    %v2449 = vunpack.c.h.b16 %v424
    %v2450 = vunpack.c.l.b16 %v425
    %v2451 = vunpack.c.h.b16 %v425
    %v2452 = vunpack.c.l.b16 %v426
    %v2453 = vunpack.c.l.b16 %v427
    %v2454 = vunpack.c.h.b16 %v427
    %v2455 = vunpack.c.l.b16 %v428
    %v2456 = vunpack.c.h.b16 %v428
    %v2457 = vunpack.c.l.b16 %v429
    %v2458 = vunpack.c.h.b16 %v429
    %v2459 = vunpack.c.l.b16 %v430
    %v2460 = vunpack.c.h.b16 %v430
    %v2461 = vunpack.c.l.b16 %v431
    %v2462 = vunpack.c.h.b16 %v431
    %v2463 = vunpack.c.l.b16 %v432
    %v2464 = vunpack.c.h.b16 %v432
    %v2465 = vunpack.c.l.b16 %v433
    %v2466 = vunpack.c.l.b16 %v434
    %v2467 = vunpack.c.h.b16 %v434
    %v2468 = vunpack.c.l.b16 %v435
    %v2469 = vunpack.c.h.b16 %v435
    %v2470 = vunpack.c.l.b16 %v436
    %v2471 = vunpack.c.h.b16 %v436
    %v2472 = vunpack.c.l.b16 %v437
    %v2473 = vunpack.c.h.b16 %v437
    %v2474 = vunpack.c.l.b16 %v438
    %v2475 = vunpack.c.h.b16 %v438
    %v2476 = vunpack.c.l.b16 %v439
    %v2477 = vunpack.c.h.b16 %v439
    %v2478 = vunpack.c.l.b16 %v440
    %v2479 = vunpack.c.l.b16 %v441
    %v2480 = vunpack.c.h.b16 %v441
    %v2481 = vunpack.c.l.b16 %v442
    %v2482 = vunpack.c.h.b16 %v442
    %v2483 = vunpack.c.l.b16 %v443
    %v2484 = vunpack.c.h.b16 %v443
    %v2485 = vunpack.c.l.b16 %v444
    %v2486 = vunpack.c.h.b16 %v444
    %v2487 = vunpack.c.l.b16 %v445
    %v2488 = vunpack.c.h.b16 %v445
    %v2489 = vunpack.c.l.b16 %v446
    %v2490 = vunpack.c.h.b16 %v446
    %v2491 = vunpack.c.l.b16 %v447
    %v2492 = vunpack.c.l.b16 %v448
    %v2493 = vunpack.c.h.b16 %v448
    %v2494 = vunpack.c.l.b16 %v449
    %v2495 = vunpack.c.h.b16 %v449
    %v2496 = vunpack.c.l.b16 %v450
    %v2497 = vunpack.c.h.b16 %v450
    %v2498 = vunpack.c.l.b16 %v451
    %v2499 = vunpack.c.h.b16 %v451
    %v2500 = vunpack.c.l.b16 %v452
    %v2501 = vunpack.c.h.b16 %v452
    %v2502 = vunpack.c.l.b16 %v453
    %v2503 = vunpack.c.h.b16 %v453
    %v2504 = vunpack.c.l.b16 %v454
    %v2505 = vunpack.c.l.b16 %v455
    %v2506 = vunpack.c.h.b16 %v455
    %v2507 = vunpack.c.l.b16 %v456
    %v2508 = vunpack.c.h.b16 %v456
    %v2509 = vunpack.c.l.b16 %v457
    %v2510 = vunpack.c.h.b16 %v457
    %v2511 = vunpack.c.l.b16 %v458
    %v2512 = vunpack.c.h.b16 %v458
    %v2513 = vunpack.c.l.b16 %v459
    %v2514 = vunpack.c.h.b16 %v459
    %v2515 = vunpack.c.l.b16 %v460
    %v2516 = vunpack.c.h.b16 %v460
    %v2517 = vunpack.c.l.b16 %v461
    %v2518 = vunpack.c.l.b16 %v462
    %v2519 = vunpack.c.h.b16 %v462
    %v2520 = vunpack.c.l.b16 %v463
    %v2521 = vunpack.c.h.b16 %v463
    %v2522 = vunpack.c.l.b16 %v464
    %v2523 = vunpack.c.h.b16 %v464
    %v2524 = vunpack.c.l.b16 %v465
    %v2525 = vunpack.c.h.b16 %v465
    %v2526 = vunpack.c.l.b16 %v466
    %v2527 = vunpack.c.h.b16 %v466
    %v2528 = vunpack.c.l.b16 %v467
    %v2529 = vunpack.c.h.b16 %v467
    %v2530 = vunpack.c.l.b16 %v468
    %v2531 = vunpack.c.l.b16 %v469
    %v2532 = vunpack.c.h.b16 %v469
    %v2533 = vunpack.c.l.b16 %v470
    %v2534 = vunpack.c.h.b16 %v470
    %v2535 = vunpack.c.l.b16 %v471
    %v2536 = vunpack.c.h.b16 %v471
    %v2537 = vunpack.c.l.b16 %v472
    %v2538 = vunpack.c.h.b16 %v472
    %v2539 = vunpack.c.l.b16 %v473
    %v2540 = vunpack.c.h.b16 %v473
    %v2541 = vunpack.c.l.b16 %v474
    %v2542 = vunpack.c.h.b16 %v474
    %v2543 = vunpack.c.l.b16 %v475
    %v2544 = vunpack.c.l.b16 %v476
    %v2545 = vunpack.c.h.b16 %v476
    %v2546 = vunpack.c.l.b16 %v477
    %v2547 = vunpack.c.h.b16 %v477
    %v2548 = vunpack.c.l.b16 %v478
    %v2549 = vunpack.c.h.b16 %v478
    %v2550 = vunpack.c.l.b16 %v479
    %v2551 = vunpack.c.h.b16 %v479
    %v2552 = vunpack.c.l.b16 %v480
    %v2553 = vunpack.c.h.b16 %v480
    %v2554 = vunpack.c.l.b16 %v481
    %v2555 = vunpack.c.h.b16 %v481
    %v2556 = vunpack.c.l.b16 %v482
    %v2557 = vunpack.c.l.b16 %v483
    %v2558 = vunpack.c.h.b16 %v483
    %v2559 = vunpack.c.l.b16 %v484
    %v2560 = vunpack.c.h.b16 %v484
    %v2561 = vunpack.c.l.b16 %v485
    %v2562 = vunpack.c.h.b16 %v485
    %v2563 = vunpack.c.l.b16 %v486
    %v2564 = vunpack.c.h.b16 %v486
    %v2565 = vunpack.c.l.b16 %v487
    %v2566 = vunpack.c.h.b16 %v487
    %v2567 = vunpack.c.l.b16 %v488
    %v2568 = vunpack.c.h.b16 %v488
    %v2569 = vunpack.c.l.b16 %v489
    %v2570 = vunpack.c.l.b16 %v490
    %v2571 = vunpack.c.h.b16 %v490
    %v2572 = vunpack.c.l.b16 %v491
    %v2573 = vunpack.c.h.b16 %v491
    %v2574 = vunpack.c.l.b16 %v492
    %v2575 = vunpack.c.h.b16 %v492
    %v2576 = vunpack.c.l.b16 %v493
    %v2577 = vunpack.c.h.b16 %v493
    %v2578 = vunpack.c.l.b16 %v494
    %v2579 = vunpack.c.h.b16 %v494
    %v2580 = vunpack.c.l.b16 %v495
    %v2581 = vunpack.c.h.b16 %v495
    %v2582 = vunpack.c.l.b16 %v496
    %v2583 = vunpack.c.l.b16 %v497
    %v2584 = vunpack.c.h.b16 %v497
    %v2585 = vunpack.c.l.b16 %v498
    %v2586 = vunpack.c.h.b16 %v498
    %v2587 = vunpack.c.l.b16 %v499
    %v2588 = vunpack.c.h.b16 %v499
    %v2589 = vunpack.c.l.b16 %v500
    %v2590 = vunpack.c.h.b16 %v500
    %v2591 = vunpack.c.l.b16 %v501
    %v2592 = vunpack.c.h.b16 %v501
    %v2593 = vunpack.c.l.b16 %v502
    %v2594 = vunpack.c.h.b16 %v502
    %v2595 = vunpack.c.l.b16 %v503
    %v2596 = vunpack.c.l.b16 %v504
    %v2597 = vunpack.c.h.b16 %v504
    %v2598 = vunpack.c.l.b16 %v505
    %v2599 = vunpack.c.h.b16 %v505
    %v2600 = vunpack.c.l.b16 %v506
    %v2601 = vunpack.c.h.b16 %v506
    %v2602 = vunpack.c.l.b16 %v507
    %v2603 = vunpack.c.h.b16 %v507
    %v2604 = vunpack.c.l.b16 %v508
    %v2605 = vunpack.c.h.b16 %v508
    %v2606 = vunpack.c.l.b16 %v509
    %v2607 = vunpack.c.h.b16 %v509
    %v2608 = vunpack.c.l.b16 %v510
    %v2609 = vunpack.c.l.b16 %v511
    %v2610 = vunpack.c.h.b16 %v511
    %v2611 = vunpack.c.l.b16 %v512
    %v2612 = vunpack.c.h.b16 %v512
    %v2613 = vunpack.c.l.b16 %v513
    %v2614 = vunpack.c.h.b16 %v513
    %v2615 = vunpack.c.l.b16 %v514
    %v2616 = vunpack.c.h.b16 %v514
    %v2617 = vunpack.c.l.b16 %v515
    %v2618 = vunpack.c.h.b16 %v515
    %v2619 = vunpack.c.l.b16 %v516
    %v2620 = vunpack.c.h.b16 %v516
    %v2621 = vunpack.c.l.b16 %v517
    %v2622 = vunpack.c.l.b16 %v518
    %v2623 = vunpack.c.h.b16 %v518
    %v2624 = vunpack.c.l.b16 %v519
    %v2625 = vunpack.c.h.b16 %v519
    %v2626 = vunpack.c.l.b16 %v520
    %v2627 = vunpack.c.h.b16 %v520
    %v2628 = vunpack.c.l.b16 %v521
    %v2629 = vunpack.c.h.b16 %v521
    %v2630 = vunpack.c.l.b16 %v522
    %v2631 = vunpack.c.h.b16 %v522
    %v2632 = vunpack.c.l.b16 %v523
    %v2633 = vunpack.c.h.b16 %v523
    %v2634 = vunpack.c.l.b16 %v524
    %v2635 = vunpack.c.l.b16 %v525
    %v2636 = vunpack.c.h.b16 %v525
    %v2637 = vunpack.c.l.b16 %v526
    %v2638 = vunpack.c.h.b16 %v526
    %v2639 = vunpack.c.l.b16 %v527
    %v2640 = vunpack.c.h.b16 %v527
    %v2641 = vunpack.c.l.b16 %v528
    %v2642 = vunpack.c.h.b16 %v528
    %v2643 = vunpack.c.l.b16 %v529
    %v2644 = vunpack.c.h.b16 %v529
    %v2645 = vunpack.c.l.b16 %v530
    %v2646 = vunpack.c.h.b16 %v530
    %v2647 = vunpack.c.l.b16 %v531
    %v2648 = vunpack.c.l.b16 %v532
    %v2649 = vunpack.c.h.b16 %v532
    %v2650 = vunpack.c.l.b16 %v533
    %v2651 = vunpack.c.h.b16 %v533
    %v2652 = vunpack.c.l.b16 %v534
    %v2653 = vunpack.c.h.b16 %v534
    %v2654 = vunpack.c.l.b16 %v535
    %v2655 = vunpack.c.h.b16 %v535
    %v2656 = vunpack.c.l.b16 %v536
    %v2657 = vunpack.c.h.b16 %v536
    %v2658 = vunpack.c.l.b16 %v537
    %v2659 = vunpack.c.h.b16 %v537
    %v2660 = vunpack.c.l.b16 %v538
    %v2661 = vunpack.c.l.b16 %v539
    %v2662 = vunpack.c.h.b16 %v539
    %v2663 = vunpack.c.l.b16 %v540
    %v2664 = vunpack.c.h.b16 %v540
    %v2665 = vunpack.c.l.b16 %v541
    %v2666 = vunpack.c.h.b16 %v541
    %v2667 = vunpack.c.l.b16 %v542
    %v2668 = vunpack.c.h.b16 %v542
    %v2669 = vunpack.c.l.b16 %v543
    %v2670 = vunpack.c.h.b16 %v543
    %v2671 = vunpack.c.l.b16 %v544
    %v2672 = vunpack.c.h.b16 %v544
    %v2673 = vunpack.c.l.b16 %v545
    %v2674 = vunpack.c.l.b16 %v546
    %v2675 = vunpack.c.h.b16 %v546
    %v2676 = vunpack.c.l.b16 %v547
    %v2677 = vunpack.c.h.b16 %v547
    %v2678 = vunpack.c.l.b16 %v548
    %v2679 = vunpack.c.h.b16 %v548
    %v2680 = vunpack.c.l.b16 %v549
    %v2681 = vunpack.c.h.b16 %v549
    %v2682 = vunpack.c.l.b16 %v550
    %v2683 = vunpack.c.h.b16 %v550
    %v2684 = vunpack.c.l.b16 %v551
    %v2685 = vunpack.c.h.b16 %v551
    %v2686 = vunpack.c.l.b16 %v552
    %v2687 = vunpack.c.l.b16 %v553
    %v2688 = vunpack.c.h.b16 %v553
    %v2689 = vunpack.c.l.b16 %v554
    %v2690 = vunpack.c.h.b16 %v554
    %v2691 = vunpack.c.l.b16 %v555
    %v2692 = vunpack.c.h.b16 %v555
    %v2693 = vunpack.c.l.b16 %v556
    %v2694 = vunpack.c.h.b16 %v556
    %v2695 = vunpack.c.l.b16 %v557
    %v2696 = vunpack.c.h.b16 %v557
    %v2697 = vunpack.c.l.b16 %v558
    %v2698 = vunpack.c.h.b16 %v558
    %v2699 = vunpack.c.l.b16 %v559
    %v2700 = vunpack.c.l.b16 %v560
    %v2701 = vunpack.c.h.b16 %v560
    %v2702 = vunpack.c.l.b16 %v561
    %v2703 = vunpack.c.h.b16 %v561
    %v2704 = vunpack.c.l.b16 %v562
    %v2705 = vunpack.c.h.b16 %v562
    %v2706 = vunpack.c.l.b16 %v563
    %v2707 = vunpack.c.h.b16 %v563
    %v2708 = vunpack.c.l.b16 %v564
    %v2709 = vunpack.c.h.b16 %v564
    %v2710 = vunpack.c.l.b16 %v565
    %v2711 = vunpack.c.h.b16 %v565
    %v2712 = vunpack.c.l.b16 %v566
    %v2713 = vunpack.c.l.b16 %v567
    %v2714 = vunpack.c.h.b16 %v567
    %v2715 = vunpack.c.l.b16 %v568
    %v2716 = vunpack.c.h.b16 %v568
    %v2717 = vunpack.c.l.b16 %v569
    %v2718 = vunpack.c.h.b16 %v569
    %v2719 = vunpack.c.l.b16 %v570
    %v2720 = vunpack.c.h.b16 %v570
    %v2721 = vunpack.c.l.b16 %v571
    %v2722 = vunpack.c.h.b16 %v571
    %v2723 = vunpack.c.l.b16 %v572
    %v2724 = vunpack.c.h.b16 %v572
    %v2725 = vunpack.c.l.b16 %v573
    %v2726 = vunpack.c.l.b16 %v574
    %v2727 = vunpack.c.h.b16 %v574
    %v2728 = vunpack.c.l.b16 %v575
    %v2729 = vunpack.c.h.b16 %v575
    %v2730 = vunpack.c.l.b16 %v576
    %v2731 = vunpack.c.h.b16 %v576
    %v2732 = vunpack.c.l.b16 %v577
    %v2733 = vunpack.c.h.b16 %v577
    %v2734 = vunpack.c.l.b16 %v578
    %v2735 = vunpack.c.h.b16 %v578
    %v2736 = vunpack.c.l.b16 %v579
    %v2737 = vunpack.c.h.b16 %v579
    %v2738 = vunpack.c.l.b16 %v580
    %v2739 = vunpack.c.l.b16 %v581
    %v2740 = vunpack.c.h.b16 %v581
    %v2741 = vunpack.c.l.b16 %v582
    %v2742 = vunpack.c.h.b16 %v582
    %v2743 = vunpack.c.l.b16 %v583
    %v2744 = vunpack.c.h.b16 %v583
    %v2745 = vunpack.c.l.b16 %v584
    %v2746 = vunpack.c.h.b16 %v584
    %v2747 = vunpack.c.l.b16 %v585
    %v2748 = vunpack.c.h.b16 %v585
    %v2749 = vunpack.c.l.b16 %v586
    %v2750 = vunpack.c.h.b16 %v586
    %v2751 = vunpack.c.l.b16 %v587
    %v2752 = vunpack.c.l.b16 %v588
    %v2753 = vunpack.c.h.b16 %v588
    %v2754 = vunpack.c.l.b16 %v589
    %v2755 = vunpack.c.h.b16 %v589
    %v2756 = vunpack.c.l.b16 %v590
    %v2757 = vunpack.c.h.b16 %v590
    %v2758 = vunpack.c.l.b16 %v591
    %v2759 = vunpack.c.h.b16 %v591
    %v2760 = vunpack.c.l.b16 %v592
    %v2761 = vunpack.c.h.b16 %v592
    %v2762 = vunpack.c.l.b16 %v593
    %v2763 = vunpack.c.h.b16 %v593
    %v2764 = vunpack.c.l.b16 %v594
    %v2765 = vunpack.c.l.b16 %v595
    %v2766 = vunpack.c.h.b16 %v595
    %v2767 = vunpack.c.l.b16 %v596
    %v2768 = vunpack.c.h.b16 %v596
    %v2769 = vunpack.c.l.b16 %v597
    %v2770 = vunpack.c.h.b16 %v597
    %v2771 = vunpack.c.l.b16 %v598
    %v2772 = vunpack.c.h.b16 %v598
    %v2773 = vunpack.c.l.b16 %v599
    %v2774 = vunpack.c.h.b16 %v599
    %v2775 = vunpack.c.l.b16 %v600
    %v2776 = vunpack.c.h.b16 %v600
    %v2777 = vunpack.c.l.b16 %v601
    %v2778 = vunpack.c.l.b16 %v602
    %v2779 = vunpack.c.h.b16 %v602
    %v2780 = vunpack.c.l.b16 %v603
    %v2781 = vunpack.c.h.b16 %v603
    %v2782 = vunpack.c.l.b16 %v604
    %v2783 = vunpack.c.h.b16 %v604
    %v2784 = vunpack.c.l.b16 %v605
    %v2785 = vunpack.c.h.b16 %v605
    %v2786 = vunpack.c.l.b16 %v606
    %v2787 = vunpack.c.h.b16 %v606
    %v2788 = vunpack.c.l.b16 %v607
    %v2789 = vunpack.c.h.b16 %v607
    %v2790 = vunpack.c.l.b16 %v608
    %v2791 = vunpack.c.l.b16 %v609
    %v2792 = vunpack.c.h.b16 %v609
    %v2793 = vunpack.c.l.b16 %v610
    %v2794 = vunpack.c.h.b16 %v610
    %v2795 = vunpack.c.l.b16 %v611
    %v2796 = vunpack.c.h.b16 %v611
    %v2797 = vunpack.c.l.b16 %v612
    %v2798 = vunpack.c.h.b16 %v612
    %v2799 = vunpack.c.l.b16 %v613
    %v2800 = vunpack.c.h.b16 %v613
    %v2801 = vunpack.c.l.b16 %v614
    %v2802 = vunpack.c.h.b16 %v614
    %v2803 = vunpack.c.l.b16 %v615
    %v2804 = vunpack.c.l.b16 %v616
    %v2805 = vunpack.c.h.b16 %v616
    %v2806 = vunpack.c.l.b16 %v617
    %v2807 = vunpack.c.h.b16 %v617
    %v2808 = vunpack.c.l.b16 %v618
    %v2809 = vunpack.c.h.b16 %v618
    %v2810 = vunpack.c.l.b16 %v619
    %v2811 = vunpack.c.h.b16 %v619
    %v2812 = vunpack.c.l.b16 %v620
    %v2813 = vunpack.c.h.b16 %v620
    %v2814 = vunpack.c.l.b16 %v621
    %v2815 = vunpack.c.h.b16 %v621
    %v2816 = vunpack.c.l.b16 %v622
    %v2817 = vunpack.c.l.b16 %v623
    %v2818 = vunpack.c.h.b16 %v623
    %v2819 = vunpack.c.l.b16 %v624
    %v2820 = vunpack.c.h.b16 %v624
    %v2821 = vunpack.c.l.b16 %v625
    %v2822 = vunpack.c.h.b16 %v625
    %v2823 = vunpack.c.l.b16 %v626
    %v2824 = vunpack.c.h.b16 %v626
    %v2825 = vunpack.c.l.b16 %v627
    %v2826 = vunpack.c.h.b16 %v627
    %v2827 = vunpack.c.l.b16 %v628
    %v2828 = vunpack.c.h.b16 %v628
    %v2829 = vunpack.c.l.b16 %v629
    %v2830 = vunpack.c.l.b16 %v630
    %v2831 = vunpack.c.h.b16 %v630
    %v2832 = vunpack.c.l.b16 %v631
    %v2833 = vunpack.c.h.b16 %v631
    %v2834 = vunpack.c.l.b16 %v632
    %v2835 = vunpack.c.h.b16 %v632
    %v2836 = vunpack.c.l.b16 %v633
    %v2837 = vunpack.c.h.b16 %v633
    %v2838 = vunpack.c.l.b16 %v634
    %v2839 = vunpack.c.h.b16 %v634
    %v2840 = vunpack.c.l.b16 %v635
    %v2841 = vunpack.c.h.b16 %v635
    %v2842 = vunpack.c.l.b16 %v636
    %v2843 = vunpack.c.l.b16 %v637
    %v2844 = vunpack.c.h.b16 %v637
    %v2845 = vunpack.c.l.b16 %v638
    %v2846 = vunpack.c.h.b16 %v638
    %v2847 = vunpack.c.l.b16 %v639
    %v2848 = vunpack.c.h.b16 %v639
    %v2849 = vunpack.c.l.b16 %v640
    %v2850 = vunpack.c.h.b16 %v640
    %v2851 = vunpack.c.l.b16 %v641
    %v2852 = vunpack.c.h.b16 %v641
    %v2853 = vunpack.c.l.b16 %v642
    %v2854 = vunpack.c.h.b16 %v642
    %v2855 = vunpack.c.l.b16 %v643
    %v2856 = vunpack.c.l.b16 %v644
    %v2857 = vunpack.c.h.b16 %v644
    %v2858 = vunpack.c.l.b16 %v645
    %v2859 = vunpack.c.h.b16 %v645
    %v2860 = vunpack.c.l.b16 %v646
    %v2861 = vunpack.c.h.b16 %v646
    %v2862 = vunpack.c.l.b16 %v647
    %v2863 = vunpack.c.h.b16 %v647
    %v2864 = vunpack.c.l.b16 %v648
    %v2865 = vunpack.c.h.b16 %v648
    %v2866 = vunpack.c.l.b16 %v649
    %v2867 = vunpack.c.h.b16 %v649
    %v2868 = vunpack.c.l.b16 %v650
    %v2869 = vunpack.c.l.b16 %v651
    %v2870 = vunpack.c.h.b16 %v651
    %v2871 = vunpack.c.l.b16 %v652
    %v2872 = vunpack.c.h.b16 %v652
    %v2873 = vunpack.c.l.b16 %v653
    %v2874 = vunpack.c.h.b16 %v653
    %v2875 = vunpack.c.l.b16 %v654
    %v2876 = vunpack.c.h.b16 %v654
    %v2877 = vunpack.c.l.b16 %v655
    %v2878 = vunpack.c.h.b16 %v655
    %v2879 = vunpack.c.l.b16 %v656
    %v2880 = vunpack.c.h.b16 %v656
    %v2881 = vunpack.c.l.b16 %v657
    %v2882 = vunpack.c.l.b16 %v658
    %v2883 = vunpack.c.h.b16 %v658
    %v2884 = vunpack.c.l.b16 %v659
    %v2885 = vunpack.c.h.b16 %v659
    %v2886 = vunpack.c.l.b16 %v660
    %v2887 = vunpack.c.h.b16 %v660
    %v2888 = vunpack.c.l.b16 %v661
    %v2889 = vunpack.c.h.b16 %v661
    %v2890 = vunpack.c.l.b16 %v662
    %v2891 = vunpack.c.h.b16 %v662
    %v2892 = vunpack.c.l.b16 %v663
    %v2893 = vunpack.c.h.b16 %v663
    %v2894 = vunpack.c.l.b16 %v664
    %v2895 = vunpack.c.l.b16 %v665
    %v2896 = vunpack.c.h.b16 %v665
    %v2897 = vunpack.c.l.b16 %v666
    %v2898 = vunpack.c.h.b16 %v666
    %v2899 = vunpack.c.l.b16 %v667
    %v2900 = vunpack.c.h.b16 %v667
    %v2901 = vunpack.c.l.b16 %v668
    %v2902 = vunpack.c.h.b16 %v668
    %v2903 = vunpack.c.l.b16 %v669
    %v2904 = vunpack.c.h.b16 %v669
    %v2905 = vunpack.c.l.b16 %v670
    %v2906 = vunpack.c.h.b16 %v670
    %v2907 = vunpack.c.l.b16 %v671
    %v2908 = vunpack.c.l.b16 %v672
    %v2909 = vunpack.c.h.b16 %v672
    %v2910 = vunpack.c.l.b16 %v673
    %v2911 = vunpack.c.h.b16 %v673
    %v2912 = vunpack.c.l.b16 %v674
    %v2913 = vunpack.c.h.b16 %v674
    %v2914 = vunpack.c.l.b16 %v675
    %v2915 = vunpack.c.h.b16 %v675
    %v2916 = vunpack.c.l.b16 %v676
    %v2917 = vunpack.c.h.b16 %v676
    %v2918 = vunpack.c.l.b16 %v677
    %v2919 = vunpack.c.h.b16 %v677
    %v2920 = vunpack.c.l.b16 %v678
    %v2921 = vunpack.c.l.b16 %v679
    %v2922 = vunpack.c.h.b16 %v679
    %v2923 = vunpack.c.l.b16 %v680
    %v2924 = vunpack.c.h.b16 %v680
    %v2925 = vunpack.c.l.b16 %v681
    %v2926 = vunpack.c.h.b16 %v681
    %v2927 = vunpack.c.l.b16 %v682
    %v2928 = vunpack.c.h.b16 %v682
    %v2929 = vunpack.c.l.b16 %v683
    %v2930 = vunpack.c.h.b16 %v683
    %v2931 = vunpack.c.l.b16 %v684
    %v2932 = vunpack.c.h.b16 %v684
    %v2933 = vunpack.c.l.b16 %v685
    %v2934 = vunpack.c.l.b16 %v686
    %v2935 = vunpack.c.h.b16 %v686
    %v2936 = vunpack.c.l.b16 %v687
    %v2937 = vunpack.c.h.b16 %v687
    %v2938 = vunpack.c.l.b16 %v688
    %v2939 = vunpack.c.h.b16 %v688
    %v2940 = vunpack.c.l.b16 %v689
    %v2941 = vunpack.c.h.b16 %v689
    %v2942 = vunpack.c.l.b16 %v690
    %v2943 = vunpack.c.h.b16 %v690
    %v2944 = vunpack.c.l.b16 %v691
    %v2945 = vunpack.c.h.b16 %v691
    %v2946 = vunpack.c.l.b16 %v692
    %v2947 = vunpack.c.l.b16 %v693
    %v2948 = vunpack.c.h.b16 %v693
    %v2949 = vunpack.c.l.b16 %v694
    %v2950 = vunpack.c.h.b16 %v694
    %v2951 = vunpack.c.l.b16 %v695
    %v2952 = vunpack.c.h.b16 %v695
    %v2953 = vunpack.c.l.b16 %v696
    %v2954 = vunpack.c.h.b16 %v696
    %v2955 = vunpack.c.l.b16 %v697
    %v2956 = vunpack.c.h.b16 %v697
    %v2957 = vunpack.c.l.b16 %v698
    %v2958 = vunpack.c.h.b16 %v698
    %v2959 = vunpack.c.l.b16 %v699
    %v2960 = vunpack.c.l.b16 %v700
    %v2961 = vunpack.c.h.b16 %v700
    %v2962 = vunpack.c.l.b16 %v701
    %v2963 = vunpack.c.h.b16 %v701
    %v2964 = vunpack.c.l.b16 %v702
    %v2965 = vunpack.c.h.b16 %v702
    %v2966 = vunpack.c.l.b16 %v703
    %v2967 = vunpack.c.h.b16 %v703
    %v2968 = vunpack.c.l.b16 %v704
    %v2969 = vunpack.c.h.b16 %v704
    %v2970 = vunpack.c.l.b16 %v705
    %v2971 = vunpack.c.h.b16 %v705
    %v2972 = vunpack.c.l.b16 %v706
    %v2973 = vunpack.c.l.b16 %v707
    %v2974 = vunpack.c.h.b16 %v707
    %v2975 = vunpack.c.l.b16 %v708
    %v2976 = vunpack.c.h.b16 %v708
    %v2977 = vunpack.c.l.b16 %v709
    %v2978 = vunpack.c.h.b16 %v709
    %v2979 = vunpack.c.l.b16 %v710
    %v2980 = vunpack.c.h.b16 %v710
    %v2981 = vunpack.c.l.b16 %v711
    %v2982 = vunpack.c.h.b16 %v711
    %v2983 = vunpack.c.l.b16 %v712
    %v2984 = vunpack.c.h.b16 %v712
    %v2985 = vunpack.c.l.b16 %v713
    %v2986 = vunpack.c.l.b16 %v714
    %v2987 = vunpack.c.h.b16 %v714
    %v2988 = vunpack.c.l.b16 %v715
    %v2989 = vunpack.c.h.b16 %v715
    %v2990 = vunpack.c.l.b16 %v716
    %v2991 = vunpack.c.h.b16 %v716
    %v2992 = vunpack.c.l.b16 %v717
    %v2993 = vunpack.c.h.b16 %v717
    %v2994 = vunpack.c.l.b16 %v718
    %v2995 = vunpack.c.h.b16 %v718
    %v2996 = vunpack.c.l.b16 %v719
    %v2997 = vunpack.c.h.b16 %v719
    %v2998 = vunpack.c.l.b16 %v720
    %v2999 = vunpack.c.l.b16 %v721
    %v3000 = vunpack.c.h.b16 %v721
    %v3001 = vunpack.c.l.b16 %v722
    %v3002 = vunpack.c.h.b16 %v722
    %v3003 = vunpack.c.l.b16 %v723
    %v3004 = vunpack.c.h.b16 %v723
    %v3005 = vunpack.c.l.b16 %v724
    %v3006 = vunpack.c.h.b16 %v724
    %v3007 = vunpack.c.l.b16 %v725
    %v3008 = vunpack.c.h.b16 %v725
    %v3009 = vunpack.c.l.b16 %v726
    %v3010 = vunpack.c.h.b16 %v726
    %v3011 = vunpack.c.l.b16 %v727
    %v3012 = vunpack.c.l.b16 %v728
    %v3013 = vunpack.c.h.b16 %v728
    %v3014 = vunpack.c.l.b16 %v729
    %v3015 = vunpack.c.h.b16 %v729
    %v3016 = vunpack.c.l.b16 %v730
    %v3017 = vunpack.c.h.b16 %v730
    %v3018 = vunpack.c.l.b16 %v731
    %v3019 = vunpack.c.h.b16 %v731
    %v3020 = vunpack.c.l.b16 %v732
    %v3021 = vunpack.c.h.b16 %v732
    %v3022 = vunpack.c.l.b16 %v733
    %v3023 = vunpack.c.h.b16 %v733
    %v3024 = vunpack.c.l.b16 %v734
    %v3025 = vunpack.c.l.b16 %v735
    %v3026 = vunpack.c.h.b16 %v735
    %v3027 = vunpack.c.l.b16 %v736
    %v3028 = vunpack.c.h.b16 %v736
    %v3029 = vunpack.c.l.b16 %v737
    %v3030 = vunpack.c.h.b16 %v737
    %v3031 = vunpack.c.l.b16 %v738
    %v3032 = vunpack.c.h.b16 %v738
    %v3033 = vunpack.c.l.b16 %v739
    %v3034 = vunpack.c.h.b16 %v739
    %v3035 = vunpack.c.l.b16 %v740
    %v3036 = vunpack.c.h.b16 %v740
    %v3037 = vunpack.c.l.b16 %v741
    %v3038 = vunpack.c.l.b16 %v742
    %v3039 = vunpack.c.h.b16 %v742
    %v3040 = vunpack.c.l.b16 %v743
    %v3041 = vunpack.c.h.b16 %v743
    %v3042 = vunpack.c.l.b16 %v744
    %v3043 = vunpack.c.h.b16 %v744
    %v3044 = vunpack.c.l.b16 %v745
    %v3045 = vunpack.c.h.b16 %v745
    %v3046 = vunpack.c.l.b16 %v746
    %v3047 = vunpack.c.h.b16 %v746
    %v3048 = vunpack.c.l.b16 %v747
    %v3049 = vunpack.c.h.b16 %v747
    %v3050 = vunpack.c.l.b16 %v748
    %v3051 = vunpack.c.l.b16 %v749
    %v3052 = vunpack.c.h.b16 %v749
    %v3053 = vunpack.c.l.b16 %v750
    %v3054 = vunpack.c.h.b16 %v750
    %v3055 = vunpack.c.l.b16 %v751
    %v3056 = vunpack.c.h.b16 %v751
    %v3057 = vunpack.c.l.b16 %v752
    %v3058 = vunpack.c.h.b16 %v752
    %v3059 = vunpack.c.l.b16 %v753
    %v3060 = vunpack.c.h.b16 %v753
    %v3061 = vunpack.c.l.b16 %v754
    %v3062 = vunpack.c.h.b16 %v754
    %v3063 = vunpack.c.l.b16 %v755
    %v3064 = vunpack.c.l.b16 %v756
    %v3065 = vunpack.c.h.b16 %v756
    %v3066 = vunpack.c.l.b16 %v757
    %v3067 = vunpack.c.h.b16 %v757
    %v3068 = vunpack.c.l.b16 %v758
    %v3069 = vunpack.c.h.b16 %v758
    %v3070 = vunpack.c.l.b16 %v759
    %v3071 = vunpack.c.h.b16 %v759
    %v3072 = vunpack.c.l.b16 %v760
    %v3073 = vunpack.c.h.b16 %v760
    %v3074 = vunpack.c.l.b16 %v761
    %v3075 = vunpack.c.h.b16 %v761
    %v3076 = vunpack.c.l.b16 %v762
    %v3077 = vunpack.c.l.b16 %v763
    %v3078 = vunpack.c.h.b16 %v763
    %v3079 = vunpack.c.l.b16 %v764
    %v3080 = vunpack.c.h.b16 %v764
    %v3081 = vunpack.c.l.b16 %v765
    %v3082 = vunpack.c.h.b16 %v765
    %v3083 = vunpack.c.l.b16 %v766
    %v3084 = vunpack.c.h.b16 %v766
    %v3085 = vunpack.c.l.b16 %v767
    %v3086 = vunpack.c.h.b16 %v767
    %v3087 = vunpack.c.l.b16 %v768
    %v3088 = vunpack.c.h.b16 %v768
    %v3089 = vunpack.c.l.b16 %v769
    %v3090 = vunpack.c.l.b16 %v770
    %v3091 = vunpack.c.h.b16 %v770
    %v3092 = vunpack.c.l.b16 %v771
    %v3093 = vunpack.c.h.b16 %v771
    %v3094 = vunpack.c.l.b16 %v772
    %v3095 = vunpack.c.h.b16 %v772
    %v3096 = vunpack.c.l.b16 %v773
    %v3097 = vunpack.c.h.b16 %v773
    %v3098 = vunpack.c.l.b16 %v774
    %v3099 = vunpack.c.h.b16 %v774
    %v3100 = vunpack.c.l.b16 %v775
    %v3101 = vunpack.c.h.b16 %v775
    %v3102 = vunpack.c.l.b16 %v776
    %v3103 = vunpack.c.l.b16 %v777
    %v3104 = vunpack.c.h.b16 %v777
    %v3105 = vunpack.c.l.b16 %v778
    %v3106 = vunpack.c.h.b16 %v778
    %v3107 = vunpack.c.l.b16 %v779
    %v3108 = vunpack.c.h.b16 %v779
    %v3109 = vunpack.c.l.b16 %v780
    %v3110 = vunpack.c.h.b16 %v780
    %v3111 = vunpack.c.l.b16 %v781
    %v3112 = vunpack.c.h.b16 %v781
    %v3113 = vunpack.c.l.b16 %v782
    %v3114 = vunpack.c.h.b16 %v782
    %v3115 = vunpack.c.l.b16 %v783
    %v3116 = vunpack.c.l.b16 %v784
    %v3117 = vunpack.c.h.b16 %v784
    %v3118 = vunpack.c.l.b16 %v785
    %v3119 = vunpack.c.h.b16 %v785
    %v3120 = vunpack.c.l.b16 %v786
    %v3121 = vunpack.c.h.b16 %v786
    %v3122 = vunpack.c.l.b16 %v787
    %v3123 = vunpack.c.h.b16 %v787
    %v3124 = vunpack.c.l.b16 %v788
    %v3125 = vunpack.c.h.b16 %v788
    %v3126 = vunpack.c.l.b16 %v789
    %v3127 = vunpack.c.h.b16 %v789
    %v3128 = vunpack.c.l.b16 %v790
    %v3129 = vunpack.c.l.b16 %v791
    %v3130 = vunpack.c.h.b16 %v791
    %v3131 = vunpack.c.l.b16 %v792
    %v3132 = vunpack.c.h.b16 %v792
    %v3133 = vunpack.c.l.b16 %v793
    %v3134 = vunpack.c.h.b16 %v793
    %v3135 = vunpack.c.l.b16 %v794
    %v3136 = vunpack.c.h.b16 %v794
    %v3137 = vunpack.c.l.b16 %v795
    %v3138 = vunpack.c.h.b16 %v795
    %v3139 = vunpack.c.l.b16 %v796
    %v3140 = vunpack.c.h.b16 %v796
    %v3141 = vunpack.c.l.b16 %v797
    %v3142 = vunpack.c.l.b16 %v798
    %v3143 = vunpack.c.h.b16 %v798
    %v3144 = vunpack.c.l.b16 %v799
    %v3145 = vunpack.c.h.b16 %v799
    %v3146 = vunpack.c.l.b16 %v800
    %v3147 = vunpack.c.h.b16 %v800
    %v3148 = vunpack.c.l.b16 %v801
    %v3149 = vunpack.c.h.b16 %v801
    %v3150 = vunpack.c.l.b16 %v802
    %v3151 = vunpack.c.h.b16 %v802
    %v3152 = vunpack.c.l.b16 %v803
    %v3153 = vunpack.c.h.b16 %v803
    %v3154 = vunpack.c.l.b16 %v804
    %v3155 = vunpack.c.l.b16 %v805
    %v3156 = vunpack.c.h.b16 %v805
    %v3157 = vunpack.c.l.b16 %v806
    %v3158 = vunpack.c.h.b16 %v806
    %v3159 = vunpack.c.l.b16 %v807
    %v3160 = vunpack.c.h.b16 %v807
    %v3161 = vunpack.c.l.b16 %v808
    %v3162 = vunpack.c.h.b16 %v808
    %v3163 = vunpack.c.l.b16 %v809
    %v3164 = vunpack.c.h.b16 %v809
    %v3165 = vunpack.c.l.b16 %v810
    %v3166 = vunpack.c.h.b16 %v810
    %v3167 = vunpack.c.l.b16 %v811
    %v3168 = vunpack.c.l.b16 %v812
    %v3169 = vunpack.c.h.b16 %v812
    %v3170 = vunpack.c.l.b16 %v813
    %v3171 = vunpack.c.h.b16 %v813
    %v3172 = vunpack.c.l.b16 %v814
    %v3173 = vunpack.c.h.b16 %v814
    %v3174 = vunpack.c.l.b16 %v815
    %v3175 = vunpack.c.h.b16 %v815
    %v3176 = vunpack.c.l.b16 %v816
    %v3177 = vunpack.c.h.b16 %v816
    %v3178 = vunpack.c.l.b16 %v817
    %v3179 = vunpack.c.h.b16 %v817
    %v3180 = vunpack.c.l.b16 %v818
    %v3181 = vunpack.c.l.b16 %v819
    %v3182 = vunpack.c.h.b16 %v819
    %v3183 = vunpack.c.l.b16 %v820
    %v3184 = vunpack.c.h.b16 %v820
    %v3185 = vunpack.c.l.b16 %v821
    %v3186 = vunpack.c.h.b16 %v821
    %v3187 = vunpack.c.l.b16 %v822
    %v3188 = vunpack.c.h.b16 %v822
    %v3189 = vunpack.c.l.b16 %v823
    %v3190 = vunpack.c.h.b16 %v823
    %v3191 = vunpack.c.l.b16 %v824
    %v3192 = vunpack.c.h.b16 %v824
    %v3193 = vunpack.c.l.b16 %v825
    %v3194 = vunpack.c.l.b16 %v826
    %v3195 = vunpack.c.h.b16 %v826
    %v3196 = vunpack.c.l.b16 %v827
    %v3197 = vunpack.c.h.b16 %v827
    %v3198 = vunpack.c.l.b16 %v828
    %v3199 = vunpack.c.h.b16 %v828
    %v3200 = vunpack.c.l.b16 %v829
    %v3201 = vunpack.c.h.b16 %v829
    %v3202 = vunpack.c.l.b16 %v830
    %v3203 = vunpack.c.h.b16 %v830
    %v3204 = vunpack.c.l.b16 %v831
    %v3205 = vunpack.c.h.b16 %v831
    %v3206 = vunpack.c.l.b16 %v832
    %v3207 = vunpack.c.l.b16 %v833
    %v3208 = vunpack.c.h.b16 %v833
    %v3209 = vunpack.c.l.b16 %v834
    %v3210 = vunpack.c.h.b16 %v834
    %v3211 = vunpack.c.l.b16 %v835
    %v3212 = vunpack.c.h.b16 %v835
    %v3213 = vunpack.c.l.b16 %v836
    %v3214 = vunpack.c.h.b16 %v836
    %v3215 = vunpack.c.l.b16 %v837
    %v3216 = vunpack.c.h.b16 %v837
    %v3217 = vunpack.c.l.b16 %v838
    %v3218 = vunpack.c.h.b16 %v838
    %v3219 = vunpack.c.l.b16 %v839
    %v3220 = vunpack.c.l.b16 %v840
    %v3221 = vunpack.c.h.b16 %v840
    %v3222 = vunpack.c.l.b16 %v841
    %v3223 = vunpack.c.h.b16 %v841
    %v3224 = vunpack.c.l.b16 %v842
    %v3225 = vunpack.c.h.b16 %v842
    %v3226 = vunpack.c.l.b16 %v843
    %v3227 = vunpack.c.h.b16 %v843
    %v3228 = vunpack.c.l.b16 %v844
    %v3229 = vunpack.c.h.b16 %v844
    %v3230 = vunpack.c.l.b16 %v845
    %v3231 = vunpack.c.h.b16 %v845
    %v3232 = vunpack.c.l.b16 %v846
    %v3233 = vunpack.c.l.b16 %v847
    %v3234 = vunpack.c.h.b16 %v847
    %v3235 = vunpack.c.l.b16 %v848
    %v3236 = vunpack.c.h.b16 %v848
    %v3237 = vunpack.c.l.b16 %v849
    %v3238 = vunpack.c.h.b16 %v849
    %v3239 = vunpack.c.l.b16 %v850
    %v3240 = vunpack.c.h.b16 %v850
    %v3241 = vunpack.c.l.b16 %v851
    %v3242 = vunpack.c.h.b16 %v851
    %v3243 = vunpack.c.l.b16 %v852
    %v3244 = vunpack.c.h.b16 %v852
    %v3245 = vunpack.c.l.b16 %v853
    %v3246 = vunpack.c.l.b16 %v854
    %v3247 = vunpack.c.h.b16 %v854
    %v3248 = vunpack.c.l.b16 %v855
    %v3249 = vunpack.c.h.b16 %v855
    %v3250 = vunpack.c.l.b16 %v856
    %v3251 = vunpack.c.h.b16 %v856
    %v3252 = vunpack.c.l.b16 %v857
    %v3253 = vunpack.c.h.b16 %v857
    %v3254 = vunpack.c.l.b16 %v858
    %v3255 = vunpack.c.h.b16 %v858
    %v3256 = vunpack.c.l.b16 %v859
    %v3257 = vunpack.c.h.b16 %v859
    %v3258 = vunpack.c.l.b16 %v860
    %v3259 = vunpack.c.l.b16 %v861
    %v3260 = vunpack.c.h.b16 %v861
    %v3261 = vunpack.c.l.b16 %v862
    %v3262 = vunpack.c.h.b16 %v862
    %v3263 = vunpack.c.l.b16 %v863
    %v3264 = vunpack.c.h.b16 %v863
    %v3265 = vunpack.c.l.b16 %v864
    %v3266 = vunpack.c.h.b16 %v864
    %v3267 = vunpack.c.l.b16 %v865
    %v3268 = vunpack.c.h.b16 %v865
    %v3269 = vunpack.c.l.b16 %v866
    %v3270 = vunpack.c.h.b16 %v866
    %v3271 = vunpack.c.l.b16 %v867
    %v3272 = vunpack.c.l.b16 %v868
    %v3273 = vunpack.c.h.b16 %v868
    %v3274 = vunpack.c.l.b16 %v869
    %v3275 = vunpack.c.h.b16 %v869
    %v3276 = vunpack.c.l.b16 %v870
    %v3277 = vunpack.c.h.b16 %v870
    %v3278 = vunpack.c.l.b16 %v871
    %v3279 = vunpack.c.h.b16 %v871
    %v3280 = vunpack.c.l.b16 %v872
    %v3281 = vunpack.c.h.b16 %v872
    %v3282 = vunpack.c.l.b16 %v873
    %v3283 = vunpack.c.h.b16 %v873
    %v3284 = vunpack.c.l.b16 %v874
    %v3285 = vunpack.c.l.b16 %v875
    %v3286 = vunpack.c.h.b16 %v875
    %v3287 = vunpack.c.l.b16 %v876
    %v3288 = vunpack.c.h.b16 %v876
    %v3289 = vunpack.c.l.b16 %v877
    %v3290 = vunpack.c.h.b16 %v877
    %v3291 = vunpack.c.l.b16 %v878
    %v3292 = vunpack.c.h.b16 %v878
    %v3293 = vunpack.c.l.b16 %v879
    %v3294 = vunpack.c.h.b16 %v879
    %v3295 = vunpack.c.l.b16 %v880
    %v3296 = vunpack.c.h.b16 %v880
    %v3297 = vunpack.c.l.b16 %v881
    %v3298 = vunpack.c.l.b16 %v882
    %v3299 = vunpack.c.h.b16 %v882
    %v3300 = vunpack.c.l.b16 %v883
    %v3301 = vunpack.c.h.b16 %v883
    %v3302 = vunpack.c.l.b16 %v884
    %v3303 = vunpack.c.h.b16 %v884
    %v3304 = vunpack.c.l.b16 %v885
    %v3305 = vunpack.c.h.b16 %v885
    %v3306 = vunpack.c.l.b16 %v886
    %v3307 = vunpack.c.h.b16 %v886
    %v3308 = vunpack.c.l.b16 %v887
    %v3309 = vunpack.c.h.b16 %v887
    %v3310 = vunpack.c.l.b16 %v888
    %v3311 = vunpack.c.l.b16 %v889
    %v3312 = vunpack.c.h.b16 %v889
    %v3313 = vunpack.c.l.b16 %v890
    %v3314 = vunpack.c.h.b16 %v890
    %v3315 = vunpack.c.l.b16 %v891
    %v3316 = vunpack.c.h.b16 %v891
    %v3317 = vunpack.c.l.b16 %v892
    %v3318 = vunpack.c.h.b16 %v892
    %v3319 = vunpack.c.l.b16 %v893
    %v3320 = vunpack.c.h.b16 %v893
    %v3321 = vunpack.c.l.b16 %v894
    %v3322 = vunpack.c.h.b16 %v894
    %v3323 = vunpack.c.l.b16 %v895
    %v3324 = vunpack.c.l.b16 %v896
    %v3325 = vunpack.c.h.b16 %v896
    %v3326 = vunpack.c.l.b16 %v897
    %v3327 = vunpack.c.h.b16 %v897
    %v3328 = vunpack.c.l.b16 %v898
    %v3329 = vunpack.c.h.b16 %v898
    %v3330 = vunpack.c.l.b16 %v899
    %v3331 = vunpack.c.h.b16 %v899
    %v3332 = vunpack.c.l.b16 %v900
    %v3333 = vunpack.c.h.b16 %v900
    %v3334 = vunpack.c.l.b16 %v901
    %v3335 = vunpack.c.h.b16 %v901
    %v3336 = vunpack.c.l.b16 %v902
    %v3337 = vunpack.c.l.b16 %v903
    %v3338 = vunpack.c.h.b16 %v903
    %v3339 = vunpack.c.l.b16 %v904
    %v3340 = vunpack.c.h.b16 %v904
    %v3341 = vunpack.c.l.b16 %v905
    %v3342 = vunpack.c.h.b16 %v905
    %v3343 = vunpack.c.l.b16 %v906
    %v3344 = vunpack.c.h.b16 %v906
    %v3345 = vunpack.c.l.b16 %v907
    %v3346 = vunpack.c.h.b16 %v907
    %v3347 = vunpack.c.l.b16 %v908
    %v3348 = vunpack.c.h.b16 %v908
    %v3349 = vunpack.c.l.b16 %v909
    %v3350 = vunpack.c.l.b16 %v910
    %v3351 = vunpack.c.h.b16 %v910
    %v3352 = vunpack.c.l.b16 %v911
    %v3353 = vunpack.c.h.b16 %v911
    %v3354 = vunpack.c.l.b16 %v912
    %v3355 = vunpack.c.h.b16 %v912
    %v3356 = vunpack.c.l.b16 %v913
    %v3357 = vunpack.c.h.b16 %v913
    %v3358 = vunpack.c.l.b16 %v914
    %v3359 = vunpack.c.h.b16 %v914
    %v3360 = vunpack.c.l.b16 %v915
    %v3361 = vunpack.c.h.b16 %v915
    %v3362 = vunpack.c.l.b16 %v916
    %v3363 = vunpack.c.l.b16 %v917
    %v3364 = vunpack.c.h.b16 %v917
    %v3365 = vunpack.c.l.b16 %v918
    %v3366 = vunpack.c.h.b16 %v918
    %v3367 = vunpack.c.l.b16 %v919
    %v3368 = vunpack.c.h.b16 %v919
    %v3369 = vunpack.c.l.b16 %v920
    %v3370 = vunpack.c.h.b16 %v920
    %v3371 = vunpack.c.l.b16 %v921
    %v3372 = vunpack.c.h.b16 %v921
    %v3373 = vunpack.c.l.b16 %v922
    %v3374 = vunpack.c.h.b16 %v922
    %v3375 = vunpack.c.l.b16 %v923
    %v3376 = vunpack.c.l.b16 %v924
    %v3377 = vunpack.c.h.b16 %v924
    %v3378 = vunpack.c.l.b16 %v925
    %v3379 = vunpack.c.h.b16 %v925
    %v3380 = vunpack.c.l.b16 %v926
    %v3381 = vunpack.c.h.b16 %v926
    %v3382 = vunpack.c.l.b16 %v927
    %v3383 = vunpack.c.h.b16 %v927
    %v3384 = vunpack.c.l.b16 %v928
    %v3385 = vunpack.c.h.b16 %v928
    %v3386 = vunpack.c.l.b16 %v929
    %v3387 = vunpack.c.h.b16 %v929
    %v3388 = vunpack.c.l.b16 %v930
    %v3389 = vunpack.c.l.b16 %v931
    %v3390 = vunpack.c.h.b16 %v931
    %v3391 = vunpack.c.l.b16 %v932
    %v3392 = vunpack.c.h.b16 %v932
    %v3393 = vunpack.c.l.b16 %v933
    %v3394 = vunpack.c.h.b16 %v933
    %v3395 = vunpack.c.l.b16 %v934
    %v3396 = vunpack.c.h.b16 %v934
    %v3397 = vunpack.c.l.b16 %v935
    %v3398 = vunpack.c.h.b16 %v935
    %v3399 = vunpack.c.l.b16 %v936
    %v3400 = vunpack.c.h.b16 %v936
    %v3401 = vunpack.c.l.b16 %v937
    %v3402 = vunpack.c.l.b16 %v938
    %v3403 = vunpack.c.h.b16 %v938
    %v3404 = vunpack.c.l.b16 %v939
    %v3405 = vunpack.c.h.b16 %v939
    %v3406 = vunpack.c.l.b16 %v940
    %v3407 = vunpack.c.h.b16 %v940
    %v3408 = vunpack.c.l.b16 %v941
    %v3409 = vunpack.c.h.b16 %v941
    %v3410 = vunpack.c.l.b16 %v942
    %v3411 = vunpack.c.h.b16 %v942
    %v3412 = vunpack.c.l.b16 %v943
    %v3413 = vunpack.c.h.b16 %v943
    %v3414 = vunpack.c.l.b16 %v944
    %v3415 = vunpack.c.l.b16 %v945
    %v3416 = vunpack.c.h.b16 %v945
    %v3417 = vunpack.c.l.b16 %v946
    %v3418 = vunpack.c.h.b16 %v946
    %v3419 = vunpack.c.l.b16 %v947
    %v3420 = vunpack.c.h.b16 %v947
    %v3421 = vunpack.c.l.b16 %v948
    %v3422 = vunpack.c.h.b16 %v948
    %v3423 = vunpack.c.l.b16 %v949
    %v3424 = vunpack.c.h.b16 %v949
    %v3425 = vunpack.c.l.b16 %v950
    %v3426 = vunpack.c.h.b16 %v950
    %v3427 = vunpack.c.l.b16 %v951
    %v3428 = vunpack.c.l.b16 %v952
    %v3429 = vunpack.c.h.b16 %v952
    %v3430 = vunpack.c.l.b16 %v953
    %v3431 = vunpack.c.h.b16 %v953
    %v3432 = vunpack.c.l.b16 %v954
    %v3433 = vunpack.c.h.b16 %v954
    %v3434 = vunpack.c.l.b16 %v955
    %v3435 = vunpack.c.h.b16 %v955
    %v3436 = vunpack.c.l.b16 %v956
    %v3437 = vunpack.c.h.b16 %v956
    %v3438 = vunpack.c.l.b16 %v957
    %v3439 = vunpack.c.h.b16 %v957
    %v3440 = vunpack.c.l.b16 %v958
    %v3441 = vunpack.c.l.b16 %v959
    %v3442 = vunpack.c.h.b16 %v959
    %v3443 = vunpack.c.l.b16 %v960
    %v3444 = vunpack.c.h.b16 %v960
    %v3445 = vunpack.c.l.b16 %v961
    %v3446 = vunpack.c.h.b16 %v961
    %v3447 = vunpack.c.l.b16 %v962
    %v3448 = vunpack.c.h.b16 %v962
    %v3449 = vunpack.c.l.b16 %v963
    %v3450 = vunpack.c.h.b16 %v963
    %v3451 = vunpack.c.l.b16 %v964
    %v3452 = vunpack.c.h.b16 %v964
    %v3453 = vunpack.c.l.b16 %v965
    %v3454 = vunpack.c.l.b16 %v966
    %v3455 = vunpack.c.h.b16 %v966
    %v3456 = vunpack.c.l.b16 %v967
    %v3457 = vunpack.c.h.b16 %v967
    %v3458 = vunpack.c.l.b16 %v968
    %v3459 = vunpack.c.h.b16 %v968
    %v3460 = vunpack.c.l.b16 %v969
    %v3461 = vunpack.c.h.b16 %v969
    %v3462 = vunpack.c.l.b16 %v970
    %v3463 = vunpack.c.h.b16 %v970
    %v3464 = vunpack.c.l.b16 %v971
    %v3465 = vunpack.c.h.b16 %v971
    %v3466 = vunpack.c.l.b16 %v972
    %v3467 = vunpack.c.l.b16 %v973
    %v3468 = vunpack.c.h.b16 %v973
    %v3469 = vunpack.c.l.b16 %v974
    %v3470 = vunpack.c.h.b16 %v974
    %v3471 = vunpack.c.l.b16 %v975
    %v3472 = vunpack.c.h.b16 %v975
    %v3473 = vunpack.c.l.b16 %v976
    %v3474 = vunpack.c.h.b16 %v976
    %v3475 = vunpack.c.l.b16 %v977
    %v3476 = vunpack.c.h.b16 %v977
    %v3477 = vunpack.c.l.b16 %v978
    %v3478 = vunpack.c.h.b16 %v978
    %v3479 = vunpack.c.l.b16 %v979
    %v3480 = vunpack.c.l.b16 %v980
    %v3481 = vunpack.c.h.b16 %v980
    %v3482 = vunpack.c.l.b16 %v981
    %v3483 = vunpack.c.h.b16 %v981
    %v3484 = vunpack.c.l.b16 %v982
    %v3485 = vunpack.c.h.b16 %v982
    %v3486 = vunpack.c.l.b16 %v983
    %v3487 = vunpack.c.h.b16 %v983
    %v3488 = vunpack.c.l.b16 %v984
    %v3489 = vunpack.c.h.b16 %v984
    %v3490 = vunpack.c.l.b16 %v985
    %v3491 = vunpack.c.h.b16 %v985
    %v3492 = vunpack.c.l.b16 %v986
    %v3493 = vunpack.c.l.b16 %v987
    %v3494 = vunpack.c.h.b16 %v987
    %v3495 = vunpack.c.l.b16 %v988
    %v3496 = vunpack.c.h.b16 %v988
    %v3497 = vunpack.c.l.b16 %v989
    %v3498 = vunpack.c.h.b16 %v989
    %v3499 = vunpack.c.l.b16 %v990
    %v3500 = vunpack.c.h.b16 %v990
    %v3501 = vunpack.c.l.b16 %v991
    %v3502 = vunpack.c.h.b16 %v991
    %v3503 = vunpack.c.l.b16 %v992
    %v3504 = vunpack.c.h.b16 %v992
    %v3505 = vunpack.c.l.b16 %v993
    %v3506 = vunpack.c.l.b16 %v994
    %v3507 = vunpack.c.h.b16 %v994
    %v3508 = vunpack.c.l.b16 %v995
    %v3509 = vunpack.c.h.b16 %v995
    %v3510 = vunpack.c.l.b16 %v996
    %v3511 = vunpack.c.h.b16 %v996
    %v3512 = vunpack.c.l.b16 %v997
    %v3513 = vunpack.c.h.b16 %v997
    %v3514 = vunpack.c.l.b16 %v998
    %v3515 = vunpack.c.h.b16 %v998
    %v3516 = vunpack.c.l.b16 %v999
    %v3517 = vunpack.c.h.b16 %v999
    %v3518 = vunpack.c.l.b16 %v1000
    %v3519 = vunpack.c.l.b16 %v1001
    %v3520 = vunpack.c.h.b16 %v1001
    %v3521 = vunpack.c.l.b16 %v1002
    %v3522 = vunpack.c.h.b16 %v1002
    %v3523 = vunpack.c.l.b16 %v1003
    %v3524 = vunpack.c.h.b16 %v1003
    %v3525 = vunpack.c.l.b16 %v1004
    %v3526 = vunpack.c.h.b16 %v1004
    %v3527 = vunpack.c.l.b16 %v1005
    %v3528 = vunpack.c.h.b16 %v1005
    %v3529 = vunpack.c.l.b16 %v1006
    %v3530 = vunpack.c.h.b16 %v1006
    %v3531 = vunpack.c.l.b16 %v1007
    %v3532 = vunpack.c.l.b16 %v1008
    %v3533 = vunpack.c.h.b16 %v1008
    %v3534 = vunpack.c.l.b16 %v1009
    %v3535 = vunpack.c.h.b16 %v1009
    %v3536 = vunpack.c.l.b16 %v1010
    %v3537 = vunpack.c.h.b16 %v1010
    %v3538 = vunpack.c.l.b16 %v1011
    %v3539 = vunpack.c.h.b16 %v1011
    %v3540 = vunpack.c.l.b16 %v1012
    %v3541 = vunpack.c.h.b16 %v1012
    %v3542 = vunpack.c.l.b16 %v1013
    %v3543 = vunpack.c.h.b16 %v1013
    %v3544 = vunpack.c.l.b16 %v1014
    %v3545 = vunpack.c.l.b16 %v1015
    %v3546 = vunpack.c.h.b16 %v1015
    %v3547 = vunpack.c.l.b16 %v1016
    %v3548 = vunpack.c.h.b16 %v1016
    %v3549 = vunpack.c.l.b16 %v1017
    %v3550 = vunpack.c.h.b16 %v1017
    %v3551 = vunpack.c.l.b16 %v1018
    %v3552 = vunpack.c.h.b16 %v1018
    %v3553 = vunpack.c.l.b16 %v1019
    %v3554 = vunpack.c.h.b16 %v1019
    %v3555 = vunpack.c.l.b16 %v1020
    %v3556 = vunpack.c.h.b16 %v1020
    %v3557 = vunpack.c.l.b16 %v1021
    %v3558 = vunpack.c.l.b16 %v1022
    %v3559 = vunpack.c.h.b16 %v1022
    %v3560 = vunpack.c.l.b16 %v1023
    %v3561 = vunpack.c.h.b16 %v1023
    %v3562 = vunpack.c.l.b16 %v1024
    %v3563 = vunpack.c.h.b16 %v1024
    %v3564 = vunpack.c.l.b16 %v1025
    %v3565 = vunpack.c.h.b16 %v1025
    %v3566 = vunpack.c.l.b16 %v1026
    %v3567 = vunpack.c.h.b16 %v1026
    %v3568 = vunpack.c.l.b16 %v1027
    %v3569 = vunpack.c.h.b16 %v1027
    %v3570 = vunpack.c.l.b16 %v1028
    %v3571 = vunpack.c.l.b16 %v1029
    %v3572 = vunpack.c.h.b16 %v1029
    %v3573 = vunpack.c.l.b16 %v1030
    %v3574 = vunpack.c.h.b16 %v1030
    %v3575 = vunpack.c.l.b16 %v1031
    %v3576 = vunpack.c.h.b16 %v1031
    %v3577 = vunpack.c.l.b16 %v1032
    %v3578 = vunpack.c.h.b16 %v1032
    %v3579 = vunpack.c.l.b16 %v1033
    %v3580 = vunpack.c.h.b16 %v1033
    %v3581 = vunpack.c.l.b16 %v1034
    %v3582 = vunpack.c.h.b16 %v1034
    %v3583 = vunpack.c.l.b16 %v1035
    %v3584 = vunpack.c.l.b16 %v1036
    %v3585 = vunpack.c.h.b16 %v1036
    %v3586 = vunpack.c.l.b16 %v1037
    %v3587 = vunpack.c.h.b16 %v1037
    %v3588 = vunpack.c.l.b16 %v1038
    %v3589 = vunpack.c.h.b16 %v1038
    %v3590 = vunpack.c.l.b16 %v1039
    %v3591 = vunpack.c.h.b16 %v1039
    %v3592 = vunpack.c.l.b16 %v1040
    %v3593 = vunpack.c.h.b16 %v1040
    %v3594 = vunpack.c.l.b16 %v1041
    %v3595 = vunpack.c.h.b16 %v1041
    %v3596 = vunpack.c.l.b16 %v1042
    %v3597 = vunpack.c.l.b16 %v1043
    %v3598 = vunpack.c.h.b16 %v1043
    %v3599 = vunpack.c.l.b16 %v1044
    %v3600 = vunpack.c.h.b16 %v1044
    %v3601 = vunpack.c.l.b16 %v1045
    %v3602 = vunpack.c.h.b16 %v1045
    %v3603 = vunpack.c.l.b16 %v1046
    %v3604 = vunpack.c.h.b16 %v1046
    %v3605 = vunpack.c.l.b16 %v1047
    %v3606 = vunpack.c.h.b16 %v1047
    %v3607 = vunpack.c.l.b16 %v1048
    %v3608 = vunpack.c.h.b16 %v1048
    %v3609 = vunpack.c.l.b16 %v1049
    %v3610 = vunpack.c.l.b16 %v1050
    %v3611 = vunpack.c.h.b16 %v1050
    %v3612 = vunpack.c.l.b16 %v1051
    %v3613 = vunpack.c.h.b16 %v1051
    %v3614 = vunpack.c.l.b16 %v1052
    %v3615 = vunpack.c.h.b16 %v1052
    %v3616 = vunpack.c.l.b16 %v1053
    %v3617 = vunpack.c.h.b16 %v1053
    %v3618 = vunpack.c.l.b16 %v1054
    %v3619 = vunpack.c.h.b16 %v1054
    %v3620 = vunpack.c.l.b16 %v1055
    %v3621 = vunpack.c.h.b16 %v1055
    %v3622 = vunpack.c.l.b16 %v1056
    %v3623 = vunpack.c.l.b16 %v1057
    %v3624 = vunpack.c.h.b16 %v1057
    %v3625 = vunpack.c.l.b16 %v1058
    %v3626 = vunpack.c.h.b16 %v1058
    %v3627 = vunpack.c.l.b16 %v1059
    %v3628 = vunpack.c.h.b16 %v1059
    %v3629 = vunpack.c.l.b16 %v1060
    %v3630 = vunpack.c.h.b16 %v1060
    %v3631 = vunpack.c.l.b16 %v1061
    %v3632 = vunpack.c.h.b16 %v1061
    %v3633 = vunpack.c.l.b16 %v1062
    %v3634 = vunpack.c.h.b16 %v1062
    %v3635 = vunpack.c.l.b16 %v1063
    %v3636 = vunpack.c.l.b16 %v1064
    %v3637 = vunpack.c.h.b16 %v1064
    %v3638 = vunpack.c.l.b16 %v1065
    %v3639 = vunpack.c.h.b16 %v1065
    %v3640 = vunpack.c.l.b16 %v1066
    %v3641 = vunpack.c.h.b16 %v1066
    %v3642 = vunpack.c.l.b16 %v1067
    %v3643 = vunpack.c.h.b16 %v1067
    %v3644 = vunpack.c.l.b16 %v1068
    %v3645 = vunpack.c.h.b16 %v1068
    %v3646 = vunpack.c.l.b16 %v1069
    %v3647 = vunpack.c.h.b16 %v1069
    %v3648 = vunpack.c.l.b16 %v1070
    %v3649 = vunpack.c.l.b16 %v1071
    %v3650 = vunpack.c.h.b16 %v1071
    %v3651 = vunpack.c.l.b16 %v1072
    %v3652 = vunpack.c.h.b16 %v1072
    %v3653 = vunpack.c.l.b16 %v1073
    %v3654 = vunpack.c.h.b16 %v1073
    %v3655 = vunpack.c.l.b16 %v1074
    %v3656 = vunpack.c.h.b16 %v1074
    %v3657 = vunpack.c.l.b16 %v1075
    %v3658 = vunpack.c.h.b16 %v1075
    %v3659 = vunpack.c.l.b16 %v1076
    %v3660 = vunpack.c.h.b16 %v1076
    %v3661 = vunpack.c.l.b16 %v1077
    %v3662 = vunpack.c.l.b16 %v1078
    %v3663 = vunpack.c.h.b16 %v1078
    %v3664 = vunpack.c.l.b16 %v1079
    %v3665 = vunpack.c.h.b16 %v1079
    %v3666 = vunpack.c.l.b16 %v1080
    %v3667 = vunpack.c.h.b16 %v1080
    %v3668 = vunpack.c.l.b16 %v1081
    %v3669 = vunpack.c.h.b16 %v1081
    %v3670 = vunpack.c.l.b16 %v1082
    %v3671 = vunpack.c.h.b16 %v1082
    %v3672 = vunpack.c.l.b16 %v1083
    %v3673 = vunpack.c.h.b16 %v1083
    %v3674 = vunpack.c.l.b16 %v1084
    %v3675 = vpack.c.b16 %v2024, %v2011
    %v3676 = vpack.c.b16 %v2025, %v2012
    %v3677 = vpack.c.b16 %v2026, %v2013
    %v3678 = vpack.c.b16 %v2027, %v2014
    %v3679 = vpack.c.b16 %v2028, %v2015
    %v3680 = vpack.c.b16 %v2029, %v2016
    %v3681 = vpack.c.b16 %v2030, %v2017
    %v3682 = vpack.c.b16 %v2031, %v2018
    %v3683 = vpack.c.b16 %v2032, %v2019
    %v3684 = vpack.c.b16 %v2033, %v2020
    %v3685 = vpack.c.b16 %v2034, %v2021
    %v3686 = vpack.c.b16 %v2035, %v2022
    %v3687 = vpack.c.b16 %v2036, %v2023
    %v3688 = vpack.c.b16 %v2050, %v2037
    %v3689 = vpack.c.b16 %v2051, %v2038
    %v3690 = vpack.c.b16 %v2052, %v2039
    %v3691 = vpack.c.b16 %v2053, %v2040
    %v3692 = vpack.c.b16 %v2054, %v2041
    %v3693 = vpack.c.b16 %v2055, %v2042
    %v3694 = vpack.c.b16 %v2056, %v2043
    %v3695 = vpack.c.b16 %v2057, %v2044
    %v3696 = vpack.c.b16 %v2058, %v2045
    %v3697 = vpack.c.b16 %v2059, %v2046
    %v3698 = vpack.c.b16 %v2060, %v2047
    %v3699 = vpack.c.b16 %v2061, %v2048
    %v3700 = vpack.c.b16 %v2062, %v2049
    %v3701 = vpack.c.b16 %v2076, %v2063
    %v3702 = vpack.c.b16 %v2077, %v2064
    %v3703 = vpack.c.b16 %v2078, %v2065
    %v3704 = vpack.c.b16 %v2079, %v2066
    %v3705 = vpack.c.b16 %v2080, %v2067
    %v3706 = vpack.c.b16 %v2081, %v2068
    %v3707 = vpack.c.b16 %v2082, %v2069
    %v3708 = vpack.c.b16 %v2083, %v2070
    %v3709 = vpack.c.b16 %v2084, %v2071
    %v3710 = vpack.c.b16 %v2085, %v2072
    %v3711 = vpack.c.b16 %v2086, %v2073
    %v3712 = vpack.c.b16 %v2087, %v2074
    %v3713 = vpack.c.b16 %v2088, %v2075
    %v3714 = vpack.c.b16 %v2102, %v2089
    %v3715 = vpack.c.b16 %v2103, %v2090
    %v3716 = vpack.c.b16 %v2104, %v2091
    %v3717 = vpack.c.b16 %v2105, %v2092
    %v3718 = vpack.c.b16 %v2106, %v2093
    %v3719 = vpack.c.b16 %v2107, %v2094
    %v3720 = vpack.c.b16 %v2108, %v2095
    %v3721 = vpack.c.b16 %v2109, %v2096
    %v3722 = vpack.c.b16 %v2110, %v2097
    %v3723 = vpack.c.b16 %v2111, %v2098
    %v3724 = vpack.c.b16 %v2112, %v2099
    %v3725 = vpack.c.b16 %v2113, %v2100
    %v3726 = vpack.c.b16 %v2114, %v2101
    %v3727 = vpack.c.b16 %v2128, %v2115
    %v3728 = vpack.c.b16 %v2129, %v2116
    %v3729 = vpack.c.b16 %v2130, %v2117
    %v3730 = vpack.c.b16 %v2131, %v2118
    %v3731 = vpack.c.b16 %v2132, %v2119
    %v3732 = vpack.c.b16 %v2133, %v2120
    %v3733 = vpack.c.b16 %v2134, %v2121
    %v3734 = vpack.c.b16 %v2135, %v2122
    %v3735 = vpack.c.b16 %v2136, %v2123
    %v3736 = vpack.c.b16 %v2137, %v2124
    %v3737 = vpack.c.b16 %v2138, %v2125
    %v3738 = vpack.c.b16 %v2139, %v2126
    %v3739 = vpack.c.b16 %v2140, %v2127
    %v3740 = vpack.c.b16 %v2154, %v2141
    %v3741 = vpack.c.b16 %v2155, %v2142
    %v3742 = vpack.c.b16 %v2156, %v2143
    %v3743 = vpack.c.b16 %v2157, %v2144
    %v3744 = vpack.c.b16 %v2158, %v2145
    %v3745 = vpack.c.b16 %v2159, %v2146
    %v3746 = vpack.c.b16 %v2160, %v2147
    %v3747 = vpack.c.b16 %v2161, %v2148
    %v3748 = vpack.c.b16 %v2162, %v2149
    %v3749 = vpack.c.b16 %v2163, %v2150
    %v3750 = vpack.c.b16 %v2164, %v2151
    %v3751 = vpack.c.b16 %v2165, %v2152
    %v3752 = vpack.c.b16 %v2166, %v2153
    %v3753 = vpack.c.b16 %v2180, %v2167
    %v3754 = vpack.c.b16 %v2181, %v2168
    %v3755 = vpack.c.b16 %v2182, %v2169
    %v3756 = vpack.c.b16 %v2183, %v2170
    %v3757 = vpack.c.b16 %v2184, %v2171
    %v3758 = vpack.c.b16 %v2185, %v2172
    %v3759 = vpack.c.b16 %v2186, %v2173
    %v3760 = vpack.c.b16 %v2187, %v2174
    %v3761 = vpack.c.b16 %v2188, %v2175
    %v3762 = vpack.c.b16 %v2189, %v2176
    %v3763 = vpack.c.b16 %v2190, %v2177
    %v3764 = vpack.c.b16 %v2191, %v2178
    %v3765 = vpack.c.b16 %v2192, %v2179
    %v3766 = vpack.c.b16 %v2206, %v2193
    %v3767 = vpack.c.b16 %v2207, %v2194
    %v3768 = vpack.c.b16 %v2208, %v2195
    %v3769 = vpack.c.b16 %v2209, %v2196
    %v3770 = vpack.c.b16 %v2210, %v2197
    %v3771 = vpack.c.b16 %v2211, %v2198
    %v3772 = vpack.c.b16 %v2212, %v2199
    %v3773 = vpack.c.b16 %v2213, %v2200
    %v3774 = vpack.c.b16 %v2214, %v2201
    %v3775 = vpack.c.b16 %v2215, %v2202
    %v3776 = vpack.c.b16 %v2216, %v2203
    %v3777 = vpack.c.b16 %v2217, %v2204
    %v3778 = vpack.c.b16 %v2218, %v2205
    %v3779 = vpack.c.b16 %v2232, %v2219
    %v3780 = vpack.c.b16 %v2233, %v2220
    %v3781 = vpack.c.b16 %v2234, %v2221
    %v3782 = vpack.c.b16 %v2235, %v2222
    %v3783 = vpack.c.b16 %v2236, %v2223
    %v3784 = vpack.c.b16 %v2237, %v2224
    %v3785 = vpack.c.b16 %v2238, %v2225
    %v3786 = vpack.c.b16 %v2239, %v2226
    %v3787 = vpack.c.b16 %v2240, %v2227
    %v3788 = vpack.c.b16 %v2241, %v2228
    %v3789 = vpack.c.b16 %v2242, %v2229
    %v3790 = vpack.c.b16 %v2243, %v2230
    %v3791 = vpack.c.b16 %v2244, %v2231
    %v3792 = vpack.c.b16 %v2258, %v2245
    %v3793 = vpack.c.b16 %v2259, %v2246
    %v3794 = vpack.c.b16 %v2260, %v2247
    %v3795 = vpack.c.b16 %v2261, %v2248
    %v3796 = vpack.c.b16 %v2262, %v2249
    %v3797 = vpack.c.b16 %v2263, %v2250
    %v3798 = vpack.c.b16 %v2264, %v2251
    %v3799 = vpack.c.b16 %v2265, %v2252
    %v3800 = vpack.c.b16 %v2266, %v2253
    %v3801 = vpack.c.b16 %v2267, %v2254
    %v3802 = vpack.c.b16 %v2268, %v2255
    %v3803 = vpack.c.b16 %v2269, %v2256
    %v3804 = vpack.c.b16 %v2270, %v2257
    %v3805 = vpack.c.b16 %v2284, %v2271
    %v3806 = vpack.c.b16 %v2285, %v2272
    %v3807 = vpack.c.b16 %v2286, %v2273
    %v3808 = vpack.c.b16 %v2287, %v2274
    %v3809 = vpack.c.b16 %v2288, %v2275
    %v3810 = vpack.c.b16 %v2289, %v2276
    %v3811 = vpack.c.b16 %v2290, %v2277
    %v3812 = vpack.c.b16 %v2291, %v2278
    %v3813 = vpack.c.b16 %v2292, %v2279
    %v3814 = vpack.c.b16 %v2293, %v2280
    %v3815 = vpack.c.b16 %v2294, %v2281
    %v3816 = vpack.c.b16 %v2295, %v2282
    %v3817 = vpack.c.b16 %v2296, %v2283
    %v3818 = vpack.c.b16 %v2310, %v2297
    %v3819 = vpack.c.b16 %v2311, %v2298
    %v3820 = vpack.c.b16 %v2312, %v2299
    %v3821 = vpack.c.b16 %v2313, %v2300
    %v3822 = vpack.c.b16 %v2314, %v2301
    %v3823 = vpack.c.b16 %v2315, %v2302
    %v3824 = vpack.c.b16 %v2316, %v2303
    %v3825 = vpack.c.b16 %v2317, %v2304
    %v3826 = vpack.c.b16 %v2318, %v2305
    %v3827 = vpack.c.b16 %v2319, %v2306
    %v3828 = vpack.c.b16 %v2320, %v2307
    %v3829 = vpack.c.b16 %v2321, %v2308
    %v3830 = vpack.c.b16 %v2322, %v2309
    %v3831 = vpack.c.b16 %v2336, %v2323
    %v3832 = vpack.c.b16 %v2337, %v2324
    %v3833 = vpack.c.b16 %v2338, %v2325
    %v3834 = vpack.c.b16 %v2339, %v2326
    %v3835 = vpack.c.b16 %v2340, %v2327
    %v3836 = vpack.c.b16 %v2341, %v2328
    %v3837 = vpack.c.b16 %v2342, %v2329
    %v3838 = vpack.c.b16 %v2343, %v2330
    %v3839 = vpack.c.b16 %v2344, %v2331
    %v3840 = vpack.c.b16 %v2345, %v2332
    %v3841 = vpack.c.b16 %v2346, %v2333
    %v3842 = vpack.c.b16 %v2347, %v2334
    %v3843 = vpack.c.b16 %v2348, %v2335
    %v3844 = vpack.c.b16 %v2362, %v2349
    %v3845 = vpack.c.b16 %v2363, %v2350
    %v3846 = vpack.c.b16 %v2364, %v2351
    %v3847 = vpack.c.b16 %v2365, %v2352
    %v3848 = vpack.c.b16 %v2366, %v2353
    %v3849 = vpack.c.b16 %v2367, %v2354
    %v3850 = vpack.c.b16 %v2368, %v2355
    %v3851 = vpack.c.b16 %v2369, %v2356
    %v3852 = vpack.c.b16 %v2370, %v2357
    %v3853 = vpack.c.b16 %v2371, %v2358
    %v3854 = vpack.c.b16 %v2372, %v2359
    %v3855 = vpack.c.b16 %v2373, %v2360
    %v3856 = vpack.c.b16 %v2374, %v2361
    %v3857 = vpack.c.b16 %v2388, %v2375
    %v3858 = vpack.c.b16 %v2389, %v2376
    %v3859 = vpack.c.b16 %v2390, %v2377
    %v3860 = vpack.c.b16 %v2391, %v2378
    %v3861 = vpack.c.b16 %v2392, %v2379
    %v3862 = vpack.c.b16 %v2393, %v2380
    %v3863 = vpack.c.b16 %v2394, %v2381
    %v3864 = vpack.c.b16 %v2395, %v2382
    %v3865 = vpack.c.b16 %v2396, %v2383
    %v3866 = vpack.c.b16 %v2397, %v2384
    %v3867 = vpack.c.b16 %v2398, %v2385
    %v3868 = vpack.c.b16 %v2399, %v2386
    %v3869 = vpack.c.b16 %v2400, %v2387
    %v3870 = vpack.c.b16 %v2414, %v2401
    %v3871 = vpack.c.b16 %v2415, %v2402
    %v3872 = vpack.c.b16 %v2416, %v2403
    %v3873 = vpack.c.b16 %v2417, %v2404
    %v3874 = vpack.c.b16 %v2418, %v2405
    %v3875 = vpack.c.b16 %v2419, %v2406
    %v3876 = vpack.c.b16 %v2420, %v2407
    %v3877 = vpack.c.b16 %v2421, %v2408
    %v3878 = vpack.c.b16 %v2422, %v2409
    %v3879 = vpack.c.b16 %v2423, %v2410
    %v3880 = vpack.c.b16 %v2424, %v2411
    %v3881 = vpack.c.b16 %v2425, %v2412
    %v3882 = vpack.c.b16 %v2426, %v2413
    %v3883 = vpack.c.b16 %v2440, %v2427
    %v3884 = vpack.c.b16 %v2441, %v2428
    %v3885 = vpack.c.b16 %v2442, %v2429
    %v3886 = vpack.c.b16 %v2443, %v2430
    %v3887 = vpack.c.b16 %v2444, %v2431
    %v3888 = vpack.c.b16 %v2445, %v2432
    %v3889 = vpack.c.b16 %v2446, %v2433
    %v3890 = vpack.c.b16 %v2447, %v2434
    %v3891 = vpack.c.b16 %v2448, %v2435
    %v3892 = vpack.c.b16 %v2449, %v2436
    %v3893 = vpack.c.b16 %v2450, %v2437
    %v3894 = vpack.c.b16 %v2451, %v2438
    %v3895 = vpack.c.b16 %v2452, %v2439
    %v3896 = vpack.c.b16 %v2466, %v2453
    %v3897 = vpack.c.b16 %v2467, %v2454
    %v3898 = vpack.c.b16 %v2468, %v2455
    %v3899 = vpack.c.b16 %v2469, %v2456
    %v3900 = vpack.c.b16 %v2470, %v2457
    %v3901 = vpack.c.b16 %v2471, %v2458
    %v3902 = vpack.c.b16 %v2472, %v2459
    %v3903 = vpack.c.b16 %v2473, %v2460
    %v3904 = vpack.c.b16 %v2474, %v2461
    %v3905 = vpack.c.b16 %v2475, %v2462
    %v3906 = vpack.c.b16 %v2476, %v2463
    %v3907 = vpack.c.b16 %v2477, %v2464
    %v3908 = vpack.c.b16 %v2478, %v2465
    %v3909 = vpack.c.b16 %v2492, %v2479
    %v3910 = vpack.c.b16 %v2493, %v2480
    %v3911 = vpack.c.b16 %v2494, %v2481
    %v3912 = vpack.c.b16 %v2495, %v2482
    %v3913 = vpack.c.b16 %v2496, %v2483
    %v3914 = vpack.c.b16 %v2497, %v2484
    %v3915 = vpack.c.b16 %v2498, %v2485
    %v3916 = vpack.c.b16 %v2499, %v2486
    %v3917 = vpack.c.b16 %v2500, %v2487
    %v3918 = vpack.c.b16 %v2501, %v2488
    %v3919 = vpack.c.b16 %v2502, %v2489
    %v3920 = vpack.c.b16 %v2503, %v2490
    %v3921 = vpack.c.b16 %v2504, %v2491
    %v3922 = vpack.c.b16 %v2518, %v2505
    %v3923 = vpack.c.b16 %v2519, %v2506
    %v3924 = vpack.c.b16 %v2520, %v2507
    %v3925 = vpack.c.b16 %v2521, %v2508
    %v3926 = vpack.c.b16 %v2522, %v2509
    %v3927 = vpack.c.b16 %v2523, %v2510
    %v3928 = vpack.c.b16 %v2524, %v2511
    %v3929 = vpack.c.b16 %v2525, %v2512
    %v3930 = vpack.c.b16 %v2526, %v2513
    %v3931 = vpack.c.b16 %v2527, %v2514
    %v3932 = vpack.c.b16 %v2528, %v2515
    %v3933 = vpack.c.b16 %v2529, %v2516
    %v3934 = vpack.c.b16 %v2530, %v2517
    %v3935 = vpack.c.b16 %v2544, %v2531
    %v3936 = vpack.c.b16 %v2545, %v2532
    %v3937 = vpack.c.b16 %v2546, %v2533
    %v3938 = vpack.c.b16 %v2547, %v2534
    %v3939 = vpack.c.b16 %v2548, %v2535
    %v3940 = vpack.c.b16 %v2549, %v2536
    %v3941 = vpack.c.b16 %v2550, %v2537
    %v3942 = vpack.c.b16 %v2551, %v2538
    %v3943 = vpack.c.b16 %v2552, %v2539
    %v3944 = vpack.c.b16 %v2553, %v2540
    %v3945 = vpack.c.b16 %v2554, %v2541
    %v3946 = vpack.c.b16 %v2555, %v2542
    %v3947 = vpack.c.b16 %v2556, %v2543
    %v3948 = vpack.c.b16 %v2570, %v2557
    %v3949 = vpack.c.b16 %v2571, %v2558
    %v3950 = vpack.c.b16 %v2572, %v2559
    %v3951 = vpack.c.b16 %v2573, %v2560
    %v3952 = vpack.c.b16 %v2574, %v2561
    %v3953 = vpack.c.b16 %v2575, %v2562
    %v3954 = vpack.c.b16 %v2576, %v2563
    %v3955 = vpack.c.b16 %v2577, %v2564
    %v3956 = vpack.c.b16 %v2578, %v2565
    %v3957 = vpack.c.b16 %v2579, %v2566
    %v3958 = vpack.c.b16 %v2580, %v2567
    %v3959 = vpack.c.b16 %v2581, %v2568
    %v3960 = vpack.c.b16 %v2582, %v2569
    %v3961 = vpack.c.b16 %v2596, %v2583
    %v3962 = vpack.c.b16 %v2597, %v2584
    %v3963 = vpack.c.b16 %v2598, %v2585
    %v3964 = vpack.c.b16 %v2599, %v2586
    %v3965 = vpack.c.b16 %v2600, %v2587
    %v3966 = vpack.c.b16 %v2601, %v2588
    %v3967 = vpack.c.b16 %v2602, %v2589
    %v3968 = vpack.c.b16 %v2603, %v2590
    %v3969 = vpack.c.b16 %v2604, %v2591
    %v3970 = vpack.c.b16 %v2605, %v2592
    %v3971 = vpack.c.b16 %v2606, %v2593
    %v3972 = vpack.c.b16 %v2607, %v2594
    %v3973 = vpack.c.b16 %v2608, %v2595
    %v3974 = vpack.c.b16 %v2622, %v2609
    %v3975 = vpack.c.b16 %v2623, %v2610
    %v3976 = vpack.c.b16 %v2624, %v2611
    %v3977 = vpack.c.b16 %v2625, %v2612
    %v3978 = vpack.c.b16 %v2626, %v2613
    %v3979 = vpack.c.b16 %v2627, %v2614
    %v3980 = vpack.c.b16 %v2628, %v2615
    %v3981 = vpack.c.b16 %v2629, %v2616
    %v3982 = vpack.c.b16 %v2630, %v2617
    %v3983 = vpack.c.b16 %v2631, %v2618
    %v3984 = vpack.c.b16 %v2632, %v2619
    %v3985 = vpack.c.b16 %v2633, %v2620
    %v3986 = vpack.c.b16 %v2634, %v2621
    %v3987 = vpack.c.b16 %v2648, %v2635
    %v3988 = vpack.c.b16 %v2649, %v2636
    %v3989 = vpack.c.b16 %v2650, %v2637
    %v3990 = vpack.c.b16 %v2651, %v2638
    %v3991 = vpack.c.b16 %v2652, %v2639
    %v3992 = vpack.c.b16 %v2653, %v2640
    %v3993 = vpack.c.b16 %v2654, %v2641
    %v3994 = vpack.c.b16 %v2655, %v2642
    %v3995 = vpack.c.b16 %v2656, %v2643
    %v3996 = vpack.c.b16 %v2657, %v2644
    %v3997 = vpack.c.b16 %v2658, %v2645
    %v3998 = vpack.c.b16 %v2659, %v2646
    %v3999 = vpack.c.b16 %v2660, %v2647
    %v4000 = vpack.c.b16 %v2674, %v2661
    %v4001 = vpack.c.b16 %v2675, %v2662
    %v4002 = vpack.c.b16 %v2676, %v2663
    %v4003 = vpack.c.b16 %v2677, %v2664
    %v4004 = vpack.c.b16 %v2678, %v2665
    %v4005 = vpack.c.b16 %v2679, %v2666
    %v4006 = vpack.c.b16 %v2680, %v2667
    %v4007 = vpack.c.b16 %v2681, %v2668
    %v4008 = vpack.c.b16 %v2682, %v2669
    %v4009 = vpack.c.b16 %v2683, %v2670
    %v4010 = vpack.c.b16 %v2684, %v2671
    %v4011 = vpack.c.b16 %v2685, %v2672
    %v4012 = vpack.c.b16 %v2686, %v2673
    %v4013 = vpack.c.b16 %v2700, %v2687
    %v4014 = vpack.c.b16 %v2701, %v2688
    %v4015 = vpack.c.b16 %v2702, %v2689
    %v4016 = vpack.c.b16 %v2703, %v2690
    %v4017 = vpack.c.b16 %v2704, %v2691
    %v4018 = vpack.c.b16 %v2705, %v2692
    %v4019 = vpack.c.b16 %v2706, %v2693
    %v4020 = vpack.c.b16 %v2707, %v2694
    %v4021 = vpack.c.b16 %v2708, %v2695
    %v4022 = vpack.c.b16 %v2709, %v2696
    %v4023 = vpack.c.b16 %v2710, %v2697
    %v4024 = vpack.c.b16 %v2711, %v2698
    %v4025 = vpack.c.b16 %v2712, %v2699
    %v4026 = vpack.c.b16 %v2726, %v2713
    %v4027 = vpack.c.b16 %v2727, %v2714
    %v4028 = vpack.c.b16 %v2728, %v2715
    %v4029 = vpack.c.b16 %v2729, %v2716
    %v4030 = vpack.c.b16 %v2730, %v2717
    %v4031 = vpack.c.b16 %v2731, %v2718
    %v4032 = vpack.c.b16 %v2732, %v2719
    %v4033 = vpack.c.b16 %v2733, %v2720
    %v4034 = vpack.c.b16 %v2734, %v2721
    %v4035 = vpack.c.b16 %v2735, %v2722
    %v4036 = vpack.c.b16 %v2736, %v2723
    %v4037 = vpack.c.b16 %v2737, %v2724
    %v4038 = vpack.c.b16 %v2738, %v2725
    %v4039 = vpack.c.b16 %v2752, %v2739
    %v4040 = vpack.c.b16 %v2753, %v2740
    %v4041 = vpack.c.b16 %v2754, %v2741
    %v4042 = vpack.c.b16 %v2755, %v2742
    %v4043 = vpack.c.b16 %v2756, %v2743
    %v4044 = vpack.c.b16 %v2757, %v2744
    %v4045 = vpack.c.b16 %v2758, %v2745
    %v4046 = vpack.c.b16 %v2759, %v2746
    %v4047 = vpack.c.b16 %v2760, %v2747
    %v4048 = vpack.c.b16 %v2761, %v2748
    %v4049 = vpack.c.b16 %v2762, %v2749
    %v4050 = vpack.c.b16 %v2763, %v2750
    %v4051 = vpack.c.b16 %v2764, %v2751
    %v4052 = vpack.c.b16 %v2778, %v2765
    %v4053 = vpack.c.b16 %v2779, %v2766
    %v4054 = vpack.c.b16 %v2780, %v2767
    %v4055 = vpack.c.b16 %v2781, %v2768
    %v4056 = vpack.c.b16 %v2782, %v2769
    %v4057 = vpack.c.b16 %v2783, %v2770
    %v4058 = vpack.c.b16 %v2784, %v2771
    %v4059 = vpack.c.b16 %v2785, %v2772
    %v4060 = vpack.c.b16 %v2786, %v2773
    %v4061 = vpack.c.b16 %v2787, %v2774
    %v4062 = vpack.c.b16 %v2788, %v2775
    %v4063 = vpack.c.b16 %v2789, %v2776
    %v4064 = vpack.c.b16 %v2790, %v2777
    %v4065 = vpack.c.b16 %v2804, %v2791
    %v4066 = vpack.c.b16 %v2805, %v2792
    %v4067 = vpack.c.b16 %v2806, %v2793
    %v4068 = vpack.c.b16 %v2807, %v2794
    %v4069 = vpack.c.b16 %v2808, %v2795
    %v4070 = vpack.c.b16 %v2809, %v2796
    %v4071 = vpack.c.b16 %v2810, %v2797
    %v4072 = vpack.c.b16 %v2811, %v2798
    %v4073 = vpack.c.b16 %v2812, %v2799
    %v4074 = vpack.c.b16 %v2813, %v2800
    %v4075 = vpack.c.b16 %v2814, %v2801
    %v4076 = vpack.c.b16 %v2815, %v2802
    %v4077 = vpack.c.b16 %v2816, %v2803
    %v4078 = vpack.c.b16 %v2830, %v2817
    %v4079 = vpack.c.b16 %v2831, %v2818
    %v4080 = vpack.c.b16 %v2832, %v2819
    %v4081 = vpack.c.b16 %v2833, %v2820
    %v4082 = vpack.c.b16 %v2834, %v2821
    %v4083 = vpack.c.b16 %v2835, %v2822
    %v4084 = vpack.c.b16 %v2836, %v2823
    %v4085 = vpack.c.b16 %v2837, %v2824
    %v4086 = vpack.c.b16 %v2838, %v2825
    %v4087 = vpack.c.b16 %v2839, %v2826
    %v4088 = vpack.c.b16 %v2840, %v2827
    %v4089 = vpack.c.b16 %v2841, %v2828
    %v4090 = vpack.c.b16 %v2842, %v2829
    %v4091 = vpack.c.b16 %v2856, %v2843
    %v4092 = vpack.c.b16 %v2857, %v2844
    %v4093 = vpack.c.b16 %v2858, %v2845
    %v4094 = vpack.c.b16 %v2859, %v2846
    %v4095 = vpack.c.b16 %v2860, %v2847
    %v4096 = vpack.c.b16 %v2861, %v2848
    %v4097 = vpack.c.b16 %v2862, %v2849
    %v4098 = vpack.c.b16 %v2863, %v2850
    %v4099 = vpack.c.b16 %v2864, %v2851
    %v4100 = vpack.c.b16 %v2865, %v2852
    %v4101 = vpack.c.b16 %v2866, %v2853
    %v4102 = vpack.c.b16 %v2867, %v2854
    %v4103 = vpack.c.b16 %v2868, %v2855
    %v4104 = vpack.c.b16 %v2882, %v2869
    %v4105 = vpack.c.b16 %v2883, %v2870
    %v4106 = vpack.c.b16 %v2884, %v2871
    %v4107 = vpack.c.b16 %v2885, %v2872
    %v4108 = vpack.c.b16 %v2886, %v2873
    %v4109 = vpack.c.b16 %v2887, %v2874
    %v4110 = vpack.c.b16 %v2888, %v2875
    %v4111 = vpack.c.b16 %v2889, %v2876
    %v4112 = vpack.c.b16 %v2890, %v2877
    %v4113 = vpack.c.b16 %v2891, %v2878
    %v4114 = vpack.c.b16 %v2892, %v2879
    %v4115 = vpack.c.b16 %v2893, %v2880
    %v4116 = vpack.c.b16 %v2894, %v2881
    %v4117 = vpack.c.b16 %v2908, %v2895
    %v4118 = vpack.c.b16 %v2909, %v2896
    %v4119 = vpack.c.b16 %v2910, %v2897
    %v4120 = vpack.c.b16 %v2911, %v2898
    %v4121 = vpack.c.b16 %v2912, %v2899
    %v4122 = vpack.c.b16 %v2913, %v2900
    %v4123 = vpack.c.b16 %v2914, %v2901
    %v4124 = vpack.c.b16 %v2915, %v2902
    %v4125 = vpack.c.b16 %v2916, %v2903
    %v4126 = vpack.c.b16 %v2917, %v2904
    %v4127 = vpack.c.b16 %v2918, %v2905
    %v4128 = vpack.c.b16 %v2919, %v2906
    %v4129 = vpack.c.b16 %v2920, %v2907
    %v4130 = vpack.c.b16 %v2934, %v2921
    %v4131 = vpack.c.b16 %v2935, %v2922
    %v4132 = vpack.c.b16 %v2936, %v2923
    %v4133 = vpack.c.b16 %v2937, %v2924
    %v4134 = vpack.c.b16 %v2938, %v2925
    %v4135 = vpack.c.b16 %v2939, %v2926
    %v4136 = vpack.c.b16 %v2940, %v2927
    %v4137 = vpack.c.b16 %v2941, %v2928
    %v4138 = vpack.c.b16 %v2942, %v2929
    %v4139 = vpack.c.b16 %v2943, %v2930
    %v4140 = vpack.c.b16 %v2944, %v2931
    %v4141 = vpack.c.b16 %v2945, %v2932
    %v4142 = vpack.c.b16 %v2946, %v2933
    %v4143 = vpack.c.b16 %v2960, %v2947
    %v4144 = vpack.c.b16 %v2961, %v2948
    %v4145 = vpack.c.b16 %v2962, %v2949
    %v4146 = vpack.c.b16 %v2963, %v2950
    %v4147 = vpack.c.b16 %v2964, %v2951
    %v4148 = vpack.c.b16 %v2965, %v2952
    %v4149 = vpack.c.b16 %v2966, %v2953
    %v4150 = vpack.c.b16 %v2967, %v2954
    %v4151 = vpack.c.b16 %v2968, %v2955
    %v4152 = vpack.c.b16 %v2969, %v2956
    %v4153 = vpack.c.b16 %v2970, %v2957
    %v4154 = vpack.c.b16 %v2971, %v2958
    %v4155 = vpack.c.b16 %v2972, %v2959
    %v4156 = vpack.c.b16 %v2986, %v2973
    %v4157 = vpack.c.b16 %v2987, %v2974
    %v4158 = vpack.c.b16 %v2988, %v2975
    %v4159 = vpack.c.b16 %v2989, %v2976
    %v4160 = vpack.c.b16 %v2990, %v2977
    %v4161 = vpack.c.b16 %v2991, %v2978
    %v4162 = vpack.c.b16 %v2992, %v2979
    %v4163 = vpack.c.b16 %v2993, %v2980
    %v4164 = vpack.c.b16 %v2994, %v2981
    %v4165 = vpack.c.b16 %v2995, %v2982
    %v4166 = vpack.c.b16 %v2996, %v2983
    %v4167 = vpack.c.b16 %v2997, %v2984
    %v4168 = vpack.c.b16 %v2998, %v2985
    %v4169 = vpack.c.b16 %v3012, %v2999
    %v4170 = vpack.c.b16 %v3013, %v3000
    %v4171 = vpack.c.b16 %v3014, %v3001
    %v4172 = vpack.c.b16 %v3015, %v3002
    %v4173 = vpack.c.b16 %v3016, %v3003
    %v4174 = vpack.c.b16 %v3017, %v3004
    %v4175 = vpack.c.b16 %v3018, %v3005
    %v4176 = vpack.c.b16 %v3019, %v3006
    %v4177 = vpack.c.b16 %v3020, %v3007
    %v4178 = vpack.c.b16 %v3021, %v3008
    %v4179 = vpack.c.b16 %v3022, %v3009
    %v4180 = vpack.c.b16 %v3023, %v3010
    %v4181 = vpack.c.b16 %v3024, %v3011
    %v4182 = vpack.c.b16 %v3038, %v3025
    %v4183 = vpack.c.b16 %v3039, %v3026
    %v4184 = vpack.c.b16 %v3040, %v3027
    %v4185 = vpack.c.b16 %v3041, %v3028
    %v4186 = vpack.c.b16 %v3042, %v3029
    %v4187 = vpack.c.b16 %v3043, %v3030
    %v4188 = vpack.c.b16 %v3044, %v3031
    %v4189 = vpack.c.b16 %v3045, %v3032
    %v4190 = vpack.c.b16 %v3046, %v3033
    %v4191 = vpack.c.b16 %v3047, %v3034
    %v4192 = vpack.c.b16 %v3048, %v3035
    %v4193 = vpack.c.b16 %v3049, %v3036
    %v4194 = vpack.c.b16 %v3050, %v3037
    %v4195 = vpack.c.b16 %v3064, %v3051
    %v4196 = vpack.c.b16 %v3065, %v3052
    %v4197 = vpack.c.b16 %v3066, %v3053
    %v4198 = vpack.c.b16 %v3067, %v3054
    %v4199 = vpack.c.b16 %v3068, %v3055
    %v4200 = vpack.c.b16 %v3069, %v3056
    %v4201 = vpack.c.b16 %v3070, %v3057
    %v4202 = vpack.c.b16 %v3071, %v3058
    %v4203 = vpack.c.b16 %v3072, %v3059
    %v4204 = vpack.c.b16 %v3073, %v3060
    %v4205 = vpack.c.b16 %v3074, %v3061
    %v4206 = vpack.c.b16 %v3075, %v3062
    %v4207 = vpack.c.b16 %v3076, %v3063
    %v4208 = vpack.c.b16 %v3090, %v3077
    %v4209 = vpack.c.b16 %v3091, %v3078
    %v4210 = vpack.c.b16 %v3092, %v3079
    %v4211 = vpack.c.b16 %v3093, %v3080
    %v4212 = vpack.c.b16 %v3094, %v3081
    %v4213 = vpack.c.b16 %v3095, %v3082
    %v4214 = vpack.c.b16 %v3096, %v3083
    %v4215 = vpack.c.b16 %v3097, %v3084
    %v4216 = vpack.c.b16 %v3098, %v3085
    %v4217 = vpack.c.b16 %v3099, %v3086
    %v4218 = vpack.c.b16 %v3100, %v3087
    %v4219 = vpack.c.b16 %v3101, %v3088
    %v4220 = vpack.c.b16 %v3102, %v3089
    %v4221 = vpack.c.b16 %v3116, %v3103
    %v4222 = vpack.c.b16 %v3117, %v3104
    %v4223 = vpack.c.b16 %v3118, %v3105
    %v4224 = vpack.c.b16 %v3119, %v3106
    %v4225 = vpack.c.b16 %v3120, %v3107
    %v4226 = vpack.c.b16 %v3121, %v3108
    %v4227 = vpack.c.b16 %v3122, %v3109
    %v4228 = vpack.c.b16 %v3123, %v3110
    %v4229 = vpack.c.b16 %v3124, %v3111
    %v4230 = vpack.c.b16 %v3125, %v3112
    %v4231 = vpack.c.b16 %v3126, %v3113
    %v4232 = vpack.c.b16 %v3127, %v3114
    %v4233 = vpack.c.b16 %v3128, %v3115
    %v4234 = vpack.c.b16 %v3142, %v3129
    %v4235 = vpack.c.b16 %v3143, %v3130
    %v4236 = vpack.c.b16 %v3144, %v3131
    %v4237 = vpack.c.b16 %v3145, %v3132
    %v4238 = vpack.c.b16 %v3146, %v3133
    %v4239 = vpack.c.b16 %v3147, %v3134
    %v4240 = vpack.c.b16 %v3148, %v3135
    %v4241 = vpack.c.b16 %v3149, %v3136
    %v4242 = vpack.c.b16 %v3150, %v3137
    %v4243 = vpack.c.b16 %v3151, %v3138
    %v4244 = vpack.c.b16 %v3152, %v3139
    %v4245 = vpack.c.b16 %v3153, %v3140
    %v4246 = vpack.c.b16 %v3154, %v3141
    %v4247 = vpack.c.b16 %v3168, %v3155
    %v4248 = vpack.c.b16 %v3169, %v3156
    %v4249 = vpack.c.b16 %v3170, %v3157
    %v4250 = vpack.c.b16 %v3171, %v3158
    %v4251 = vpack.c.b16 %v3172, %v3159
    %v4252 = vpack.c.b16 %v3173, %v3160
    %v4253 = vpack.c.b16 %v3174, %v3161
    %v4254 = vpack.c.b16 %v3175, %v3162
    %v4255 = vpack.c.b16 %v3176, %v3163
    %v4256 = vpack.c.b16 %v3177, %v3164
    %v4257 = vpack.c.b16 %v3178, %v3165
    %v4258 = vpack.c.b16 %v3179, %v3166
    %v4259 = vpack.c.b16 %v3180, %v3167
    %v4260 = vpack.c.b16 %v3194, %v3181
    %v4261 = vpack.c.b16 %v3195, %v3182
    %v4262 = vpack.c.b16 %v3196, %v3183
    %v4263 = vpack.c.b16 %v3197, %v3184
    %v4264 = vpack.c.b16 %v3198, %v3185
    %v4265 = vpack.c.b16 %v3199, %v3186
    %v4266 = vpack.c.b16 %v3200, %v3187
    %v4267 = vpack.c.b16 %v3201, %v3188
    %v4268 = vpack.c.b16 %v3202, %v3189
    %v4269 = vpack.c.b16 %v3203, %v3190
    %v4270 = vpack.c.b16 %v3204, %v3191
    %v4271 = vpack.c.b16 %v3205, %v3192
    %v4272 = vpack.c.b16 %v3206, %v3193
    %v4273 = vpack.c.b16 %v3220, %v3207
    %v4274 = vpack.c.b16 %v3221, %v3208
    %v4275 = vpack.c.b16 %v3222, %v3209
    %v4276 = vpack.c.b16 %v3223, %v3210
    %v4277 = vpack.c.b16 %v3224, %v3211
    %v4278 = vpack.c.b16 %v3225, %v3212
    %v4279 = vpack.c.b16 %v3226, %v3213
    %v4280 = vpack.c.b16 %v3227, %v3214
    %v4281 = vpack.c.b16 %v3228, %v3215
    %v4282 = vpack.c.b16 %v3229, %v3216
    %v4283 = vpack.c.b16 %v3230, %v3217
    %v4284 = vpack.c.b16 %v3231, %v3218
    %v4285 = vpack.c.b16 %v3232, %v3219
    %v4286 = vpack.c.b16 %v3246, %v3233
    %v4287 = vpack.c.b16 %v3247, %v3234
    %v4288 = vpack.c.b16 %v3248, %v3235
    %v4289 = vpack.c.b16 %v3249, %v3236
    %v4290 = vpack.c.b16 %v3250, %v3237
    %v4291 = vpack.c.b16 %v3251, %v3238
    %v4292 = vpack.c.b16 %v3252, %v3239
    %v4293 = vpack.c.b16 %v3253, %v3240
    %v4294 = vpack.c.b16 %v3254, %v3241
    %v4295 = vpack.c.b16 %v3255, %v3242
    %v4296 = vpack.c.b16 %v3256, %v3243
    %v4297 = vpack.c.b16 %v3257, %v3244
    %v4298 = vpack.c.b16 %v3258, %v3245
    %v4299 = vpack.c.b16 %v3272, %v3259
    %v4300 = vpack.c.b16 %v3273, %v3260
    %v4301 = vpack.c.b16 %v3274, %v3261
    %v4302 = vpack.c.b16 %v3275, %v3262
    %v4303 = vpack.c.b16 %v3276, %v3263
    %v4304 = vpack.c.b16 %v3277, %v3264
    %v4305 = vpack.c.b16 %v3278, %v3265
    %v4306 = vpack.c.b16 %v3279, %v3266
    %v4307 = vpack.c.b16 %v3280, %v3267
    %v4308 = vpack.c.b16 %v3281, %v3268
    %v4309 = vpack.c.b16 %v3282, %v3269
    %v4310 = vpack.c.b16 %v3283, %v3270
    %v4311 = vpack.c.b16 %v3284, %v3271
    %v4312 = vpack.c.b16 %v3298, %v3285
    %v4313 = vpack.c.b16 %v3299, %v3286
    %v4314 = vpack.c.b16 %v3300, %v3287
    %v4315 = vpack.c.b16 %v3301, %v3288
    %v4316 = vpack.c.b16 %v3302, %v3289
    %v4317 = vpack.c.b16 %v3303, %v3290
    %v4318 = vpack.c.b16 %v3304, %v3291
    %v4319 = vpack.c.b16 %v3305, %v3292
    %v4320 = vpack.c.b16 %v3306, %v3293
    %v4321 = vpack.c.b16 %v3307, %v3294
    %v4322 = vpack.c.b16 %v3308, %v3295
    %v4323 = vpack.c.b16 %v3309, %v3296
    %v4324 = vpack.c.b16 %v3310, %v3297
    %v4325 = vpack.c.b16 %v3324, %v3311
    %v4326 = vpack.c.b16 %v3325, %v3312
    %v4327 = vpack.c.b16 %v3326, %v3313
    %v4328 = vpack.c.b16 %v3327, %v3314
    %v4329 = vpack.c.b16 %v3328, %v3315
    %v4330 = vpack.c.b16 %v3329, %v3316
    %v4331 = vpack.c.b16 %v3330, %v3317
    %v4332 = vpack.c.b16 %v3331, %v3318
    %v4333 = vpack.c.b16 %v3332, %v3319
    %v4334 = vpack.c.b16 %v3333, %v3320
    %v4335 = vpack.c.b16 %v3334, %v3321
    %v4336 = vpack.c.b16 %v3335, %v3322
    %v4337 = vpack.c.b16 %v3336, %v3323
    %v4338 = vpack.c.b16 %v3350, %v3337
    %v4339 = vpack.c.b16 %v3351, %v3338
    %v4340 = vpack.c.b16 %v3352, %v3339
    %v4341 = vpack.c.b16 %v3353, %v3340
    %v4342 = vpack.c.b16 %v3354, %v3341
    %v4343 = vpack.c.b16 %v3355, %v3342
    %v4344 = vpack.c.b16 %v3356, %v3343
    %v4345 = vpack.c.b16 %v3357, %v3344
    %v4346 = vpack.c.b16 %v3358, %v3345
    %v4347 = vpack.c.b16 %v3359, %v3346
    %v4348 = vpack.c.b16 %v3360, %v3347
    %v4349 = vpack.c.b16 %v3361, %v3348
    %v4350 = vpack.c.b16 %v3362, %v3349
    %v4351 = vpack.c.b16 %v3376, %v3363
    %v4352 = vpack.c.b16 %v3377, %v3364
    %v4353 = vpack.c.b16 %v3378, %v3365
    %v4354 = vpack.c.b16 %v3379, %v3366
    %v4355 = vpack.c.b16 %v3380, %v3367
    %v4356 = vpack.c.b16 %v3381, %v3368
    %v4357 = vpack.c.b16 %v3382, %v3369
    %v4358 = vpack.c.b16 %v3383, %v3370
    %v4359 = vpack.c.b16 %v3384, %v3371
    %v4360 = vpack.c.b16 %v3385, %v3372
    %v4361 = vpack.c.b16 %v3386, %v3373
    %v4362 = vpack.c.b16 %v3387, %v3374
    %v4363 = vpack.c.b16 %v3388, %v3375
    %v4364 = vpack.c.b16 %v3402, %v3389
    %v4365 = vpack.c.b16 %v3403, %v3390
    %v4366 = vpack.c.b16 %v3404, %v3391
    %v4367 = vpack.c.b16 %v3405, %v3392
    %v4368 = vpack.c.b16 %v3406, %v3393
    %v4369 = vpack.c.b16 %v3407, %v3394
    %v4370 = vpack.c.b16 %v3408, %v3395
    %v4371 = vpack.c.b16 %v3409, %v3396
    %v4372 = vpack.c.b16 %v3410, %v3397
    %v4373 = vpack.c.b16 %v3411, %v3398
    %v4374 = vpack.c.b16 %v3412, %v3399
    %v4375 = vpack.c.b16 %v3413, %v3400
    %v4376 = vpack.c.b16 %v3414, %v3401
    %v4377 = vpack.c.b16 %v3428, %v3415
    %v4378 = vpack.c.b16 %v3429, %v3416
    %v4379 = vpack.c.b16 %v3430, %v3417
    %v4380 = vpack.c.b16 %v3431, %v3418
    %v4381 = vpack.c.b16 %v3432, %v3419
    %v4382 = vpack.c.b16 %v3433, %v3420
    %v4383 = vpack.c.b16 %v3434, %v3421
    %v4384 = vpack.c.b16 %v3435, %v3422
    %v4385 = vpack.c.b16 %v3436, %v3423
    %v4386 = vpack.c.b16 %v3437, %v3424
    %v4387 = vpack.c.b16 %v3438, %v3425
    %v4388 = vpack.c.b16 %v3439, %v3426
    %v4389 = vpack.c.b16 %v3440, %v3427
    %v4390 = vpack.c.b16 %v3454, %v3441
    %v4391 = vpack.c.b16 %v3455, %v3442
    %v4392 = vpack.c.b16 %v3456, %v3443
    %v4393 = vpack.c.b16 %v3457, %v3444
    %v4394 = vpack.c.b16 %v3458, %v3445
    %v4395 = vpack.c.b16 %v3459, %v3446
    %v4396 = vpack.c.b16 %v3460, %v3447
    %v4397 = vpack.c.b16 %v3461, %v3448
    %v4398 = vpack.c.b16 %v3462, %v3449
    %v4399 = vpack.c.b16 %v3463, %v3450
    %v4400 = vpack.c.b16 %v3464, %v3451
    %v4401 = vpack.c.b16 %v3465, %v3452
    %v4402 = vpack.c.b16 %v3466, %v3453
    %v4403 = vpack.c.b16 %v3480, %v3467
    %v4404 = vpack.c.b16 %v3481, %v3468
    %v4405 = vpack.c.b16 %v3482, %v3469
    %v4406 = vpack.c.b16 %v3483, %v3470
    %v4407 = vpack.c.b16 %v3484, %v3471
    %v4408 = vpack.c.b16 %v3485, %v3472
    %v4409 = vpack.c.b16 %v3486, %v3473
    %v4410 = vpack.c.b16 %v3487, %v3474
    %v4411 = vpack.c.b16 %v3488, %v3475
    %v4412 = vpack.c.b16 %v3489, %v3476
    %v4413 = vpack.c.b16 %v3490, %v3477
    %v4414 = vpack.c.b16 %v3491, %v3478
    %v4415 = vpack.c.b16 %v3492, %v3479
    %v4416 = vpack.c.b16 %v3506, %v3493
    %v4417 = vpack.c.b16 %v3507, %v3494
    %v4418 = vpack.c.b16 %v3508, %v3495
    %v4419 = vpack.c.b16 %v3509, %v3496
    %v4420 = vpack.c.b16 %v3510, %v3497
    %v4421 = vpack.c.b16 %v3511, %v3498
    %v4422 = vpack.c.b16 %v3512, %v3499
    %v4423 = vpack.c.b16 %v3513, %v3500
    %v4424 = vpack.c.b16 %v3514, %v3501
    %v4425 = vpack.c.b16 %v3515, %v3502
    %v4426 = vpack.c.b16 %v3516, %v3503
    %v4427 = vpack.c.b16 %v3517, %v3504
    %v4428 = vpack.c.b16 %v3518, %v3505
    %v4429 = vpack.c.b16 %v3532, %v3519
    %v4430 = vpack.c.b16 %v3533, %v3520
    %v4431 = vpack.c.b16 %v3534, %v3521
    %v4432 = vpack.c.b16 %v3535, %v3522
    %v4433 = vpack.c.b16 %v3536, %v3523
    %v4434 = vpack.c.b16 %v3537, %v3524
    %v4435 = vpack.c.b16 %v3538, %v3525
    %v4436 = vpack.c.b16 %v3539, %v3526
    %v4437 = vpack.c.b16 %v3540, %v3527
    %v4438 = vpack.c.b16 %v3541, %v3528
    %v4439 = vpack.c.b16 %v3542, %v3529
    %v4440 = vpack.c.b16 %v3543, %v3530
    %v4441 = vpack.c.b16 %v3544, %v3531
    %v4442 = vpack.c.b16 %v3558, %v3545
    %v4443 = vpack.c.b16 %v3559, %v3546
    %v4444 = vpack.c.b16 %v3560, %v3547
    %v4445 = vpack.c.b16 %v3561, %v3548
    %v4446 = vpack.c.b16 %v3562, %v3549
    %v4447 = vpack.c.b16 %v3563, %v3550
    %v4448 = vpack.c.b16 %v3564, %v3551
    %v4449 = vpack.c.b16 %v3565, %v3552
    %v4450 = vpack.c.b16 %v3566, %v3553
    %v4451 = vpack.c.b16 %v3567, %v3554
    %v4452 = vpack.c.b16 %v3568, %v3555
    %v4453 = vpack.c.b16 %v3569, %v3556
    %v4454 = vpack.c.b16 %v3570, %v3557
    %v4455 = vpack.c.b16 %v3584, %v3571
    %v4456 = vpack.c.b16 %v3585, %v3572
    %v4457 = vpack.c.b16 %v3586, %v3573
    %v4458 = vpack.c.b16 %v3587, %v3574
    %v4459 = vpack.c.b16 %v3588, %v3575
    %v4460 = vpack.c.b16 %v3589, %v3576
    %v4461 = vpack.c.b16 %v3590, %v3577
    %v4462 = vpack.c.b16 %v3591, %v3578
    %v4463 = vpack.c.b16 %v3592, %v3579
    %v4464 = vpack.c.b16 %v3593, %v3580
    %v4465 = vpack.c.b16 %v3594, %v3581
    %v4466 = vpack.c.b16 %v3595, %v3582
    %v4467 = vpack.c.b16 %v3596, %v3583
    %v4468 = vpack.c.b16 %v3610, %v3597
    %v4469 = vpack.c.b16 %v3611, %v3598
    %v4470 = vpack.c.b16 %v3612, %v3599
    %v4471 = vpack.c.b16 %v3613, %v3600
    %v4472 = vpack.c.b16 %v3614, %v3601
    %v4473 = vpack.c.b16 %v3615, %v3602
    %v4474 = vpack.c.b16 %v3616, %v3603
    %v4475 = vpack.c.b16 %v3617, %v3604
    %v4476 = vpack.c.b16 %v3618, %v3605
    %v4477 = vpack.c.b16 %v3619, %v3606
    %v4478 = vpack.c.b16 %v3620, %v3607
    %v4479 = vpack.c.b16 %v3621, %v3608
    %v4480 = vpack.c.b16 %v3622, %v3609
    %v4481 = vpack.c.b16 %v3636, %v3623
    %v4482 = vpack.c.b16 %v3637, %v3624
    %v4483 = vpack.c.b16 %v3638, %v3625
    %v4484 = vpack.c.b16 %v3639, %v3626
    %v4485 = vpack.c.b16 %v3640, %v3627
    %v4486 = vpack.c.b16 %v3641, %v3628
    %v4487 = vpack.c.b16 %v3642, %v3629
    %v4488 = vpack.c.b16 %v3643, %v3630
    %v4489 = vpack.c.b16 %v3644, %v3631
    %v4490 = vpack.c.b16 %v3645, %v3632
    %v4491 = vpack.c.b16 %v3646, %v3633
    %v4492 = vpack.c.b16 %v3647, %v3634
    %v4493 = vpack.c.b16 %v3648, %v3635
    %v4494 = vpack.c.b16 %v3662, %v3649
    %v4495 = vpack.c.b16 %v3663, %v3650
    %v4496 = vpack.c.b16 %v3664, %v3651
    %v4497 = vpack.c.b16 %v3665, %v3652
    %v4498 = vpack.c.b16 %v3666, %v3653
    %v4499 = vpack.c.b16 %v3667, %v3654
    %v4500 = vpack.c.b16 %v3668, %v3655
    %v4501 = vpack.c.b16 %v3669, %v3656
    %v4502 = vpack.c.b16 %v3670, %v3657
    %v4503 = vpack.c.b16 %v3671, %v3658
    %v4504 = vpack.c.b16 %v3672, %v3659
    %v4505 = vpack.c.b16 %v3673, %v3660
    %v4506 = vpack.c.b16 %v3674, %v3661
    %5339 = vmatpush.bf16.msra.mxu0 %v3766
    %5340 = vmatpush.bf16.msra.mxu0 %v3753
    %5341 = vmatpush.bf16.msra.mxu0 %v3740
    %5342 = vmatpush.bf16.msra.mxu0 %v3727
    %5343 = vmatpush.bf16.msra.mxu0 %v3714
    %5344 = vmatpush.bf16.msra.mxu0 %v3701
    %5345 = vmatpush.bf16.msra.mxu0 %v3688
    %5346 = vmatpush.bf16.msra.mxu0 %v3675
    %5347 = vmatmul.bf16.gmra.mxu0 %v181
    %v5348 = vpop.f32.mrf.mxu0
    %v5349 = vadd.f32 %v1089, %v5348
    %v5350 = vpop.f32.mrf.mxu0
    %v5351 = vadd.f32 %v1089, %v5350
    %5352 = vdwg.mxu0
    %5353 = vmatpush.bf16.msra.mxu0 %v3870
    %5354 = vmatpush.bf16.msra.mxu0 %v3857
    %5355 = vmatpush.bf16.msra.mxu0 %v3844
    %5356 = vmatpush.bf16.msra.mxu0 %v3831
    %5357 = vmatpush.bf16.msra.mxu0 %v3818
    %5358 = vmatpush.bf16.msra.mxu0 %v3805
    %5359 = vmatpush.bf16.msra.mxu0 %v3792
    %5360 = vmatpush.bf16.msra.mxu0 %v3779
    %5361 = vmatmul.bf16.gmra.mxu0 %v182
    %v5362 = vpop.f32.mrf.mxu0
    %v5363 = vadd.f32 %v5349, %v5362
    %v5364 = vpop.f32.mrf.mxu0
    %v5365 = vadd.f32 %v5351, %v5364
    %5366 = vdwg.mxu0
    %5367 = vmatpush.bf16.msra.mxu0 %v3974
    %5368 = vmatpush.bf16.msra.mxu0 %v3961
    %5369 = vmatpush.bf16.msra.mxu0 %v3948
    %5370 = vmatpush.bf16.msra.mxu0 %v3935
    %5371 = vmatpush.bf16.msra.mxu0 %v3922
    %5372 = vmatpush.bf16.msra.mxu0 %v3909
    %5373 = vmatpush.bf16.msra.mxu0 %v3896
    %5374 = vmatpush.bf16.msra.mxu0 %v3883
    %5375 = vmatmul.bf16.gmra.mxu0 %v183
    %v5376 = vpop.f32.mrf.mxu0
    %v5377 = vadd.f32 %v5363, %v5376
    %v5378 = vpop.f32.mrf.mxu0
    %v5379 = vadd.f32 %v5365, %v5378
    %5380 = vdwg.mxu0
    %5381 = vmatpush.bf16.msra.mxu0 %v4078
    %5382 = vmatpush.bf16.msra.mxu0 %v4065
    %5383 = vmatpush.bf16.msra.mxu0 %v4052
    %5384 = vmatpush.bf16.msra.mxu0 %v4039
    %5385 = vmatpush.bf16.msra.mxu0 %v4026
    %5386 = vmatpush.bf16.msra.mxu0 %v4013
    %5387 = vmatpush.bf16.msra.mxu0 %v4000
    %5388 = vmatpush.bf16.msra.mxu0 %v3987
    %5389 = vmatmul.bf16.gmra.mxu0 %v184
    %v5390 = vpop.f32.mrf.mxu0
    %v5391 = vadd.f32 %v5377, %v5390
    %v5392 = vpop.f32.mrf.mxu0
    %v5393 = vadd.f32 %v5379, %v5392
    %5394 = vdwg.mxu0
    %5395 = vmatpush.bf16.msra.mxu0 %v4182
    %5396 = vmatpush.bf16.msra.mxu0 %v4169
    %5397 = vmatpush.bf16.msra.mxu0 %v4156
    %5398 = vmatpush.bf16.msra.mxu0 %v4143
    %5399 = vmatpush.bf16.msra.mxu0 %v4130
    %5400 = vmatpush.bf16.msra.mxu0 %v4117
    %5401 = vmatpush.bf16.msra.mxu0 %v4104
    %5402 = vmatpush.bf16.msra.mxu0 %v4091
    %5403 = vmatmul.bf16.gmra.mxu0 %v185
    %v5404 = vpop.f32.mrf.mxu0
    %v5405 = vadd.f32 %v5391, %v5404
    %v5406 = vpop.f32.mrf.mxu0
    %v5407 = vadd.f32 %v5393, %v5406
    %5408 = vdwg.mxu0
    %5409 = vmatpush.bf16.msra.mxu0 %v4286
    %5410 = vmatpush.bf16.msra.mxu0 %v4273
    %5411 = vmatpush.bf16.msra.mxu0 %v4260
    %5412 = vmatpush.bf16.msra.mxu0 %v4247
    %5413 = vmatpush.bf16.msra.mxu0 %v4234
    %5414 = vmatpush.bf16.msra.mxu0 %v4221
    %5415 = vmatpush.bf16.msra.mxu0 %v4208
    %5416 = vmatpush.bf16.msra.mxu0 %v4195
    %5417 = vmatmul.bf16.gmra.mxu0 %v186
    %v5418 = vpop.f32.mrf.mxu0
    %v5419 = vadd.f32 %v5405, %v5418
    %v5420 = vpop.f32.mrf.mxu0
    %v5421 = vadd.f32 %v5407, %v5420
    %5422 = vdwg.mxu0
    %5423 = vmatpush.bf16.msra.mxu0 %v4390
    %5424 = vmatpush.bf16.msra.mxu0 %v4377
    %5425 = vmatpush.bf16.msra.mxu0 %v4364
    %5426 = vmatpush.bf16.msra.mxu0 %v4351
    %5427 = vmatpush.bf16.msra.mxu0 %v4338
    %5428 = vmatpush.bf16.msra.mxu0 %v4325
    %5429 = vmatpush.bf16.msra.mxu0 %v4312
    %5430 = vmatpush.bf16.msra.mxu0 %v4299
    %5431 = vmatmul.bf16.gmra.mxu0 %v187
    %v5432 = vpop.f32.mrf.mxu0
    %v5433 = vadd.f32 %v5419, %v5432
    %v5434 = vpop.f32.mrf.mxu0
    %v5435 = vadd.f32 %v5421, %v5434
    %5436 = vdwg.mxu0
    %5437 = vmatpush.bf16.msra.mxu0 %v4494
    %5438 = vmatpush.bf16.msra.mxu0 %v4481
    %5439 = vmatpush.bf16.msra.mxu0 %v4468
    %5440 = vmatpush.bf16.msra.mxu0 %v4455
    %5441 = vmatpush.bf16.msra.mxu0 %v4442
    %5442 = vmatpush.bf16.msra.mxu0 %v4429
    %5443 = vmatpush.bf16.msra.mxu0 %v4416
    %5444 = vmatpush.bf16.msra.mxu0 %v4403
    %5445 = vmatmul.bf16.gmra.mxu0 %v188
    %v5446 = vpop.f32.mrf.mxu0
    %v5447 = vadd.f32 %v5433, %v5446
    %v5448 = vpop.f32.mrf.mxu0
    %v5449 = vadd.f32 %v5435, %v5448
    %5450 = vdwg.mxu0
    %5451 = vmatpush.bf16.msra.mxu0 %v3767
    %5452 = vmatpush.bf16.msra.mxu0 %v3754
    %5453 = vmatpush.bf16.msra.mxu0 %v3741
    %5454 = vmatpush.bf16.msra.mxu0 %v3728
    %5455 = vmatpush.bf16.msra.mxu0 %v3715
    %5456 = vmatpush.bf16.msra.mxu0 %v3702
    %5457 = vmatpush.bf16.msra.mxu0 %v3689
    %5458 = vmatpush.bf16.msra.mxu0 %v3676
    %5459 = vmatmul.bf16.gmra.mxu0 %v181
    %v5460 = vpop.f32.mrf.mxu0
    %v5461 = vadd.f32 %v1090, %v5460
    %v5462 = vpop.f32.mrf.mxu0
    %v5463 = vadd.f32 %v1090, %v5462
    %5464 = vdwg.mxu0
    %5465 = vmatpush.bf16.msra.mxu0 %v3871
    %5466 = vmatpush.bf16.msra.mxu0 %v3858
    %5467 = vmatpush.bf16.msra.mxu0 %v3845
    %5468 = vmatpush.bf16.msra.mxu0 %v3832
    %5469 = vmatpush.bf16.msra.mxu0 %v3819
    %5470 = vmatpush.bf16.msra.mxu0 %v3806
    %5471 = vmatpush.bf16.msra.mxu0 %v3793
    %5472 = vmatpush.bf16.msra.mxu0 %v3780
    %5473 = vmatmul.bf16.gmra.mxu0 %v182
    %v5474 = vpop.f32.mrf.mxu0
    %v5475 = vadd.f32 %v5461, %v5474
    %v5476 = vpop.f32.mrf.mxu0
    %v5477 = vadd.f32 %v5463, %v5476
    %5478 = vdwg.mxu0
    %5479 = vmatpush.bf16.msra.mxu0 %v3975
    %5480 = vmatpush.bf16.msra.mxu0 %v3962
    %5481 = vmatpush.bf16.msra.mxu0 %v3949
    %5482 = vmatpush.bf16.msra.mxu0 %v3936
    %5483 = vmatpush.bf16.msra.mxu0 %v3923
    %5484 = vmatpush.bf16.msra.mxu0 %v3910
    %5485 = vmatpush.bf16.msra.mxu0 %v3897
    %5486 = vmatpush.bf16.msra.mxu0 %v3884
    %5487 = vmatmul.bf16.gmra.mxu0 %v183
    %v5488 = vpop.f32.mrf.mxu0
    %v5489 = vadd.f32 %v5475, %v5488
    %v5490 = vpop.f32.mrf.mxu0
    %v5491 = vadd.f32 %v5477, %v5490
    %5492 = vdwg.mxu0
    %5493 = vmatpush.bf16.msra.mxu0 %v4079
    %5494 = vmatpush.bf16.msra.mxu0 %v4066
    %5495 = vmatpush.bf16.msra.mxu0 %v4053
    %5496 = vmatpush.bf16.msra.mxu0 %v4040
    %5497 = vmatpush.bf16.msra.mxu0 %v4027
    %5498 = vmatpush.bf16.msra.mxu0 %v4014
    %5499 = vmatpush.bf16.msra.mxu0 %v4001
    %5500 = vmatpush.bf16.msra.mxu0 %v3988
    %5501 = vmatmul.bf16.gmra.mxu0 %v184
    %v5502 = vpop.f32.mrf.mxu0
    %v5503 = vadd.f32 %v5489, %v5502
    %v5504 = vpop.f32.mrf.mxu0
    %v5505 = vadd.f32 %v5491, %v5504
    %5506 = vdwg.mxu0
    %5507 = vmatpush.bf16.msra.mxu0 %v4183
    %5508 = vmatpush.bf16.msra.mxu0 %v4170
    %5509 = vmatpush.bf16.msra.mxu0 %v4157
    %5510 = vmatpush.bf16.msra.mxu0 %v4144
    %5511 = vmatpush.bf16.msra.mxu0 %v4131
    %5512 = vmatpush.bf16.msra.mxu0 %v4118
    %5513 = vmatpush.bf16.msra.mxu0 %v4105
    %5514 = vmatpush.bf16.msra.mxu0 %v4092
    %5515 = vmatmul.bf16.gmra.mxu0 %v185
    %v5516 = vpop.f32.mrf.mxu0
    %v5517 = vadd.f32 %v5503, %v5516
    %v5518 = vpop.f32.mrf.mxu0
    %v5519 = vadd.f32 %v5505, %v5518
    %5520 = vdwg.mxu0
    %5521 = vmatpush.bf16.msra.mxu0 %v4287
    %5522 = vmatpush.bf16.msra.mxu0 %v4274
    %5523 = vmatpush.bf16.msra.mxu0 %v4261
    %5524 = vmatpush.bf16.msra.mxu0 %v4248
    %5525 = vmatpush.bf16.msra.mxu0 %v4235
    %5526 = vmatpush.bf16.msra.mxu0 %v4222
    %5527 = vmatpush.bf16.msra.mxu0 %v4209
    %5528 = vmatpush.bf16.msra.mxu0 %v4196
    %5529 = vmatmul.bf16.gmra.mxu0 %v186
    %v5530 = vpop.f32.mrf.mxu0
    %v5531 = vadd.f32 %v5517, %v5530
    %v5532 = vpop.f32.mrf.mxu0
    %v5533 = vadd.f32 %v5519, %v5532
    %5534 = vdwg.mxu0
    %5535 = vmatpush.bf16.msra.mxu0 %v4391
    %5536 = vmatpush.bf16.msra.mxu0 %v4378
    %5537 = vmatpush.bf16.msra.mxu0 %v4365
    %5538 = vmatpush.bf16.msra.mxu0 %v4352
    %5539 = vmatpush.bf16.msra.mxu0 %v4339
    %5540 = vmatpush.bf16.msra.mxu0 %v4326
    %5541 = vmatpush.bf16.msra.mxu0 %v4313
    %5542 = vmatpush.bf16.msra.mxu0 %v4300
    %5543 = vmatmul.bf16.gmra.mxu0 %v187
    %v5544 = vpop.f32.mrf.mxu0
    %v5545 = vadd.f32 %v5531, %v5544
    %v5546 = vpop.f32.mrf.mxu0
    %v5547 = vadd.f32 %v5533, %v5546
    %5548 = vdwg.mxu0
    %5549 = vmatpush.bf16.msra.mxu0 %v4495
    %5550 = vmatpush.bf16.msra.mxu0 %v4482
    %5551 = vmatpush.bf16.msra.mxu0 %v4469
    %5552 = vmatpush.bf16.msra.mxu0 %v4456
    %5553 = vmatpush.bf16.msra.mxu0 %v4443
    %5554 = vmatpush.bf16.msra.mxu0 %v4430
    %5555 = vmatpush.bf16.msra.mxu0 %v4417
    %5556 = vmatpush.bf16.msra.mxu0 %v4404
    %5557 = vmatmul.bf16.gmra.mxu0 %v188
    %v5558 = vpop.f32.mrf.mxu0
    %v5559 = vadd.f32 %v5545, %v5558
    %v5560 = vpop.f32.mrf.mxu0
    %v5561 = vadd.f32 %v5547, %v5560
    %5562 = vdwg.mxu0
    %5563 = vmatpush.bf16.msra.mxu0 %v3768
    %5564 = vmatpush.bf16.msra.mxu0 %v3755
    %5565 = vmatpush.bf16.msra.mxu0 %v3742
    %5566 = vmatpush.bf16.msra.mxu0 %v3729
    %5567 = vmatpush.bf16.msra.mxu0 %v3716
    %5568 = vmatpush.bf16.msra.mxu0 %v3703
    %5569 = vmatpush.bf16.msra.mxu0 %v3690
    %5570 = vmatpush.bf16.msra.mxu0 %v3677
    %5571 = vmatmul.bf16.gmra.mxu0 %v181
    %v5572 = vpop.f32.mrf.mxu0
    %v5573 = vadd.f32 %v1091, %v5572
    %v5574 = vpop.f32.mrf.mxu0
    %v5575 = vadd.f32 %v1091, %v5574
    %5576 = vdwg.mxu0
    %5577 = vmatpush.bf16.msra.mxu0 %v3872
    %5578 = vmatpush.bf16.msra.mxu0 %v3859
    %5579 = vmatpush.bf16.msra.mxu0 %v3846
    %5580 = vmatpush.bf16.msra.mxu0 %v3833
    %5581 = vmatpush.bf16.msra.mxu0 %v3820
    %5582 = vmatpush.bf16.msra.mxu0 %v3807
    %5583 = vmatpush.bf16.msra.mxu0 %v3794
    %5584 = vmatpush.bf16.msra.mxu0 %v3781
    %5585 = vmatmul.bf16.gmra.mxu0 %v182
    %v5586 = vpop.f32.mrf.mxu0
    %v5587 = vadd.f32 %v5573, %v5586
    %v5588 = vpop.f32.mrf.mxu0
    %v5589 = vadd.f32 %v5575, %v5588
    %5590 = vdwg.mxu0
    %5591 = vmatpush.bf16.msra.mxu0 %v3976
    %5592 = vmatpush.bf16.msra.mxu0 %v3963
    %5593 = vmatpush.bf16.msra.mxu0 %v3950
    %5594 = vmatpush.bf16.msra.mxu0 %v3937
    %5595 = vmatpush.bf16.msra.mxu0 %v3924
    %5596 = vmatpush.bf16.msra.mxu0 %v3911
    %5597 = vmatpush.bf16.msra.mxu0 %v3898
    %5598 = vmatpush.bf16.msra.mxu0 %v3885
    %5599 = vmatmul.bf16.gmra.mxu0 %v183
    %v5600 = vpop.f32.mrf.mxu0
    %v5601 = vadd.f32 %v5587, %v5600
    %v5602 = vpop.f32.mrf.mxu0
    %v5603 = vadd.f32 %v5589, %v5602
    %5604 = vdwg.mxu0
    %5605 = vmatpush.bf16.msra.mxu0 %v4080
    %5606 = vmatpush.bf16.msra.mxu0 %v4067
    %5607 = vmatpush.bf16.msra.mxu0 %v4054
    %5608 = vmatpush.bf16.msra.mxu0 %v4041
    %5609 = vmatpush.bf16.msra.mxu0 %v4028
    %5610 = vmatpush.bf16.msra.mxu0 %v4015
    %5611 = vmatpush.bf16.msra.mxu0 %v4002
    %5612 = vmatpush.bf16.msra.mxu0 %v3989
    %5613 = vmatmul.bf16.gmra.mxu0 %v184
    %v5614 = vpop.f32.mrf.mxu0
    %v5615 = vadd.f32 %v5601, %v5614
    %v5616 = vpop.f32.mrf.mxu0
    %v5617 = vadd.f32 %v5603, %v5616
    %5618 = vdwg.mxu0
    %5619 = vmatpush.bf16.msra.mxu0 %v4184
    %5620 = vmatpush.bf16.msra.mxu0 %v4171
    %5621 = vmatpush.bf16.msra.mxu0 %v4158
    %5622 = vmatpush.bf16.msra.mxu0 %v4145
    %5623 = vmatpush.bf16.msra.mxu0 %v4132
    %5624 = vmatpush.bf16.msra.mxu0 %v4119
    %5625 = vmatpush.bf16.msra.mxu0 %v4106
    %5626 = vmatpush.bf16.msra.mxu0 %v4093
    %5627 = vmatmul.bf16.gmra.mxu0 %v185
    %v5628 = vpop.f32.mrf.mxu0
    %v5629 = vadd.f32 %v5615, %v5628
    %v5630 = vpop.f32.mrf.mxu0
    %v5631 = vadd.f32 %v5617, %v5630
    %5632 = vdwg.mxu0
    %5633 = vmatpush.bf16.msra.mxu0 %v4288
    %5634 = vmatpush.bf16.msra.mxu0 %v4275
    %5635 = vmatpush.bf16.msra.mxu0 %v4262
    %5636 = vmatpush.bf16.msra.mxu0 %v4249
    %5637 = vmatpush.bf16.msra.mxu0 %v4236
    %5638 = vmatpush.bf16.msra.mxu0 %v4223
    %5639 = vmatpush.bf16.msra.mxu0 %v4210
    %5640 = vmatpush.bf16.msra.mxu0 %v4197
    %5641 = vmatmul.bf16.gmra.mxu0 %v186
    %v5642 = vpop.f32.mrf.mxu0
    %v5643 = vadd.f32 %v5629, %v5642
    %v5644 = vpop.f32.mrf.mxu0
    %v5645 = vadd.f32 %v5631, %v5644
    %5646 = vdwg.mxu0
    %5647 = vmatpush.bf16.msra.mxu0 %v4392
    %5648 = vmatpush.bf16.msra.mxu0 %v4379
    %5649 = vmatpush.bf16.msra.mxu0 %v4366
    %5650 = vmatpush.bf16.msra.mxu0 %v4353
    %5651 = vmatpush.bf16.msra.mxu0 %v4340
    %5652 = vmatpush.bf16.msra.mxu0 %v4327
    %5653 = vmatpush.bf16.msra.mxu0 %v4314
    %5654 = vmatpush.bf16.msra.mxu0 %v4301
    %5655 = vmatmul.bf16.gmra.mxu0 %v187
    %v5656 = vpop.f32.mrf.mxu0
    %v5657 = vadd.f32 %v5643, %v5656
    %v5658 = vpop.f32.mrf.mxu0
    %v5659 = vadd.f32 %v5645, %v5658
    %5660 = vdwg.mxu0
    %5661 = vmatpush.bf16.msra.mxu0 %v4496
    %5662 = vmatpush.bf16.msra.mxu0 %v4483
    %5663 = vmatpush.bf16.msra.mxu0 %v4470
    %5664 = vmatpush.bf16.msra.mxu0 %v4457
    %5665 = vmatpush.bf16.msra.mxu0 %v4444
    %5666 = vmatpush.bf16.msra.mxu0 %v4431
    %5667 = vmatpush.bf16.msra.mxu0 %v4418
    %5668 = vmatpush.bf16.msra.mxu0 %v4405
    %5669 = vmatmul.bf16.gmra.mxu0 %v188
    %v5670 = vpop.f32.mrf.mxu0
    %v5671 = vadd.f32 %v5657, %v5670
    %v5672 = vpop.f32.mrf.mxu0
    %v5673 = vadd.f32 %v5659, %v5672
    %5674 = vdwg.mxu0
    %5675 = vmatpush.bf16.msra.mxu0 %v3769
    %5676 = vmatpush.bf16.msra.mxu0 %v3756
    %5677 = vmatpush.bf16.msra.mxu0 %v3743
    %5678 = vmatpush.bf16.msra.mxu0 %v3730
    %5679 = vmatpush.bf16.msra.mxu0 %v3717
    %5680 = vmatpush.bf16.msra.mxu0 %v3704
    %5681 = vmatpush.bf16.msra.mxu0 %v3691
    %5682 = vmatpush.bf16.msra.mxu0 %v3678
    %5683 = vmatmul.bf16.gmra.mxu0 %v181
    %v5684 = vpop.f32.mrf.mxu0
    %v5685 = vadd.f32 %v1092, %v5684
    %v5686 = vpop.f32.mrf.mxu0
    %v5687 = vadd.f32 %v1092, %v5686
    %5688 = vdwg.mxu0
    %5689 = vmatpush.bf16.msra.mxu0 %v3873
    %5690 = vmatpush.bf16.msra.mxu0 %v3860
    %5691 = vmatpush.bf16.msra.mxu0 %v3847
    %5692 = vmatpush.bf16.msra.mxu0 %v3834
    %5693 = vmatpush.bf16.msra.mxu0 %v3821
    %5694 = vmatpush.bf16.msra.mxu0 %v3808
    %5695 = vmatpush.bf16.msra.mxu0 %v3795
    %5696 = vmatpush.bf16.msra.mxu0 %v3782
    %5697 = vmatmul.bf16.gmra.mxu0 %v182
    %v5698 = vpop.f32.mrf.mxu0
    %v5699 = vadd.f32 %v5685, %v5698
    %v5700 = vpop.f32.mrf.mxu0
    %v5701 = vadd.f32 %v5687, %v5700
    %5702 = vdwg.mxu0
    %5703 = vmatpush.bf16.msra.mxu0 %v3977
    %5704 = vmatpush.bf16.msra.mxu0 %v3964
    %5705 = vmatpush.bf16.msra.mxu0 %v3951
    %5706 = vmatpush.bf16.msra.mxu0 %v3938
    %5707 = vmatpush.bf16.msra.mxu0 %v3925
    %5708 = vmatpush.bf16.msra.mxu0 %v3912
    %5709 = vmatpush.bf16.msra.mxu0 %v3899
    %5710 = vmatpush.bf16.msra.mxu0 %v3886
    %5711 = vmatmul.bf16.gmra.mxu0 %v183
    %v5712 = vpop.f32.mrf.mxu0
    %v5713 = vadd.f32 %v5699, %v5712
    %v5714 = vpop.f32.mrf.mxu0
    %v5715 = vadd.f32 %v5701, %v5714
    %5716 = vdwg.mxu0
    %5717 = vmatpush.bf16.msra.mxu0 %v4081
    %5718 = vmatpush.bf16.msra.mxu0 %v4068
    %5719 = vmatpush.bf16.msra.mxu0 %v4055
    %5720 = vmatpush.bf16.msra.mxu0 %v4042
    %5721 = vmatpush.bf16.msra.mxu0 %v4029
    %5722 = vmatpush.bf16.msra.mxu0 %v4016
    %5723 = vmatpush.bf16.msra.mxu0 %v4003
    %5724 = vmatpush.bf16.msra.mxu0 %v3990
    %5725 = vmatmul.bf16.gmra.mxu0 %v184
    %v5726 = vpop.f32.mrf.mxu0
    %v5727 = vadd.f32 %v5713, %v5726
    %v5728 = vpop.f32.mrf.mxu0
    %v5729 = vadd.f32 %v5715, %v5728
    %5730 = vdwg.mxu0
    %5731 = vmatpush.bf16.msra.mxu0 %v4185
    %5732 = vmatpush.bf16.msra.mxu0 %v4172
    %5733 = vmatpush.bf16.msra.mxu0 %v4159
    %5734 = vmatpush.bf16.msra.mxu0 %v4146
    %5735 = vmatpush.bf16.msra.mxu0 %v4133
    %5736 = vmatpush.bf16.msra.mxu0 %v4120
    %5737 = vmatpush.bf16.msra.mxu0 %v4107
    %5738 = vmatpush.bf16.msra.mxu0 %v4094
    %5739 = vmatmul.bf16.gmra.mxu0 %v185
    %v5740 = vpop.f32.mrf.mxu0
    %v5741 = vadd.f32 %v5727, %v5740
    %v5742 = vpop.f32.mrf.mxu0
    %v5743 = vadd.f32 %v5729, %v5742
    %5744 = vdwg.mxu0
    %5745 = vmatpush.bf16.msra.mxu0 %v4289
    %5746 = vmatpush.bf16.msra.mxu0 %v4276
    %5747 = vmatpush.bf16.msra.mxu0 %v4263
    %5748 = vmatpush.bf16.msra.mxu0 %v4250
    %5749 = vmatpush.bf16.msra.mxu0 %v4237
    %5750 = vmatpush.bf16.msra.mxu0 %v4224
    %5751 = vmatpush.bf16.msra.mxu0 %v4211
    %5752 = vmatpush.bf16.msra.mxu0 %v4198
    %5753 = vmatmul.bf16.gmra.mxu0 %v186
    %v5754 = vpop.f32.mrf.mxu0
    %v5755 = vadd.f32 %v5741, %v5754
    %v5756 = vpop.f32.mrf.mxu0
    %v5757 = vadd.f32 %v5743, %v5756
    %5758 = vdwg.mxu0
    %5759 = vmatpush.bf16.msra.mxu0 %v4393
    %5760 = vmatpush.bf16.msra.mxu0 %v4380
    %5761 = vmatpush.bf16.msra.mxu0 %v4367
    %5762 = vmatpush.bf16.msra.mxu0 %v4354
    %5763 = vmatpush.bf16.msra.mxu0 %v4341
    %5764 = vmatpush.bf16.msra.mxu0 %v4328
    %5765 = vmatpush.bf16.msra.mxu0 %v4315
    %5766 = vmatpush.bf16.msra.mxu0 %v4302
    %5767 = vmatmul.bf16.gmra.mxu0 %v187
    %v5768 = vpop.f32.mrf.mxu0
    %v5769 = vadd.f32 %v5755, %v5768
    %v5770 = vpop.f32.mrf.mxu0
    %v5771 = vadd.f32 %v5757, %v5770
    %5772 = vdwg.mxu0
    %5773 = vmatpush.bf16.msra.mxu0 %v4497
    %5774 = vmatpush.bf16.msra.mxu0 %v4484
    %5775 = vmatpush.bf16.msra.mxu0 %v4471
    %5776 = vmatpush.bf16.msra.mxu0 %v4458
    %5777 = vmatpush.bf16.msra.mxu0 %v4445
    %5778 = vmatpush.bf16.msra.mxu0 %v4432
    %5779 = vmatpush.bf16.msra.mxu0 %v4419
    %5780 = vmatpush.bf16.msra.mxu0 %v4406
    %5781 = vmatmul.bf16.gmra.mxu0 %v188
    %v5782 = vpop.f32.mrf.mxu0
    %v5783 = vadd.f32 %v5769, %v5782
    %v5784 = vpop.f32.mrf.mxu0
    %v5785 = vadd.f32 %v5771, %v5784
    %5786 = vdwg.mxu0
    %5787 = vmatpush.bf16.msra.mxu0 %v3770
    %5788 = vmatpush.bf16.msra.mxu0 %v3757
    %5789 = vmatpush.bf16.msra.mxu0 %v3744
    %5790 = vmatpush.bf16.msra.mxu0 %v3731
    %5791 = vmatpush.bf16.msra.mxu0 %v3718
    %5792 = vmatpush.bf16.msra.mxu0 %v3705
    %5793 = vmatpush.bf16.msra.mxu0 %v3692
    %5794 = vmatpush.bf16.msra.mxu0 %v3679
    %5795 = vmatmul.bf16.gmra.mxu0 %v181
    %v5796 = vpop.f32.mrf.mxu0
    %v5797 = vadd.f32 %v1093, %v5796
    %v5798 = vpop.f32.mrf.mxu0
    %v5799 = vadd.f32 %v1093, %v5798
    %5800 = vdwg.mxu0
    %5801 = vmatpush.bf16.msra.mxu0 %v3874
    %5802 = vmatpush.bf16.msra.mxu0 %v3861
    %5803 = vmatpush.bf16.msra.mxu0 %v3848
    %5804 = vmatpush.bf16.msra.mxu0 %v3835
    %5805 = vmatpush.bf16.msra.mxu0 %v3822
    %5806 = vmatpush.bf16.msra.mxu0 %v3809
    %5807 = vmatpush.bf16.msra.mxu0 %v3796
    %5808 = vmatpush.bf16.msra.mxu0 %v3783
    %5809 = vmatmul.bf16.gmra.mxu0 %v182
    %v5810 = vpop.f32.mrf.mxu0
    %v5811 = vadd.f32 %v5797, %v5810
    %v5812 = vpop.f32.mrf.mxu0
    %v5813 = vadd.f32 %v5799, %v5812
    %5814 = vdwg.mxu0
    %5815 = vmatpush.bf16.msra.mxu0 %v3978
    %5816 = vmatpush.bf16.msra.mxu0 %v3965
    %5817 = vmatpush.bf16.msra.mxu0 %v3952
    %5818 = vmatpush.bf16.msra.mxu0 %v3939
    %5819 = vmatpush.bf16.msra.mxu0 %v3926
    %5820 = vmatpush.bf16.msra.mxu0 %v3913
    %5821 = vmatpush.bf16.msra.mxu0 %v3900
    %5822 = vmatpush.bf16.msra.mxu0 %v3887
    %5823 = vmatmul.bf16.gmra.mxu0 %v183
    %v5824 = vpop.f32.mrf.mxu0
    %v5825 = vadd.f32 %v5811, %v5824
    %v5826 = vpop.f32.mrf.mxu0
    %v5827 = vadd.f32 %v5813, %v5826
    %5828 = vdwg.mxu0
    %5829 = vmatpush.bf16.msra.mxu0 %v4082
    %5830 = vmatpush.bf16.msra.mxu0 %v4069
    %5831 = vmatpush.bf16.msra.mxu0 %v4056
    %5832 = vmatpush.bf16.msra.mxu0 %v4043
    %5833 = vmatpush.bf16.msra.mxu0 %v4030
    %5834 = vmatpush.bf16.msra.mxu0 %v4017
    %5835 = vmatpush.bf16.msra.mxu0 %v4004
    %5836 = vmatpush.bf16.msra.mxu0 %v3991
    %5837 = vmatmul.bf16.gmra.mxu0 %v184
    %v5838 = vpop.f32.mrf.mxu0
    %v5839 = vadd.f32 %v5825, %v5838
    %v5840 = vpop.f32.mrf.mxu0
    %v5841 = vadd.f32 %v5827, %v5840
    %5842 = vdwg.mxu0
    %5843 = vmatpush.bf16.msra.mxu0 %v4186
    %5844 = vmatpush.bf16.msra.mxu0 %v4173
    %5845 = vmatpush.bf16.msra.mxu0 %v4160
    %5846 = vmatpush.bf16.msra.mxu0 %v4147
    %5847 = vmatpush.bf16.msra.mxu0 %v4134
    %5848 = vmatpush.bf16.msra.mxu0 %v4121
    %5849 = vmatpush.bf16.msra.mxu0 %v4108
    %5850 = vmatpush.bf16.msra.mxu0 %v4095
    %5851 = vmatmul.bf16.gmra.mxu0 %v185
    %v5852 = vpop.f32.mrf.mxu0
    %v5853 = vadd.f32 %v5839, %v5852
    %v5854 = vpop.f32.mrf.mxu0
    %v5855 = vadd.f32 %v5841, %v5854
    %5856 = vdwg.mxu0
    %5857 = vmatpush.bf16.msra.mxu0 %v4290
    %5858 = vmatpush.bf16.msra.mxu0 %v4277
    %5859 = vmatpush.bf16.msra.mxu0 %v4264
    %5860 = vmatpush.bf16.msra.mxu0 %v4251
    %5861 = vmatpush.bf16.msra.mxu0 %v4238
    %5862 = vmatpush.bf16.msra.mxu0 %v4225
    %5863 = vmatpush.bf16.msra.mxu0 %v4212
    %5864 = vmatpush.bf16.msra.mxu0 %v4199
    %5865 = vmatmul.bf16.gmra.mxu0 %v186
    %v5866 = vpop.f32.mrf.mxu0
    %v5867 = vadd.f32 %v5853, %v5866
    %v5868 = vpop.f32.mrf.mxu0
    %v5869 = vadd.f32 %v5855, %v5868
    %5870 = vdwg.mxu0
    %5871 = vmatpush.bf16.msra.mxu0 %v4394
    %5872 = vmatpush.bf16.msra.mxu0 %v4381
    %5873 = vmatpush.bf16.msra.mxu0 %v4368
    %5874 = vmatpush.bf16.msra.mxu0 %v4355
    %5875 = vmatpush.bf16.msra.mxu0 %v4342
    %5876 = vmatpush.bf16.msra.mxu0 %v4329
    %5877 = vmatpush.bf16.msra.mxu0 %v4316
    %5878 = vmatpush.bf16.msra.mxu0 %v4303
    %5879 = vmatmul.bf16.gmra.mxu0 %v187
    %v5880 = vpop.f32.mrf.mxu0
    %v5881 = vadd.f32 %v5867, %v5880
    %v5882 = vpop.f32.mrf.mxu0
    %v5883 = vadd.f32 %v5869, %v5882
    %5884 = vdwg.mxu0
    %5885 = vmatpush.bf16.msra.mxu0 %v4498
    %5886 = vmatpush.bf16.msra.mxu0 %v4485
    %5887 = vmatpush.bf16.msra.mxu0 %v4472
    %5888 = vmatpush.bf16.msra.mxu0 %v4459
    %5889 = vmatpush.bf16.msra.mxu0 %v4446
    %5890 = vmatpush.bf16.msra.mxu0 %v4433
    %5891 = vmatpush.bf16.msra.mxu0 %v4420
    %5892 = vmatpush.bf16.msra.mxu0 %v4407
    %5893 = vmatmul.bf16.gmra.mxu0 %v188
    %v5894 = vpop.f32.mrf.mxu0
    %v5895 = vadd.f32 %v5881, %v5894
    %v5896 = vpop.f32.mrf.mxu0
    %v5897 = vadd.f32 %v5883, %v5896
    %5898 = vdwg.mxu0
    %5899 = vmatpush.bf16.msra.mxu0 %v3771
    %5900 = vmatpush.bf16.msra.mxu0 %v3758
    %5901 = vmatpush.bf16.msra.mxu0 %v3745
    %5902 = vmatpush.bf16.msra.mxu0 %v3732
    %5903 = vmatpush.bf16.msra.mxu0 %v3719
    %5904 = vmatpush.bf16.msra.mxu0 %v3706
    %5905 = vmatpush.bf16.msra.mxu0 %v3693
    %5906 = vmatpush.bf16.msra.mxu0 %v3680
    %5907 = vmatmul.bf16.gmra.mxu0 %v181
    %v5908 = vpop.f32.mrf.mxu0
    %v5909 = vadd.f32 %v1094, %v5908
    %v5910 = vpop.f32.mrf.mxu0
    %v5911 = vadd.f32 %v1094, %v5910
    %5912 = vdwg.mxu0
    %5913 = vmatpush.bf16.msra.mxu0 %v3875
    %5914 = vmatpush.bf16.msra.mxu0 %v3862
    %5915 = vmatpush.bf16.msra.mxu0 %v3849
    %5916 = vmatpush.bf16.msra.mxu0 %v3836
    %5917 = vmatpush.bf16.msra.mxu0 %v3823
    %5918 = vmatpush.bf16.msra.mxu0 %v3810
    %5919 = vmatpush.bf16.msra.mxu0 %v3797
    %5920 = vmatpush.bf16.msra.mxu0 %v3784
    %5921 = vmatmul.bf16.gmra.mxu0 %v182
    %v5922 = vpop.f32.mrf.mxu0
    %v5923 = vadd.f32 %v5909, %v5922
    %v5924 = vpop.f32.mrf.mxu0
    %v5925 = vadd.f32 %v5911, %v5924
    %5926 = vdwg.mxu0
    %5927 = vmatpush.bf16.msra.mxu0 %v3979
    %5928 = vmatpush.bf16.msra.mxu0 %v3966
    %5929 = vmatpush.bf16.msra.mxu0 %v3953
    %5930 = vmatpush.bf16.msra.mxu0 %v3940
    %5931 = vmatpush.bf16.msra.mxu0 %v3927
    %5932 = vmatpush.bf16.msra.mxu0 %v3914
    %5933 = vmatpush.bf16.msra.mxu0 %v3901
    %5934 = vmatpush.bf16.msra.mxu0 %v3888
    %5935 = vmatmul.bf16.gmra.mxu0 %v183
    %v5936 = vpop.f32.mrf.mxu0
    %v5937 = vadd.f32 %v5923, %v5936
    %v5938 = vpop.f32.mrf.mxu0
    %v5939 = vadd.f32 %v5925, %v5938
    %5940 = vdwg.mxu0
    %5941 = vmatpush.bf16.msra.mxu0 %v4083
    %5942 = vmatpush.bf16.msra.mxu0 %v4070
    %5943 = vmatpush.bf16.msra.mxu0 %v4057
    %5944 = vmatpush.bf16.msra.mxu0 %v4044
    %5945 = vmatpush.bf16.msra.mxu0 %v4031
    %5946 = vmatpush.bf16.msra.mxu0 %v4018
    %5947 = vmatpush.bf16.msra.mxu0 %v4005
    %5948 = vmatpush.bf16.msra.mxu0 %v3992
    %5949 = vmatmul.bf16.gmra.mxu0 %v184
    %v5950 = vpop.f32.mrf.mxu0
    %v5951 = vadd.f32 %v5937, %v5950
    %v5952 = vpop.f32.mrf.mxu0
    %v5953 = vadd.f32 %v5939, %v5952
    %5954 = vdwg.mxu0
    %5955 = vmatpush.bf16.msra.mxu0 %v4187
    %5956 = vmatpush.bf16.msra.mxu0 %v4174
    %5957 = vmatpush.bf16.msra.mxu0 %v4161
    %5958 = vmatpush.bf16.msra.mxu0 %v4148
    %5959 = vmatpush.bf16.msra.mxu0 %v4135
    %5960 = vmatpush.bf16.msra.mxu0 %v4122
    %5961 = vmatpush.bf16.msra.mxu0 %v4109
    %5962 = vmatpush.bf16.msra.mxu0 %v4096
    %5963 = vmatmul.bf16.gmra.mxu0 %v185
    %v5964 = vpop.f32.mrf.mxu0
    %v5965 = vadd.f32 %v5951, %v5964
    %v5966 = vpop.f32.mrf.mxu0
    %v5967 = vadd.f32 %v5953, %v5966
    %5968 = vdwg.mxu0
    %5969 = vmatpush.bf16.msra.mxu0 %v4291
    %5970 = vmatpush.bf16.msra.mxu0 %v4278
    %5971 = vmatpush.bf16.msra.mxu0 %v4265
    %5972 = vmatpush.bf16.msra.mxu0 %v4252
    %5973 = vmatpush.bf16.msra.mxu0 %v4239
    %5974 = vmatpush.bf16.msra.mxu0 %v4226
    %5975 = vmatpush.bf16.msra.mxu0 %v4213
    %5976 = vmatpush.bf16.msra.mxu0 %v4200
    %5977 = vmatmul.bf16.gmra.mxu0 %v186
    %v5978 = vpop.f32.mrf.mxu0
    %v5979 = vadd.f32 %v5965, %v5978
    %v5980 = vpop.f32.mrf.mxu0
    %v5981 = vadd.f32 %v5967, %v5980
    %5982 = vdwg.mxu0
    %5983 = vmatpush.bf16.msra.mxu0 %v4395
    %5984 = vmatpush.bf16.msra.mxu0 %v4382
    %5985 = vmatpush.bf16.msra.mxu0 %v4369
    %5986 = vmatpush.bf16.msra.mxu0 %v4356
    %5987 = vmatpush.bf16.msra.mxu0 %v4343
    %5988 = vmatpush.bf16.msra.mxu0 %v4330
    %5989 = vmatpush.bf16.msra.mxu0 %v4317
    %5990 = vmatpush.bf16.msra.mxu0 %v4304
    %5991 = vmatmul.bf16.gmra.mxu0 %v187
    %v5992 = vpop.f32.mrf.mxu0
    %v5993 = vadd.f32 %v5979, %v5992
    %v5994 = vpop.f32.mrf.mxu0
    %v5995 = vadd.f32 %v5981, %v5994
    %5996 = vdwg.mxu0
    %5997 = vmatpush.bf16.msra.mxu0 %v4499
    %5998 = vmatpush.bf16.msra.mxu0 %v4486
    %5999 = vmatpush.bf16.msra.mxu0 %v4473
    %6000 = vmatpush.bf16.msra.mxu0 %v4460
    %6001 = vmatpush.bf16.msra.mxu0 %v4447
    %6002 = vmatpush.bf16.msra.mxu0 %v4434
    %6003 = vmatpush.bf16.msra.mxu0 %v4421
    %6004 = vmatpush.bf16.msra.mxu0 %v4408
    %6005 = vmatmul.bf16.gmra.mxu0 %v188
    %v6006 = vpop.f32.mrf.mxu0
    %v6007 = vadd.f32 %v5993, %v6006
    %v6008 = vpop.f32.mrf.mxu0
    %v6009 = vadd.f32 %v5995, %v6008
    %6010 = vdwg.mxu0
    %6011 = vmatpush.bf16.msra.mxu0 %v3772
    %6012 = vmatpush.bf16.msra.mxu0 %v3759
    %6013 = vmatpush.bf16.msra.mxu0 %v3746
    %6014 = vmatpush.bf16.msra.mxu0 %v3733
    %6015 = vmatpush.bf16.msra.mxu0 %v3720
    %6016 = vmatpush.bf16.msra.mxu0 %v3707
    %6017 = vmatpush.bf16.msra.mxu0 %v3694
    %6018 = vmatpush.bf16.msra.mxu0 %v3681
    %6019 = vmatmul.bf16.gmra.mxu0 %v181
    %v6020 = vpop.f32.mrf.mxu0
    %v6021 = vadd.f32 %v1095, %v6020
    %v6022 = vpop.f32.mrf.mxu0
    %v6023 = vadd.f32 %v1095, %v6022
    %6024 = vdwg.mxu0
    %6025 = vmatpush.bf16.msra.mxu0 %v3876
    %6026 = vmatpush.bf16.msra.mxu0 %v3863
    %6027 = vmatpush.bf16.msra.mxu0 %v3850
    %6028 = vmatpush.bf16.msra.mxu0 %v3837
    %6029 = vmatpush.bf16.msra.mxu0 %v3824
    %6030 = vmatpush.bf16.msra.mxu0 %v3811
    %6031 = vmatpush.bf16.msra.mxu0 %v3798
    %6032 = vmatpush.bf16.msra.mxu0 %v3785
    %6033 = vmatmul.bf16.gmra.mxu0 %v182
    %v6034 = vpop.f32.mrf.mxu0
    %v6035 = vadd.f32 %v6021, %v6034
    %v6036 = vpop.f32.mrf.mxu0
    %v6037 = vadd.f32 %v6023, %v6036
    %6038 = vdwg.mxu0
    %6039 = vmatpush.bf16.msra.mxu0 %v3980
    %6040 = vmatpush.bf16.msra.mxu0 %v3967
    %6041 = vmatpush.bf16.msra.mxu0 %v3954
    %6042 = vmatpush.bf16.msra.mxu0 %v3941
    %6043 = vmatpush.bf16.msra.mxu0 %v3928
    %6044 = vmatpush.bf16.msra.mxu0 %v3915
    %6045 = vmatpush.bf16.msra.mxu0 %v3902
    %6046 = vmatpush.bf16.msra.mxu0 %v3889
    %6047 = vmatmul.bf16.gmra.mxu0 %v183
    %v6048 = vpop.f32.mrf.mxu0
    %v6049 = vadd.f32 %v6035, %v6048
    %v6050 = vpop.f32.mrf.mxu0
    %v6051 = vadd.f32 %v6037, %v6050
    %6052 = vdwg.mxu0
    %6053 = vmatpush.bf16.msra.mxu0 %v4084
    %6054 = vmatpush.bf16.msra.mxu0 %v4071
    %6055 = vmatpush.bf16.msra.mxu0 %v4058
    %6056 = vmatpush.bf16.msra.mxu0 %v4045
    %6057 = vmatpush.bf16.msra.mxu0 %v4032
    %6058 = vmatpush.bf16.msra.mxu0 %v4019
    %6059 = vmatpush.bf16.msra.mxu0 %v4006
    %6060 = vmatpush.bf16.msra.mxu0 %v3993
    %6061 = vmatmul.bf16.gmra.mxu0 %v184
    %v6062 = vpop.f32.mrf.mxu0
    %v6063 = vadd.f32 %v6049, %v6062
    %v6064 = vpop.f32.mrf.mxu0
    %v6065 = vadd.f32 %v6051, %v6064
    %6066 = vdwg.mxu0
    %6067 = vmatpush.bf16.msra.mxu0 %v4188
    %6068 = vmatpush.bf16.msra.mxu0 %v4175
    %6069 = vmatpush.bf16.msra.mxu0 %v4162
    %6070 = vmatpush.bf16.msra.mxu0 %v4149
    %6071 = vmatpush.bf16.msra.mxu0 %v4136
    %6072 = vmatpush.bf16.msra.mxu0 %v4123
    %6073 = vmatpush.bf16.msra.mxu0 %v4110
    %6074 = vmatpush.bf16.msra.mxu0 %v4097
    %6075 = vmatmul.bf16.gmra.mxu0 %v185
    %v6076 = vpop.f32.mrf.mxu0
    %v6077 = vadd.f32 %v6063, %v6076
    %v6078 = vpop.f32.mrf.mxu0
    %v6079 = vadd.f32 %v6065, %v6078
    %6080 = vdwg.mxu0
    %6081 = vmatpush.bf16.msra.mxu0 %v4292
    %6082 = vmatpush.bf16.msra.mxu0 %v4279
    %6083 = vmatpush.bf16.msra.mxu0 %v4266
    %6084 = vmatpush.bf16.msra.mxu0 %v4253
    %6085 = vmatpush.bf16.msra.mxu0 %v4240
    %6086 = vmatpush.bf16.msra.mxu0 %v4227
    %6087 = vmatpush.bf16.msra.mxu0 %v4214
    %6088 = vmatpush.bf16.msra.mxu0 %v4201
    %6089 = vmatmul.bf16.gmra.mxu0 %v186
    %v6090 = vpop.f32.mrf.mxu0
    %v6091 = vadd.f32 %v6077, %v6090
    %v6092 = vpop.f32.mrf.mxu0
    %v6093 = vadd.f32 %v6079, %v6092
    %6094 = vdwg.mxu0
    %6095 = vmatpush.bf16.msra.mxu0 %v4396
    %6096 = vmatpush.bf16.msra.mxu0 %v4383
    %6097 = vmatpush.bf16.msra.mxu0 %v4370
    %6098 = vmatpush.bf16.msra.mxu0 %v4357
    %6099 = vmatpush.bf16.msra.mxu0 %v4344
    %6100 = vmatpush.bf16.msra.mxu0 %v4331
    %6101 = vmatpush.bf16.msra.mxu0 %v4318
    %6102 = vmatpush.bf16.msra.mxu0 %v4305
    %6103 = vmatmul.bf16.gmra.mxu0 %v187
    %v6104 = vpop.f32.mrf.mxu0
    %v6105 = vadd.f32 %v6091, %v6104
    %v6106 = vpop.f32.mrf.mxu0
    %v6107 = vadd.f32 %v6093, %v6106
    %6108 = vdwg.mxu0
    %6109 = vmatpush.bf16.msra.mxu0 %v4500
    %6110 = vmatpush.bf16.msra.mxu0 %v4487
    %6111 = vmatpush.bf16.msra.mxu0 %v4474
    %6112 = vmatpush.bf16.msra.mxu0 %v4461
    %6113 = vmatpush.bf16.msra.mxu0 %v4448
    %6114 = vmatpush.bf16.msra.mxu0 %v4435
    %6115 = vmatpush.bf16.msra.mxu0 %v4422
    %6116 = vmatpush.bf16.msra.mxu0 %v4409
    %6117 = vmatmul.bf16.gmra.mxu0 %v188
    %v6118 = vpop.f32.mrf.mxu0
    %v6119 = vadd.f32 %v6105, %v6118
    %v6120 = vpop.f32.mrf.mxu0
    %v6121 = vadd.f32 %v6107, %v6120
    %6122 = vdwg.mxu0
    %6123 = vmatpush.bf16.msra.mxu0 %v3773
    %6124 = vmatpush.bf16.msra.mxu0 %v3760
    %6125 = vmatpush.bf16.msra.mxu0 %v3747
    %6126 = vmatpush.bf16.msra.mxu0 %v3734
    %6127 = vmatpush.bf16.msra.mxu0 %v3721
    %6128 = vmatpush.bf16.msra.mxu0 %v3708
    %6129 = vmatpush.bf16.msra.mxu0 %v3695
    %6130 = vmatpush.bf16.msra.mxu0 %v3682
    %6131 = vmatmul.bf16.gmra.mxu0 %v181
    %v6132 = vpop.f32.mrf.mxu0
    %v6133 = vadd.f32 %v1096, %v6132
    %v6134 = vpop.f32.mrf.mxu0
    %v6135 = vadd.f32 %v1096, %v6134
    %6136 = vdwg.mxu0
    %6137 = vmatpush.bf16.msra.mxu0 %v3877
    %6138 = vmatpush.bf16.msra.mxu0 %v3864
    %6139 = vmatpush.bf16.msra.mxu0 %v3851
    %6140 = vmatpush.bf16.msra.mxu0 %v3838
    %6141 = vmatpush.bf16.msra.mxu0 %v3825
    %6142 = vmatpush.bf16.msra.mxu0 %v3812
    %6143 = vmatpush.bf16.msra.mxu0 %v3799
    %6144 = vmatpush.bf16.msra.mxu0 %v3786
    %6145 = vmatmul.bf16.gmra.mxu0 %v182
    %v6146 = vpop.f32.mrf.mxu0
    %v6147 = vadd.f32 %v6133, %v6146
    %v6148 = vpop.f32.mrf.mxu0
    %v6149 = vadd.f32 %v6135, %v6148
    %6150 = vdwg.mxu0
    %6151 = vmatpush.bf16.msra.mxu0 %v3981
    %6152 = vmatpush.bf16.msra.mxu0 %v3968
    %6153 = vmatpush.bf16.msra.mxu0 %v3955
    %6154 = vmatpush.bf16.msra.mxu0 %v3942
    %6155 = vmatpush.bf16.msra.mxu0 %v3929
    %6156 = vmatpush.bf16.msra.mxu0 %v3916
    %6157 = vmatpush.bf16.msra.mxu0 %v3903
    %6158 = vmatpush.bf16.msra.mxu0 %v3890
    %6159 = vmatmul.bf16.gmra.mxu0 %v183
    %v6160 = vpop.f32.mrf.mxu0
    %v6161 = vadd.f32 %v6147, %v6160
    %v6162 = vpop.f32.mrf.mxu0
    %v6163 = vadd.f32 %v6149, %v6162
    %6164 = vdwg.mxu0
    %6165 = vmatpush.bf16.msra.mxu0 %v4085
    %6166 = vmatpush.bf16.msra.mxu0 %v4072
    %6167 = vmatpush.bf16.msra.mxu0 %v4059
    %6168 = vmatpush.bf16.msra.mxu0 %v4046
    %6169 = vmatpush.bf16.msra.mxu0 %v4033
    %6170 = vmatpush.bf16.msra.mxu0 %v4020
    %6171 = vmatpush.bf16.msra.mxu0 %v4007
    %6172 = vmatpush.bf16.msra.mxu0 %v3994
    %6173 = vmatmul.bf16.gmra.mxu0 %v184
    %v6174 = vpop.f32.mrf.mxu0
    %v6175 = vadd.f32 %v6161, %v6174
    %v6176 = vpop.f32.mrf.mxu0
    %v6177 = vadd.f32 %v6163, %v6176
    %6178 = vdwg.mxu0
    %6179 = vmatpush.bf16.msra.mxu0 %v4189
    %6180 = vmatpush.bf16.msra.mxu0 %v4176
    %6181 = vmatpush.bf16.msra.mxu0 %v4163
    %6182 = vmatpush.bf16.msra.mxu0 %v4150
    %6183 = vmatpush.bf16.msra.mxu0 %v4137
    %6184 = vmatpush.bf16.msra.mxu0 %v4124
    %6185 = vmatpush.bf16.msra.mxu0 %v4111
    %6186 = vmatpush.bf16.msra.mxu0 %v4098
    %6187 = vmatmul.bf16.gmra.mxu0 %v185
    %v6188 = vpop.f32.mrf.mxu0
    %v6189 = vadd.f32 %v6175, %v6188
    %v6190 = vpop.f32.mrf.mxu0
    %v6191 = vadd.f32 %v6177, %v6190
    %6192 = vdwg.mxu0
    %6193 = vmatpush.bf16.msra.mxu0 %v4293
    %6194 = vmatpush.bf16.msra.mxu0 %v4280
    %6195 = vmatpush.bf16.msra.mxu0 %v4267
    %6196 = vmatpush.bf16.msra.mxu0 %v4254
    %6197 = vmatpush.bf16.msra.mxu0 %v4241
    %6198 = vmatpush.bf16.msra.mxu0 %v4228
    %6199 = vmatpush.bf16.msra.mxu0 %v4215
    %6200 = vmatpush.bf16.msra.mxu0 %v4202
    %6201 = vmatmul.bf16.gmra.mxu0 %v186
    %v6202 = vpop.f32.mrf.mxu0
    %v6203 = vadd.f32 %v6189, %v6202
    %v6204 = vpop.f32.mrf.mxu0
    %v6205 = vadd.f32 %v6191, %v6204
    %6206 = vdwg.mxu0
    %6207 = vmatpush.bf16.msra.mxu0 %v4397
    %6208 = vmatpush.bf16.msra.mxu0 %v4384
    %6209 = vmatpush.bf16.msra.mxu0 %v4371
    %6210 = vmatpush.bf16.msra.mxu0 %v4358
    %6211 = vmatpush.bf16.msra.mxu0 %v4345
    %6212 = vmatpush.bf16.msra.mxu0 %v4332
    %6213 = vmatpush.bf16.msra.mxu0 %v4319
    %6214 = vmatpush.bf16.msra.mxu0 %v4306
    %6215 = vmatmul.bf16.gmra.mxu0 %v187
    %v6216 = vpop.f32.mrf.mxu0
    %v6217 = vadd.f32 %v6203, %v6216
    %v6218 = vpop.f32.mrf.mxu0
    %v6219 = vadd.f32 %v6205, %v6218
    %6220 = vdwg.mxu0
    %6221 = vmatpush.bf16.msra.mxu0 %v4501
    %6222 = vmatpush.bf16.msra.mxu0 %v4488
    %6223 = vmatpush.bf16.msra.mxu0 %v4475
    %6224 = vmatpush.bf16.msra.mxu0 %v4462
    %6225 = vmatpush.bf16.msra.mxu0 %v4449
    %6226 = vmatpush.bf16.msra.mxu0 %v4436
    %6227 = vmatpush.bf16.msra.mxu0 %v4423
    %6228 = vmatpush.bf16.msra.mxu0 %v4410
    %6229 = vmatmul.bf16.gmra.mxu0 %v188
    %v6230 = vpop.f32.mrf.mxu0
    %v6231 = vadd.f32 %v6217, %v6230
    %v6232 = vpop.f32.mrf.mxu0
    %v6233 = vadd.f32 %v6219, %v6232
    %6234 = vdwg.mxu0
    %6235 = vmatpush.bf16.msra.mxu0 %v3774
    %6236 = vmatpush.bf16.msra.mxu0 %v3761
    %6237 = vmatpush.bf16.msra.mxu0 %v3748
    %6238 = vmatpush.bf16.msra.mxu0 %v3735
    %6239 = vmatpush.bf16.msra.mxu0 %v3722
    %6240 = vmatpush.bf16.msra.mxu0 %v3709
    %6241 = vmatpush.bf16.msra.mxu0 %v3696
    %6242 = vmatpush.bf16.msra.mxu0 %v3683
    %6243 = vmatmul.bf16.gmra.mxu0 %v181
    %v6244 = vpop.f32.mrf.mxu0
    %v6245 = vadd.f32 %v1097, %v6244
    %v6246 = vpop.f32.mrf.mxu0
    %v6247 = vadd.f32 %v1097, %v6246
    %6248 = vdwg.mxu0
    %6249 = vmatpush.bf16.msra.mxu0 %v3878
    %6250 = vmatpush.bf16.msra.mxu0 %v3865
    %6251 = vmatpush.bf16.msra.mxu0 %v3852
    %6252 = vmatpush.bf16.msra.mxu0 %v3839
    %6253 = vmatpush.bf16.msra.mxu0 %v3826
    %6254 = vmatpush.bf16.msra.mxu0 %v3813
    %6255 = vmatpush.bf16.msra.mxu0 %v3800
    %6256 = vmatpush.bf16.msra.mxu0 %v3787
    %6257 = vmatmul.bf16.gmra.mxu0 %v182
    %v6258 = vpop.f32.mrf.mxu0
    %v6259 = vadd.f32 %v6245, %v6258
    %v6260 = vpop.f32.mrf.mxu0
    %v6261 = vadd.f32 %v6247, %v6260
    %6262 = vdwg.mxu0
    %6263 = vmatpush.bf16.msra.mxu0 %v3982
    %6264 = vmatpush.bf16.msra.mxu0 %v3969
    %6265 = vmatpush.bf16.msra.mxu0 %v3956
    %6266 = vmatpush.bf16.msra.mxu0 %v3943
    %6267 = vmatpush.bf16.msra.mxu0 %v3930
    %6268 = vmatpush.bf16.msra.mxu0 %v3917
    %6269 = vmatpush.bf16.msra.mxu0 %v3904
    %6270 = vmatpush.bf16.msra.mxu0 %v3891
    %6271 = vmatmul.bf16.gmra.mxu0 %v183
    %v6272 = vpop.f32.mrf.mxu0
    %v6273 = vadd.f32 %v6259, %v6272
    %v6274 = vpop.f32.mrf.mxu0
    %v6275 = vadd.f32 %v6261, %v6274
    %6276 = vdwg.mxu0
    %6277 = vmatpush.bf16.msra.mxu0 %v4086
    %6278 = vmatpush.bf16.msra.mxu0 %v4073
    %6279 = vmatpush.bf16.msra.mxu0 %v4060
    %6280 = vmatpush.bf16.msra.mxu0 %v4047
    %6281 = vmatpush.bf16.msra.mxu0 %v4034
    %6282 = vmatpush.bf16.msra.mxu0 %v4021
    %6283 = vmatpush.bf16.msra.mxu0 %v4008
    %6284 = vmatpush.bf16.msra.mxu0 %v3995
    %6285 = vmatmul.bf16.gmra.mxu0 %v184
    %v6286 = vpop.f32.mrf.mxu0
    %v6287 = vadd.f32 %v6273, %v6286
    %v6288 = vpop.f32.mrf.mxu0
    %v6289 = vadd.f32 %v6275, %v6288
    %6290 = vdwg.mxu0
    %6291 = vmatpush.bf16.msra.mxu0 %v4190
    %6292 = vmatpush.bf16.msra.mxu0 %v4177
    %6293 = vmatpush.bf16.msra.mxu0 %v4164
    %6294 = vmatpush.bf16.msra.mxu0 %v4151
    %6295 = vmatpush.bf16.msra.mxu0 %v4138
    %6296 = vmatpush.bf16.msra.mxu0 %v4125
    %6297 = vmatpush.bf16.msra.mxu0 %v4112
    %6298 = vmatpush.bf16.msra.mxu0 %v4099
    %6299 = vmatmul.bf16.gmra.mxu0 %v185
    %v6300 = vpop.f32.mrf.mxu0
    %v6301 = vadd.f32 %v6287, %v6300
    %v6302 = vpop.f32.mrf.mxu0
    %v6303 = vadd.f32 %v6289, %v6302
    %6304 = vdwg.mxu0
    %6305 = vmatpush.bf16.msra.mxu0 %v4294
    %6306 = vmatpush.bf16.msra.mxu0 %v4281
    %6307 = vmatpush.bf16.msra.mxu0 %v4268
    %6308 = vmatpush.bf16.msra.mxu0 %v4255
    %6309 = vmatpush.bf16.msra.mxu0 %v4242
    %6310 = vmatpush.bf16.msra.mxu0 %v4229
    %6311 = vmatpush.bf16.msra.mxu0 %v4216
    %6312 = vmatpush.bf16.msra.mxu0 %v4203
    %6313 = vmatmul.bf16.gmra.mxu0 %v186
    %v6314 = vpop.f32.mrf.mxu0
    %v6315 = vadd.f32 %v6301, %v6314
    %v6316 = vpop.f32.mrf.mxu0
    %v6317 = vadd.f32 %v6303, %v6316
    %6318 = vdwg.mxu0
    %6319 = vmatpush.bf16.msra.mxu0 %v4398
    %6320 = vmatpush.bf16.msra.mxu0 %v4385
    %6321 = vmatpush.bf16.msra.mxu0 %v4372
    %6322 = vmatpush.bf16.msra.mxu0 %v4359
    %6323 = vmatpush.bf16.msra.mxu0 %v4346
    %6324 = vmatpush.bf16.msra.mxu0 %v4333
    %6325 = vmatpush.bf16.msra.mxu0 %v4320
    %6326 = vmatpush.bf16.msra.mxu0 %v4307
    %6327 = vmatmul.bf16.gmra.mxu0 %v187
    %v6328 = vpop.f32.mrf.mxu0
    %v6329 = vadd.f32 %v6315, %v6328
    %v6330 = vpop.f32.mrf.mxu0
    %v6331 = vadd.f32 %v6317, %v6330
    %6332 = vdwg.mxu0
    %6333 = vmatpush.bf16.msra.mxu0 %v4502
    %6334 = vmatpush.bf16.msra.mxu0 %v4489
    %6335 = vmatpush.bf16.msra.mxu0 %v4476
    %6336 = vmatpush.bf16.msra.mxu0 %v4463
    %6337 = vmatpush.bf16.msra.mxu0 %v4450
    %6338 = vmatpush.bf16.msra.mxu0 %v4437
    %6339 = vmatpush.bf16.msra.mxu0 %v4424
    %6340 = vmatpush.bf16.msra.mxu0 %v4411
    %6341 = vmatmul.bf16.gmra.mxu0 %v188
    %v6342 = vpop.f32.mrf.mxu0
    %v6343 = vadd.f32 %v6329, %v6342
    %v6344 = vpop.f32.mrf.mxu0
    %v6345 = vadd.f32 %v6331, %v6344
    %6346 = vdwg.mxu0
    %6347 = vmatpush.bf16.msra.mxu0 %v3775
    %6348 = vmatpush.bf16.msra.mxu0 %v3762
    %6349 = vmatpush.bf16.msra.mxu0 %v3749
    %6350 = vmatpush.bf16.msra.mxu0 %v3736
    %6351 = vmatpush.bf16.msra.mxu0 %v3723
    %6352 = vmatpush.bf16.msra.mxu0 %v3710
    %6353 = vmatpush.bf16.msra.mxu0 %v3697
    %6354 = vmatpush.bf16.msra.mxu0 %v3684
    %6355 = vmatmul.bf16.gmra.mxu0 %v181
    %v6356 = vpop.f32.mrf.mxu0
    %v6357 = vadd.f32 %v1098, %v6356
    %v6358 = vpop.f32.mrf.mxu0
    %v6359 = vadd.f32 %v1098, %v6358
    %6360 = vdwg.mxu0
    %6361 = vmatpush.bf16.msra.mxu0 %v3879
    %6362 = vmatpush.bf16.msra.mxu0 %v3866
    %6363 = vmatpush.bf16.msra.mxu0 %v3853
    %6364 = vmatpush.bf16.msra.mxu0 %v3840
    %6365 = vmatpush.bf16.msra.mxu0 %v3827
    %6366 = vmatpush.bf16.msra.mxu0 %v3814
    %6367 = vmatpush.bf16.msra.mxu0 %v3801
    %6368 = vmatpush.bf16.msra.mxu0 %v3788
    %6369 = vmatmul.bf16.gmra.mxu0 %v182
    %v6370 = vpop.f32.mrf.mxu0
    %v6371 = vadd.f32 %v6357, %v6370
    %v6372 = vpop.f32.mrf.mxu0
    %v6373 = vadd.f32 %v6359, %v6372
    %6374 = vdwg.mxu0
    %6375 = vmatpush.bf16.msra.mxu0 %v3983
    %6376 = vmatpush.bf16.msra.mxu0 %v3970
    %6377 = vmatpush.bf16.msra.mxu0 %v3957
    %6378 = vmatpush.bf16.msra.mxu0 %v3944
    %6379 = vmatpush.bf16.msra.mxu0 %v3931
    %6380 = vmatpush.bf16.msra.mxu0 %v3918
    %6381 = vmatpush.bf16.msra.mxu0 %v3905
    %6382 = vmatpush.bf16.msra.mxu0 %v3892
    %6383 = vmatmul.bf16.gmra.mxu0 %v183
    %v6384 = vpop.f32.mrf.mxu0
    %v6385 = vadd.f32 %v6371, %v6384
    %v6386 = vpop.f32.mrf.mxu0
    %v6387 = vadd.f32 %v6373, %v6386
    %6388 = vdwg.mxu0
    %6389 = vmatpush.bf16.msra.mxu0 %v4087
    %6390 = vmatpush.bf16.msra.mxu0 %v4074
    %6391 = vmatpush.bf16.msra.mxu0 %v4061
    %6392 = vmatpush.bf16.msra.mxu0 %v4048
    %6393 = vmatpush.bf16.msra.mxu0 %v4035
    %6394 = vmatpush.bf16.msra.mxu0 %v4022
    %6395 = vmatpush.bf16.msra.mxu0 %v4009
    %6396 = vmatpush.bf16.msra.mxu0 %v3996
    %6397 = vmatmul.bf16.gmra.mxu0 %v184
    %v6398 = vpop.f32.mrf.mxu0
    %v6399 = vadd.f32 %v6385, %v6398
    %v6400 = vpop.f32.mrf.mxu0
    %v6401 = vadd.f32 %v6387, %v6400
    %6402 = vdwg.mxu0
    %6403 = vmatpush.bf16.msra.mxu0 %v4191
    %6404 = vmatpush.bf16.msra.mxu0 %v4178
    %6405 = vmatpush.bf16.msra.mxu0 %v4165
    %6406 = vmatpush.bf16.msra.mxu0 %v4152
    %6407 = vmatpush.bf16.msra.mxu0 %v4139
    %6408 = vmatpush.bf16.msra.mxu0 %v4126
    %6409 = vmatpush.bf16.msra.mxu0 %v4113
    %6410 = vmatpush.bf16.msra.mxu0 %v4100
    %6411 = vmatmul.bf16.gmra.mxu0 %v185
    %v6412 = vpop.f32.mrf.mxu0
    %v6413 = vadd.f32 %v6399, %v6412
    %v6414 = vpop.f32.mrf.mxu0
    %v6415 = vadd.f32 %v6401, %v6414
    %6416 = vdwg.mxu0
    %6417 = vmatpush.bf16.msra.mxu0 %v4295
    %6418 = vmatpush.bf16.msra.mxu0 %v4282
    %6419 = vmatpush.bf16.msra.mxu0 %v4269
    %6420 = vmatpush.bf16.msra.mxu0 %v4256
    %6421 = vmatpush.bf16.msra.mxu0 %v4243
    %6422 = vmatpush.bf16.msra.mxu0 %v4230
    %6423 = vmatpush.bf16.msra.mxu0 %v4217
    %6424 = vmatpush.bf16.msra.mxu0 %v4204
    %6425 = vmatmul.bf16.gmra.mxu0 %v186
    %v6426 = vpop.f32.mrf.mxu0
    %v6427 = vadd.f32 %v6413, %v6426
    %v6428 = vpop.f32.mrf.mxu0
    %v6429 = vadd.f32 %v6415, %v6428
    %6430 = vdwg.mxu0
    %6431 = vmatpush.bf16.msra.mxu0 %v4399
    %6432 = vmatpush.bf16.msra.mxu0 %v4386
    %6433 = vmatpush.bf16.msra.mxu0 %v4373
    %6434 = vmatpush.bf16.msra.mxu0 %v4360
    %6435 = vmatpush.bf16.msra.mxu0 %v4347
    %6436 = vmatpush.bf16.msra.mxu0 %v4334
    %6437 = vmatpush.bf16.msra.mxu0 %v4321
    %6438 = vmatpush.bf16.msra.mxu0 %v4308
    %6439 = vmatmul.bf16.gmra.mxu0 %v187
    %v6440 = vpop.f32.mrf.mxu0
    %v6441 = vadd.f32 %v6427, %v6440
    %v6442 = vpop.f32.mrf.mxu0
    %v6443 = vadd.f32 %v6429, %v6442
    %6444 = vdwg.mxu0
    %6445 = vmatpush.bf16.msra.mxu0 %v4503
    %6446 = vmatpush.bf16.msra.mxu0 %v4490
    %6447 = vmatpush.bf16.msra.mxu0 %v4477
    %6448 = vmatpush.bf16.msra.mxu0 %v4464
    %6449 = vmatpush.bf16.msra.mxu0 %v4451
    %6450 = vmatpush.bf16.msra.mxu0 %v4438
    %6451 = vmatpush.bf16.msra.mxu0 %v4425
    %6452 = vmatpush.bf16.msra.mxu0 %v4412
    %6453 = vmatmul.bf16.gmra.mxu0 %v188
    %v6454 = vpop.f32.mrf.mxu0
    %v6455 = vadd.f32 %v6441, %v6454
    %v6456 = vpop.f32.mrf.mxu0
    %v6457 = vadd.f32 %v6443, %v6456
    %6458 = vdwg.mxu0
    %6459 = vmatpush.bf16.msra.mxu0 %v3776
    %6460 = vmatpush.bf16.msra.mxu0 %v3763
    %6461 = vmatpush.bf16.msra.mxu0 %v3750
    %6462 = vmatpush.bf16.msra.mxu0 %v3737
    %6463 = vmatpush.bf16.msra.mxu0 %v3724
    %6464 = vmatpush.bf16.msra.mxu0 %v3711
    %6465 = vmatpush.bf16.msra.mxu0 %v3698
    %6466 = vmatpush.bf16.msra.mxu0 %v3685
    %6467 = vmatmul.bf16.gmra.mxu0 %v181
    %v6468 = vpop.f32.mrf.mxu0
    %v6469 = vadd.f32 %v1099, %v6468
    %v6470 = vpop.f32.mrf.mxu0
    %v6471 = vadd.f32 %v1099, %v6470
    %6472 = vdwg.mxu0
    %6473 = vmatpush.bf16.msra.mxu0 %v3880
    %6474 = vmatpush.bf16.msra.mxu0 %v3867
    %6475 = vmatpush.bf16.msra.mxu0 %v3854
    %6476 = vmatpush.bf16.msra.mxu0 %v3841
    %6477 = vmatpush.bf16.msra.mxu0 %v3828
    %6478 = vmatpush.bf16.msra.mxu0 %v3815
    %6479 = vmatpush.bf16.msra.mxu0 %v3802
    %6480 = vmatpush.bf16.msra.mxu0 %v3789
    %6481 = vmatmul.bf16.gmra.mxu0 %v182
    %v6482 = vpop.f32.mrf.mxu0
    %v6483 = vadd.f32 %v6469, %v6482
    %v6484 = vpop.f32.mrf.mxu0
    %v6485 = vadd.f32 %v6471, %v6484
    %6486 = vdwg.mxu0
    %6487 = vmatpush.bf16.msra.mxu0 %v3984
    %6488 = vmatpush.bf16.msra.mxu0 %v3971
    %6489 = vmatpush.bf16.msra.mxu0 %v3958
    %6490 = vmatpush.bf16.msra.mxu0 %v3945
    %6491 = vmatpush.bf16.msra.mxu0 %v3932
    %6492 = vmatpush.bf16.msra.mxu0 %v3919
    %6493 = vmatpush.bf16.msra.mxu0 %v3906
    %6494 = vmatpush.bf16.msra.mxu0 %v3893
    %6495 = vmatmul.bf16.gmra.mxu0 %v183
    %v6496 = vpop.f32.mrf.mxu0
    %v6497 = vadd.f32 %v6483, %v6496
    %v6498 = vpop.f32.mrf.mxu0
    %v6499 = vadd.f32 %v6485, %v6498
    %6500 = vdwg.mxu0
    %6501 = vmatpush.bf16.msra.mxu0 %v4088
    %6502 = vmatpush.bf16.msra.mxu0 %v4075
    %6503 = vmatpush.bf16.msra.mxu0 %v4062
    %6504 = vmatpush.bf16.msra.mxu0 %v4049
    %6505 = vmatpush.bf16.msra.mxu0 %v4036
    %6506 = vmatpush.bf16.msra.mxu0 %v4023
    %6507 = vmatpush.bf16.msra.mxu0 %v4010
    %6508 = vmatpush.bf16.msra.mxu0 %v3997
    %6509 = vmatmul.bf16.gmra.mxu0 %v184
    %v6510 = vpop.f32.mrf.mxu0
    %v6511 = vadd.f32 %v6497, %v6510
    %v6512 = vpop.f32.mrf.mxu0
    %v6513 = vadd.f32 %v6499, %v6512
    %6514 = vdwg.mxu0
    %6515 = vmatpush.bf16.msra.mxu0 %v4192
    %6516 = vmatpush.bf16.msra.mxu0 %v4179
    %6517 = vmatpush.bf16.msra.mxu0 %v4166
    %6518 = vmatpush.bf16.msra.mxu0 %v4153
    %6519 = vmatpush.bf16.msra.mxu0 %v4140
    %6520 = vmatpush.bf16.msra.mxu0 %v4127
    %6521 = vmatpush.bf16.msra.mxu0 %v4114
    %6522 = vmatpush.bf16.msra.mxu0 %v4101
    %6523 = vmatmul.bf16.gmra.mxu0 %v185
    %v6524 = vpop.f32.mrf.mxu0
    %v6525 = vadd.f32 %v6511, %v6524
    %v6526 = vpop.f32.mrf.mxu0
    %v6527 = vadd.f32 %v6513, %v6526
    %6528 = vdwg.mxu0
    %6529 = vmatpush.bf16.msra.mxu0 %v4296
    %6530 = vmatpush.bf16.msra.mxu0 %v4283
    %6531 = vmatpush.bf16.msra.mxu0 %v4270
    %6532 = vmatpush.bf16.msra.mxu0 %v4257
    %6533 = vmatpush.bf16.msra.mxu0 %v4244
    %6534 = vmatpush.bf16.msra.mxu0 %v4231
    %6535 = vmatpush.bf16.msra.mxu0 %v4218
    %6536 = vmatpush.bf16.msra.mxu0 %v4205
    %6537 = vmatmul.bf16.gmra.mxu0 %v186
    %v6538 = vpop.f32.mrf.mxu0
    %v6539 = vadd.f32 %v6525, %v6538
    %v6540 = vpop.f32.mrf.mxu0
    %v6541 = vadd.f32 %v6527, %v6540
    %6542 = vdwg.mxu0
    %6543 = vmatpush.bf16.msra.mxu0 %v4400
    %6544 = vmatpush.bf16.msra.mxu0 %v4387
    %6545 = vmatpush.bf16.msra.mxu0 %v4374
    %6546 = vmatpush.bf16.msra.mxu0 %v4361
    %6547 = vmatpush.bf16.msra.mxu0 %v4348
    %6548 = vmatpush.bf16.msra.mxu0 %v4335
    %6549 = vmatpush.bf16.msra.mxu0 %v4322
    %6550 = vmatpush.bf16.msra.mxu0 %v4309
    %6551 = vmatmul.bf16.gmra.mxu0 %v187
    %v6552 = vpop.f32.mrf.mxu0
    %v6553 = vadd.f32 %v6539, %v6552
    %v6554 = vpop.f32.mrf.mxu0
    %v6555 = vadd.f32 %v6541, %v6554
    %6556 = vdwg.mxu0
    %6557 = vmatpush.bf16.msra.mxu0 %v4504
    %6558 = vmatpush.bf16.msra.mxu0 %v4491
    %6559 = vmatpush.bf16.msra.mxu0 %v4478
    %6560 = vmatpush.bf16.msra.mxu0 %v4465
    %6561 = vmatpush.bf16.msra.mxu0 %v4452
    %6562 = vmatpush.bf16.msra.mxu0 %v4439
    %6563 = vmatpush.bf16.msra.mxu0 %v4426
    %6564 = vmatpush.bf16.msra.mxu0 %v4413
    %6565 = vmatmul.bf16.gmra.mxu0 %v188
    %v6566 = vpop.f32.mrf.mxu0
    %v6567 = vadd.f32 %v6553, %v6566
    %v6568 = vpop.f32.mrf.mxu0
    %v6569 = vadd.f32 %v6555, %v6568
    %6570 = vdwg.mxu0
    %6571 = vmatpush.bf16.msra.mxu0 %v3777
    %6572 = vmatpush.bf16.msra.mxu0 %v3764
    %6573 = vmatpush.bf16.msra.mxu0 %v3751
    %6574 = vmatpush.bf16.msra.mxu0 %v3738
    %6575 = vmatpush.bf16.msra.mxu0 %v3725
    %6576 = vmatpush.bf16.msra.mxu0 %v3712
    %6577 = vmatpush.bf16.msra.mxu0 %v3699
    %6578 = vmatpush.bf16.msra.mxu0 %v3686
    %6579 = vmatmul.bf16.gmra.mxu0 %v181
    %v6580 = vpop.f32.mrf.mxu0
    %v6581 = vadd.f32 %v1100, %v6580
    %v6582 = vpop.f32.mrf.mxu0
    %v6583 = vadd.f32 %v1100, %v6582
    %6584 = vdwg.mxu0
    %6585 = vmatpush.bf16.msra.mxu0 %v3881
    %6586 = vmatpush.bf16.msra.mxu0 %v3868
    %6587 = vmatpush.bf16.msra.mxu0 %v3855
    %6588 = vmatpush.bf16.msra.mxu0 %v3842
    %6589 = vmatpush.bf16.msra.mxu0 %v3829
    %6590 = vmatpush.bf16.msra.mxu0 %v3816
    %6591 = vmatpush.bf16.msra.mxu0 %v3803
    %6592 = vmatpush.bf16.msra.mxu0 %v3790
    %6593 = vmatmul.bf16.gmra.mxu0 %v182
    %v6594 = vpop.f32.mrf.mxu0
    %v6595 = vadd.f32 %v6581, %v6594
    %v6596 = vpop.f32.mrf.mxu0
    %v6597 = vadd.f32 %v6583, %v6596
    %6598 = vdwg.mxu0
    %6599 = vmatpush.bf16.msra.mxu0 %v3985
    %6600 = vmatpush.bf16.msra.mxu0 %v3972
    %6601 = vmatpush.bf16.msra.mxu0 %v3959
    %6602 = vmatpush.bf16.msra.mxu0 %v3946
    %6603 = vmatpush.bf16.msra.mxu0 %v3933
    %6604 = vmatpush.bf16.msra.mxu0 %v3920
    %6605 = vmatpush.bf16.msra.mxu0 %v3907
    %6606 = vmatpush.bf16.msra.mxu0 %v3894
    %6607 = vmatmul.bf16.gmra.mxu0 %v183
    %v6608 = vpop.f32.mrf.mxu0
    %v6609 = vadd.f32 %v6595, %v6608
    %v6610 = vpop.f32.mrf.mxu0
    %v6611 = vadd.f32 %v6597, %v6610
    %6612 = vdwg.mxu0
    %6613 = vmatpush.bf16.msra.mxu0 %v4089
    %6614 = vmatpush.bf16.msra.mxu0 %v4076
    %6615 = vmatpush.bf16.msra.mxu0 %v4063
    %6616 = vmatpush.bf16.msra.mxu0 %v4050
    %6617 = vmatpush.bf16.msra.mxu0 %v4037
    %6618 = vmatpush.bf16.msra.mxu0 %v4024
    %6619 = vmatpush.bf16.msra.mxu0 %v4011
    %6620 = vmatpush.bf16.msra.mxu0 %v3998
    %6621 = vmatmul.bf16.gmra.mxu0 %v184
    %v6622 = vpop.f32.mrf.mxu0
    %v6623 = vadd.f32 %v6609, %v6622
    %v6624 = vpop.f32.mrf.mxu0
    %v6625 = vadd.f32 %v6611, %v6624
    %6626 = vdwg.mxu0
    %6627 = vmatpush.bf16.msra.mxu0 %v4193
    %6628 = vmatpush.bf16.msra.mxu0 %v4180
    %6629 = vmatpush.bf16.msra.mxu0 %v4167
    %6630 = vmatpush.bf16.msra.mxu0 %v4154
    %6631 = vmatpush.bf16.msra.mxu0 %v4141
    %6632 = vmatpush.bf16.msra.mxu0 %v4128
    %6633 = vmatpush.bf16.msra.mxu0 %v4115
    %6634 = vmatpush.bf16.msra.mxu0 %v4102
    %6635 = vmatmul.bf16.gmra.mxu0 %v185
    %v6636 = vpop.f32.mrf.mxu0
    %v6637 = vadd.f32 %v6623, %v6636
    %v6638 = vpop.f32.mrf.mxu0
    %v6639 = vadd.f32 %v6625, %v6638
    %6640 = vdwg.mxu0
    %6641 = vmatpush.bf16.msra.mxu0 %v4297
    %6642 = vmatpush.bf16.msra.mxu0 %v4284
    %6643 = vmatpush.bf16.msra.mxu0 %v4271
    %6644 = vmatpush.bf16.msra.mxu0 %v4258
    %6645 = vmatpush.bf16.msra.mxu0 %v4245
    %6646 = vmatpush.bf16.msra.mxu0 %v4232
    %6647 = vmatpush.bf16.msra.mxu0 %v4219
    %6648 = vmatpush.bf16.msra.mxu0 %v4206
    %6649 = vmatmul.bf16.gmra.mxu0 %v186
    %v6650 = vpop.f32.mrf.mxu0
    %v6651 = vadd.f32 %v6637, %v6650
    %v6652 = vpop.f32.mrf.mxu0
    %v6653 = vadd.f32 %v6639, %v6652
    %6654 = vdwg.mxu0
    %6655 = vmatpush.bf16.msra.mxu0 %v4401
    %6656 = vmatpush.bf16.msra.mxu0 %v4388
    %6657 = vmatpush.bf16.msra.mxu0 %v4375
    %6658 = vmatpush.bf16.msra.mxu0 %v4362
    %6659 = vmatpush.bf16.msra.mxu0 %v4349
    %6660 = vmatpush.bf16.msra.mxu0 %v4336
    %6661 = vmatpush.bf16.msra.mxu0 %v4323
    %6662 = vmatpush.bf16.msra.mxu0 %v4310
    %6663 = vmatmul.bf16.gmra.mxu0 %v187
    %v6664 = vpop.f32.mrf.mxu0
    %v6665 = vadd.f32 %v6651, %v6664
    %v6666 = vpop.f32.mrf.mxu0
    %v6667 = vadd.f32 %v6653, %v6666
    %6668 = vdwg.mxu0
    %6669 = vmatpush.bf16.msra.mxu0 %v4505
    %6670 = vmatpush.bf16.msra.mxu0 %v4492
    %6671 = vmatpush.bf16.msra.mxu0 %v4479
    %6672 = vmatpush.bf16.msra.mxu0 %v4466
    %6673 = vmatpush.bf16.msra.mxu0 %v4453
    %6674 = vmatpush.bf16.msra.mxu0 %v4440
    %6675 = vmatpush.bf16.msra.mxu0 %v4427
    %6676 = vmatpush.bf16.msra.mxu0 %v4414
    %6677 = vmatmul.bf16.gmra.mxu0 %v188
    %v6678 = vpop.f32.mrf.mxu0
    %v6679 = vadd.f32 %v6665, %v6678
    %v6680 = vpop.f32.mrf.mxu0
    %v6681 = vadd.f32 %v6667, %v6680
    %6682 = vdwg.mxu0
    %6683 = vmatpush.bf16.msra.mxu0 %v3778
    %6684 = vmatpush.bf16.msra.mxu0 %v3765
    %6685 = vmatpush.bf16.msra.mxu0 %v3752
    %6686 = vmatpush.bf16.msra.mxu0 %v3739
    %6687 = vmatpush.bf16.msra.mxu0 %v3726
    %6688 = vmatpush.bf16.msra.mxu0 %v3713
    %6689 = vmatpush.bf16.msra.mxu0 %v3700
    %6690 = vmatpush.bf16.msra.mxu0 %v3687
    %6691 = vmatmul.bf16.gmra.mxu0 %v181
    %v6692 = vpop.f32.mrf.mxu0
    %v6693 = vadd.f32 %v1101, %v6692
    %v6694 = vpop.f32.mrf.mxu0
    %v6695 = vadd.f32 %v1101, %v6694
    %6696 = vdwg.mxu0
    %6697 = vmatpush.bf16.msra.mxu0 %v3882
    %6698 = vmatpush.bf16.msra.mxu0 %v3869
    %6699 = vmatpush.bf16.msra.mxu0 %v3856
    %6700 = vmatpush.bf16.msra.mxu0 %v3843
    %6701 = vmatpush.bf16.msra.mxu0 %v3830
    %6702 = vmatpush.bf16.msra.mxu0 %v3817
    %6703 = vmatpush.bf16.msra.mxu0 %v3804
    %6704 = vmatpush.bf16.msra.mxu0 %v3791
    %6705 = vmatmul.bf16.gmra.mxu0 %v182
    %v6706 = vpop.f32.mrf.mxu0
    %v6707 = vadd.f32 %v6693, %v6706
    %v6708 = vpop.f32.mrf.mxu0
    %v6709 = vadd.f32 %v6695, %v6708
    %6710 = vdwg.mxu0
    %6711 = vmatpush.bf16.msra.mxu0 %v3986
    %6712 = vmatpush.bf16.msra.mxu0 %v3973
    %6713 = vmatpush.bf16.msra.mxu0 %v3960
    %6714 = vmatpush.bf16.msra.mxu0 %v3947
    %6715 = vmatpush.bf16.msra.mxu0 %v3934
    %6716 = vmatpush.bf16.msra.mxu0 %v3921
    %6717 = vmatpush.bf16.msra.mxu0 %v3908
    %6718 = vmatpush.bf16.msra.mxu0 %v3895
    %6719 = vmatmul.bf16.gmra.mxu0 %v183
    %v6720 = vpop.f32.mrf.mxu0
    %v6721 = vadd.f32 %v6707, %v6720
    %v6722 = vpop.f32.mrf.mxu0
    %v6723 = vadd.f32 %v6709, %v6722
    %6724 = vdwg.mxu0
    %6725 = vmatpush.bf16.msra.mxu0 %v4090
    %6726 = vmatpush.bf16.msra.mxu0 %v4077
    %6727 = vmatpush.bf16.msra.mxu0 %v4064
    %6728 = vmatpush.bf16.msra.mxu0 %v4051
    %6729 = vmatpush.bf16.msra.mxu0 %v4038
    %6730 = vmatpush.bf16.msra.mxu0 %v4025
    %6731 = vmatpush.bf16.msra.mxu0 %v4012
    %6732 = vmatpush.bf16.msra.mxu0 %v3999
    %6733 = vmatmul.bf16.gmra.mxu0 %v184
    %v6734 = vpop.f32.mrf.mxu0
    %v6735 = vadd.f32 %v6721, %v6734
    %v6736 = vpop.f32.mrf.mxu0
    %v6737 = vadd.f32 %v6723, %v6736
    %6738 = vdwg.mxu0
    %6739 = vmatpush.bf16.msra.mxu0 %v4194
    %6740 = vmatpush.bf16.msra.mxu0 %v4181
    %6741 = vmatpush.bf16.msra.mxu0 %v4168
    %6742 = vmatpush.bf16.msra.mxu0 %v4155
    %6743 = vmatpush.bf16.msra.mxu0 %v4142
    %6744 = vmatpush.bf16.msra.mxu0 %v4129
    %6745 = vmatpush.bf16.msra.mxu0 %v4116
    %6746 = vmatpush.bf16.msra.mxu0 %v4103
    %6747 = vmatmul.bf16.gmra.mxu0 %v185
    %v6748 = vpop.f32.mrf.mxu0
    %v6749 = vadd.f32 %v6735, %v6748
    %v6750 = vpop.f32.mrf.mxu0
    %v6751 = vadd.f32 %v6737, %v6750
    %6752 = vdwg.mxu0
    %6753 = vmatpush.bf16.msra.mxu0 %v4298
    %6754 = vmatpush.bf16.msra.mxu0 %v4285
    %6755 = vmatpush.bf16.msra.mxu0 %v4272
    %6756 = vmatpush.bf16.msra.mxu0 %v4259
    %6757 = vmatpush.bf16.msra.mxu0 %v4246
    %6758 = vmatpush.bf16.msra.mxu0 %v4233
    %6759 = vmatpush.bf16.msra.mxu0 %v4220
    %6760 = vmatpush.bf16.msra.mxu0 %v4207
    %6761 = vmatmul.bf16.gmra.mxu0 %v186
    %v6762 = vpop.f32.mrf.mxu0
    %v6763 = vadd.f32 %v6749, %v6762
    %v6764 = vpop.f32.mrf.mxu0
    %v6765 = vadd.f32 %v6751, %v6764
    %6766 = vdwg.mxu0
    %6767 = vmatpush.bf16.msra.mxu0 %v4402
    %6768 = vmatpush.bf16.msra.mxu0 %v4389
    %6769 = vmatpush.bf16.msra.mxu0 %v4376
    %6770 = vmatpush.bf16.msra.mxu0 %v4363
    %6771 = vmatpush.bf16.msra.mxu0 %v4350
    %6772 = vmatpush.bf16.msra.mxu0 %v4337
    %6773 = vmatpush.bf16.msra.mxu0 %v4324
    %6774 = vmatpush.bf16.msra.mxu0 %v4311
    %6775 = vmatmul.bf16.gmra.mxu0 %v187
    %v6776 = vpop.f32.mrf.mxu0
    %v6777 = vadd.f32 %v6763, %v6776
    %v6778 = vpop.f32.mrf.mxu0
    %v6779 = vadd.f32 %v6765, %v6778
    %6780 = vdwg.mxu0
    %6781 = vmatpush.bf16.msra.mxu0 %v4506
    %6782 = vmatpush.bf16.msra.mxu0 %v4493
    %6783 = vmatpush.bf16.msra.mxu0 %v4480
    %6784 = vmatpush.bf16.msra.mxu0 %v4467
    %6785 = vmatpush.bf16.msra.mxu0 %v4454
    %6786 = vmatpush.bf16.msra.mxu0 %v4441
    %6787 = vmatpush.bf16.msra.mxu0 %v4428
    %6788 = vmatpush.bf16.msra.mxu0 %v4415
    %6789 = vmatmul.bf16.gmra.mxu0 %v188
    %v6790 = vpop.f32.mrf.mxu0
    %v6791 = vadd.f32 %v6777, %v6790
    %v6792 = vpop.f32.mrf.mxu0
    %v6793 = vadd.f32 %v6779, %v6792
    %6794 = vdwg.mxu0
    %v6795 = vmax.f32 %v5447, 0.0
    %v6796 = vmax.f32 %v5559, 0.0
    %v6797 = vmax.f32 %v5671, 0.0
    %v6798 = vmax.f32 %v5783, 0.0
    %v6799 = vmax.f32 %v5895, 0.0
    %v6800 = vmax.f32 %v6007, 0.0
    %v6801 = vmax.f32 %v6119, 0.0
    %v6802 = vmax.f32 %v6231, 0.0
    %v6803 = vmax.f32 %v6343, 0.0
    %v6804 = vmax.f32 %v6455, 0.0
    %v6805 = vmax.f32 %v6567, 0.0
    %v6806 = vmax.f32 %v6679, 0.0
    %v6807 = vmax.f32 %v6791, 0.0
    %v6808 = vmax.f32 %v5449, 0.0
    %v6809 = vmax.f32 %v5561, 0.0
    %v6810 = vmax.f32 %v5673, 0.0
    %v6811 = vmax.f32 %v5785, 0.0
    %v6812 = vmax.f32 %v5897, 0.0
    %v6813 = vmax.f32 %v6009, 0.0
    %v6814 = vmax.f32 %v6121, 0.0
    %v6815 = vmax.f32 %v6233, 0.0
    %v6816 = vmax.f32 %v6345, 0.0
    %v6817 = vmax.f32 %v6457, 0.0
    %v6818 = vmax.f32 %v6569, 0.0
    %v6819 = vmax.f32 %v6681, 0.0
    %v6820 = vmax.f32 %v6793, 0.0
    %v6821 = vpack.c.bf16 %v6808, %v6795
    %v6822 = vpack.c.bf16 %v6809, %v6796
    %v6823 = vpack.c.bf16 %v6810, %v6797
    %v6824 = vpack.c.bf16 %v6811, %v6798
    %v6825 = vpack.c.bf16 %v6812, %v6799
    %v6826 = vpack.c.bf16 %v6813, %v6800
    %v6827 = vpack.c.bf16 %v6814, %v6801
    %v6828 = vpack.c.bf16 %v6815, %v6802
    %v6829 = vpack.c.bf16 %v6816, %v6803
    %v6830 = vpack.c.bf16 %v6817, %v6804
    %v6831 = vpack.c.bf16 %v6818, %v6805
    %v6832 = vpack.c.bf16 %v6819, %v6806
    %v6833 = vpack.c.bf16 %v6820, %v6807
    %v6834 = vld [vmem:[#allocation8] sm:$0xff]
    %v6835 = vld [vmem:[#allocation8 + $0x8] sm:$0xff]
    %v6836 = vld [vmem:[#allocation8 + $0x10] sm:$0xff]
    %v6837 = vld [vmem:[#allocation8 + $0x18] sm:$0xff]
    %v6838 = vld [vmem:[#allocation8 + $0x20] sm:$0xff]
    %v6839 = vld [vmem:[#allocation8 + $0x28] sm:$0xff]
    %v6840 = vld [vmem:[#allocation8 + $0x30] sm:$0xff]
    %v6841 = vld [vmem:[#allocation8 + $0x38] sm:$0xff]
    %v6842 = vld [vmem:[#allocation8 + $0x40] sm:$0xff]
    %v6843 = vld [vmem:[#allocation8 + $0x48] sm:$0xff]
    %v6844 = vld [vmem:[#allocation8 + $0x50] sm:$0xff]
    %v6845 = vld [vmem:[#allocation8 + $0x58] sm:$0xff]
    %v6846 = vld [vmem:[#allocation8 + $0x60] sm:$0xff]
    %v6847 = vld [vmem:[#allocation8 + $0x68] sm:$0xff]
    %v6848 = vld [vmem:[#allocation8 + $0x70] sm:$0xff]
    %v6849 = vld [vmem:[#allocation8 + $0x78] sm:$0xff]
    %v6850 = vld [vmem:[#allocation8 + $0x80] sm:$0xff]
    %v6851 = vld [vmem:[#allocation8 + $0x88] sm:$0xff]
    %v6852 = vld [vmem:[#allocation8 + $0x90] sm:$0xff]
    %v6853 = vld [vmem:[#allocation8 + $0x98] sm:$0xff]
    %v6854 = vld [vmem:[#allocation8 + $0xa0] sm:$0xff]
    %v6855 = vld [vmem:[#allocation8 + $0xa8] sm:$0xff]
    %v6856 = vld [vmem:[#allocation8 + $0xb0] sm:$0xff]
    %v6857 = vld [vmem:[#allocation8 + $0xb8] sm:$0xff]
    %v6858 = vld [vmem:[#allocation8 + $0xc0] sm:$0xff]
    %v6859 = vld [vmem:[#allocation8 + $0xc8] sm:$0xff]
    %v6860 = vld [vmem:[#allocation8 + $0xd0] sm:$0xff]
    %v6861 = vld [vmem:[#allocation8 + $0xd8] sm:$0xff]
    %v6862 = vld [vmem:[#allocation8 + $0xe0] sm:$0xff]
    %v6863 = vld [vmem:[#allocation8 + $0xe8] sm:$0xff]
    %v6864 = vld [vmem:[#allocation8 + $0xf0] sm:$0xff]
    %v6865 = vld [vmem:[#allocation8 + $0xf8] sm:$0xff]
    %v6866 = vld [vmem:[#allocation8 + $0x100] sm:$0xff]
    %v6867 = vld [vmem:[#allocation8 + $0x108] sm:$0xff]
    %v6868 = vld [vmem:[#allocation8 + $0x110] sm:$0xff]
    %v6869 = vld [vmem:[#allocation8 + $0x118] sm:$0xff]
    %v6870 = vld [vmem:[#allocation8 + $0x120] sm:$0xff]
    %v6871 = vld [vmem:[#allocation8 + $0x128] sm:$0xff]
    %v6872 = vld [vmem:[#allocation8 + $0x130] sm:$0xff]
    %v6873 = vld [vmem:[#allocation8 + $0x138] sm:$0xff]
    %v6874 = vld [vmem:[#allocation8 + $0x140] sm:$0xff]
    %v6875 = vld [vmem:[#allocation8 + $0x148] sm:$0xff]
    %v6876 = vld [vmem:[#allocation8 + $0x150] sm:$0xff]
    %v6877 = vld [vmem:[#allocation8 + $0x158] sm:$0xff]
    %v6878 = vld [vmem:[#allocation8 + $0x160] sm:$0xff]
    %v6879 = vld [vmem:[#allocation8 + $0x168] sm:$0xff]
    %v6880 = vld [vmem:[#allocation8 + $0x170] sm:$0xff]
    %v6881 = vld [vmem:[#allocation8 + $0x178] sm:$0xff]
    %v6882 = vld [vmem:[#allocation8 + $0x180] sm:$0xff]
    %v6883 = vld [vmem:[#allocation8 + $0x188] sm:$0xff]
    %v6884 = vld [vmem:[#allocation8 + $0x190] sm:$0xff]
    %v6885 = vld [vmem:[#allocation8 + $0x198] sm:$0xff]
    %v6886 = vld [vmem:[#allocation8 + $0x1a0] sm:$0xff]
    %v6887 = vld [vmem:[#allocation8 + $0x1a8] sm:$0xff]
    %v6888 = vld [vmem:[#allocation8 + $0x1b0] sm:$0xff]
    %v6889 = vld [vmem:[#allocation8 + $0x1b8] sm:$0xff]
    %v6890 = vld [vmem:[#allocation8 + $0x1c0] sm:$0xff]
    %v6891 = vld [vmem:[#allocation8 + $0x1c8] sm:$0xff]
    %v6892 = vld [vmem:[#allocation8 + $0x1d0] sm:$0xff]
    %v6893 = vld [vmem:[#allocation8 + $0x1d8] sm:$0xff]
    %v6894 = vld [vmem:[#allocation8 + $0x1e0] sm:$0xff]
    %v6895 = vld [vmem:[#allocation8 + $0x1e8] sm:$0xff]
    %v6896 = vld [vmem:[#allocation8 + $0x1f0] sm:$0xff]
    %v6897 = vld [vmem:[#allocation8 + $0x1f8] sm:$0xff]
    %v6898 = vld [vmem:[#allocation8 + $0x200] sm:$0xff]
    %v6899 = vld [vmem:[#allocation8 + $0x208] sm:$0xff]
    %v6900 = vld [vmem:[#allocation8 + $0x210] sm:$0xff]
    %v6901 = vld [vmem:[#allocation8 + $0x218] sm:$0xff]
    %v6902 = vld [vmem:[#allocation8 + $0x220] sm:$0xff]
    %v6903 = vld [vmem:[#allocation8 + $0x228] sm:$0xff]
    %v6904 = vld [vmem:[#allocation8 + $0x230] sm:$0xff]
    %v6905 = vld [vmem:[#allocation8 + $0x238] sm:$0xff]
    %v6906 = vld [vmem:[#allocation8 + $0x240] sm:$0xff]
    %v6907 = vld [vmem:[#allocation8 + $0x248] sm:$0xff]
    %v6908 = vld [vmem:[#allocation8 + $0x250] sm:$0xff]
    %v6909 = vld [vmem:[#allocation8 + $0x258] sm:$0xff]
    %v6910 = vld [vmem:[#allocation8 + $0x260] sm:$0xff]
    %v6911 = vld [vmem:[#allocation8 + $0x268] sm:$0xff]
    %v6912 = vld [vmem:[#allocation8 + $0x270] sm:$0xff]
    %v6913 = vld [vmem:[#allocation8 + $0x278] sm:$0xff]
    %v6914 = vld [vmem:[#allocation8 + $0x280] sm:$0xff]
    %v6915 = vld [vmem:[#allocation8 + $0x288] sm:$0xff]
    %v6916 = vld [vmem:[#allocation8 + $0x290] sm:$0xff]
    %v6917 = vld [vmem:[#allocation8 + $0x298] sm:$0xff]
    %v6918 = vld [vmem:[#allocation8 + $0x2a0] sm:$0xff]
    %v6919 = vld [vmem:[#allocation8 + $0x2a8] sm:$0xff]
    %v6920 = vld [vmem:[#allocation8 + $0x2b0] sm:$0xff]
    %v6921 = vld [vmem:[#allocation8 + $0x2b8] sm:$0xff]
    %v6922 = vld [vmem:[#allocation8 + $0x2c0] sm:$0xff]
    %v6923 = vld [vmem:[#allocation8 + $0x2c8] sm:$0xff]
    %v6924 = vld [vmem:[#allocation8 + $0x2d0] sm:$0xff]
    %v6925 = vld [vmem:[#allocation8 + $0x2d8] sm:$0xff]
    %v6926 = vld [vmem:[#allocation8 + $0x2e0] sm:$0xff]
    %v6927 = vld [vmem:[#allocation8 + $0x2e8] sm:$0xff]
    %v6928 = vld [vmem:[#allocation8 + $0x2f0] sm:$0xff]
    %v6929 = vld [vmem:[#allocation8 + $0x2f8] sm:$0xff]
    %v6930 = vld [vmem:[#allocation8 + $0x300] sm:$0xff]
    %v6931 = vld [vmem:[#allocation8 + $0x308] sm:$0xff]
    %v6932 = vld [vmem:[#allocation8 + $0x310] sm:$0xff]
    %v6933 = vld [vmem:[#allocation8 + $0x318] sm:$0xff]
    %v6934 = vld [vmem:[#allocation8 + $0x320] sm:$0xff]
    %v6935 = vld [vmem:[#allocation8 + $0x328] sm:$0xff]
    %v6936 = vld [vmem:[#allocation8 + $0x330] sm:$0xff]
    %v6937 = vld [vmem:[#allocation8 + $0x338] sm:$0xff]
    %v6938 = vld [vmem:[#allocation8 + $0x340] sm:$0xff]
    %v6939 = vld [vmem:[#allocation8 + $0x348] sm:$0xff]
    %v6940 = vld [vmem:[#allocation8 + $0x350] sm:$0xff]
    %v6941 = vld [vmem:[#allocation8 + $0x358] sm:$0xff]
    %v6942 = vld [vmem:[#allocation8 + $0x360] sm:$0xff]
    %v6943 = vld [vmem:[#allocation8 + $0x368] sm:$0xff]
    %v6944 = vld [vmem:[#allocation8 + $0x370] sm:$0xff]
    %v6945 = vld [vmem:[#allocation8 + $0x378] sm:$0xff]
    %v6946 = vld [vmem:[#allocation8 + $0x380] sm:$0xff]
    %v6947 = vld [vmem:[#allocation8 + $0x388] sm:$0xff]
    %v6948 = vld [vmem:[#allocation8 + $0x390] sm:$0xff]
    %v6949 = vld [vmem:[#allocation8 + $0x398] sm:$0xff]
    %v6950 = vld [vmem:[#allocation8 + $0x3a0] sm:$0xff]
    %v6951 = vld [vmem:[#allocation8 + $0x3a8] sm:$0xff]
    %v6952 = vld [vmem:[#allocation8 + $0x3b0] sm:$0xff]
    %v6953 = vld [vmem:[#allocation8 + $0x3b8] sm:$0xff]
    %v6954 = vld [vmem:[#allocation8 + $0x3c0] sm:$0xff]
    %v6955 = vld [vmem:[#allocation8 + $0x3c8] sm:$0xff]
    %v6956 = vld [vmem:[#allocation8 + $0x3d0] sm:$0xff]
    %v6957 = vld [vmem:[#allocation8 + $0x3d8] sm:$0xff]
    %v6958 = vld [vmem:[#allocation8 + $0x3e0] sm:$0xff]
    %v6959 = vld [vmem:[#allocation8 + $0x3e8] sm:$0xff]
    %v6960 = vld [vmem:[#allocation8 + $0x3f0] sm:$0xff]
    %v6961 = vld [vmem:[#allocation8 + $0x3f8] sm:$0xff]
    %v6962 = vld [vmem:[#allocation8 + $0x400] sm:$0xff]
    %v6963 = vld [vmem:[#allocation8 + $0x408] sm:$0xff]
    %v6964 = vld [vmem:[#allocation8 + $0x410] sm:$0xff]
    %v6965 = vld [vmem:[#allocation8 + $0x418] sm:$0xff]
    %v6966 = vld [vmem:[#allocation8 + $0x420] sm:$0xff]
    %v6967 = vld [vmem:[#allocation8 + $0x428] sm:$0xff]
    %v6968 = vld [vmem:[#allocation8 + $0x430] sm:$0xff]
    %v6969 = vld [vmem:[#allocation8 + $0x438] sm:$0xff]
    %v6970 = vld [vmem:[#allocation8 + $0x440] sm:$0xff]
    %v6971 = vld [vmem:[#allocation8 + $0x448] sm:$0xff]
    %v6972 = vld [vmem:[#allocation8 + $0x450] sm:$0xff]
    %v6973 = vld [vmem:[#allocation8 + $0x458] sm:$0xff]
    %v6974 = vld [vmem:[#allocation8 + $0x460] sm:$0xff]
    %v6975 = vld [vmem:[#allocation8 + $0x468] sm:$0xff]
    %v6976 = vld [vmem:[#allocation8 + $0x470] sm:$0xff]
    %v6977 = vld [vmem:[#allocation8 + $0x478] sm:$0xff]
    %v6978 = vld [vmem:[#allocation8 + $0x480] sm:$0xff]
    %v6979 = vld [vmem:[#allocation8 + $0x488] sm:$0xff]
    %v6980 = vld [vmem:[#allocation8 + $0x490] sm:$0xff]
    %v6981 = vld [vmem:[#allocation8 + $0x498] sm:$0xff]
    %v6982 = vld [vmem:[#allocation8 + $0x4a0] sm:$0xff]
    %v6983 = vld [vmem:[#allocation8 + $0x4a8] sm:$0xff]
    %v6984 = vld [vmem:[#allocation8 + $0x4b0] sm:$0xff]
    %v6985 = vld [vmem:[#allocation8 + $0x4b8] sm:$0xff]
    %v6986 = vld [vmem:[#allocation8 + $0x4c0] sm:$0xff]
    %v6987 = vld [vmem:[#allocation8 + $0x4c8] sm:$0xff]
    %v6988 = vld [vmem:[#allocation8 + $0x4d0] sm:$0xff]
    %v6989 = vld [vmem:[#allocation8 + $0x4d8] sm:$0xff]
    %v6990 = vld [vmem:[#allocation8 + $0x4e0] sm:$0xff]
    %v6991 = vld [vmem:[#allocation8 + $0x4e8] sm:$0xff]
    %v6992 = vld [vmem:[#allocation8 + $0x4f0] sm:$0xff]
    %v6993 = vld [vmem:[#allocation8 + $0x4f8] sm:$0xff]
    %v6994 = vld [vmem:[#allocation8 + $0x500] sm:$0xff]
    %v6995 = vld [vmem:[#allocation8 + $0x508] sm:$0xff]
    %v6996 = vld [vmem:[#allocation8 + $0x510] sm:$0xff]
    %v6997 = vld [vmem:[#allocation8 + $0x518] sm:$0xff]
    %v6998 = vld [vmem:[#allocation8 + $0x520] sm:$0xff]
    %v6999 = vld [vmem:[#allocation8 + $0x528] sm:$0xff]
    %v7000 = vld [vmem:[#allocation8 + $0x530] sm:$0xff]
    %v7001 = vld [vmem:[#allocation8 + $0x538] sm:$0xff]
    %v7002 = vld [vmem:[#allocation8 + $0x540] sm:$0xff]
    %v7003 = vld [vmem:[#allocation8 + $0x548] sm:$0xff]
    %v7004 = vld [vmem:[#allocation8 + $0x550] sm:$0xff]
    %v7005 = vld [vmem:[#allocation8 + $0x558] sm:$0xff]
    %v7006 = vld [vmem:[#allocation8 + $0x560] sm:$0xff]
    %v7007 = vld [vmem:[#allocation8 + $0x568] sm:$0xff]
    %v7008 = vld [vmem:[#allocation8 + $0x570] sm:$0xff]
    %v7009 = vld [vmem:[#allocation8 + $0x578] sm:$0xff]
    %v7010 = vld [vmem:[#allocation8 + $0x580] sm:$0xff]
    %v7011 = vld [vmem:[#allocation8 + $0x588] sm:$0xff]
    %v7012 = vld [vmem:[#allocation8 + $0x590] sm:$0xff]
    %v7013 = vld [vmem:[#allocation8 + $0x598] sm:$0xff]
    %v7014 = vld [vmem:[#allocation8 + $0x5a0] sm:$0xff]
    %v7015 = vld [vmem:[#allocation8 + $0x5a8] sm:$0xff]
    %v7016 = vld [vmem:[#allocation8 + $0x5b0] sm:$0xff]
    %v7017 = vld [vmem:[#allocation8 + $0x5b8] sm:$0xff]
    %v7018 = vld [vmem:[#allocation8 + $0x5c0] sm:$0xff]
    %v7019 = vld [vmem:[#allocation8 + $0x5c8] sm:$0xff]
    %v7020 = vld [vmem:[#allocation8 + $0x5d0] sm:$0xff]
    %v7021 = vld [vmem:[#allocation8 + $0x5d8] sm:$0xff]
    %v7022 = vld [vmem:[#allocation8 + $0x5e0] sm:$0xff]
    %v7023 = vld [vmem:[#allocation8 + $0x5e8] sm:$0xff]
    %v7024 = vld [vmem:[#allocation8 + $0x5f0] sm:$0xff]
    %v7025 = vld [vmem:[#allocation8 + $0x5f8] sm:$0xff]
    %v7026 = vld [vmem:[#allocation8 + $0x600] sm:$0xff]
    %v7027 = vld [vmem:[#allocation8 + $0x608] sm:$0xff]
    %v7028 = vld [vmem:[#allocation8 + $0x610] sm:$0xff]
    %v7029 = vld [vmem:[#allocation8 + $0x618] sm:$0xff]
    %v7030 = vld [vmem:[#allocation8 + $0x620] sm:$0xff]
    %v7031 = vld [vmem:[#allocation8 + $0x628] sm:$0xff]
    %v7032 = vld [vmem:[#allocation8 + $0x630] sm:$0xff]
    %v7033 = vld [vmem:[#allocation8 + $0x638] sm:$0xff]
    %v7034 = vld [vmem:[#allocation8 + $0x640] sm:$0xff]
    %v7035 = vld [vmem:[#allocation8 + $0x648] sm:$0xff]
    %v7036 = vld [vmem:[#allocation8 + $0x650] sm:$0xff]
    %v7037 = vld [vmem:[#allocation8 + $0x658] sm:$0xff]
    %v7038 = vld [vmem:[#allocation8 + $0x660] sm:$0xff]
    %v7039 = vld [vmem:[#allocation8 + $0x668] sm:$0xff]
    %v7040 = vld [vmem:[#allocation8 + $0x670] sm:$0xff]
    %v7041 = vld [vmem:[#allocation8 + $0x678] sm:$0xff]
    %v7042 = vld [vmem:[#allocation8 + $0x680] sm:$0xff]
    %v7043 = vld [vmem:[#allocation8 + $0x688] sm:$0xff]
    %v7044 = vld [vmem:[#allocation8 + $0x690] sm:$0xff]
    %v7045 = vld [vmem:[#allocation8 + $0x698] sm:$0xff]
    %v7046 = vld [vmem:[#allocation8 + $0x6a0] sm:$0xff]
    %v7047 = vld [vmem:[#allocation8 + $0x6a8] sm:$0xff]
    %v7048 = vld [vmem:[#allocation8 + $0x6b0] sm:$0xff]
    %v7049 = vld [vmem:[#allocation8 + $0x6b8] sm:$0xff]
    %v7050 = vld [vmem:[#allocation8 + $0x6c0] sm:$0xff]
    %v7051 = vld [vmem:[#allocation8 + $0x6c8] sm:$0xff]
    %v7052 = vld [vmem:[#allocation8 + $0x6d0] sm:$0xff]
    %v7053 = vld [vmem:[#allocation8 + $0x6d8] sm:$0xff]
    %v7054 = vld [vmem:[#allocation8 + $0x6e0] sm:$0xff]
    %v7055 = vld [vmem:[#allocation8 + $0x6e8] sm:$0xff]
    %v7056 = vld [vmem:[#allocation8 + $0x6f0] sm:$0xff]
    %v7057 = vld [vmem:[#allocation8 + $0x6f8] sm:$0xff]
    %v7058 = vld [vmem:[#allocation8 + $0x700] sm:$0xff]
    %v7059 = vld [vmem:[#allocation8 + $0x708] sm:$0xff]
    %v7060 = vld [vmem:[#allocation8 + $0x710] sm:$0xff]
    %v7061 = vld [vmem:[#allocation8 + $0x718] sm:$0xff]
    %v7062 = vld [vmem:[#allocation8 + $0x720] sm:$0xff]
    %v7063 = vld [vmem:[#allocation8 + $0x728] sm:$0xff]
    %v7064 = vld [vmem:[#allocation8 + $0x730] sm:$0xff]
    %v7065 = vld [vmem:[#allocation8 + $0x738] sm:$0xff]
    %v7066 = vld [vmem:[#allocation8 + $0x740] sm:$0xff]
    %v7067 = vld [vmem:[#allocation8 + $0x748] sm:$0xff]
    %v7068 = vld [vmem:[#allocation8 + $0x750] sm:$0xff]
    %v7069 = vld [vmem:[#allocation8 + $0x758] sm:$0xff]
    %v7070 = vld [vmem:[#allocation8 + $0x760] sm:$0xff]
    %v7071 = vld [vmem:[#allocation8 + $0x768] sm:$0xff]
    %v7072 = vld [vmem:[#allocation8 + $0x770] sm:$0xff]
    %v7073 = vld [vmem:[#allocation8 + $0x778] sm:$0xff]
    %v7074 = vld [vmem:[#allocation8 + $0x780] sm:$0xff]
    %v7075 = vld [vmem:[#allocation8 + $0x788] sm:$0xff]
    %v7076 = vld [vmem:[#allocation8 + $0x790] sm:$0xff]
    %v7077 = vld [vmem:[#allocation8 + $0x798] sm:$0xff]
    %v7078 = vld [vmem:[#allocation8 + $0x7a0] sm:$0xff]
    %v7079 = vld [vmem:[#allocation8 + $0x7a8] sm:$0xff]
    %v7080 = vld [vmem:[#allocation8 + $0x7b0] sm:$0xff]
    %v7081 = vld [vmem:[#allocation8 + $0x7b8] sm:$0xff]
    %v7082 = vld [vmem:[#allocation8 + $0x7c0] sm:$0xff]
    %v7083 = vld [vmem:[#allocation8 + $0x7c8] sm:$0xff]
    %v7084 = vld [vmem:[#allocation8 + $0x7d0] sm:$0xff]
    %v7085 = vld [vmem:[#allocation8 + $0x7d8] sm:$0xff]
    %v7086 = vld [vmem:[#allocation8 + $0x7e0] sm:$0xff]
    %v7087 = vld [vmem:[#allocation8 + $0x7e8] sm:$0xff]
    %v7088 = vld [vmem:[#allocation8 + $0x7f0] sm:$0xff]
    %v7089 = vld [vmem:[#allocation8 + $0x7f8] sm:$0xff]
    %v7090 = vld [vmem:[#allocation8 + $0x800] sm:$0xff]
    %v7091 = vld [vmem:[#allocation8 + $0x808] sm:$0xff]
    %v7092 = vld [vmem:[#allocation8 + $0x810] sm:$0xff]
    %v7093 = vld [vmem:[#allocation8 + $0x818] sm:$0xff]
    %v7094 = vld [vmem:[#allocation8 + $0x820] sm:$0xff]
    %v7095 = vld [vmem:[#allocation8 + $0x828] sm:$0xff]
    %v7096 = vld [vmem:[#allocation8 + $0x830] sm:$0xff]
    %v7097 = vld [vmem:[#allocation8 + $0x838] sm:$0xff]
    %v7098 = vld [vmem:[#allocation8 + $0x840] sm:$0xff]
    %v7099 = vld [vmem:[#allocation8 + $0x848] sm:$0xff]
    %v7100 = vld [vmem:[#allocation8 + $0x850] sm:$0xff]
    %v7101 = vld [vmem:[#allocation8 + $0x858] sm:$0xff]
    %v7102 = vld [vmem:[#allocation8 + $0x860] sm:$0xff]
    %v7103 = vld [vmem:[#allocation8 + $0x868] sm:$0xff]
    %v7104 = vld [vmem:[#allocation8 + $0x870] sm:$0xff]
    %v7105 = vld [vmem:[#allocation8 + $0x878] sm:$0xff]
    %v7106 = vld [vmem:[#allocation8 + $0x880] sm:$0xff]
    %v7107 = vld [vmem:[#allocation8 + $0x888] sm:$0xff]
    %v7108 = vld [vmem:[#allocation8 + $0x890] sm:$0xff]
    %v7109 = vld [vmem:[#allocation8 + $0x898] sm:$0xff]
    %v7110 = vld [vmem:[#allocation8 + $0x8a0] sm:$0xff]
    %v7111 = vld [vmem:[#allocation8 + $0x8a8] sm:$0xff]
    %v7112 = vld [vmem:[#allocation8 + $0x8b0] sm:$0xff]
    %v7113 = vld [vmem:[#allocation8 + $0x8b8] sm:$0xff]
    %v7114 = vld [vmem:[#allocation8 + $0x8c0] sm:$0xff]
    %v7115 = vld [vmem:[#allocation8 + $0x8c8] sm:$0xff]
    %v7116 = vld [vmem:[#allocation8 + $0x8d0] sm:$0xff]
    %v7117 = vld [vmem:[#allocation8 + $0x8d8] sm:$0xff]
    %v7118 = vld [vmem:[#allocation8 + $0x8e0] sm:$0xff]
    %v7119 = vld [vmem:[#allocation8 + $0x8e8] sm:$0xff]
    %v7120 = vld [vmem:[#allocation8 + $0x8f0] sm:$0xff]
    %v7121 = vld [vmem:[#allocation8 + $0x8f8] sm:$0xff]
    %v7122 = vld [vmem:[#allocation8 + $0x900] sm:$0xff]
    %v7123 = vld [vmem:[#allocation8 + $0x908] sm:$0xff]
    %v7124 = vld [vmem:[#allocation8 + $0x910] sm:$0xff]
    %v7125 = vld [vmem:[#allocation8 + $0x918] sm:$0xff]
    %v7126 = vld [vmem:[#allocation8 + $0x920] sm:$0xff]
    %v7127 = vld [vmem:[#allocation8 + $0x928] sm:$0xff]
    %v7128 = vld [vmem:[#allocation8 + $0x930] sm:$0xff]
    %v7129 = vld [vmem:[#allocation8 + $0x938] sm:$0xff]
    %v7130 = vld [vmem:[#allocation8 + $0x940] sm:$0xff]
    %v7131 = vld [vmem:[#allocation8 + $0x948] sm:$0xff]
    %v7132 = vld [vmem:[#allocation8 + $0x950] sm:$0xff]
    %v7133 = vld [vmem:[#allocation8 + $0x958] sm:$0xff]
    %v7134 = vld [vmem:[#allocation8 + $0x960] sm:$0xff]
    %v7135 = vld [vmem:[#allocation8 + $0x968] sm:$0xff]
    %v7136 = vld [vmem:[#allocation8 + $0x970] sm:$0xff]
    %v7137 = vld [vmem:[#allocation8 + $0x978] sm:$0xff]
    %v7138 = vld [vmem:[#allocation8 + $0x980] sm:$0xff]
    %v7139 = vld [vmem:[#allocation8 + $0x988] sm:$0xff]
    %v7140 = vld [vmem:[#allocation8 + $0x990] sm:$0xff]
    %v7141 = vld [vmem:[#allocation8 + $0x998] sm:$0xff]
    %v7142 = vld [vmem:[#allocation8 + $0x9a0] sm:$0xff]
    %v7143 = vld [vmem:[#allocation8 + $0x9a8] sm:$0xff]
    %v7144 = vld [vmem:[#allocation8 + $0x9b0] sm:$0xff]
    %v7145 = vld [vmem:[#allocation8 + $0x9b8] sm:$0xff]
    %v7146 = vld [vmem:[#allocation8 + $0x9c0] sm:$0xff]
    %v7147 = vld [vmem:[#allocation8 + $0x9c8] sm:$0xff]
    %v7148 = vld [vmem:[#allocation8 + $0x9d0] sm:$0xff]
    %v7149 = vld [vmem:[#allocation8 + $0x9d8] sm:$0xff]
    %v7150 = vld [vmem:[#allocation8 + $0x9e0] sm:$0xff]
    %v7151 = vld [vmem:[#allocation8 + $0x9e8] sm:$0xff]
    %v7152 = vld [vmem:[#allocation8 + $0x9f0] sm:$0xff]
    %v7153 = vld [vmem:[#allocation8 + $0x9f8] sm:$0xff]
    %v7154 = vld [vmem:[#allocation8 + $0xa00] sm:$0xff]
    %v7155 = vld [vmem:[#allocation8 + $0xa08] sm:$0xff]
    %v7156 = vld [vmem:[#allocation8 + $0xa10] sm:$0xff]
    %v7157 = vld [vmem:[#allocation8 + $0xa18] sm:$0xff]
    %v7158 = vld [vmem:[#allocation8 + $0xa20] sm:$0xff]
    %v7159 = vld [vmem:[#allocation8 + $0xa28] sm:$0xff]
    %v7160 = vld [vmem:[#allocation8 + $0xa30] sm:$0xff]
    %v7161 = vld [vmem:[#allocation8 + $0xa38] sm:$0xff]
    %v7162 = vld [vmem:[#allocation8 + $0xa40] sm:$0xff]
    %v7163 = vld [vmem:[#allocation8 + $0xa48] sm:$0xff]
    %v7164 = vld [vmem:[#allocation8 + $0xa50] sm:$0xff]
    %v7165 = vld [vmem:[#allocation8 + $0xa58] sm:$0xff]
    %v7166 = vld [vmem:[#allocation8 + $0xa60] sm:$0xff]
    %v7167 = vld [vmem:[#allocation8 + $0xa68] sm:$0xff]
    %v7168 = vld [vmem:[#allocation8 + $0xa70] sm:$0xff]
    %v7169 = vld [vmem:[#allocation8 + $0xa78] sm:$0xff]
    %v7170 = vld [vmem:[#allocation8 + $0xa80] sm:$0xff]
    %v7171 = vld [vmem:[#allocation8 + $0xa88] sm:$0xff]
    %v7172 = vld [vmem:[#allocation8 + $0xa90] sm:$0xff]
    %v7173 = vld [vmem:[#allocation8 + $0xa98] sm:$0xff]
    %v7174 = vld [vmem:[#allocation8 + $0xaa0] sm:$0xff]
    %v7175 = vld [vmem:[#allocation8 + $0xaa8] sm:$0xff]
    %v7176 = vld [vmem:[#allocation8 + $0xab0] sm:$0xff]
    %v7177 = vld [vmem:[#allocation8 + $0xab8] sm:$0xff]
    %v7178 = vld [vmem:[#allocation8 + $0xac0] sm:$0xff]
    %v7179 = vld [vmem:[#allocation8 + $0xac8] sm:$0xff]
    %v7180 = vld [vmem:[#allocation8 + $0xad0] sm:$0xff]
    %v7181 = vld [vmem:[#allocation8 + $0xad8] sm:$0xff]
    %v7182 = vld [vmem:[#allocation8 + $0xae0] sm:$0xff]
    %v7183 = vld [vmem:[#allocation8 + $0xae8] sm:$0xff]
    %v7184 = vld [vmem:[#allocation8 + $0xaf0] sm:$0xff]
    %v7185 = vld [vmem:[#allocation8 + $0xaf8] sm:$0xff]
    %v7186 = vld [vmem:[#allocation8 + $0xb00] sm:$0xff]
    %v7187 = vld [vmem:[#allocation8 + $0xb08] sm:$0xff]
    %v7188 = vld [vmem:[#allocation8 + $0xb10] sm:$0xff]
    %v7189 = vld [vmem:[#allocation8 + $0xb18] sm:$0xff]
    %v7190 = vld [vmem:[#allocation8 + $0xb20] sm:$0xff]
    %v7191 = vld [vmem:[#allocation8 + $0xb28] sm:$0xff]
    %v7192 = vld [vmem:[#allocation8 + $0xb30] sm:$0xff]
    %v7193 = vld [vmem:[#allocation8 + $0xb38] sm:$0xff]
    %v7194 = vld [vmem:[#allocation8 + $0xb40] sm:$0xff]
    %v7195 = vld [vmem:[#allocation8 + $0xb48] sm:$0xff]
    %v7196 = vld [vmem:[#allocation8 + $0xb50] sm:$0xff]
    %v7197 = vld [vmem:[#allocation8 + $0xb58] sm:$0xff]
    %v7198 = vld [vmem:[#allocation8 + $0xb60] sm:$0xff]
    %v7199 = vld [vmem:[#allocation8 + $0xb68] sm:$0xff]
    %v7200 = vld [vmem:[#allocation8 + $0xb70] sm:$0xff]
    %v7201 = vld [vmem:[#allocation8 + $0xb78] sm:$0xff]
    %v7202 = vld [vmem:[#allocation8 + $0xb80] sm:$0xff]
    %v7203 = vld [vmem:[#allocation8 + $0xb88] sm:$0xff]
    %v7204 = vld [vmem:[#allocation8 + $0xb90] sm:$0xff]
    %v7205 = vld [vmem:[#allocation8 + $0xb98] sm:$0xff]
    %v7206 = vld [vmem:[#allocation8 + $0xba0] sm:$0xff]
    %v7207 = vld [vmem:[#allocation8 + $0xba8] sm:$0xff]
    %v7208 = vld [vmem:[#allocation8 + $0xbb0] sm:$0xff]
    %v7209 = vld [vmem:[#allocation8 + $0xbb8] sm:$0xff]
    %v7210 = vld [vmem:[#allocation8 + $0xbc0] sm:$0xff]
    %v7211 = vld [vmem:[#allocation8 + $0xbc8] sm:$0xff]
    %v7212 = vld [vmem:[#allocation8 + $0xbd0] sm:$0xff]
    %v7213 = vld [vmem:[#allocation8 + $0xbd8] sm:$0xff]
    %v7214 = vld [vmem:[#allocation8 + $0xbe0] sm:$0xff]
    %v7215 = vld [vmem:[#allocation8 + $0xbe8] sm:$0xff]
    %v7216 = vld [vmem:[#allocation8 + $0xbf0] sm:$0xff]
    %v7217 = vld [vmem:[#allocation8 + $0xbf8] sm:$0xff]
    %v7218 = vld [vmem:[#allocation8 + $0xc00] sm:$0xff]
    %v7219 = vld [vmem:[#allocation8 + $0xc08] sm:$0xff]
    %v7220 = vld [vmem:[#allocation8 + $0xc10] sm:$0xff]
    %v7221 = vld [vmem:[#allocation8 + $0xc18] sm:$0xff]
    %v7222 = vld [vmem:[#allocation8 + $0xc20] sm:$0xff]
    %v7223 = vld [vmem:[#allocation8 + $0xc28] sm:$0xff]
    %v7224 = vld [vmem:[#allocation8 + $0xc30] sm:$0xff]
    %v7225 = vld [vmem:[#allocation8 + $0xc38] sm:$0xff]
    %v7226 = vld [vmem:[#allocation8 + $0xc40] sm:$0xff]
    %v7227 = vld [vmem:[#allocation8 + $0xc48] sm:$0xff]
    %v7228 = vld [vmem:[#allocation8 + $0xc50] sm:$0xff]
    %v7229 = vld [vmem:[#allocation8 + $0xc58] sm:$0xff]
    %v7230 = vld [vmem:[#allocation8 + $0xc60] sm:$0xff]
    %v7231 = vld [vmem:[#allocation8 + $0xc68] sm:$0xff]
    %v7232 = vld [vmem:[#allocation8 + $0xc70] sm:$0xff]
    %v7233 = vld [vmem:[#allocation8 + $0xc78] sm:$0xff]
    %v7234 = vld [vmem:[#allocation8 + $0xc80] sm:$0xff]
    %v7235 = vld [vmem:[#allocation8 + $0xc88] sm:$0xff]
    %v7236 = vld [vmem:[#allocation8 + $0xc90] sm:$0xff]
    %v7237 = vld [vmem:[#allocation8 + $0xc98] sm:$0xff]
    %v7238 = vld [vmem:[#allocation8 + $0xca0] sm:$0xff]
    %v7239 = vld [vmem:[#allocation8 + $0xca8] sm:$0xff]
    %v7240 = vld [vmem:[#allocation8 + $0xcb0] sm:$0xff]
    %v7241 = vld [vmem:[#allocation8 + $0xcb8] sm:$0xff]
    %v7242 = vld [vmem:[#allocation8 + $0xcc0] sm:$0xff]
    %v7243 = vld [vmem:[#allocation8 + $0xcc8] sm:$0xff]
    %v7244 = vld [vmem:[#allocation8 + $0xcd0] sm:$0xff]
    %v7245 = vld [vmem:[#allocation8 + $0xcd8] sm:$0xff]
    %v7246 = vld [vmem:[#allocation8 + $0xce0] sm:$0xff]
    %v7247 = vld [vmem:[#allocation8 + $0xce8] sm:$0xff]
    %v7248 = vld [vmem:[#allocation8 + $0xcf0] sm:$0xff]
    %v7249 = vld [vmem:[#allocation8 + $0xcf8] sm:$0xff]
    %v7250 = vld [vmem:[#allocation10] sm:$0xf]
    %v7252 = vperm.slane %v7250, 0
    %v7253 = vperm.slane %v7250, 1
    %v7254 = vperm.slane %v7250, 2
    %v7255 = vperm.slane %v7250, 3
    %v7676 = vunpack.c.l.b16 %v6834
    %v7677 = vunpack.c.h.b16 %v6834
    %v7678 = vunpack.c.l.b16 %v6835
    %v7679 = vunpack.c.h.b16 %v6835
    %v7680 = vunpack.c.l.b16 %v6836
    %v7681 = vunpack.c.h.b16 %v6836
    %v7682 = vunpack.c.l.b16 %v6837
    %v7683 = vunpack.c.h.b16 %v6837
    %v7684 = vunpack.c.l.b16 %v6838
    %v7685 = vunpack.c.h.b16 %v6838
    %v7686 = vunpack.c.l.b16 %v6839
    %v7687 = vunpack.c.h.b16 %v6839
    %v7688 = vunpack.c.l.b16 %v6840
    %v7689 = vunpack.c.h.b16 %v6840
    %v7690 = vunpack.c.l.b16 %v6841
    %v7691 = vunpack.c.h.b16 %v6841
    %v7692 = vunpack.c.l.b16 %v6842
    %v7693 = vunpack.c.h.b16 %v6842
    %v7694 = vunpack.c.l.b16 %v6843
    %v7695 = vunpack.c.h.b16 %v6843
    %v7696 = vunpack.c.l.b16 %v6844
    %v7697 = vunpack.c.h.b16 %v6844
    %v7698 = vunpack.c.l.b16 %v6845
    %v7699 = vunpack.c.h.b16 %v6845
    %v7700 = vunpack.c.l.b16 %v6846
    %v7701 = vunpack.c.h.b16 %v6846
    %v7702 = vunpack.c.l.b16 %v6847
    %v7703 = vunpack.c.h.b16 %v6847
    %v7704 = vunpack.c.l.b16 %v6848
    %v7705 = vunpack.c.h.b16 %v6848
    %v7706 = vunpack.c.l.b16 %v6849
    %v7707 = vunpack.c.h.b16 %v6849
    %v7708 = vunpack.c.l.b16 %v6850
    %v7709 = vunpack.c.h.b16 %v6850
    %v7710 = vunpack.c.l.b16 %v6851
    %v7711 = vunpack.c.h.b16 %v6851
    %v7712 = vunpack.c.l.b16 %v6852
    %v7713 = vunpack.c.h.b16 %v6852
    %v7714 = vunpack.c.l.b16 %v6853
    %v7715 = vunpack.c.h.b16 %v6853
    %v7716 = vunpack.c.l.b16 %v6854
    %v7717 = vunpack.c.h.b16 %v6854
    %v7718 = vunpack.c.l.b16 %v6855
    %v7719 = vunpack.c.h.b16 %v6855
    %v7720 = vunpack.c.l.b16 %v6856
    %v7721 = vunpack.c.h.b16 %v6856
    %v7722 = vunpack.c.l.b16 %v6857
    %v7723 = vunpack.c.h.b16 %v6857
    %v7724 = vunpack.c.l.b16 %v6858
    %v7725 = vunpack.c.h.b16 %v6858
    %v7726 = vunpack.c.l.b16 %v6859
    %v7727 = vunpack.c.h.b16 %v6859
    %v7728 = vunpack.c.l.b16 %v6860
    %v7729 = vunpack.c.h.b16 %v6860
    %v7730 = vunpack.c.l.b16 %v6861
    %v7731 = vunpack.c.h.b16 %v6861
    %v7732 = vunpack.c.l.b16 %v6862
    %v7733 = vunpack.c.h.b16 %v6862
    %v7734 = vunpack.c.l.b16 %v6863
    %v7735 = vunpack.c.h.b16 %v6863
    %v7736 = vunpack.c.l.b16 %v6864
    %v7737 = vunpack.c.h.b16 %v6864
    %v7738 = vunpack.c.l.b16 %v6865
    %v7739 = vunpack.c.h.b16 %v6865
    %v7740 = vunpack.c.l.b16 %v6866
    %v7741 = vunpack.c.h.b16 %v6866
    %v7742 = vunpack.c.l.b16 %v6867
    %v7743 = vunpack.c.h.b16 %v6867
    %v7744 = vunpack.c.l.b16 %v6868
    %v7745 = vunpack.c.h.b16 %v6868
    %v7746 = vunpack.c.l.b16 %v6869
    %v7747 = vunpack.c.h.b16 %v6869
    %v7748 = vunpack.c.l.b16 %v6870
    %v7749 = vunpack.c.h.b16 %v6870
    %v7750 = vunpack.c.l.b16 %v6871
    %v7751 = vunpack.c.h.b16 %v6871
    %v7752 = vunpack.c.l.b16 %v6872
    %v7753 = vunpack.c.h.b16 %v6872
    %v7754 = vunpack.c.l.b16 %v6873
    %v7755 = vunpack.c.h.b16 %v6873
    %v7756 = vunpack.c.l.b16 %v6874
    %v7757 = vunpack.c.h.b16 %v6874
    %v7758 = vunpack.c.l.b16 %v6875
    %v7759 = vunpack.c.h.b16 %v6875
    %v7760 = vunpack.c.l.b16 %v6876
    %v7761 = vunpack.c.h.b16 %v6876
    %v7762 = vunpack.c.l.b16 %v6877
    %v7763 = vunpack.c.h.b16 %v6877
    %v7764 = vunpack.c.l.b16 %v6878
    %v7765 = vunpack.c.h.b16 %v6878
    %v7766 = vunpack.c.l.b16 %v6879
    %v7767 = vunpack.c.h.b16 %v6879
    %v7768 = vunpack.c.l.b16 %v6880
    %v7769 = vunpack.c.h.b16 %v6880
    %v7770 = vunpack.c.l.b16 %v6881
    %v7771 = vunpack.c.h.b16 %v6881
    %v7772 = vunpack.c.l.b16 %v6882
    %v7773 = vunpack.c.h.b16 %v6882
    %v7774 = vunpack.c.l.b16 %v6883
    %v7775 = vunpack.c.h.b16 %v6883
    %v7776 = vunpack.c.l.b16 %v6884
    %v7777 = vunpack.c.h.b16 %v6884
    %v7778 = vunpack.c.l.b16 %v6885
    %v7779 = vunpack.c.h.b16 %v6885
    %v7780 = vunpack.c.l.b16 %v6886
    %v7781 = vunpack.c.h.b16 %v6886
    %v7782 = vunpack.c.l.b16 %v6887
    %v7783 = vunpack.c.h.b16 %v6887
    %v7784 = vunpack.c.l.b16 %v6888
    %v7785 = vunpack.c.h.b16 %v6888
    %v7786 = vunpack.c.l.b16 %v6889
    %v7787 = vunpack.c.h.b16 %v6889
    %v7788 = vunpack.c.l.b16 %v6890
    %v7789 = vunpack.c.h.b16 %v6890
    %v7790 = vunpack.c.l.b16 %v6891
    %v7791 = vunpack.c.h.b16 %v6891
    %v7792 = vunpack.c.l.b16 %v6892
    %v7793 = vunpack.c.h.b16 %v6892
    %v7794 = vunpack.c.l.b16 %v6893
    %v7795 = vunpack.c.h.b16 %v6893
    %v7796 = vunpack.c.l.b16 %v6894
    %v7797 = vunpack.c.h.b16 %v6894
    %v7798 = vunpack.c.l.b16 %v6895
    %v7799 = vunpack.c.h.b16 %v6895
    %v7800 = vunpack.c.l.b16 %v6896
    %v7801 = vunpack.c.h.b16 %v6896
    %v7802 = vunpack.c.l.b16 %v6897
    %v7803 = vunpack.c.h.b16 %v6897
    %v7804 = vunpack.c.l.b16 %v6898
    %v7805 = vunpack.c.h.b16 %v6898
    %v7806 = vunpack.c.l.b16 %v6899
    %v7807 = vunpack.c.h.b16 %v6899
    %v7808 = vunpack.c.l.b16 %v6900
    %v7809 = vunpack.c.h.b16 %v6900
    %v7810 = vunpack.c.l.b16 %v6901
    %v7811 = vunpack.c.h.b16 %v6901
    %v7812 = vunpack.c.l.b16 %v6902
    %v7813 = vunpack.c.h.b16 %v6902
    %v7814 = vunpack.c.l.b16 %v6903
    %v7815 = vunpack.c.h.b16 %v6903
    %v7816 = vunpack.c.l.b16 %v6904
    %v7817 = vunpack.c.h.b16 %v6904
    %v7818 = vunpack.c.l.b16 %v6905
    %v7819 = vunpack.c.h.b16 %v6905
    %v7820 = vunpack.c.l.b16 %v6906
    %v7821 = vunpack.c.h.b16 %v6906
    %v7822 = vunpack.c.l.b16 %v6907
    %v7823 = vunpack.c.h.b16 %v6907
    %v7824 = vunpack.c.l.b16 %v6908
    %v7825 = vunpack.c.h.b16 %v6908
    %v7826 = vunpack.c.l.b16 %v6909
    %v7827 = vunpack.c.h.b16 %v6909
    %v7828 = vunpack.c.l.b16 %v6910
    %v7829 = vunpack.c.h.b16 %v6910
    %v7830 = vunpack.c.l.b16 %v6911
    %v7831 = vunpack.c.h.b16 %v6911
    %v7832 = vunpack.c.l.b16 %v6912
    %v7833 = vunpack.c.h.b16 %v6912
    %v7834 = vunpack.c.l.b16 %v6913
    %v7835 = vunpack.c.h.b16 %v6913
    %v7836 = vunpack.c.l.b16 %v6914
    %v7837 = vunpack.c.h.b16 %v6914
    %v7838 = vunpack.c.l.b16 %v6915
    %v7839 = vunpack.c.h.b16 %v6915
    %v7840 = vunpack.c.l.b16 %v6916
    %v7841 = vunpack.c.h.b16 %v6916
    %v7842 = vunpack.c.l.b16 %v6917
    %v7843 = vunpack.c.h.b16 %v6917
    %v7844 = vunpack.c.l.b16 %v6918
    %v7845 = vunpack.c.h.b16 %v6918
    %v7846 = vunpack.c.l.b16 %v6919
    %v7847 = vunpack.c.h.b16 %v6919
    %v7848 = vunpack.c.l.b16 %v6920
    %v7849 = vunpack.c.h.b16 %v6920
    %v7850 = vunpack.c.l.b16 %v6921
    %v7851 = vunpack.c.h.b16 %v6921
    %v7852 = vunpack.c.l.b16 %v6922
    %v7853 = vunpack.c.h.b16 %v6922
    %v7854 = vunpack.c.l.b16 %v6923
    %v7855 = vunpack.c.h.b16 %v6923
    %v7856 = vunpack.c.l.b16 %v6924
    %v7857 = vunpack.c.h.b16 %v6924
    %v7858 = vunpack.c.l.b16 %v6925
    %v7859 = vunpack.c.h.b16 %v6925
    %v7860 = vunpack.c.l.b16 %v6926
    %v7861 = vunpack.c.h.b16 %v6926
    %v7862 = vunpack.c.l.b16 %v6927
    %v7863 = vunpack.c.h.b16 %v6927
    %v7864 = vunpack.c.l.b16 %v6928
    %v7865 = vunpack.c.h.b16 %v6928
    %v7866 = vunpack.c.l.b16 %v6929
    %v7867 = vunpack.c.h.b16 %v6929
    %v7868 = vunpack.c.l.b16 %v6930
    %v7869 = vunpack.c.h.b16 %v6930
    %v7870 = vunpack.c.l.b16 %v6931
    %v7871 = vunpack.c.h.b16 %v6931
    %v7872 = vunpack.c.l.b16 %v6932
    %v7873 = vunpack.c.h.b16 %v6932
    %v7874 = vunpack.c.l.b16 %v6933
    %v7875 = vunpack.c.h.b16 %v6933
    %v7876 = vunpack.c.l.b16 %v6934
    %v7877 = vunpack.c.h.b16 %v6934
    %v7878 = vunpack.c.l.b16 %v6935
    %v7879 = vunpack.c.h.b16 %v6935
    %v7880 = vunpack.c.l.b16 %v6936
    %v7881 = vunpack.c.h.b16 %v6936
    %v7882 = vunpack.c.l.b16 %v6937
    %v7883 = vunpack.c.h.b16 %v6937
    %v7884 = vunpack.c.l.b16 %v6938
    %v7885 = vunpack.c.h.b16 %v6938
    %v7886 = vunpack.c.l.b16 %v6939
    %v7887 = vunpack.c.h.b16 %v6939
    %v7888 = vunpack.c.l.b16 %v6940
    %v7889 = vunpack.c.h.b16 %v6940
    %v7890 = vunpack.c.l.b16 %v6941
    %v7891 = vunpack.c.h.b16 %v6941
    %v7892 = vunpack.c.l.b16 %v6942
    %v7893 = vunpack.c.h.b16 %v6942
    %v7894 = vunpack.c.l.b16 %v6943
    %v7895 = vunpack.c.h.b16 %v6943
    %v7896 = vunpack.c.l.b16 %v6944
    %v7897 = vunpack.c.h.b16 %v6944
    %v7898 = vunpack.c.l.b16 %v6945
    %v7899 = vunpack.c.h.b16 %v6945
    %v7900 = vunpack.c.l.b16 %v6946
    %v7901 = vunpack.c.h.b16 %v6946
    %v7902 = vunpack.c.l.b16 %v6947
    %v7903 = vunpack.c.h.b16 %v6947
    %v7904 = vunpack.c.l.b16 %v6948
    %v7905 = vunpack.c.h.b16 %v6948
    %v7906 = vunpack.c.l.b16 %v6949
    %v7907 = vunpack.c.h.b16 %v6949
    %v7908 = vunpack.c.l.b16 %v6950
    %v7909 = vunpack.c.h.b16 %v6950
    %v7910 = vunpack.c.l.b16 %v6951
    %v7911 = vunpack.c.h.b16 %v6951
    %v7912 = vunpack.c.l.b16 %v6952
    %v7913 = vunpack.c.h.b16 %v6952
    %v7914 = vunpack.c.l.b16 %v6953
    %v7915 = vunpack.c.h.b16 %v6953
    %v7916 = vunpack.c.l.b16 %v6954
    %v7917 = vunpack.c.h.b16 %v6954
    %v7918 = vunpack.c.l.b16 %v6955
    %v7919 = vunpack.c.h.b16 %v6955
    %v7920 = vunpack.c.l.b16 %v6956
    %v7921 = vunpack.c.h.b16 %v6956
    %v7922 = vunpack.c.l.b16 %v6957
    %v7923 = vunpack.c.h.b16 %v6957
    %v7924 = vunpack.c.l.b16 %v6958
    %v7925 = vunpack.c.h.b16 %v6958
    %v7926 = vunpack.c.l.b16 %v6959
    %v7927 = vunpack.c.h.b16 %v6959
    %v7928 = vunpack.c.l.b16 %v6960
    %v7929 = vunpack.c.h.b16 %v6960
    %v7930 = vunpack.c.l.b16 %v6961
    %v7931 = vunpack.c.h.b16 %v6961
    %v7932 = vunpack.c.l.b16 %v6962
    %v7933 = vunpack.c.h.b16 %v6962
    %v7934 = vunpack.c.l.b16 %v6963
    %v7935 = vunpack.c.h.b16 %v6963
    %v7936 = vunpack.c.l.b16 %v6964
    %v7937 = vunpack.c.h.b16 %v6964
    %v7938 = vunpack.c.l.b16 %v6965
    %v7939 = vunpack.c.h.b16 %v6965
    %v7940 = vunpack.c.l.b16 %v6966
    %v7941 = vunpack.c.h.b16 %v6966
    %v7942 = vunpack.c.l.b16 %v6967
    %v7943 = vunpack.c.h.b16 %v6967
    %v7944 = vunpack.c.l.b16 %v6968
    %v7945 = vunpack.c.h.b16 %v6968
    %v7946 = vunpack.c.l.b16 %v6969
    %v7947 = vunpack.c.h.b16 %v6969
    %v7948 = vunpack.c.l.b16 %v6970
    %v7949 = vunpack.c.h.b16 %v6970
    %v7950 = vunpack.c.l.b16 %v6971
    %v7951 = vunpack.c.h.b16 %v6971
    %v7952 = vunpack.c.l.b16 %v6972
    %v7953 = vunpack.c.h.b16 %v6972
    %v7954 = vunpack.c.l.b16 %v6973
    %v7955 = vunpack.c.h.b16 %v6973
    %v7956 = vunpack.c.l.b16 %v6974
    %v7957 = vunpack.c.h.b16 %v6974
    %v7958 = vunpack.c.l.b16 %v6975
    %v7959 = vunpack.c.h.b16 %v6975
    %v7960 = vunpack.c.l.b16 %v6976
    %v7961 = vunpack.c.h.b16 %v6976
    %v7962 = vunpack.c.l.b16 %v6977
    %v7963 = vunpack.c.h.b16 %v6977
    %v7964 = vunpack.c.l.b16 %v6978
    %v7965 = vunpack.c.h.b16 %v6978
    %v7966 = vunpack.c.l.b16 %v6979
    %v7967 = vunpack.c.h.b16 %v6979
    %v7968 = vunpack.c.l.b16 %v6980
    %v7969 = vunpack.c.h.b16 %v6980
    %v7970 = vunpack.c.l.b16 %v6981
    %v7971 = vunpack.c.h.b16 %v6981
    %v7972 = vunpack.c.l.b16 %v6982
    %v7973 = vunpack.c.h.b16 %v6982
    %v7974 = vunpack.c.l.b16 %v6983
    %v7975 = vunpack.c.h.b16 %v6983
    %v7976 = vunpack.c.l.b16 %v6984
    %v7977 = vunpack.c.h.b16 %v6984
    %v7978 = vunpack.c.l.b16 %v6985
    %v7979 = vunpack.c.h.b16 %v6985
    %v7980 = vunpack.c.l.b16 %v6986
    %v7981 = vunpack.c.h.b16 %v6986
    %v7982 = vunpack.c.l.b16 %v6987
    %v7983 = vunpack.c.h.b16 %v6987
    %v7984 = vunpack.c.l.b16 %v6988
    %v7985 = vunpack.c.h.b16 %v6988
    %v7986 = vunpack.c.l.b16 %v6989
    %v7987 = vunpack.c.h.b16 %v6989
    %v7988 = vunpack.c.l.b16 %v6990
    %v7989 = vunpack.c.h.b16 %v6990
    %v7990 = vunpack.c.l.b16 %v6991
    %v7991 = vunpack.c.h.b16 %v6991
    %v7992 = vunpack.c.l.b16 %v6992
    %v7993 = vunpack.c.h.b16 %v6992
    %v7994 = vunpack.c.l.b16 %v6993
    %v7995 = vunpack.c.h.b16 %v6993
    %v7996 = vunpack.c.l.b16 %v6994
    %v7997 = vunpack.c.h.b16 %v6994
    %v7998 = vunpack.c.l.b16 %v6995
    %v7999 = vunpack.c.h.b16 %v6995
    %v8000 = vunpack.c.l.b16 %v6996
    %v8001 = vunpack.c.h.b16 %v6996
    %v8002 = vunpack.c.l.b16 %v6997
    %v8003 = vunpack.c.h.b16 %v6997
    %v8004 = vunpack.c.l.b16 %v6998
    %v8005 = vunpack.c.h.b16 %v6998
    %v8006 = vunpack.c.l.b16 %v6999
    %v8007 = vunpack.c.h.b16 %v6999
    %v8008 = vunpack.c.l.b16 %v7000
    %v8009 = vunpack.c.h.b16 %v7000
    %v8010 = vunpack.c.l.b16 %v7001
    %v8011 = vunpack.c.h.b16 %v7001
    %v8012 = vunpack.c.l.b16 %v7002
    %v8013 = vunpack.c.h.b16 %v7002
    %v8014 = vunpack.c.l.b16 %v7003
    %v8015 = vunpack.c.h.b16 %v7003
    %v8016 = vunpack.c.l.b16 %v7004
    %v8017 = vunpack.c.h.b16 %v7004
    %v8018 = vunpack.c.l.b16 %v7005
    %v8019 = vunpack.c.h.b16 %v7005
    %v8020 = vunpack.c.l.b16 %v7006
    %v8021 = vunpack.c.h.b16 %v7006
    %v8022 = vunpack.c.l.b16 %v7007
    %v8023 = vunpack.c.h.b16 %v7007
    %v8024 = vunpack.c.l.b16 %v7008
    %v8025 = vunpack.c.h.b16 %v7008
    %v8026 = vunpack.c.l.b16 %v7009
    %v8027 = vunpack.c.h.b16 %v7009
    %v8028 = vunpack.c.l.b16 %v7010
    %v8029 = vunpack.c.h.b16 %v7010
    %v8030 = vunpack.c.l.b16 %v7011
    %v8031 = vunpack.c.h.b16 %v7011
    %v8032 = vunpack.c.l.b16 %v7012
    %v8033 = vunpack.c.h.b16 %v7012
    %v8034 = vunpack.c.l.b16 %v7013
    %v8035 = vunpack.c.h.b16 %v7013
    %v8036 = vunpack.c.l.b16 %v7014
    %v8037 = vunpack.c.h.b16 %v7014
    %v8038 = vunpack.c.l.b16 %v7015
    %v8039 = vunpack.c.h.b16 %v7015
    %v8040 = vunpack.c.l.b16 %v7016
    %v8041 = vunpack.c.h.b16 %v7016
    %v8042 = vunpack.c.l.b16 %v7017
    %v8043 = vunpack.c.h.b16 %v7017
    %v8044 = vunpack.c.l.b16 %v7018
    %v8045 = vunpack.c.h.b16 %v7018
    %v8046 = vunpack.c.l.b16 %v7019
    %v8047 = vunpack.c.h.b16 %v7019
    %v8048 = vunpack.c.l.b16 %v7020
    %v8049 = vunpack.c.h.b16 %v7020
    %v8050 = vunpack.c.l.b16 %v7021
    %v8051 = vunpack.c.h.b16 %v7021
    %v8052 = vunpack.c.l.b16 %v7022
    %v8053 = vunpack.c.h.b16 %v7022
    %v8054 = vunpack.c.l.b16 %v7023
    %v8055 = vunpack.c.h.b16 %v7023
    %v8056 = vunpack.c.l.b16 %v7024
    %v8057 = vunpack.c.h.b16 %v7024
    %v8058 = vunpack.c.l.b16 %v7025
    %v8059 = vunpack.c.h.b16 %v7025
    %v8060 = vunpack.c.l.b16 %v7026
    %v8061 = vunpack.c.h.b16 %v7026
    %v8062 = vunpack.c.l.b16 %v7027
    %v8063 = vunpack.c.h.b16 %v7027
    %v8064 = vunpack.c.l.b16 %v7028
    %v8065 = vunpack.c.h.b16 %v7028
    %v8066 = vunpack.c.l.b16 %v7029
    %v8067 = vunpack.c.h.b16 %v7029
    %v8068 = vunpack.c.l.b16 %v7030
    %v8069 = vunpack.c.h.b16 %v7030
    %v8070 = vunpack.c.l.b16 %v7031
    %v8071 = vunpack.c.h.b16 %v7031
    %v8072 = vunpack.c.l.b16 %v7032
    %v8073 = vunpack.c.h.b16 %v7032
    %v8074 = vunpack.c.l.b16 %v7033
    %v8075 = vunpack.c.h.b16 %v7033
    %v8076 = vunpack.c.l.b16 %v7034
    %v8077 = vunpack.c.h.b16 %v7034
    %v8078 = vunpack.c.l.b16 %v7035
    %v8079 = vunpack.c.h.b16 %v7035
    %v8080 = vunpack.c.l.b16 %v7036
    %v8081 = vunpack.c.h.b16 %v7036
    %v8082 = vunpack.c.l.b16 %v7037
    %v8083 = vunpack.c.h.b16 %v7037
    %v8084 = vunpack.c.l.b16 %v7038
    %v8085 = vunpack.c.h.b16 %v7038
    %v8086 = vunpack.c.l.b16 %v7039
    %v8087 = vunpack.c.h.b16 %v7039
    %v8088 = vunpack.c.l.b16 %v7040
    %v8089 = vunpack.c.h.b16 %v7040
    %v8090 = vunpack.c.l.b16 %v7041
    %v8091 = vunpack.c.h.b16 %v7041
    %v8092 = vunpack.c.l.b16 %v7042
    %v8093 = vunpack.c.h.b16 %v7042
    %v8094 = vunpack.c.l.b16 %v7043
    %v8095 = vunpack.c.h.b16 %v7043
    %v8096 = vunpack.c.l.b16 %v7044
    %v8097 = vunpack.c.h.b16 %v7044
    %v8098 = vunpack.c.l.b16 %v7045
    %v8099 = vunpack.c.h.b16 %v7045
    %v8100 = vunpack.c.l.b16 %v7046
    %v8101 = vunpack.c.h.b16 %v7046
    %v8102 = vunpack.c.l.b16 %v7047
    %v8103 = vunpack.c.h.b16 %v7047
    %v8104 = vunpack.c.l.b16 %v7048
    %v8105 = vunpack.c.h.b16 %v7048
    %v8106 = vunpack.c.l.b16 %v7049
    %v8107 = vunpack.c.h.b16 %v7049
    %v8108 = vunpack.c.l.b16 %v7050
    %v8109 = vunpack.c.h.b16 %v7050
    %v8110 = vunpack.c.l.b16 %v7051
    %v8111 = vunpack.c.h.b16 %v7051
    %v8112 = vunpack.c.l.b16 %v7052
    %v8113 = vunpack.c.h.b16 %v7052
    %v8114 = vunpack.c.l.b16 %v7053
    %v8115 = vunpack.c.h.b16 %v7053
    %v8116 = vunpack.c.l.b16 %v7054
    %v8117 = vunpack.c.h.b16 %v7054
    %v8118 = vunpack.c.l.b16 %v7055
    %v8119 = vunpack.c.h.b16 %v7055
    %v8120 = vunpack.c.l.b16 %v7056
    %v8121 = vunpack.c.h.b16 %v7056
    %v8122 = vunpack.c.l.b16 %v7057
    %v8123 = vunpack.c.h.b16 %v7057
    %v8124 = vunpack.c.l.b16 %v7058
    %v8125 = vunpack.c.h.b16 %v7058
    %v8126 = vunpack.c.l.b16 %v7059
    %v8127 = vunpack.c.h.b16 %v7059
    %v8128 = vunpack.c.l.b16 %v7060
    %v8129 = vunpack.c.h.b16 %v7060
    %v8130 = vunpack.c.l.b16 %v7061
    %v8131 = vunpack.c.h.b16 %v7061
    %v8132 = vunpack.c.l.b16 %v7062
    %v8133 = vunpack.c.h.b16 %v7062
    %v8134 = vunpack.c.l.b16 %v7063
    %v8135 = vunpack.c.h.b16 %v7063
    %v8136 = vunpack.c.l.b16 %v7064
    %v8137 = vunpack.c.h.b16 %v7064
    %v8138 = vunpack.c.l.b16 %v7065
    %v8139 = vunpack.c.h.b16 %v7065
    %v8140 = vunpack.c.l.b16 %v7066
    %v8141 = vunpack.c.h.b16 %v7066
    %v8142 = vunpack.c.l.b16 %v7067
    %v8143 = vunpack.c.h.b16 %v7067
    %v8144 = vunpack.c.l.b16 %v7068
    %v8145 = vunpack.c.h.b16 %v7068
    %v8146 = vunpack.c.l.b16 %v7069
    %v8147 = vunpack.c.h.b16 %v7069
    %v8148 = vunpack.c.l.b16 %v7070
    %v8149 = vunpack.c.h.b16 %v7070
    %v8150 = vunpack.c.l.b16 %v7071
    %v8151 = vunpack.c.h.b16 %v7071
    %v8152 = vunpack.c.l.b16 %v7072
    %v8153 = vunpack.c.h.b16 %v7072
    %v8154 = vunpack.c.l.b16 %v7073
    %v8155 = vunpack.c.h.b16 %v7073
    %v8156 = vunpack.c.l.b16 %v7074
    %v8157 = vunpack.c.h.b16 %v7074
    %v8158 = vunpack.c.l.b16 %v7075
    %v8159 = vunpack.c.h.b16 %v7075
    %v8160 = vunpack.c.l.b16 %v7076
    %v8161 = vunpack.c.h.b16 %v7076
    %v8162 = vunpack.c.l.b16 %v7077
    %v8163 = vunpack.c.h.b16 %v7077
    %v8164 = vunpack.c.l.b16 %v7078
    %v8165 = vunpack.c.h.b16 %v7078
    %v8166 = vunpack.c.l.b16 %v7079
    %v8167 = vunpack.c.h.b16 %v7079
    %v8168 = vunpack.c.l.b16 %v7080
    %v8169 = vunpack.c.h.b16 %v7080
    %v8170 = vunpack.c.l.b16 %v7081
    %v8171 = vunpack.c.h.b16 %v7081
    %v8172 = vunpack.c.l.b16 %v7082
    %v8173 = vunpack.c.h.b16 %v7082
    %v8174 = vunpack.c.l.b16 %v7083
    %v8175 = vunpack.c.h.b16 %v7083
    %v8176 = vunpack.c.l.b16 %v7084
    %v8177 = vunpack.c.h.b16 %v7084
    %v8178 = vunpack.c.l.b16 %v7085
    %v8179 = vunpack.c.h.b16 %v7085
    %v8180 = vunpack.c.l.b16 %v7086
    %v8181 = vunpack.c.h.b16 %v7086
    %v8182 = vunpack.c.l.b16 %v7087
    %v8183 = vunpack.c.h.b16 %v7087
    %v8184 = vunpack.c.l.b16 %v7088
    %v8185 = vunpack.c.h.b16 %v7088
    %v8186 = vunpack.c.l.b16 %v7089
    %v8187 = vunpack.c.h.b16 %v7089
    %v8188 = vunpack.c.l.b16 %v7090
    %v8189 = vunpack.c.h.b16 %v7090
    %v8190 = vunpack.c.l.b16 %v7091
    %v8191 = vunpack.c.h.b16 %v7091
    %v8192 = vunpack.c.l.b16 %v7092
    %v8193 = vunpack.c.h.b16 %v7092
    %v8194 = vunpack.c.l.b16 %v7093
    %v8195 = vunpack.c.h.b16 %v7093
    %v8196 = vunpack.c.l.b16 %v7094
    %v8197 = vunpack.c.h.b16 %v7094
    %v8198 = vunpack.c.l.b16 %v7095
    %v8199 = vunpack.c.h.b16 %v7095
    %v8200 = vunpack.c.l.b16 %v7096
    %v8201 = vunpack.c.h.b16 %v7096
    %v8202 = vunpack.c.l.b16 %v7097
    %v8203 = vunpack.c.h.b16 %v7097
    %v8204 = vunpack.c.l.b16 %v7098
    %v8205 = vunpack.c.h.b16 %v7098
    %v8206 = vunpack.c.l.b16 %v7099
    %v8207 = vunpack.c.h.b16 %v7099
    %v8208 = vunpack.c.l.b16 %v7100
    %v8209 = vunpack.c.h.b16 %v7100
    %v8210 = vunpack.c.l.b16 %v7101
    %v8211 = vunpack.c.h.b16 %v7101
    %v8212 = vunpack.c.l.b16 %v7102
    %v8213 = vunpack.c.h.b16 %v7102
    %v8214 = vunpack.c.l.b16 %v7103
    %v8215 = vunpack.c.h.b16 %v7103
    %v8216 = vunpack.c.l.b16 %v7104
    %v8217 = vunpack.c.h.b16 %v7104
    %v8218 = vunpack.c.l.b16 %v7105
    %v8219 = vunpack.c.h.b16 %v7105
    %v8220 = vunpack.c.l.b16 %v7106
    %v8221 = vunpack.c.h.b16 %v7106
    %v8222 = vunpack.c.l.b16 %v7107
    %v8223 = vunpack.c.h.b16 %v7107
    %v8224 = vunpack.c.l.b16 %v7108
    %v8225 = vunpack.c.h.b16 %v7108
    %v8226 = vunpack.c.l.b16 %v7109
    %v8227 = vunpack.c.h.b16 %v7109
    %v8228 = vunpack.c.l.b16 %v7110
    %v8229 = vunpack.c.h.b16 %v7110
    %v8230 = vunpack.c.l.b16 %v7111
    %v8231 = vunpack.c.h.b16 %v7111
    %v8232 = vunpack.c.l.b16 %v7112
    %v8233 = vunpack.c.h.b16 %v7112
    %v8234 = vunpack.c.l.b16 %v7113
    %v8235 = vunpack.c.h.b16 %v7113
    %v8236 = vunpack.c.l.b16 %v7114
    %v8237 = vunpack.c.h.b16 %v7114
    %v8238 = vunpack.c.l.b16 %v7115
    %v8239 = vunpack.c.h.b16 %v7115
    %v8240 = vunpack.c.l.b16 %v7116
    %v8241 = vunpack.c.h.b16 %v7116
    %v8242 = vunpack.c.l.b16 %v7117
    %v8243 = vunpack.c.h.b16 %v7117
    %v8244 = vunpack.c.l.b16 %v7118
    %v8245 = vunpack.c.h.b16 %v7118
    %v8246 = vunpack.c.l.b16 %v7119
    %v8247 = vunpack.c.h.b16 %v7119
    %v8248 = vunpack.c.l.b16 %v7120
    %v8249 = vunpack.c.h.b16 %v7120
    %v8250 = vunpack.c.l.b16 %v7121
    %v8251 = vunpack.c.h.b16 %v7121
    %v8252 = vunpack.c.l.b16 %v7122
    %v8253 = vunpack.c.h.b16 %v7122
    %v8254 = vunpack.c.l.b16 %v7123
    %v8255 = vunpack.c.h.b16 %v7123
    %v8256 = vunpack.c.l.b16 %v7124
    %v8257 = vunpack.c.h.b16 %v7124
    %v8258 = vunpack.c.l.b16 %v7125
    %v8259 = vunpack.c.h.b16 %v7125
    %v8260 = vunpack.c.l.b16 %v7126
    %v8261 = vunpack.c.h.b16 %v7126
    %v8262 = vunpack.c.l.b16 %v7127
    %v8263 = vunpack.c.h.b16 %v7127
    %v8264 = vunpack.c.l.b16 %v7128
    %v8265 = vunpack.c.h.b16 %v7128
    %v8266 = vunpack.c.l.b16 %v7129
    %v8267 = vunpack.c.h.b16 %v7129
    %v8268 = vunpack.c.l.b16 %v7130
    %v8269 = vunpack.c.h.b16 %v7130
    %v8270 = vunpack.c.l.b16 %v7131
    %v8271 = vunpack.c.h.b16 %v7131
    %v8272 = vunpack.c.l.b16 %v7132
    %v8273 = vunpack.c.h.b16 %v7132
    %v8274 = vunpack.c.l.b16 %v7133
    %v8275 = vunpack.c.h.b16 %v7133
    %v8276 = vunpack.c.l.b16 %v7134
    %v8277 = vunpack.c.h.b16 %v7134
    %v8278 = vunpack.c.l.b16 %v7135
    %v8279 = vunpack.c.h.b16 %v7135
    %v8280 = vunpack.c.l.b16 %v7136
    %v8281 = vunpack.c.h.b16 %v7136
    %v8282 = vunpack.c.l.b16 %v7137
    %v8283 = vunpack.c.h.b16 %v7137
    %v8284 = vunpack.c.l.b16 %v7138
    %v8285 = vunpack.c.h.b16 %v7138
    %v8286 = vunpack.c.l.b16 %v7139
    %v8287 = vunpack.c.h.b16 %v7139
    %v8288 = vunpack.c.l.b16 %v7140
    %v8289 = vunpack.c.h.b16 %v7140
    %v8290 = vunpack.c.l.b16 %v7141
    %v8291 = vunpack.c.h.b16 %v7141
    %v8292 = vunpack.c.l.b16 %v7142
    %v8293 = vunpack.c.h.b16 %v7142
    %v8294 = vunpack.c.l.b16 %v7143
    %v8295 = vunpack.c.h.b16 %v7143
    %v8296 = vunpack.c.l.b16 %v7144
    %v8297 = vunpack.c.h.b16 %v7144
    %v8298 = vunpack.c.l.b16 %v7145
    %v8299 = vunpack.c.h.b16 %v7145
    %v8300 = vunpack.c.l.b16 %v7146
    %v8301 = vunpack.c.h.b16 %v7146
    %v8302 = vunpack.c.l.b16 %v7147
    %v8303 = vunpack.c.h.b16 %v7147
    %v8304 = vunpack.c.l.b16 %v7148
    %v8305 = vunpack.c.h.b16 %v7148
    %v8306 = vunpack.c.l.b16 %v7149
    %v8307 = vunpack.c.h.b16 %v7149
    %v8308 = vunpack.c.l.b16 %v7150
    %v8309 = vunpack.c.h.b16 %v7150
    %v8310 = vunpack.c.l.b16 %v7151
    %v8311 = vunpack.c.h.b16 %v7151
    %v8312 = vunpack.c.l.b16 %v7152
    %v8313 = vunpack.c.h.b16 %v7152
    %v8314 = vunpack.c.l.b16 %v7153
    %v8315 = vunpack.c.h.b16 %v7153
    %v8316 = vunpack.c.l.b16 %v7154
    %v8317 = vunpack.c.h.b16 %v7154
    %v8318 = vunpack.c.l.b16 %v7155
    %v8319 = vunpack.c.h.b16 %v7155
    %v8320 = vunpack.c.l.b16 %v7156
    %v8321 = vunpack.c.h.b16 %v7156
    %v8322 = vunpack.c.l.b16 %v7157
    %v8323 = vunpack.c.h.b16 %v7157
    %v8324 = vunpack.c.l.b16 %v7158
    %v8325 = vunpack.c.h.b16 %v7158
    %v8326 = vunpack.c.l.b16 %v7159
    %v8327 = vunpack.c.h.b16 %v7159
    %v8328 = vunpack.c.l.b16 %v7160
    %v8329 = vunpack.c.h.b16 %v7160
    %v8330 = vunpack.c.l.b16 %v7161
    %v8331 = vunpack.c.h.b16 %v7161
    %v8332 = vunpack.c.l.b16 %v7162
    %v8333 = vunpack.c.h.b16 %v7162
    %v8334 = vunpack.c.l.b16 %v7163
    %v8335 = vunpack.c.h.b16 %v7163
    %v8336 = vunpack.c.l.b16 %v7164
    %v8337 = vunpack.c.h.b16 %v7164
    %v8338 = vunpack.c.l.b16 %v7165
    %v8339 = vunpack.c.h.b16 %v7165
    %v8340 = vunpack.c.l.b16 %v7166
    %v8341 = vunpack.c.h.b16 %v7166
    %v8342 = vunpack.c.l.b16 %v7167
    %v8343 = vunpack.c.h.b16 %v7167
    %v8344 = vunpack.c.l.b16 %v7168
    %v8345 = vunpack.c.h.b16 %v7168
    %v8346 = vunpack.c.l.b16 %v7169
    %v8347 = vunpack.c.h.b16 %v7169
    %v8348 = vunpack.c.l.b16 %v7170
    %v8349 = vunpack.c.h.b16 %v7170
    %v8350 = vunpack.c.l.b16 %v7171
    %v8351 = vunpack.c.h.b16 %v7171
    %v8352 = vunpack.c.l.b16 %v7172
    %v8353 = vunpack.c.h.b16 %v7172
    %v8354 = vunpack.c.l.b16 %v7173
    %v8355 = vunpack.c.h.b16 %v7173
    %v8356 = vunpack.c.l.b16 %v7174
    %v8357 = vunpack.c.h.b16 %v7174
    %v8358 = vunpack.c.l.b16 %v7175
    %v8359 = vunpack.c.h.b16 %v7175
    %v8360 = vunpack.c.l.b16 %v7176
    %v8361 = vunpack.c.h.b16 %v7176
    %v8362 = vunpack.c.l.b16 %v7177
    %v8363 = vunpack.c.h.b16 %v7177
    %v8364 = vunpack.c.l.b16 %v7178
    %v8365 = vunpack.c.h.b16 %v7178
    %v8366 = vunpack.c.l.b16 %v7179
    %v8367 = vunpack.c.h.b16 %v7179
    %v8368 = vunpack.c.l.b16 %v7180
    %v8369 = vunpack.c.h.b16 %v7180
    %v8370 = vunpack.c.l.b16 %v7181
    %v8371 = vunpack.c.h.b16 %v7181
    %v8372 = vunpack.c.l.b16 %v7182
    %v8373 = vunpack.c.h.b16 %v7182
    %v8374 = vunpack.c.l.b16 %v7183
    %v8375 = vunpack.c.h.b16 %v7183
    %v8376 = vunpack.c.l.b16 %v7184
    %v8377 = vunpack.c.h.b16 %v7184
    %v8378 = vunpack.c.l.b16 %v7185
    %v8379 = vunpack.c.h.b16 %v7185
    %v8380 = vunpack.c.l.b16 %v7186
    %v8381 = vunpack.c.h.b16 %v7186
    %v8382 = vunpack.c.l.b16 %v7187
    %v8383 = vunpack.c.h.b16 %v7187
    %v8384 = vunpack.c.l.b16 %v7188
    %v8385 = vunpack.c.h.b16 %v7188
    %v8386 = vunpack.c.l.b16 %v7189
    %v8387 = vunpack.c.h.b16 %v7189
    %v8388 = vunpack.c.l.b16 %v7190
    %v8389 = vunpack.c.h.b16 %v7190
    %v8390 = vunpack.c.l.b16 %v7191
    %v8391 = vunpack.c.h.b16 %v7191
    %v8392 = vunpack.c.l.b16 %v7192
    %v8393 = vunpack.c.h.b16 %v7192
    %v8394 = vunpack.c.l.b16 %v7193
    %v8395 = vunpack.c.h.b16 %v7193
    %v8396 = vunpack.c.l.b16 %v7194
    %v8397 = vunpack.c.h.b16 %v7194
    %v8398 = vunpack.c.l.b16 %v7195
    %v8399 = vunpack.c.h.b16 %v7195
    %v8400 = vunpack.c.l.b16 %v7196
    %v8401 = vunpack.c.h.b16 %v7196
    %v8402 = vunpack.c.l.b16 %v7197
    %v8403 = vunpack.c.h.b16 %v7197
    %v8404 = vunpack.c.l.b16 %v7198
    %v8405 = vunpack.c.h.b16 %v7198
    %v8406 = vunpack.c.l.b16 %v7199
    %v8407 = vunpack.c.h.b16 %v7199
    %v8408 = vunpack.c.l.b16 %v7200
    %v8409 = vunpack.c.h.b16 %v7200
    %v8410 = vunpack.c.l.b16 %v7201
    %v8411 = vunpack.c.h.b16 %v7201
    %v8412 = vunpack.c.l.b16 %v7202
    %v8413 = vunpack.c.h.b16 %v7202
    %v8414 = vunpack.c.l.b16 %v7203
    %v8415 = vunpack.c.h.b16 %v7203
    %v8416 = vunpack.c.l.b16 %v7204
    %v8417 = vunpack.c.h.b16 %v7204
    %v8418 = vunpack.c.l.b16 %v7205
    %v8419 = vunpack.c.h.b16 %v7205
    %v8420 = vunpack.c.l.b16 %v7206
    %v8421 = vunpack.c.h.b16 %v7206
    %v8422 = vunpack.c.l.b16 %v7207
    %v8423 = vunpack.c.h.b16 %v7207
    %v8424 = vunpack.c.l.b16 %v7208
    %v8425 = vunpack.c.h.b16 %v7208
    %v8426 = vunpack.c.l.b16 %v7209
    %v8427 = vunpack.c.h.b16 %v7209
    %v8428 = vunpack.c.l.b16 %v7210
    %v8429 = vunpack.c.h.b16 %v7210
    %v8430 = vunpack.c.l.b16 %v7211
    %v8431 = vunpack.c.h.b16 %v7211
    %v8432 = vunpack.c.l.b16 %v7212
    %v8433 = vunpack.c.h.b16 %v7212
    %v8434 = vunpack.c.l.b16 %v7213
    %v8435 = vunpack.c.h.b16 %v7213
    %v8436 = vunpack.c.l.b16 %v7214
    %v8437 = vunpack.c.h.b16 %v7214
    %v8438 = vunpack.c.l.b16 %v7215
    %v8439 = vunpack.c.h.b16 %v7215
    %v8440 = vunpack.c.l.b16 %v7216
    %v8441 = vunpack.c.h.b16 %v7216
    %v8442 = vunpack.c.l.b16 %v7217
    %v8443 = vunpack.c.h.b16 %v7217
    %v8444 = vunpack.c.l.b16 %v7218
    %v8445 = vunpack.c.h.b16 %v7218
    %v8446 = vunpack.c.l.b16 %v7219
    %v8447 = vunpack.c.h.b16 %v7219
    %v8448 = vunpack.c.l.b16 %v7220
    %v8449 = vunpack.c.h.b16 %v7220
    %v8450 = vunpack.c.l.b16 %v7221
    %v8451 = vunpack.c.h.b16 %v7221
    %v8452 = vunpack.c.l.b16 %v7222
    %v8453 = vunpack.c.h.b16 %v7222
    %v8454 = vunpack.c.l.b16 %v7223
    %v8455 = vunpack.c.h.b16 %v7223
    %v8456 = vunpack.c.l.b16 %v7224
    %v8457 = vunpack.c.h.b16 %v7224
    %v8458 = vunpack.c.l.b16 %v7225
    %v8459 = vunpack.c.h.b16 %v7225
    %v8460 = vunpack.c.l.b16 %v7226
    %v8461 = vunpack.c.h.b16 %v7226
    %v8462 = vunpack.c.l.b16 %v7227
    %v8463 = vunpack.c.h.b16 %v7227
    %v8464 = vunpack.c.l.b16 %v7228
    %v8465 = vunpack.c.h.b16 %v7228
    %v8466 = vunpack.c.l.b16 %v7229
    %v8467 = vunpack.c.h.b16 %v7229
    %v8468 = vunpack.c.l.b16 %v7230
    %v8469 = vunpack.c.h.b16 %v7230
    %v8470 = vunpack.c.l.b16 %v7231
    %v8471 = vunpack.c.h.b16 %v7231
    %v8472 = vunpack.c.l.b16 %v7232
    %v8473 = vunpack.c.h.b16 %v7232
    %v8474 = vunpack.c.l.b16 %v7233
    %v8475 = vunpack.c.h.b16 %v7233
    %v8476 = vunpack.c.l.b16 %v7234
    %v8477 = vunpack.c.h.b16 %v7234
    %v8478 = vunpack.c.l.b16 %v7235
    %v8479 = vunpack.c.h.b16 %v7235
    %v8480 = vunpack.c.l.b16 %v7236
    %v8481 = vunpack.c.h.b16 %v7236
    %v8482 = vunpack.c.l.b16 %v7237
    %v8483 = vunpack.c.h.b16 %v7237
    %v8484 = vunpack.c.l.b16 %v7238
    %v8485 = vunpack.c.h.b16 %v7238
    %v8486 = vunpack.c.l.b16 %v7239
    %v8487 = vunpack.c.h.b16 %v7239
    %v8488 = vunpack.c.l.b16 %v7240
    %v8489 = vunpack.c.h.b16 %v7240
    %v8490 = vunpack.c.l.b16 %v7241
    %v8491 = vunpack.c.h.b16 %v7241
    %v8492 = vunpack.c.l.b16 %v7242
    %v8493 = vunpack.c.h.b16 %v7242
    %v8494 = vunpack.c.l.b16 %v7243
    %v8495 = vunpack.c.h.b16 %v7243
    %v8496 = vunpack.c.l.b16 %v7244
    %v8497 = vunpack.c.h.b16 %v7244
    %v8498 = vunpack.c.l.b16 %v7245
    %v8499 = vunpack.c.h.b16 %v7245
    %v8500 = vunpack.c.l.b16 %v7246
    %v8501 = vunpack.c.h.b16 %v7246
    %v8502 = vunpack.c.l.b16 %v7247
    %v8503 = vunpack.c.h.b16 %v7247
    %v8504 = vunpack.c.l.b16 %v7248
    %v8505 = vunpack.c.h.b16 %v7248
    %v8506 = vunpack.c.l.b16 %v7249
    %v8507 = vunpack.c.h.b16 %v7249
    %v8508 = vpack.c.b16 %v7680, %v7676
    %v8509 = vpack.c.b16 %v7681, %v7677
    %v8510 = vpack.c.b16 %v7682, %v7678
    %v8511 = vpack.c.b16 %v7683, %v7679
    %v8512 = vpack.c.b16 %v7688, %v7684
    %v8513 = vpack.c.b16 %v7689, %v7685
    %v8514 = vpack.c.b16 %v7690, %v7686
    %v8515 = vpack.c.b16 %v7691, %v7687
    %v8516 = vpack.c.b16 %v7696, %v7692
    %v8517 = vpack.c.b16 %v7697, %v7693
    %v8518 = vpack.c.b16 %v7698, %v7694
    %v8519 = vpack.c.b16 %v7699, %v7695
    %v8520 = vpack.c.b16 %v7704, %v7700
    %v8521 = vpack.c.b16 %v7705, %v7701
    %v8522 = vpack.c.b16 %v7706, %v7702
    %v8523 = vpack.c.b16 %v7707, %v7703
    %v8524 = vpack.c.b16 %v7712, %v7708
    %v8525 = vpack.c.b16 %v7713, %v7709
    %v8526 = vpack.c.b16 %v7714, %v7710
    %v8527 = vpack.c.b16 %v7715, %v7711
    %v8528 = vpack.c.b16 %v7720, %v7716
    %v8529 = vpack.c.b16 %v7721, %v7717
    %v8530 = vpack.c.b16 %v7722, %v7718
    %v8531 = vpack.c.b16 %v7723, %v7719
    %v8532 = vpack.c.b16 %v7728, %v7724
    %v8533 = vpack.c.b16 %v7729, %v7725
    %v8534 = vpack.c.b16 %v7730, %v7726
    %v8535 = vpack.c.b16 %v7731, %v7727
    %v8536 = vpack.c.b16 %v7736, %v7732
    %v8537 = vpack.c.b16 %v7737, %v7733
    %v8538 = vpack.c.b16 %v7738, %v7734
    %v8539 = vpack.c.b16 %v7739, %v7735
    %v8540 = vpack.c.b16 %v7744, %v7740
    %v8541 = vpack.c.b16 %v7745, %v7741
    %v8542 = vpack.c.b16 %v7746, %v7742
    %v8543 = vpack.c.b16 %v7747, %v7743
    %v8544 = vpack.c.b16 %v7752, %v7748
    %v8545 = vpack.c.b16 %v7753, %v7749
    %v8546 = vpack.c.b16 %v7754, %v7750
    %v8547 = vpack.c.b16 %v7755, %v7751
    %v8548 = vpack.c.b16 %v7760, %v7756
    %v8549 = vpack.c.b16 %v7761, %v7757
    %v8550 = vpack.c.b16 %v7762, %v7758
    %v8551 = vpack.c.b16 %v7763, %v7759
    %v8552 = vpack.c.b16 %v7768, %v7764
    %v8553 = vpack.c.b16 %v7769, %v7765
    %v8554 = vpack.c.b16 %v7770, %v7766
    %v8555 = vpack.c.b16 %v7771, %v7767
    %v8556 = vpack.c.b16 %v7776, %v7772
    %v8557 = vpack.c.b16 %v7777, %v7773
    %v8558 = vpack.c.b16 %v7778, %v7774
    %v8559 = vpack.c.b16 %v7779, %v7775
    %v8560 = vpack.c.b16 %v7784, %v7780
    %v8561 = vpack.c.b16 %v7785, %v7781
    %v8562 = vpack.c.b16 %v7786, %v7782
    %v8563 = vpack.c.b16 %v7787, %v7783
    %v8564 = vpack.c.b16 %v7792, %v7788
    %v8565 = vpack.c.b16 %v7793, %v7789
    %v8566 = vpack.c.b16 %v7794, %v7790
    %v8567 = vpack.c.b16 %v7795, %v7791
    %v8568 = vpack.c.b16 %v7800, %v7796
    %v8569 = vpack.c.b16 %v7801, %v7797
    %v8570 = vpack.c.b16 %v7802, %v7798
    %v8571 = vpack.c.b16 %v7803, %v7799
    %v8572 = vpack.c.b16 %v7808, %v7804
    %v8573 = vpack.c.b16 %v7809, %v7805
    %v8574 = vpack.c.b16 %v7810, %v7806
    %v8575 = vpack.c.b16 %v7811, %v7807
    %v8576 = vpack.c.b16 %v7816, %v7812
    %v8577 = vpack.c.b16 %v7817, %v7813
    %v8578 = vpack.c.b16 %v7818, %v7814
    %v8579 = vpack.c.b16 %v7819, %v7815
    %v8580 = vpack.c.b16 %v7824, %v7820
    %v8581 = vpack.c.b16 %v7825, %v7821
    %v8582 = vpack.c.b16 %v7826, %v7822
    %v8583 = vpack.c.b16 %v7827, %v7823
    %v8584 = vpack.c.b16 %v7832, %v7828
    %v8585 = vpack.c.b16 %v7833, %v7829
    %v8586 = vpack.c.b16 %v7834, %v7830
    %v8587 = vpack.c.b16 %v7835, %v7831
    %v8588 = vpack.c.b16 %v7840, %v7836
    %v8589 = vpack.c.b16 %v7841, %v7837
    %v8590 = vpack.c.b16 %v7842, %v7838
    %v8591 = vpack.c.b16 %v7843, %v7839
    %v8592 = vpack.c.b16 %v7848, %v7844
    %v8593 = vpack.c.b16 %v7849, %v7845
    %v8594 = vpack.c.b16 %v7850, %v7846
    %v8595 = vpack.c.b16 %v7851, %v7847
    %v8596 = vpack.c.b16 %v7856, %v7852
    %v8597 = vpack.c.b16 %v7857, %v7853
    %v8598 = vpack.c.b16 %v7858, %v7854
    %v8599 = vpack.c.b16 %v7859, %v7855
    %v8600 = vpack.c.b16 %v7864, %v7860
    %v8601 = vpack.c.b16 %v7865, %v7861
    %v8602 = vpack.c.b16 %v7866, %v7862
    %v8603 = vpack.c.b16 %v7867, %v7863
    %v8604 = vpack.c.b16 %v7872, %v7868
    %v8605 = vpack.c.b16 %v7873, %v7869
    %v8606 = vpack.c.b16 %v7874, %v7870
    %v8607 = vpack.c.b16 %v7875, %v7871
    %v8608 = vpack.c.b16 %v7880, %v7876
    %v8609 = vpack.c.b16 %v7881, %v7877
    %v8610 = vpack.c.b16 %v7882, %v7878
    %v8611 = vpack.c.b16 %v7883, %v7879
    %v8612 = vpack.c.b16 %v7888, %v7884
    %v8613 = vpack.c.b16 %v7889, %v7885
    %v8614 = vpack.c.b16 %v7890, %v7886
    %v8615 = vpack.c.b16 %v7891, %v7887
    %v8616 = vpack.c.b16 %v7896, %v7892
    %v8617 = vpack.c.b16 %v7897, %v7893
    %v8618 = vpack.c.b16 %v7898, %v7894
    %v8619 = vpack.c.b16 %v7899, %v7895
    %v8620 = vpack.c.b16 %v7904, %v7900
    %v8621 = vpack.c.b16 %v7905, %v7901
    %v8622 = vpack.c.b16 %v7906, %v7902
    %v8623 = vpack.c.b16 %v7907, %v7903
    %v8624 = vpack.c.b16 %v7912, %v7908
    %v8625 = vpack.c.b16 %v7913, %v7909
    %v8626 = vpack.c.b16 %v7914, %v7910
    %v8627 = vpack.c.b16 %v7915, %v7911
    %v8628 = vpack.c.b16 %v7920, %v7916
    %v8629 = vpack.c.b16 %v7921, %v7917
    %v8630 = vpack.c.b16 %v7922, %v7918
    %v8631 = vpack.c.b16 %v7923, %v7919
    %v8632 = vpack.c.b16 %v7928, %v7924
    %v8633 = vpack.c.b16 %v7929, %v7925
    %v8634 = vpack.c.b16 %v7930, %v7926
    %v8635 = vpack.c.b16 %v7931, %v7927
    %v8636 = vpack.c.b16 %v7936, %v7932
    %v8637 = vpack.c.b16 %v7937, %v7933
    %v8638 = vpack.c.b16 %v7938, %v7934
    %v8639 = vpack.c.b16 %v7939, %v7935
    %v8640 = vpack.c.b16 %v7944, %v7940
    %v8641 = vpack.c.b16 %v7945, %v7941
    %v8642 = vpack.c.b16 %v7946, %v7942
    %v8643 = vpack.c.b16 %v7947, %v7943
    %v8644 = vpack.c.b16 %v7952, %v7948
    %v8645 = vpack.c.b16 %v7953, %v7949
    %v8646 = vpack.c.b16 %v7954, %v7950
    %v8647 = vpack.c.b16 %v7955, %v7951
    %v8648 = vpack.c.b16 %v7960, %v7956
    %v8649 = vpack.c.b16 %v7961, %v7957
    %v8650 = vpack.c.b16 %v7962, %v7958
    %v8651 = vpack.c.b16 %v7963, %v7959
    %v8652 = vpack.c.b16 %v7968, %v7964
    %v8653 = vpack.c.b16 %v7969, %v7965
    %v8654 = vpack.c.b16 %v7970, %v7966
    %v8655 = vpack.c.b16 %v7971, %v7967
    %v8656 = vpack.c.b16 %v7976, %v7972
    %v8657 = vpack.c.b16 %v7977, %v7973
    %v8658 = vpack.c.b16 %v7978, %v7974
    %v8659 = vpack.c.b16 %v7979, %v7975
    %v8660 = vpack.c.b16 %v7984, %v7980
    %v8661 = vpack.c.b16 %v7985, %v7981
    %v8662 = vpack.c.b16 %v7986, %v7982
    %v8663 = vpack.c.b16 %v7987, %v7983
    %v8664 = vpack.c.b16 %v7992, %v7988
    %v8665 = vpack.c.b16 %v7993, %v7989
    %v8666 = vpack.c.b16 %v7994, %v7990
    %v8667 = vpack.c.b16 %v7995, %v7991
    %v8668 = vpack.c.b16 %v8000, %v7996
    %v8669 = vpack.c.b16 %v8001, %v7997
    %v8670 = vpack.c.b16 %v8002, %v7998
    %v8671 = vpack.c.b16 %v8003, %v7999
    %v8672 = vpack.c.b16 %v8008, %v8004
    %v8673 = vpack.c.b16 %v8009, %v8005
    %v8674 = vpack.c.b16 %v8010, %v8006
    %v8675 = vpack.c.b16 %v8011, %v8007
    %v8676 = vpack.c.b16 %v8016, %v8012
    %v8677 = vpack.c.b16 %v8017, %v8013
    %v8678 = vpack.c.b16 %v8018, %v8014
    %v8679 = vpack.c.b16 %v8019, %v8015
    %v8680 = vpack.c.b16 %v8024, %v8020
    %v8681 = vpack.c.b16 %v8025, %v8021
    %v8682 = vpack.c.b16 %v8026, %v8022
    %v8683 = vpack.c.b16 %v8027, %v8023
    %v8684 = vpack.c.b16 %v8032, %v8028
    %v8685 = vpack.c.b16 %v8033, %v8029
    %v8686 = vpack.c.b16 %v8034, %v8030
    %v8687 = vpack.c.b16 %v8035, %v8031
    %v8688 = vpack.c.b16 %v8040, %v8036
    %v8689 = vpack.c.b16 %v8041, %v8037
    %v8690 = vpack.c.b16 %v8042, %v8038
    %v8691 = vpack.c.b16 %v8043, %v8039
    %v8692 = vpack.c.b16 %v8048, %v8044
    %v8693 = vpack.c.b16 %v8049, %v8045
    %v8694 = vpack.c.b16 %v8050, %v8046
    %v8695 = vpack.c.b16 %v8051, %v8047
    %v8696 = vpack.c.b16 %v8056, %v8052
    %v8697 = vpack.c.b16 %v8057, %v8053
    %v8698 = vpack.c.b16 %v8058, %v8054
    %v8699 = vpack.c.b16 %v8059, %v8055
    %v8700 = vpack.c.b16 %v8064, %v8060
    %v8701 = vpack.c.b16 %v8065, %v8061
    %v8702 = vpack.c.b16 %v8066, %v8062
    %v8703 = vpack.c.b16 %v8067, %v8063
    %v8704 = vpack.c.b16 %v8072, %v8068
    %v8705 = vpack.c.b16 %v8073, %v8069
    %v8706 = vpack.c.b16 %v8074, %v8070
    %v8707 = vpack.c.b16 %v8075, %v8071
    %v8708 = vpack.c.b16 %v8080, %v8076
    %v8709 = vpack.c.b16 %v8081, %v8077
    %v8710 = vpack.c.b16 %v8082, %v8078
    %v8711 = vpack.c.b16 %v8083, %v8079
    %v8712 = vpack.c.b16 %v8088, %v8084
    %v8713 = vpack.c.b16 %v8089, %v8085
    %v8714 = vpack.c.b16 %v8090, %v8086
    %v8715 = vpack.c.b16 %v8091, %v8087
    %v8716 = vpack.c.b16 %v8096, %v8092
    %v8717 = vpack.c.b16 %v8097, %v8093
    %v8718 = vpack.c.b16 %v8098, %v8094
    %v8719 = vpack.c.b16 %v8099, %v8095
    %v8720 = vpack.c.b16 %v8104, %v8100
    %v8721 = vpack.c.b16 %v8105, %v8101
    %v8722 = vpack.c.b16 %v8106, %v8102
    %v8723 = vpack.c.b16 %v8107, %v8103
    %v8724 = vpack.c.b16 %v8112, %v8108
    %v8725 = vpack.c.b16 %v8113, %v8109
    %v8726 = vpack.c.b16 %v8114, %v8110
    %v8727 = vpack.c.b16 %v8115, %v8111
    %v8728 = vpack.c.b16 %v8120, %v8116
    %v8729 = vpack.c.b16 %v8121, %v8117
    %v8730 = vpack.c.b16 %v8122, %v8118
    %v8731 = vpack.c.b16 %v8123, %v8119
    %v8732 = vpack.c.b16 %v8128, %v8124
    %v8733 = vpack.c.b16 %v8129, %v8125
    %v8734 = vpack.c.b16 %v8130, %v8126
    %v8735 = vpack.c.b16 %v8131, %v8127
    %v8736 = vpack.c.b16 %v8136, %v8132
    %v8737 = vpack.c.b16 %v8137, %v8133
    %v8738 = vpack.c.b16 %v8138, %v8134
    %v8739 = vpack.c.b16 %v8139, %v8135
    %v8740 = vpack.c.b16 %v8144, %v8140
    %v8741 = vpack.c.b16 %v8145, %v8141
    %v8742 = vpack.c.b16 %v8146, %v8142
    %v8743 = vpack.c.b16 %v8147, %v8143
    %v8744 = vpack.c.b16 %v8152, %v8148
    %v8745 = vpack.c.b16 %v8153, %v8149
    %v8746 = vpack.c.b16 %v8154, %v8150
    %v8747 = vpack.c.b16 %v8155, %v8151
    %v8748 = vpack.c.b16 %v8160, %v8156
    %v8749 = vpack.c.b16 %v8161, %v8157
    %v8750 = vpack.c.b16 %v8162, %v8158
    %v8751 = vpack.c.b16 %v8163, %v8159
    %v8752 = vpack.c.b16 %v8168, %v8164
    %v8753 = vpack.c.b16 %v8169, %v8165
    %v8754 = vpack.c.b16 %v8170, %v8166
    %v8755 = vpack.c.b16 %v8171, %v8167
    %v8756 = vpack.c.b16 %v8176, %v8172
    %v8757 = vpack.c.b16 %v8177, %v8173
    %v8758 = vpack.c.b16 %v8178, %v8174
    %v8759 = vpack.c.b16 %v8179, %v8175
    %v8760 = vpack.c.b16 %v8184, %v8180
    %v8761 = vpack.c.b16 %v8185, %v8181
    %v8762 = vpack.c.b16 %v8186, %v8182
    %v8763 = vpack.c.b16 %v8187, %v8183
    %v8764 = vpack.c.b16 %v8192, %v8188
    %v8765 = vpack.c.b16 %v8193, %v8189
    %v8766 = vpack.c.b16 %v8194, %v8190
    %v8767 = vpack.c.b16 %v8195, %v8191
    %v8768 = vpack.c.b16 %v8200, %v8196
    %v8769 = vpack.c.b16 %v8201, %v8197
    %v8770 = vpack.c.b16 %v8202, %v8198
    %v8771 = vpack.c.b16 %v8203, %v8199
    %v8772 = vpack.c.b16 %v8208, %v8204
    %v8773 = vpack.c.b16 %v8209, %v8205
    %v8774 = vpack.c.b16 %v8210, %v8206
    %v8775 = vpack.c.b16 %v8211, %v8207
    %v8776 = vpack.c.b16 %v8216, %v8212
    %v8777 = vpack.c.b16 %v8217, %v8213
    %v8778 = vpack.c.b16 %v8218, %v8214
    %v8779 = vpack.c.b16 %v8219, %v8215
    %v8780 = vpack.c.b16 %v8224, %v8220
    %v8781 = vpack.c.b16 %v8225, %v8221
    %v8782 = vpack.c.b16 %v8226, %v8222
    %v8783 = vpack.c.b16 %v8227, %v8223
    %v8784 = vpack.c.b16 %v8232, %v8228
    %v8785 = vpack.c.b16 %v8233, %v8229
    %v8786 = vpack.c.b16 %v8234, %v8230
    %v8787 = vpack.c.b16 %v8235, %v8231
    %v8788 = vpack.c.b16 %v8240, %v8236
    %v8789 = vpack.c.b16 %v8241, %v8237
    %v8790 = vpack.c.b16 %v8242, %v8238
    %v8791 = vpack.c.b16 %v8243, %v8239
    %v8792 = vpack.c.b16 %v8248, %v8244
    %v8793 = vpack.c.b16 %v8249, %v8245
    %v8794 = vpack.c.b16 %v8250, %v8246
    %v8795 = vpack.c.b16 %v8251, %v8247
    %v8796 = vpack.c.b16 %v8256, %v8252
    %v8797 = vpack.c.b16 %v8257, %v8253
    %v8798 = vpack.c.b16 %v8258, %v8254
    %v8799 = vpack.c.b16 %v8259, %v8255
    %v8800 = vpack.c.b16 %v8264, %v8260
    %v8801 = vpack.c.b16 %v8265, %v8261
    %v8802 = vpack.c.b16 %v8266, %v8262
    %v8803 = vpack.c.b16 %v8267, %v8263
    %v8804 = vpack.c.b16 %v8272, %v8268
    %v8805 = vpack.c.b16 %v8273, %v8269
    %v8806 = vpack.c.b16 %v8274, %v8270
    %v8807 = vpack.c.b16 %v8275, %v8271
    %v8808 = vpack.c.b16 %v8280, %v8276
    %v8809 = vpack.c.b16 %v8281, %v8277
    %v8810 = vpack.c.b16 %v8282, %v8278
    %v8811 = vpack.c.b16 %v8283, %v8279
    %v8812 = vpack.c.b16 %v8288, %v8284
    %v8813 = vpack.c.b16 %v8289, %v8285
    %v8814 = vpack.c.b16 %v8290, %v8286
    %v8815 = vpack.c.b16 %v8291, %v8287
    %v8816 = vpack.c.b16 %v8296, %v8292
    %v8817 = vpack.c.b16 %v8297, %v8293
    %v8818 = vpack.c.b16 %v8298, %v8294
    %v8819 = vpack.c.b16 %v8299, %v8295
    %v8820 = vpack.c.b16 %v8304, %v8300
    %v8821 = vpack.c.b16 %v8305, %v8301
    %v8822 = vpack.c.b16 %v8306, %v8302
    %v8823 = vpack.c.b16 %v8307, %v8303
    %v8824 = vpack.c.b16 %v8312, %v8308
    %v8825 = vpack.c.b16 %v8313, %v8309
    %v8826 = vpack.c.b16 %v8314, %v8310
    %v8827 = vpack.c.b16 %v8315, %v8311
    %v8828 = vpack.c.b16 %v8320, %v8316
    %v8829 = vpack.c.b16 %v8321, %v8317
    %v8830 = vpack.c.b16 %v8322, %v8318
    %v8831 = vpack.c.b16 %v8323, %v8319
    %v8832 = vpack.c.b16 %v8328, %v8324
    %v8833 = vpack.c.b16 %v8329, %v8325
    %v8834 = vpack.c.b16 %v8330, %v8326
    %v8835 = vpack.c.b16 %v8331, %v8327
    %v8836 = vpack.c.b16 %v8336, %v8332
    %v8837 = vpack.c.b16 %v8337, %v8333
    %v8838 = vpack.c.b16 %v8338, %v8334
    %v8839 = vpack.c.b16 %v8339, %v8335
    %v8840 = vpack.c.b16 %v8344, %v8340
    %v8841 = vpack.c.b16 %v8345, %v8341
    %v8842 = vpack.c.b16 %v8346, %v8342
    %v8843 = vpack.c.b16 %v8347, %v8343
    %v8844 = vpack.c.b16 %v8352, %v8348
    %v8845 = vpack.c.b16 %v8353, %v8349
    %v8846 = vpack.c.b16 %v8354, %v8350
    %v8847 = vpack.c.b16 %v8355, %v8351
    %v8848 = vpack.c.b16 %v8360, %v8356
    %v8849 = vpack.c.b16 %v8361, %v8357
    %v8850 = vpack.c.b16 %v8362, %v8358
    %v8851 = vpack.c.b16 %v8363, %v8359
    %v8852 = vpack.c.b16 %v8368, %v8364
    %v8853 = vpack.c.b16 %v8369, %v8365
    %v8854 = vpack.c.b16 %v8370, %v8366
    %v8855 = vpack.c.b16 %v8371, %v8367
    %v8856 = vpack.c.b16 %v8376, %v8372
    %v8857 = vpack.c.b16 %v8377, %v8373
    %v8858 = vpack.c.b16 %v8378, %v8374
    %v8859 = vpack.c.b16 %v8379, %v8375
    %v8860 = vpack.c.b16 %v8384, %v8380
    %v8861 = vpack.c.b16 %v8385, %v8381
    %v8862 = vpack.c.b16 %v8386, %v8382
    %v8863 = vpack.c.b16 %v8387, %v8383
    %v8864 = vpack.c.b16 %v8392, %v8388
    %v8865 = vpack.c.b16 %v8393, %v8389
    %v8866 = vpack.c.b16 %v8394, %v8390
    %v8867 = vpack.c.b16 %v8395, %v8391
    %v8868 = vpack.c.b16 %v8400, %v8396
    %v8869 = vpack.c.b16 %v8401, %v8397
    %v8870 = vpack.c.b16 %v8402, %v8398
    %v8871 = vpack.c.b16 %v8403, %v8399
    %v8872 = vpack.c.b16 %v8408, %v8404
    %v8873 = vpack.c.b16 %v8409, %v8405
    %v8874 = vpack.c.b16 %v8410, %v8406
    %v8875 = vpack.c.b16 %v8411, %v8407
    %v8876 = vpack.c.b16 %v8416, %v8412
    %v8877 = vpack.c.b16 %v8417, %v8413
    %v8878 = vpack.c.b16 %v8418, %v8414
    %v8879 = vpack.c.b16 %v8419, %v8415
    %v8880 = vpack.c.b16 %v8424, %v8420
    %v8881 = vpack.c.b16 %v8425, %v8421
    %v8882 = vpack.c.b16 %v8426, %v8422
    %v8883 = vpack.c.b16 %v8427, %v8423
    %v8884 = vpack.c.b16 %v8432, %v8428
    %v8885 = vpack.c.b16 %v8433, %v8429
    %v8886 = vpack.c.b16 %v8434, %v8430
    %v8887 = vpack.c.b16 %v8435, %v8431
    %v8888 = vpack.c.b16 %v8440, %v8436
    %v8889 = vpack.c.b16 %v8441, %v8437
    %v8890 = vpack.c.b16 %v8442, %v8438
    %v8891 = vpack.c.b16 %v8443, %v8439
    %v8892 = vpack.c.b16 %v8448, %v8444
    %v8893 = vpack.c.b16 %v8449, %v8445
    %v8894 = vpack.c.b16 %v8450, %v8446
    %v8895 = vpack.c.b16 %v8451, %v8447
    %v8896 = vpack.c.b16 %v8456, %v8452
    %v8897 = vpack.c.b16 %v8457, %v8453
    %v8898 = vpack.c.b16 %v8458, %v8454
    %v8899 = vpack.c.b16 %v8459, %v8455
    %v8900 = vpack.c.b16 %v8464, %v8460
    %v8901 = vpack.c.b16 %v8465, %v8461
    %v8902 = vpack.c.b16 %v8466, %v8462
    %v8903 = vpack.c.b16 %v8467, %v8463
    %v8904 = vpack.c.b16 %v8472, %v8468
    %v8905 = vpack.c.b16 %v8473, %v8469
    %v8906 = vpack.c.b16 %v8474, %v8470
    %v8907 = vpack.c.b16 %v8475, %v8471
    %v8908 = vpack.c.b16 %v8480, %v8476
    %v8909 = vpack.c.b16 %v8481, %v8477
    %v8910 = vpack.c.b16 %v8482, %v8478
    %v8911 = vpack.c.b16 %v8483, %v8479
    %v8912 = vpack.c.b16 %v8488, %v8484
    %v8913 = vpack.c.b16 %v8489, %v8485
    %v8914 = vpack.c.b16 %v8490, %v8486
    %v8915 = vpack.c.b16 %v8491, %v8487
    %v8916 = vpack.c.b16 %v8496, %v8492
    %v8917 = vpack.c.b16 %v8497, %v8493
    %v8918 = vpack.c.b16 %v8498, %v8494
    %v8919 = vpack.c.b16 %v8499, %v8495
    %v8920 = vpack.c.b16 %v8504, %v8500
    %v8921 = vpack.c.b16 %v8505, %v8501
    %v8922 = vpack.c.b16 %v8506, %v8502
    %v8923 = vpack.c.b16 %v8507, %v8503
    %9340 = vmatpush.bf16.msra.mxu0 %v8536
    %9341 = vmatpush.bf16.msra.mxu0 %v8532
    %9342 = vmatpush.bf16.msra.mxu0 %v8528
    %9343 = vmatpush.bf16.msra.mxu0 %v8524
    %9344 = vmatpush.bf16.msra.mxu0 %v8520
    %9345 = vmatpush.bf16.msra.mxu0 %v8516
    %9346 = vmatpush.bf16.msra.mxu0 %v8512
    %9347 = vmatpush.bf16.msra.mxu0 %v8508
    %9348 = vmatmul.bf16.gmra.mxu0 %v6821
    %v9349 = vpop.f32.mrf.mxu0
    %v9350 = vadd.f32 %v7252, %v9349
    %v9351 = vpop.f32.mrf.mxu0
    %v9352 = vadd.f32 %v7252, %v9351
    %9353 = vdwg.mxu0
    %9354 = vmatpush.bf16.msra.mxu0 %v8568
    %9355 = vmatpush.bf16.msra.mxu0 %v8564
    %9356 = vmatpush.bf16.msra.mxu0 %v8560
    %9357 = vmatpush.bf16.msra.mxu0 %v8556
    %9358 = vmatpush.bf16.msra.mxu0 %v8552
    %9359 = vmatpush.bf16.msra.mxu0 %v8548
    %9360 = vmatpush.bf16.msra.mxu0 %v8544
    %9361 = vmatpush.bf16.msra.mxu0 %v8540
    %9362 = vmatmul.bf16.gmra.mxu0 %v6822
    %v9363 = vpop.f32.mrf.mxu0
    %v9364 = vadd.f32 %v9350, %v9363
    %v9365 = vpop.f32.mrf.mxu0
    %v9366 = vadd.f32 %v9352, %v9365
    %9367 = vdwg.mxu0
    %9368 = vmatpush.bf16.msra.mxu0 %v8600
    %9369 = vmatpush.bf16.msra.mxu0 %v8596
    %9370 = vmatpush.bf16.msra.mxu0 %v8592
    %9371 = vmatpush.bf16.msra.mxu0 %v8588
    %9372 = vmatpush.bf16.msra.mxu0 %v8584
    %9373 = vmatpush.bf16.msra.mxu0 %v8580
    %9374 = vmatpush.bf16.msra.mxu0 %v8576
    %9375 = vmatpush.bf16.msra.mxu0 %v8572
    %9376 = vmatmul.bf16.gmra.mxu0 %v6823
    %v9377 = vpop.f32.mrf.mxu0
    %v9378 = vadd.f32 %v9364, %v9377
    %v9379 = vpop.f32.mrf.mxu0
    %v9380 = vadd.f32 %v9366, %v9379
    %9381 = vdwg.mxu0
    %9382 = vmatpush.bf16.msra.mxu0 %v8632
    %9383 = vmatpush.bf16.msra.mxu0 %v8628
    %9384 = vmatpush.bf16.msra.mxu0 %v8624
    %9385 = vmatpush.bf16.msra.mxu0 %v8620
    %9386 = vmatpush.bf16.msra.mxu0 %v8616
    %9387 = vmatpush.bf16.msra.mxu0 %v8612
    %9388 = vmatpush.bf16.msra.mxu0 %v8608
    %9389 = vmatpush.bf16.msra.mxu0 %v8604
    %9390 = vmatmul.bf16.gmra.mxu0 %v6824
    %v9391 = vpop.f32.mrf.mxu0
    %v9392 = vadd.f32 %v9378, %v9391
    %v9393 = vpop.f32.mrf.mxu0
    %v9394 = vadd.f32 %v9380, %v9393
    %9395 = vdwg.mxu0
    %9396 = vmatpush.bf16.msra.mxu0 %v8664
    %9397 = vmatpush.bf16.msra.mxu0 %v8660
    %9398 = vmatpush.bf16.msra.mxu0 %v8656
    %9399 = vmatpush.bf16.msra.mxu0 %v8652
    %9400 = vmatpush.bf16.msra.mxu0 %v8648
    %9401 = vmatpush.bf16.msra.mxu0 %v8644
    %9402 = vmatpush.bf16.msra.mxu0 %v8640
    %9403 = vmatpush.bf16.msra.mxu0 %v8636
    %9404 = vmatmul.bf16.gmra.mxu0 %v6825
    %v9405 = vpop.f32.mrf.mxu0
    %v9406 = vadd.f32 %v9392, %v9405
    %v9407 = vpop.f32.mrf.mxu0
    %v9408 = vadd.f32 %v9394, %v9407
    %9409 = vdwg.mxu0
    %9410 = vmatpush.bf16.msra.mxu0 %v8696
    %9411 = vmatpush.bf16.msra.mxu0 %v8692
    %9412 = vmatpush.bf16.msra.mxu0 %v8688
    %9413 = vmatpush.bf16.msra.mxu0 %v8684
    %9414 = vmatpush.bf16.msra.mxu0 %v8680
    %9415 = vmatpush.bf16.msra.mxu0 %v8676
    %9416 = vmatpush.bf16.msra.mxu0 %v8672
    %9417 = vmatpush.bf16.msra.mxu0 %v8668
    %9418 = vmatmul.bf16.gmra.mxu0 %v6826
    %v9419 = vpop.f32.mrf.mxu0
    %v9420 = vadd.f32 %v9406, %v9419
    %v9421 = vpop.f32.mrf.mxu0
    %v9422 = vadd.f32 %v9408, %v9421
    %9423 = vdwg.mxu0
    %9424 = vmatpush.bf16.msra.mxu0 %v8728
    %9425 = vmatpush.bf16.msra.mxu0 %v8724
    %9426 = vmatpush.bf16.msra.mxu0 %v8720
    %9427 = vmatpush.bf16.msra.mxu0 %v8716
    %9428 = vmatpush.bf16.msra.mxu0 %v8712
    %9429 = vmatpush.bf16.msra.mxu0 %v8708
    %9430 = vmatpush.bf16.msra.mxu0 %v8704
    %9431 = vmatpush.bf16.msra.mxu0 %v8700
    %9432 = vmatmul.bf16.gmra.mxu0 %v6827
    %v9433 = vpop.f32.mrf.mxu0
    %v9434 = vadd.f32 %v9420, %v9433
    %v9435 = vpop.f32.mrf.mxu0
    %v9436 = vadd.f32 %v9422, %v9435
    %9437 = vdwg.mxu0
    %9438 = vmatpush.bf16.msra.mxu0 %v8760
    %9439 = vmatpush.bf16.msra.mxu0 %v8756
    %9440 = vmatpush.bf16.msra.mxu0 %v8752
    %9441 = vmatpush.bf16.msra.mxu0 %v8748
    %9442 = vmatpush.bf16.msra.mxu0 %v8744
    %9443 = vmatpush.bf16.msra.mxu0 %v8740
    %9444 = vmatpush.bf16.msra.mxu0 %v8736
    %9445 = vmatpush.bf16.msra.mxu0 %v8732
    %9446 = vmatmul.bf16.gmra.mxu0 %v6828
    %v9447 = vpop.f32.mrf.mxu0
    %v9448 = vadd.f32 %v9434, %v9447
    %v9449 = vpop.f32.mrf.mxu0
    %v9450 = vadd.f32 %v9436, %v9449
    %9451 = vdwg.mxu0
    %9452 = vmatpush.bf16.msra.mxu0 %v8792
    %9453 = vmatpush.bf16.msra.mxu0 %v8788
    %9454 = vmatpush.bf16.msra.mxu0 %v8784
    %9455 = vmatpush.bf16.msra.mxu0 %v8780
    %9456 = vmatpush.bf16.msra.mxu0 %v8776
    %9457 = vmatpush.bf16.msra.mxu0 %v8772
    %9458 = vmatpush.bf16.msra.mxu0 %v8768
    %9459 = vmatpush.bf16.msra.mxu0 %v8764
    %9460 = vmatmul.bf16.gmra.mxu0 %v6829
    %v9461 = vpop.f32.mrf.mxu0
    %v9462 = vadd.f32 %v9448, %v9461
    %v9463 = vpop.f32.mrf.mxu0
    %v9464 = vadd.f32 %v9450, %v9463
    %9465 = vdwg.mxu0
    %9466 = vmatpush.bf16.msra.mxu0 %v8824
    %9467 = vmatpush.bf16.msra.mxu0 %v8820
    %9468 = vmatpush.bf16.msra.mxu0 %v8816
    %9469 = vmatpush.bf16.msra.mxu0 %v8812
    %9470 = vmatpush.bf16.msra.mxu0 %v8808
    %9471 = vmatpush.bf16.msra.mxu0 %v8804
    %9472 = vmatpush.bf16.msra.mxu0 %v8800
    %9473 = vmatpush.bf16.msra.mxu0 %v8796
    %9474 = vmatmul.bf16.gmra.mxu0 %v6830
    %v9475 = vpop.f32.mrf.mxu0
    %v9476 = vadd.f32 %v9462, %v9475
    %v9477 = vpop.f32.mrf.mxu0
    %v9478 = vadd.f32 %v9464, %v9477
    %9479 = vdwg.mxu0
    %9480 = vmatpush.bf16.msra.mxu0 %v8856
    %9481 = vmatpush.bf16.msra.mxu0 %v8852
    %9482 = vmatpush.bf16.msra.mxu0 %v8848
    %9483 = vmatpush.bf16.msra.mxu0 %v8844
    %9484 = vmatpush.bf16.msra.mxu0 %v8840
    %9485 = vmatpush.bf16.msra.mxu0 %v8836
    %9486 = vmatpush.bf16.msra.mxu0 %v8832
    %9487 = vmatpush.bf16.msra.mxu0 %v8828
    %9488 = vmatmul.bf16.gmra.mxu0 %v6831
    %v9489 = vpop.f32.mrf.mxu0
    %v9490 = vadd.f32 %v9476, %v9489
    %v9491 = vpop.f32.mrf.mxu0
    %v9492 = vadd.f32 %v9478, %v9491
    %9493 = vdwg.mxu0
    %9494 = vmatpush.bf16.msra.mxu0 %v8888
    %9495 = vmatpush.bf16.msra.mxu0 %v8884
    %9496 = vmatpush.bf16.msra.mxu0 %v8880
    %9497 = vmatpush.bf16.msra.mxu0 %v8876
    %9498 = vmatpush.bf16.msra.mxu0 %v8872
    %9499 = vmatpush.bf16.msra.mxu0 %v8868
    %9500 = vmatpush.bf16.msra.mxu0 %v8864
    %9501 = vmatpush.bf16.msra.mxu0 %v8860
    %9502 = vmatmul.bf16.gmra.mxu0 %v6832
    %v9503 = vpop.f32.mrf.mxu0
    %v9504 = vadd.f32 %v9490, %v9503
    %v9505 = vpop.f32.mrf.mxu0
    %v9506 = vadd.f32 %v9492, %v9505
    %9507 = vdwg.mxu0
    %9508 = vmatpush.bf16.msra.mxu0 %v8920
    %9509 = vmatpush.bf16.msra.mxu0 %v8916
    %9510 = vmatpush.bf16.msra.mxu0 %v8912
    %9511 = vmatpush.bf16.msra.mxu0 %v8908
    %9512 = vmatpush.bf16.msra.mxu0 %v8904
    %9513 = vmatpush.bf16.msra.mxu0 %v8900
    %9514 = vmatpush.bf16.msra.mxu0 %v8896
    %9515 = vmatpush.bf16.msra.mxu0 %v8892
    %9516 = vmatmul.bf16.gmra.mxu0 %v6833
    %v9517 = vpop.f32.mrf.mxu0
    %v9518 = vadd.f32 %v9504, %v9517
    %v9519 = vpop.f32.mrf.mxu0
    %v9520 = vadd.f32 %v9506, %v9519
    %9521 = vdwg.mxu0
    %9522 = vmatpush.bf16.msra.mxu0 %v8537
    %9523 = vmatpush.bf16.msra.mxu0 %v8533
    %9524 = vmatpush.bf16.msra.mxu0 %v8529
    %9525 = vmatpush.bf16.msra.mxu0 %v8525
    %9526 = vmatpush.bf16.msra.mxu0 %v8521
    %9527 = vmatpush.bf16.msra.mxu0 %v8517
    %9528 = vmatpush.bf16.msra.mxu0 %v8513
    %9529 = vmatpush.bf16.msra.mxu0 %v8509
    %9530 = vmatmul.bf16.gmra.mxu0 %v6821
    %v9531 = vpop.f32.mrf.mxu0
    %v9532 = vadd.f32 %v7253, %v9531
    %v9533 = vpop.f32.mrf.mxu0
    %v9534 = vadd.f32 %v7253, %v9533
    %9535 = vdwg.mxu0
    %9536 = vmatpush.bf16.msra.mxu0 %v8569
    %9537 = vmatpush.bf16.msra.mxu0 %v8565
    %9538 = vmatpush.bf16.msra.mxu0 %v8561
    %9539 = vmatpush.bf16.msra.mxu0 %v8557
    %9540 = vmatpush.bf16.msra.mxu0 %v8553
    %9541 = vmatpush.bf16.msra.mxu0 %v8549
    %9542 = vmatpush.bf16.msra.mxu0 %v8545
    %9543 = vmatpush.bf16.msra.mxu0 %v8541
    %9544 = vmatmul.bf16.gmra.mxu0 %v6822
    %v9545 = vpop.f32.mrf.mxu0
    %v9546 = vadd.f32 %v9532, %v9545
    %v9547 = vpop.f32.mrf.mxu0
    %v9548 = vadd.f32 %v9534, %v9547
    %9549 = vdwg.mxu0
    %9550 = vmatpush.bf16.msra.mxu0 %v8601
    %9551 = vmatpush.bf16.msra.mxu0 %v8597
    %9552 = vmatpush.bf16.msra.mxu0 %v8593
    %9553 = vmatpush.bf16.msra.mxu0 %v8589
    %9554 = vmatpush.bf16.msra.mxu0 %v8585
    %9555 = vmatpush.bf16.msra.mxu0 %v8581
    %9556 = vmatpush.bf16.msra.mxu0 %v8577
    %9557 = vmatpush.bf16.msra.mxu0 %v8573
    %9558 = vmatmul.bf16.gmra.mxu0 %v6823
    %v9559 = vpop.f32.mrf.mxu0
    %v9560 = vadd.f32 %v9546, %v9559
    %v9561 = vpop.f32.mrf.mxu0
    %v9562 = vadd.f32 %v9548, %v9561
    %9563 = vdwg.mxu0
    %9564 = vmatpush.bf16.msra.mxu0 %v8633
    %9565 = vmatpush.bf16.msra.mxu0 %v8629
    %9566 = vmatpush.bf16.msra.mxu0 %v8625
    %9567 = vmatpush.bf16.msra.mxu0 %v8621
    %9568 = vmatpush.bf16.msra.mxu0 %v8617
    %9569 = vmatpush.bf16.msra.mxu0 %v8613
    %9570 = vmatpush.bf16.msra.mxu0 %v8609
    %9571 = vmatpush.bf16.msra.mxu0 %v8605
    %9572 = vmatmul.bf16.gmra.mxu0 %v6824
    %v9573 = vpop.f32.mrf.mxu0
    %v9574 = vadd.f32 %v9560, %v9573
    %v9575 = vpop.f32.mrf.mxu0
    %v9576 = vadd.f32 %v9562, %v9575
    %9577 = vdwg.mxu0
    %9578 = vmatpush.bf16.msra.mxu0 %v8665
    %9579 = vmatpush.bf16.msra.mxu0 %v8661
    %9580 = vmatpush.bf16.msra.mxu0 %v8657
    %9581 = vmatpush.bf16.msra.mxu0 %v8653
    %9582 = vmatpush.bf16.msra.mxu0 %v8649
    %9583 = vmatpush.bf16.msra.mxu0 %v8645
    %9584 = vmatpush.bf16.msra.mxu0 %v8641
    %9585 = vmatpush.bf16.msra.mxu0 %v8637
    %9586 = vmatmul.bf16.gmra.mxu0 %v6825
    %v9587 = vpop.f32.mrf.mxu0
    %v9588 = vadd.f32 %v9574, %v9587
    %v9589 = vpop.f32.mrf.mxu0
    %v9590 = vadd.f32 %v9576, %v9589
    %9591 = vdwg.mxu0
    %9592 = vmatpush.bf16.msra.mxu0 %v8697
    %9593 = vmatpush.bf16.msra.mxu0 %v8693
    %9594 = vmatpush.bf16.msra.mxu0 %v8689
    %9595 = vmatpush.bf16.msra.mxu0 %v8685
    %9596 = vmatpush.bf16.msra.mxu0 %v8681
    %9597 = vmatpush.bf16.msra.mxu0 %v8677
    %9598 = vmatpush.bf16.msra.mxu0 %v8673
    %9599 = vmatpush.bf16.msra.mxu0 %v8669
    %9600 = vmatmul.bf16.gmra.mxu0 %v6826
    %v9601 = vpop.f32.mrf.mxu0
    %v9602 = vadd.f32 %v9588, %v9601
    %v9603 = vpop.f32.mrf.mxu0
    %v9604 = vadd.f32 %v9590, %v9603
    %9605 = vdwg.mxu0
    %9606 = vmatpush.bf16.msra.mxu0 %v8729
    %9607 = vmatpush.bf16.msra.mxu0 %v8725
    %9608 = vmatpush.bf16.msra.mxu0 %v8721
    %9609 = vmatpush.bf16.msra.mxu0 %v8717
    %9610 = vmatpush.bf16.msra.mxu0 %v8713
    %9611 = vmatpush.bf16.msra.mxu0 %v8709
    %9612 = vmatpush.bf16.msra.mxu0 %v8705
    %9613 = vmatpush.bf16.msra.mxu0 %v8701
    %9614 = vmatmul.bf16.gmra.mxu0 %v6827
    %v9615 = vpop.f32.mrf.mxu0
    %v9616 = vadd.f32 %v9602, %v9615
    %v9617 = vpop.f32.mrf.mxu0
    %v9618 = vadd.f32 %v9604, %v9617
    %9619 = vdwg.mxu0
    %9620 = vmatpush.bf16.msra.mxu0 %v8761
    %9621 = vmatpush.bf16.msra.mxu0 %v8757
    %9622 = vmatpush.bf16.msra.mxu0 %v8753
    %9623 = vmatpush.bf16.msra.mxu0 %v8749
    %9624 = vmatpush.bf16.msra.mxu0 %v8745
    %9625 = vmatpush.bf16.msra.mxu0 %v8741
    %9626 = vmatpush.bf16.msra.mxu0 %v8737
    %9627 = vmatpush.bf16.msra.mxu0 %v8733
    %9628 = vmatmul.bf16.gmra.mxu0 %v6828
    %v9629 = vpop.f32.mrf.mxu0
    %v9630 = vadd.f32 %v9616, %v9629
    %v9631 = vpop.f32.mrf.mxu0
    %v9632 = vadd.f32 %v9618, %v9631
    %9633 = vdwg.mxu0
    %9634 = vmatpush.bf16.msra.mxu0 %v8793
    %9635 = vmatpush.bf16.msra.mxu0 %v8789
    %9636 = vmatpush.bf16.msra.mxu0 %v8785
    %9637 = vmatpush.bf16.msra.mxu0 %v8781
    %9638 = vmatpush.bf16.msra.mxu0 %v8777
    %9639 = vmatpush.bf16.msra.mxu0 %v8773
    %9640 = vmatpush.bf16.msra.mxu0 %v8769
    %9641 = vmatpush.bf16.msra.mxu0 %v8765
    %9642 = vmatmul.bf16.gmra.mxu0 %v6829
    %v9643 = vpop.f32.mrf.mxu0
    %v9644 = vadd.f32 %v9630, %v9643
    %v9645 = vpop.f32.mrf.mxu0
    %v9646 = vadd.f32 %v9632, %v9645
    %9647 = vdwg.mxu0
    %9648 = vmatpush.bf16.msra.mxu0 %v8825
    %9649 = vmatpush.bf16.msra.mxu0 %v8821
    %9650 = vmatpush.bf16.msra.mxu0 %v8817
    %9651 = vmatpush.bf16.msra.mxu0 %v8813
    %9652 = vmatpush.bf16.msra.mxu0 %v8809
    %9653 = vmatpush.bf16.msra.mxu0 %v8805
    %9654 = vmatpush.bf16.msra.mxu0 %v8801
    %9655 = vmatpush.bf16.msra.mxu0 %v8797
    %9656 = vmatmul.bf16.gmra.mxu0 %v6830
    %v9657 = vpop.f32.mrf.mxu0
    %v9658 = vadd.f32 %v9644, %v9657
    %v9659 = vpop.f32.mrf.mxu0
    %v9660 = vadd.f32 %v9646, %v9659
    %9661 = vdwg.mxu0
    %9662 = vmatpush.bf16.msra.mxu0 %v8857
    %9663 = vmatpush.bf16.msra.mxu0 %v8853
    %9664 = vmatpush.bf16.msra.mxu0 %v8849
    %9665 = vmatpush.bf16.msra.mxu0 %v8845
    %9666 = vmatpush.bf16.msra.mxu0 %v8841
    %9667 = vmatpush.bf16.msra.mxu0 %v8837
    %9668 = vmatpush.bf16.msra.mxu0 %v8833
    %9669 = vmatpush.bf16.msra.mxu0 %v8829
    %9670 = vmatmul.bf16.gmra.mxu0 %v6831
    %v9671 = vpop.f32.mrf.mxu0
    %v9672 = vadd.f32 %v9658, %v9671
    %v9673 = vpop.f32.mrf.mxu0
    %v9674 = vadd.f32 %v9660, %v9673
    %9675 = vdwg.mxu0
    %9676 = vmatpush.bf16.msra.mxu0 %v8889
    %9677 = vmatpush.bf16.msra.mxu0 %v8885
    %9678 = vmatpush.bf16.msra.mxu0 %v8881
    %9679 = vmatpush.bf16.msra.mxu0 %v8877
    %9680 = vmatpush.bf16.msra.mxu0 %v8873
    %9681 = vmatpush.bf16.msra.mxu0 %v8869
    %9682 = vmatpush.bf16.msra.mxu0 %v8865
    %9683 = vmatpush.bf16.msra.mxu0 %v8861
    %9684 = vmatmul.bf16.gmra.mxu0 %v6832
    %v9685 = vpop.f32.mrf.mxu0
    %v9686 = vadd.f32 %v9672, %v9685
    %v9687 = vpop.f32.mrf.mxu0
    %v9688 = vadd.f32 %v9674, %v9687
    %9689 = vdwg.mxu0
    %9690 = vmatpush.bf16.msra.mxu0 %v8921
    %9691 = vmatpush.bf16.msra.mxu0 %v8917
    %9692 = vmatpush.bf16.msra.mxu0 %v8913
    %9693 = vmatpush.bf16.msra.mxu0 %v8909
    %9694 = vmatpush.bf16.msra.mxu0 %v8905
    %9695 = vmatpush.bf16.msra.mxu0 %v8901
    %9696 = vmatpush.bf16.msra.mxu0 %v8897
    %9697 = vmatpush.bf16.msra.mxu0 %v8893
    %9698 = vmatmul.bf16.gmra.mxu0 %v6833
    %v9699 = vpop.f32.mrf.mxu0
    %v9700 = vadd.f32 %v9686, %v9699
    %v9701 = vpop.f32.mrf.mxu0
    %v9702 = vadd.f32 %v9688, %v9701
    %9703 = vdwg.mxu0
    %9704 = vmatpush.bf16.msra.mxu0 %v8538
    %9705 = vmatpush.bf16.msra.mxu0 %v8534
    %9706 = vmatpush.bf16.msra.mxu0 %v8530
    %9707 = vmatpush.bf16.msra.mxu0 %v8526
    %9708 = vmatpush.bf16.msra.mxu0 %v8522
    %9709 = vmatpush.bf16.msra.mxu0 %v8518
    %9710 = vmatpush.bf16.msra.mxu0 %v8514
    %9711 = vmatpush.bf16.msra.mxu0 %v8510
    %9712 = vmatmul.bf16.gmra.mxu0 %v6821
    %v9713 = vpop.f32.mrf.mxu0
    %v9714 = vadd.f32 %v7254, %v9713
    %v9715 = vpop.f32.mrf.mxu0
    %v9716 = vadd.f32 %v7254, %v9715
    %9717 = vdwg.mxu0
    %9718 = vmatpush.bf16.msra.mxu0 %v8570
    %9719 = vmatpush.bf16.msra.mxu0 %v8566
    %9720 = vmatpush.bf16.msra.mxu0 %v8562
    %9721 = vmatpush.bf16.msra.mxu0 %v8558
    %9722 = vmatpush.bf16.msra.mxu0 %v8554
    %9723 = vmatpush.bf16.msra.mxu0 %v8550
    %9724 = vmatpush.bf16.msra.mxu0 %v8546
    %9725 = vmatpush.bf16.msra.mxu0 %v8542
    %9726 = vmatmul.bf16.gmra.mxu0 %v6822
    %v9727 = vpop.f32.mrf.mxu0
    %v9728 = vadd.f32 %v9714, %v9727
    %v9729 = vpop.f32.mrf.mxu0
    %v9730 = vadd.f32 %v9716, %v9729
    %9731 = vdwg.mxu0
    %9732 = vmatpush.bf16.msra.mxu0 %v8602
    %9733 = vmatpush.bf16.msra.mxu0 %v8598
    %9734 = vmatpush.bf16.msra.mxu0 %v8594
    %9735 = vmatpush.bf16.msra.mxu0 %v8590
    %9736 = vmatpush.bf16.msra.mxu0 %v8586
    %9737 = vmatpush.bf16.msra.mxu0 %v8582
    %9738 = vmatpush.bf16.msra.mxu0 %v8578
    %9739 = vmatpush.bf16.msra.mxu0 %v8574
    %9740 = vmatmul.bf16.gmra.mxu0 %v6823
    %v9741 = vpop.f32.mrf.mxu0
    %v9742 = vadd.f32 %v9728, %v9741
    %v9743 = vpop.f32.mrf.mxu0
    %v9744 = vadd.f32 %v9730, %v9743
    %9745 = vdwg.mxu0
    %9746 = vmatpush.bf16.msra.mxu0 %v8634
    %9747 = vmatpush.bf16.msra.mxu0 %v8630
    %9748 = vmatpush.bf16.msra.mxu0 %v8626
    %9749 = vmatpush.bf16.msra.mxu0 %v8622
    %9750 = vmatpush.bf16.msra.mxu0 %v8618
    %9751 = vmatpush.bf16.msra.mxu0 %v8614
    %9752 = vmatpush.bf16.msra.mxu0 %v8610
    %9753 = vmatpush.bf16.msra.mxu0 %v8606
    %9754 = vmatmul.bf16.gmra.mxu0 %v6824
    %v9755 = vpop.f32.mrf.mxu0
    %v9756 = vadd.f32 %v9742, %v9755
    %v9757 = vpop.f32.mrf.mxu0
    %v9758 = vadd.f32 %v9744, %v9757
    %9759 = vdwg.mxu0
    %9760 = vmatpush.bf16.msra.mxu0 %v8666
    %9761 = vmatpush.bf16.msra.mxu0 %v8662
    %9762 = vmatpush.bf16.msra.mxu0 %v8658
    %9763 = vmatpush.bf16.msra.mxu0 %v8654
    %9764 = vmatpush.bf16.msra.mxu0 %v8650
    %9765 = vmatpush.bf16.msra.mxu0 %v8646
    %9766 = vmatpush.bf16.msra.mxu0 %v8642
    %9767 = vmatpush.bf16.msra.mxu0 %v8638
    %9768 = vmatmul.bf16.gmra.mxu0 %v6825
    %v9769 = vpop.f32.mrf.mxu0
    %v9770 = vadd.f32 %v9756, %v9769
    %v9771 = vpop.f32.mrf.mxu0
    %v9772 = vadd.f32 %v9758, %v9771
    %9773 = vdwg.mxu0
    %9774 = vmatpush.bf16.msra.mxu0 %v8698
    %9775 = vmatpush.bf16.msra.mxu0 %v8694
    %9776 = vmatpush.bf16.msra.mxu0 %v8690
    %9777 = vmatpush.bf16.msra.mxu0 %v8686
    %9778 = vmatpush.bf16.msra.mxu0 %v8682
    %9779 = vmatpush.bf16.msra.mxu0 %v8678
    %9780 = vmatpush.bf16.msra.mxu0 %v8674
    %9781 = vmatpush.bf16.msra.mxu0 %v8670
    %9782 = vmatmul.bf16.gmra.mxu0 %v6826
    %v9783 = vpop.f32.mrf.mxu0
    %v9784 = vadd.f32 %v9770, %v9783
    %v9785 = vpop.f32.mrf.mxu0
    %v9786 = vadd.f32 %v9772, %v9785
    %9787 = vdwg.mxu0
    %9788 = vmatpush.bf16.msra.mxu0 %v8730
    %9789 = vmatpush.bf16.msra.mxu0 %v8726
    %9790 = vmatpush.bf16.msra.mxu0 %v8722
    %9791 = vmatpush.bf16.msra.mxu0 %v8718
    %9792 = vmatpush.bf16.msra.mxu0 %v8714
    %9793 = vmatpush.bf16.msra.mxu0 %v8710
    %9794 = vmatpush.bf16.msra.mxu0 %v8706
    %9795 = vmatpush.bf16.msra.mxu0 %v8702
    %9796 = vmatmul.bf16.gmra.mxu0 %v6827
    %v9797 = vpop.f32.mrf.mxu0
    %v9798 = vadd.f32 %v9784, %v9797
    %v9799 = vpop.f32.mrf.mxu0
    %v9800 = vadd.f32 %v9786, %v9799
    %9801 = vdwg.mxu0
    %9802 = vmatpush.bf16.msra.mxu0 %v8762
    %9803 = vmatpush.bf16.msra.mxu0 %v8758
    %9804 = vmatpush.bf16.msra.mxu0 %v8754
    %9805 = vmatpush.bf16.msra.mxu0 %v8750
    %9806 = vmatpush.bf16.msra.mxu0 %v8746
    %9807 = vmatpush.bf16.msra.mxu0 %v8742
    %9808 = vmatpush.bf16.msra.mxu0 %v8738
    %9809 = vmatpush.bf16.msra.mxu0 %v8734
    %9810 = vmatmul.bf16.gmra.mxu0 %v6828
    %v9811 = vpop.f32.mrf.mxu0
    %v9812 = vadd.f32 %v9798, %v9811
    %v9813 = vpop.f32.mrf.mxu0
    %v9814 = vadd.f32 %v9800, %v9813
    %9815 = vdwg.mxu0
    %9816 = vmatpush.bf16.msra.mxu0 %v8794
    %9817 = vmatpush.bf16.msra.mxu0 %v8790
    %9818 = vmatpush.bf16.msra.mxu0 %v8786
    %9819 = vmatpush.bf16.msra.mxu0 %v8782
    %9820 = vmatpush.bf16.msra.mxu0 %v8778
    %9821 = vmatpush.bf16.msra.mxu0 %v8774
    %9822 = vmatpush.bf16.msra.mxu0 %v8770
    %9823 = vmatpush.bf16.msra.mxu0 %v8766
    %9824 = vmatmul.bf16.gmra.mxu0 %v6829
    %v9825 = vpop.f32.mrf.mxu0
    %v9826 = vadd.f32 %v9812, %v9825
    %v9827 = vpop.f32.mrf.mxu0
    %v9828 = vadd.f32 %v9814, %v9827
    %9829 = vdwg.mxu0
    %9830 = vmatpush.bf16.msra.mxu0 %v8826
    %9831 = vmatpush.bf16.msra.mxu0 %v8822
    %9832 = vmatpush.bf16.msra.mxu0 %v8818
    %9833 = vmatpush.bf16.msra.mxu0 %v8814
    %9834 = vmatpush.bf16.msra.mxu0 %v8810
    %9835 = vmatpush.bf16.msra.mxu0 %v8806
    %9836 = vmatpush.bf16.msra.mxu0 %v8802
    %9837 = vmatpush.bf16.msra.mxu0 %v8798
    %9838 = vmatmul.bf16.gmra.mxu0 %v6830
    %v9839 = vpop.f32.mrf.mxu0
    %v9840 = vadd.f32 %v9826, %v9839
    %v9841 = vpop.f32.mrf.mxu0
    %v9842 = vadd.f32 %v9828, %v9841
    %9843 = vdwg.mxu0
    %9844 = vmatpush.bf16.msra.mxu0 %v8858
    %9845 = vmatpush.bf16.msra.mxu0 %v8854
    %9846 = vmatpush.bf16.msra.mxu0 %v8850
    %9847 = vmatpush.bf16.msra.mxu0 %v8846
    %9848 = vmatpush.bf16.msra.mxu0 %v8842
    %9849 = vmatpush.bf16.msra.mxu0 %v8838
    %9850 = vmatpush.bf16.msra.mxu0 %v8834
    %9851 = vmatpush.bf16.msra.mxu0 %v8830
    %9852 = vmatmul.bf16.gmra.mxu0 %v6831
    %v9853 = vpop.f32.mrf.mxu0
    %v9854 = vadd.f32 %v9840, %v9853
    %v9855 = vpop.f32.mrf.mxu0
    %v9856 = vadd.f32 %v9842, %v9855
    %9857 = vdwg.mxu0
    %9858 = vmatpush.bf16.msra.mxu0 %v8890
    %9859 = vmatpush.bf16.msra.mxu0 %v8886
    %9860 = vmatpush.bf16.msra.mxu0 %v8882
    %9861 = vmatpush.bf16.msra.mxu0 %v8878
    %9862 = vmatpush.bf16.msra.mxu0 %v8874
    %9863 = vmatpush.bf16.msra.mxu0 %v8870
    %9864 = vmatpush.bf16.msra.mxu0 %v8866
    %9865 = vmatpush.bf16.msra.mxu0 %v8862
    %9866 = vmatmul.bf16.gmra.mxu0 %v6832
    %v9867 = vpop.f32.mrf.mxu0
    %v9868 = vadd.f32 %v9854, %v9867
    %v9869 = vpop.f32.mrf.mxu0
    %v9870 = vadd.f32 %v9856, %v9869
    %9871 = vdwg.mxu0
    %9872 = vmatpush.bf16.msra.mxu0 %v8922
    %9873 = vmatpush.bf16.msra.mxu0 %v8918
    %9874 = vmatpush.bf16.msra.mxu0 %v8914
    %9875 = vmatpush.bf16.msra.mxu0 %v8910
    %9876 = vmatpush.bf16.msra.mxu0 %v8906
    %9877 = vmatpush.bf16.msra.mxu0 %v8902
    %9878 = vmatpush.bf16.msra.mxu0 %v8898
    %9879 = vmatpush.bf16.msra.mxu0 %v8894
    %9880 = vmatmul.bf16.gmra.mxu0 %v6833
    %v9881 = vpop.f32.mrf.mxu0
    %v9882 = vadd.f32 %v9868, %v9881
    %v9883 = vpop.f32.mrf.mxu0
    %v9884 = vadd.f32 %v9870, %v9883
    %9885 = vdwg.mxu0
    %9886 = vmatpush.bf16.msra.mxu0 %v8539
    %9887 = vmatpush.bf16.msra.mxu0 %v8535
    %9888 = vmatpush.bf16.msra.mxu0 %v8531
    %9889 = vmatpush.bf16.msra.mxu0 %v8527
    %9890 = vmatpush.bf16.msra.mxu0 %v8523
    %9891 = vmatpush.bf16.msra.mxu0 %v8519
    %9892 = vmatpush.bf16.msra.mxu0 %v8515
    %9893 = vmatpush.bf16.msra.mxu0 %v8511
    %9894 = vmatmul.bf16.gmra.mxu0 %v6821
    %v9895 = vpop.f32.mrf.mxu0
    %v9896 = vadd.f32 %v7255, %v9895
    %v9897 = vpop.f32.mrf.mxu0
    %v9898 = vadd.f32 %v7255, %v9897
    %9899 = vdwg.mxu0
    %9900 = vmatpush.bf16.msra.mxu0 %v8571
    %9901 = vmatpush.bf16.msra.mxu0 %v8567
    %9902 = vmatpush.bf16.msra.mxu0 %v8563
    %9903 = vmatpush.bf16.msra.mxu0 %v8559
    %9904 = vmatpush.bf16.msra.mxu0 %v8555
    %9905 = vmatpush.bf16.msra.mxu0 %v8551
    %9906 = vmatpush.bf16.msra.mxu0 %v8547
    %9907 = vmatpush.bf16.msra.mxu0 %v8543
    %9908 = vmatmul.bf16.gmra.mxu0 %v6822
    %v9909 = vpop.f32.mrf.mxu0
    %v9910 = vadd.f32 %v9896, %v9909
    %v9911 = vpop.f32.mrf.mxu0
    %v9912 = vadd.f32 %v9898, %v9911
    %9913 = vdwg.mxu0
    %9914 = vmatpush.bf16.msra.mxu0 %v8603
    %9915 = vmatpush.bf16.msra.mxu0 %v8599
    %9916 = vmatpush.bf16.msra.mxu0 %v8595
    %9917 = vmatpush.bf16.msra.mxu0 %v8591
    %9918 = vmatpush.bf16.msra.mxu0 %v8587
    %9919 = vmatpush.bf16.msra.mxu0 %v8583
    %9920 = vmatpush.bf16.msra.mxu0 %v8579
    %9921 = vmatpush.bf16.msra.mxu0 %v8575
    %9922 = vmatmul.bf16.gmra.mxu0 %v6823
    %v9923 = vpop.f32.mrf.mxu0
    %v9924 = vadd.f32 %v9910, %v9923
    %v9925 = vpop.f32.mrf.mxu0
    %v9926 = vadd.f32 %v9912, %v9925
    %9927 = vdwg.mxu0
    %9928 = vmatpush.bf16.msra.mxu0 %v8635
    %9929 = vmatpush.bf16.msra.mxu0 %v8631
    %9930 = vmatpush.bf16.msra.mxu0 %v8627
    %9931 = vmatpush.bf16.msra.mxu0 %v8623
    %9932 = vmatpush.bf16.msra.mxu0 %v8619
    %9933 = vmatpush.bf16.msra.mxu0 %v8615
    %9934 = vmatpush.bf16.msra.mxu0 %v8611
    %9935 = vmatpush.bf16.msra.mxu0 %v8607
    %9936 = vmatmul.bf16.gmra.mxu0 %v6824
    %v9937 = vpop.f32.mrf.mxu0
    %v9938 = vadd.f32 %v9924, %v9937
    %v9939 = vpop.f32.mrf.mxu0
    %v9940 = vadd.f32 %v9926, %v9939
    %9941 = vdwg.mxu0
    %9942 = vmatpush.bf16.msra.mxu0 %v8667
    %9943 = vmatpush.bf16.msra.mxu0 %v8663
    %9944 = vmatpush.bf16.msra.mxu0 %v8659
    %9945 = vmatpush.bf16.msra.mxu0 %v8655
    %9946 = vmatpush.bf16.msra.mxu0 %v8651
    %9947 = vmatpush.bf16.msra.mxu0 %v8647
    %9948 = vmatpush.bf16.msra.mxu0 %v8643
    %9949 = vmatpush.bf16.msra.mxu0 %v8639
    %9950 = vmatmul.bf16.gmra.mxu0 %v6825
    %v9951 = vpop.f32.mrf.mxu0
    %v9952 = vadd.f32 %v9938, %v9951
    %v9953 = vpop.f32.mrf.mxu0
    %v9954 = vadd.f32 %v9940, %v9953
    %9955 = vdwg.mxu0
    %9956 = vmatpush.bf16.msra.mxu0 %v8699
    %9957 = vmatpush.bf16.msra.mxu0 %v8695
    %9958 = vmatpush.bf16.msra.mxu0 %v8691
    %9959 = vmatpush.bf16.msra.mxu0 %v8687
    %9960 = vmatpush.bf16.msra.mxu0 %v8683
    %9961 = vmatpush.bf16.msra.mxu0 %v8679
    %9962 = vmatpush.bf16.msra.mxu0 %v8675
    %9963 = vmatpush.bf16.msra.mxu0 %v8671
    %9964 = vmatmul.bf16.gmra.mxu0 %v6826
    %v9965 = vpop.f32.mrf.mxu0
    %v9966 = vadd.f32 %v9952, %v9965
    %v9967 = vpop.f32.mrf.mxu0
    %v9968 = vadd.f32 %v9954, %v9967
    %9969 = vdwg.mxu0
    %9970 = vmatpush.bf16.msra.mxu0 %v8731
    %9971 = vmatpush.bf16.msra.mxu0 %v8727
    %9972 = vmatpush.bf16.msra.mxu0 %v8723
    %9973 = vmatpush.bf16.msra.mxu0 %v8719
    %9974 = vmatpush.bf16.msra.mxu0 %v8715
    %9975 = vmatpush.bf16.msra.mxu0 %v8711
    %9976 = vmatpush.bf16.msra.mxu0 %v8707
    %9977 = vmatpush.bf16.msra.mxu0 %v8703
    %9978 = vmatmul.bf16.gmra.mxu0 %v6827
    %v9979 = vpop.f32.mrf.mxu0
    %v9980 = vadd.f32 %v9966, %v9979
    %v9981 = vpop.f32.mrf.mxu0
    %v9982 = vadd.f32 %v9968, %v9981
    %9983 = vdwg.mxu0
    %9984 = vmatpush.bf16.msra.mxu0 %v8763
    %9985 = vmatpush.bf16.msra.mxu0 %v8759
    %9986 = vmatpush.bf16.msra.mxu0 %v8755
    %9987 = vmatpush.bf16.msra.mxu0 %v8751
    %9988 = vmatpush.bf16.msra.mxu0 %v8747
    %9989 = vmatpush.bf16.msra.mxu0 %v8743
    %9990 = vmatpush.bf16.msra.mxu0 %v8739
    %9991 = vmatpush.bf16.msra.mxu0 %v8735
    %9992 = vmatmul.bf16.gmra.mxu0 %v6828
    %v9993 = vpop.f32.mrf.mxu0
    %v9994 = vadd.f32 %v9980, %v9993
    %v9995 = vpop.f32.mrf.mxu0
    %v9996 = vadd.f32 %v9982, %v9995
    %9997 = vdwg.mxu0
    %9998 = vmatpush.bf16.msra.mxu0 %v8795
    %9999 = vmatpush.bf16.msra.mxu0 %v8791
    %10000 = vmatpush.bf16.msra.mxu0 %v8787
    %10001 = vmatpush.bf16.msra.mxu0 %v8783
    %10002 = vmatpush.bf16.msra.mxu0 %v8779
    %10003 = vmatpush.bf16.msra.mxu0 %v8775
    %10004 = vmatpush.bf16.msra.mxu0 %v8771
    %10005 = vmatpush.bf16.msra.mxu0 %v8767
    %10006 = vmatmul.bf16.gmra.mxu0 %v6829
    %v10007 = vpop.f32.mrf.mxu0
    %v10008 = vadd.f32 %v9994, %v10007
    %v10009 = vpop.f32.mrf.mxu0
    %v10010 = vadd.f32 %v9996, %v10009
    %10011 = vdwg.mxu0
    %10012 = vmatpush.bf16.msra.mxu0 %v8827
    %10013 = vmatpush.bf16.msra.mxu0 %v8823
    %10014 = vmatpush.bf16.msra.mxu0 %v8819
    %10015 = vmatpush.bf16.msra.mxu0 %v8815
    %10016 = vmatpush.bf16.msra.mxu0 %v8811
    %10017 = vmatpush.bf16.msra.mxu0 %v8807
    %10018 = vmatpush.bf16.msra.mxu0 %v8803
    %10019 = vmatpush.bf16.msra.mxu0 %v8799
    %10020 = vmatmul.bf16.gmra.mxu0 %v6830
    %v10021 = vpop.f32.mrf.mxu0
    %v10022 = vadd.f32 %v10008, %v10021
    %v10023 = vpop.f32.mrf.mxu0
    %v10024 = vadd.f32 %v10010, %v10023
    %10025 = vdwg.mxu0
    %10026 = vmatpush.bf16.msra.mxu0 %v8859
    %10027 = vmatpush.bf16.msra.mxu0 %v8855
    %10028 = vmatpush.bf16.msra.mxu0 %v8851
    %10029 = vmatpush.bf16.msra.mxu0 %v8847
    %10030 = vmatpush.bf16.msra.mxu0 %v8843
    %10031 = vmatpush.bf16.msra.mxu0 %v8839
    %10032 = vmatpush.bf16.msra.mxu0 %v8835
    %10033 = vmatpush.bf16.msra.mxu0 %v8831
    %10034 = vmatmul.bf16.gmra.mxu0 %v6831
    %v10035 = vpop.f32.mrf.mxu0
    %v10036 = vadd.f32 %v10022, %v10035
    %v10037 = vpop.f32.mrf.mxu0
    %v10038 = vadd.f32 %v10024, %v10037
    %10039 = vdwg.mxu0
    %10040 = vmatpush.bf16.msra.mxu0 %v8891
    %10041 = vmatpush.bf16.msra.mxu0 %v8887
    %10042 = vmatpush.bf16.msra.mxu0 %v8883
    %10043 = vmatpush.bf16.msra.mxu0 %v8879
    %10044 = vmatpush.bf16.msra.mxu0 %v8875
    %10045 = vmatpush.bf16.msra.mxu0 %v8871
    %10046 = vmatpush.bf16.msra.mxu0 %v8867
    %10047 = vmatpush.bf16.msra.mxu0 %v8863
    %10048 = vmatmul.bf16.gmra.mxu0 %v6832
    %v10049 = vpop.f32.mrf.mxu0
    %v10050 = vadd.f32 %v10036, %v10049
    %v10051 = vpop.f32.mrf.mxu0
    %v10052 = vadd.f32 %v10038, %v10051
    %10053 = vdwg.mxu0
    %10054 = vmatpush.bf16.msra.mxu0 %v8923
    %10055 = vmatpush.bf16.msra.mxu0 %v8919
    %10056 = vmatpush.bf16.msra.mxu0 %v8915
    %10057 = vmatpush.bf16.msra.mxu0 %v8911
    %10058 = vmatpush.bf16.msra.mxu0 %v8907
    %10059 = vmatpush.bf16.msra.mxu0 %v8903
    %10060 = vmatpush.bf16.msra.mxu0 %v8899
    %10061 = vmatpush.bf16.msra.mxu0 %v8895
    %10062 = vmatmul.bf16.gmra.mxu0 %v6833
    %v10063 = vpop.f32.mrf.mxu0
    %v10064 = vadd.f32 %v10050, %v10063
    %v10065 = vpop.f32.mrf.mxu0
    %v10066 = vadd.f32 %v10052, %v10065
    %10067 = vdwg.mxu0
    %v10068 = vmax.f32 %v9518, 0.0
    %v10069 = vmax.f32 %v9700, 0.0
    %v10070 = vmax.f32 %v9882, 0.0
    %v10071 = vmax.f32 %v10064, 0.0
    %v10072 = vmax.f32 %v9520, 0.0
    %v10073 = vmax.f32 %v9702, 0.0
    %v10074 = vmax.f32 %v9884, 0.0
    %v10075 = vmax.f32 %v10066, 0.0
    %v10076 = vpack.c.bf16 %v10072, %v10068
    %v10077 = vpack.c.bf16 %v10073, %v10069
    %v10078 = vpack.c.bf16 %v10074, %v10070
    %v10079 = vpack.c.bf16 %v10075, %v10071
    %v10080 = vld [vmem:[#allocation11] sm:$0xff]
    %v10081 = vld [vmem:[#allocation11 + $0x8] sm:$0xff]
    %v10082 = vld [vmem:[#allocation11 + $0x10] sm:$0xff]
    %v10083 = vld [vmem:[#allocation11 + $0x18] sm:$0xff]
    %v10084 = vld [vmem:[#allocation11 + $0x20] sm:$0xff]
    %v10085 = vld [vmem:[#allocation11 + $0x28] sm:$0xff]
    %v10086 = vld [vmem:[#allocation11 + $0x30] sm:$0xff]
    %v10087 = vld [vmem:[#allocation11 + $0x38] sm:$0xff]
    %v10088 = vld [vmem:[#allocation11 + $0x40] sm:$0xff]
    %v10089 = vld [vmem:[#allocation11 + $0x48] sm:$0xff]
    %v10090 = vld [vmem:[#allocation11 + $0x50] sm:$0xff]
    %v10091 = vld [vmem:[#allocation11 + $0x58] sm:$0xff]
    %v10092 = vld [vmem:[#allocation11 + $0x60] sm:$0xff]
    %v10093 = vld [vmem:[#allocation11 + $0x68] sm:$0xff]
    %v10094 = vld [vmem:[#allocation11 + $0x70] sm:$0xff]
    %v10095 = vld [vmem:[#allocation11 + $0x78] sm:$0xff]
    %v10096 = vld [vmem:[#allocation11 + $0x80] sm:$0xff]
    %v10097 = vld [vmem:[#allocation11 + $0x88] sm:$0xff]
    %v10098 = vld [vmem:[#allocation11 + $0x90] sm:$0xff]
    %v10099 = vld [vmem:[#allocation11 + $0x98] sm:$0xff]
    %v10100 = vld [vmem:[#allocation11 + $0xa0] sm:$0xff]
    %v10101 = vld [vmem:[#allocation11 + $0xa8] sm:$0xff]
    %v10102 = vld [vmem:[#allocation11 + $0xb0] sm:$0xff]
    %v10103 = vld [vmem:[#allocation11 + $0xb8] sm:$0xff]
    %v10104 = vld [vmem:[#allocation11 + $0xc0] sm:$0xff]
    %v10105 = vld [vmem:[#allocation11 + $0xc8] sm:$0xff]
    %v10106 = vld [vmem:[#allocation11 + $0xd0] sm:$0xff]
    %v10107 = vld [vmem:[#allocation11 + $0xd8] sm:$0xff]
    %v10108 = vld [vmem:[#allocation11 + $0xe0] sm:$0xff]
    %v10109 = vld [vmem:[#allocation11 + $0xe8] sm:$0xff]
    %v10110 = vld [vmem:[#allocation11 + $0xf0] sm:$0xff]
    %v10111 = vld [vmem:[#allocation11 + $0xf8] sm:$0xff]
    %v10112 = vld [vmem:[#allocation11 + $0x100] sm:$0xff]
    %v10113 = vld [vmem:[#allocation11 + $0x108] sm:$0xff]
    %v10114 = vld [vmem:[#allocation11 + $0x110] sm:$0xff]
    %v10115 = vld [vmem:[#allocation11 + $0x118] sm:$0xff]
    %v10116 = vld [vmem:[#allocation11 + $0x120] sm:$0xff]
    %v10117 = vld [vmem:[#allocation11 + $0x128] sm:$0xff]
    %v10118 = vld [vmem:[#allocation11 + $0x130] sm:$0xff]
    %v10119 = vld [vmem:[#allocation11 + $0x138] sm:$0xff]
    %v10120 = vld [vmem:[#allocation11 + $0x140] sm:$0xff]
    %v10121 = vld [vmem:[#allocation11 + $0x148] sm:$0xff]
    %v10122 = vld [vmem:[#allocation11 + $0x150] sm:$0xff]
    %v10123 = vld [vmem:[#allocation11 + $0x158] sm:$0xff]
    %v10124 = vld [vmem:[#allocation11 + $0x160] sm:$0xff]
    %v10125 = vld [vmem:[#allocation11 + $0x168] sm:$0xff]
    %v10126 = vld [vmem:[#allocation11 + $0x170] sm:$0xff]
    %v10127 = vld [vmem:[#allocation11 + $0x178] sm:$0xff]
    %v10128 = vld [vmem:[#allocation11 + $0x180] sm:$0xff]
    %v10129 = vld [vmem:[#allocation11 + $0x188] sm:$0xff]
    %v10130 = vld [vmem:[#allocation11 + $0x190] sm:$0xff]
    %v10131 = vld [vmem:[#allocation11 + $0x198] sm:$0xff]
    %v10132 = vld [vmem:[#allocation11 + $0x1a0] sm:$0xff]
    %v10133 = vld [vmem:[#allocation11 + $0x1a8] sm:$0xff]
    %v10134 = vld [vmem:[#allocation11 + $0x1b0] sm:$0xff]
    %v10135 = vld [vmem:[#allocation11 + $0x1b8] sm:$0xff]
    %v10136 = vld [vmem:[#allocation11 + $0x1c0] sm:$0xff]
    %v10137 = vld [vmem:[#allocation11 + $0x1c8] sm:$0xff]
    %v10138 = vld [vmem:[#allocation11 + $0x1d0] sm:$0xff]
    %v10139 = vld [vmem:[#allocation11 + $0x1d8] sm:$0xff]
    %v10140 = vld [vmem:[#allocation11 + $0x1e0] sm:$0xff]
    %v10141 = vld [vmem:[#allocation11 + $0x1e8] sm:$0xff]
    %v10142 = vld [vmem:[#allocation11 + $0x1f0] sm:$0xff]
    %v10143 = vld [vmem:[#allocation11 + $0x1f8] sm:$0xff]
    %v10144 = vld [vmem:[#allocation11 + $0x200] sm:$0xff]
    %v10145 = vld [vmem:[#allocation11 + $0x208] sm:$0xff]
    %v10146 = vld [vmem:[#allocation11 + $0x210] sm:$0xff]
    %v10147 = vld [vmem:[#allocation11 + $0x218] sm:$0xff]
    %v10148 = vld [vmem:[#allocation11 + $0x220] sm:$0xff]
    %v10149 = vld [vmem:[#allocation11 + $0x228] sm:$0xff]
    %v10150 = vld [vmem:[#allocation11 + $0x230] sm:$0xff]
    %v10151 = vld [vmem:[#allocation11 + $0x238] sm:$0xff]
    %v10152 = vld [vmem:[#allocation11 + $0x240] sm:$0xff]
    %v10153 = vld [vmem:[#allocation11 + $0x248] sm:$0xff]
    %v10154 = vld [vmem:[#allocation11 + $0x250] sm:$0xff]
    %v10155 = vld [vmem:[#allocation11 + $0x258] sm:$0xff]
    %v10156 = vld [vmem:[#allocation11 + $0x260] sm:$0xff]
    %v10157 = vld [vmem:[#allocation11 + $0x268] sm:$0xff]
    %v10158 = vld [vmem:[#allocation11 + $0x270] sm:$0xff]
    %v10159 = vld [vmem:[#allocation11 + $0x278] sm:$0xff]
    %v10160 = vld [vmem:[#allocation11 + $0x280] sm:$0xff]
    %v10161 = vld [vmem:[#allocation11 + $0x288] sm:$0xff]
    %v10162 = vld [vmem:[#allocation11 + $0x290] sm:$0xff]
    %v10163 = vld [vmem:[#allocation11 + $0x298] sm:$0xff]
    %v10164 = vld [vmem:[#allocation11 + $0x2a0] sm:$0xff]
    %v10165 = vld [vmem:[#allocation11 + $0x2a8] sm:$0xff]
    %v10166 = vld [vmem:[#allocation11 + $0x2b0] sm:$0xff]
    %v10167 = vld [vmem:[#allocation11 + $0x2b8] sm:$0xff]
    %v10168 = vld [vmem:[#allocation11 + $0x2c0] sm:$0xff]
    %v10169 = vld [vmem:[#allocation11 + $0x2c8] sm:$0xff]
    %v10170 = vld [vmem:[#allocation11 + $0x2d0] sm:$0xff]
    %v10171 = vld [vmem:[#allocation11 + $0x2d8] sm:$0xff]
    %v10172 = vld [vmem:[#allocation11 + $0x2e0] sm:$0xff]
    %v10173 = vld [vmem:[#allocation11 + $0x2e8] sm:$0xff]
    %v10174 = vld [vmem:[#allocation11 + $0x2f0] sm:$0xff]
    %v10175 = vld [vmem:[#allocation11 + $0x2f8] sm:$0xff]
    %v10176 = vld [vmem:[#allocation11 + $0x300] sm:$0xff]
    %v10177 = vld [vmem:[#allocation11 + $0x308] sm:$0xff]
    %v10178 = vld [vmem:[#allocation11 + $0x310] sm:$0xff]
    %v10179 = vld [vmem:[#allocation11 + $0x318] sm:$0xff]
    %v10180 = vld [vmem:[#allocation11 + $0x320] sm:$0xff]
    %v10181 = vld [vmem:[#allocation11 + $0x328] sm:$0xff]
    %v10182 = vld [vmem:[#allocation11 + $0x330] sm:$0xff]
    %v10183 = vld [vmem:[#allocation11 + $0x338] sm:$0xff]
    %v10184 = vld [vmem:[#allocation11 + $0x340] sm:$0xff]
    %v10185 = vld [vmem:[#allocation11 + $0x348] sm:$0xff]
    %v10186 = vld [vmem:[#allocation11 + $0x350] sm:$0xff]
    %v10187 = vld [vmem:[#allocation11 + $0x358] sm:$0xff]
    %v10188 = vld [vmem:[#allocation11 + $0x360] sm:$0xff]
    %v10189 = vld [vmem:[#allocation11 + $0x368] sm:$0xff]
    %v10190 = vld [vmem:[#allocation11 + $0x370] sm:$0xff]
    %v10191 = vld [vmem:[#allocation11 + $0x378] sm:$0xff]
    %v10192 = vld [vmem:[#allocation11 + $0x380] sm:$0xff]
    %v10193 = vld [vmem:[#allocation11 + $0x388] sm:$0xff]
    %v10194 = vld [vmem:[#allocation11 + $0x390] sm:$0xff]
    %v10195 = vld [vmem:[#allocation11 + $0x398] sm:$0xff]
    %v10196 = vld [vmem:[#allocation11 + $0x3a0] sm:$0xff]
    %v10197 = vld [vmem:[#allocation11 + $0x3a8] sm:$0xff]
    %v10198 = vld [vmem:[#allocation11 + $0x3b0] sm:$0xff]
    %v10199 = vld [vmem:[#allocation11 + $0x3b8] sm:$0xff]
    %v10200 = vld [vmem:[#allocation11 + $0x3c0] sm:$0xff]
    %v10201 = vld [vmem:[#allocation11 + $0x3c8] sm:$0xff]
    %v10202 = vld [vmem:[#allocation11 + $0x3d0] sm:$0xff]
    %v10203 = vld [vmem:[#allocation11 + $0x3d8] sm:$0xff]
    %v10204 = vld [vmem:[#allocation11 + $0x3e0] sm:$0xff]
    %v10205 = vld [vmem:[#allocation11 + $0x3e8] sm:$0xff]
    %v10206 = vld [vmem:[#allocation11 + $0x3f0] sm:$0xff]
    %v10207 = vld [vmem:[#allocation11 + $0x3f8] sm:$0xff]
    %v10208 = vld [vmem:[#allocation13] sm:$0xf]
    %v10210 = vperm.slane %v10208, 0
    %v10211 = vperm.slane %v10208, 1
    %v10212 = vperm.slane %v10208, 2
    %v10213 = vperm.slane %v10208, 3
    %v10346 = vunpack.c.l.b16 %v10080
    %v10347 = vunpack.c.h.b16 %v10080
    %v10348 = vunpack.c.l.b16 %v10081
    %v10349 = vunpack.c.h.b16 %v10081
    %v10350 = vunpack.c.l.b16 %v10082
    %v10351 = vunpack.c.h.b16 %v10082
    %v10352 = vunpack.c.l.b16 %v10083
    %v10353 = vunpack.c.h.b16 %v10083
    %v10354 = vunpack.c.l.b16 %v10084
    %v10355 = vunpack.c.h.b16 %v10084
    %v10356 = vunpack.c.l.b16 %v10085
    %v10357 = vunpack.c.h.b16 %v10085
    %v10358 = vunpack.c.l.b16 %v10086
    %v10359 = vunpack.c.h.b16 %v10086
    %v10360 = vunpack.c.l.b16 %v10087
    %v10361 = vunpack.c.h.b16 %v10087
    %v10362 = vunpack.c.l.b16 %v10088
    %v10363 = vunpack.c.h.b16 %v10088
    %v10364 = vunpack.c.l.b16 %v10089
    %v10365 = vunpack.c.h.b16 %v10089
    %v10366 = vunpack.c.l.b16 %v10090
    %v10367 = vunpack.c.h.b16 %v10090
    %v10368 = vunpack.c.l.b16 %v10091
    %v10369 = vunpack.c.h.b16 %v10091
    %v10370 = vunpack.c.l.b16 %v10092
    %v10371 = vunpack.c.h.b16 %v10092
    %v10372 = vunpack.c.l.b16 %v10093
    %v10373 = vunpack.c.h.b16 %v10093
    %v10374 = vunpack.c.l.b16 %v10094
    %v10375 = vunpack.c.h.b16 %v10094
    %v10376 = vunpack.c.l.b16 %v10095
    %v10377 = vunpack.c.h.b16 %v10095
    %v10378 = vunpack.c.l.b16 %v10096
    %v10379 = vunpack.c.h.b16 %v10096
    %v10380 = vunpack.c.l.b16 %v10097
    %v10381 = vunpack.c.h.b16 %v10097
    %v10382 = vunpack.c.l.b16 %v10098
    %v10383 = vunpack.c.h.b16 %v10098
    %v10384 = vunpack.c.l.b16 %v10099
    %v10385 = vunpack.c.h.b16 %v10099
    %v10386 = vunpack.c.l.b16 %v10100
    %v10387 = vunpack.c.h.b16 %v10100
    %v10388 = vunpack.c.l.b16 %v10101
    %v10389 = vunpack.c.h.b16 %v10101
    %v10390 = vunpack.c.l.b16 %v10102
    %v10391 = vunpack.c.h.b16 %v10102
    %v10392 = vunpack.c.l.b16 %v10103
    %v10393 = vunpack.c.h.b16 %v10103
    %v10394 = vunpack.c.l.b16 %v10104
    %v10395 = vunpack.c.h.b16 %v10104
    %v10396 = vunpack.c.l.b16 %v10105
    %v10397 = vunpack.c.h.b16 %v10105
    %v10398 = vunpack.c.l.b16 %v10106
    %v10399 = vunpack.c.h.b16 %v10106
    %v10400 = vunpack.c.l.b16 %v10107
    %v10401 = vunpack.c.h.b16 %v10107
    %v10402 = vunpack.c.l.b16 %v10108
    %v10403 = vunpack.c.h.b16 %v10108
    %v10404 = vunpack.c.l.b16 %v10109
    %v10405 = vunpack.c.h.b16 %v10109
    %v10406 = vunpack.c.l.b16 %v10110
    %v10407 = vunpack.c.h.b16 %v10110
    %v10408 = vunpack.c.l.b16 %v10111
    %v10409 = vunpack.c.h.b16 %v10111
    %v10410 = vunpack.c.l.b16 %v10112
    %v10411 = vunpack.c.h.b16 %v10112
    %v10412 = vunpack.c.l.b16 %v10113
    %v10413 = vunpack.c.h.b16 %v10113
    %v10414 = vunpack.c.l.b16 %v10114
    %v10415 = vunpack.c.h.b16 %v10114
    %v10416 = vunpack.c.l.b16 %v10115
    %v10417 = vunpack.c.h.b16 %v10115
    %v10418 = vunpack.c.l.b16 %v10116
    %v10419 = vunpack.c.h.b16 %v10116
    %v10420 = vunpack.c.l.b16 %v10117
    %v10421 = vunpack.c.h.b16 %v10117
    %v10422 = vunpack.c.l.b16 %v10118
    %v10423 = vunpack.c.h.b16 %v10118
    %v10424 = vunpack.c.l.b16 %v10119
    %v10425 = vunpack.c.h.b16 %v10119
    %v10426 = vunpack.c.l.b16 %v10120
    %v10427 = vunpack.c.h.b16 %v10120
    %v10428 = vunpack.c.l.b16 %v10121
    %v10429 = vunpack.c.h.b16 %v10121
    %v10430 = vunpack.c.l.b16 %v10122
    %v10431 = vunpack.c.h.b16 %v10122
    %v10432 = vunpack.c.l.b16 %v10123
    %v10433 = vunpack.c.h.b16 %v10123
    %v10434 = vunpack.c.l.b16 %v10124
    %v10435 = vunpack.c.h.b16 %v10124
    %v10436 = vunpack.c.l.b16 %v10125
    %v10437 = vunpack.c.h.b16 %v10125
    %v10438 = vunpack.c.l.b16 %v10126
    %v10439 = vunpack.c.h.b16 %v10126
    %v10440 = vunpack.c.l.b16 %v10127
    %v10441 = vunpack.c.h.b16 %v10127
    %v10442 = vunpack.c.l.b16 %v10128
    %v10443 = vunpack.c.h.b16 %v10128
    %v10444 = vunpack.c.l.b16 %v10129
    %v10445 = vunpack.c.h.b16 %v10129
    %v10446 = vunpack.c.l.b16 %v10130
    %v10447 = vunpack.c.h.b16 %v10130
    %v10448 = vunpack.c.l.b16 %v10131
    %v10449 = vunpack.c.h.b16 %v10131
    %v10450 = vunpack.c.l.b16 %v10132
    %v10451 = vunpack.c.h.b16 %v10132
    %v10452 = vunpack.c.l.b16 %v10133
    %v10453 = vunpack.c.h.b16 %v10133
    %v10454 = vunpack.c.l.b16 %v10134
    %v10455 = vunpack.c.h.b16 %v10134
    %v10456 = vunpack.c.l.b16 %v10135
    %v10457 = vunpack.c.h.b16 %v10135
    %v10458 = vunpack.c.l.b16 %v10136
    %v10459 = vunpack.c.h.b16 %v10136
    %v10460 = vunpack.c.l.b16 %v10137
    %v10461 = vunpack.c.h.b16 %v10137
    %v10462 = vunpack.c.l.b16 %v10138
    %v10463 = vunpack.c.h.b16 %v10138
    %v10464 = vunpack.c.l.b16 %v10139
    %v10465 = vunpack.c.h.b16 %v10139
    %v10466 = vunpack.c.l.b16 %v10140
    %v10467 = vunpack.c.h.b16 %v10140
    %v10468 = vunpack.c.l.b16 %v10141
    %v10469 = vunpack.c.h.b16 %v10141
    %v10470 = vunpack.c.l.b16 %v10142
    %v10471 = vunpack.c.h.b16 %v10142
    %v10472 = vunpack.c.l.b16 %v10143
    %v10473 = vunpack.c.h.b16 %v10143
    %v10474 = vunpack.c.l.b16 %v10144
    %v10475 = vunpack.c.h.b16 %v10144
    %v10476 = vunpack.c.l.b16 %v10145
    %v10477 = vunpack.c.h.b16 %v10145
    %v10478 = vunpack.c.l.b16 %v10146
    %v10479 = vunpack.c.h.b16 %v10146
    %v10480 = vunpack.c.l.b16 %v10147
    %v10481 = vunpack.c.h.b16 %v10147
    %v10482 = vunpack.c.l.b16 %v10148
    %v10483 = vunpack.c.h.b16 %v10148
    %v10484 = vunpack.c.l.b16 %v10149
    %v10485 = vunpack.c.h.b16 %v10149
    %v10486 = vunpack.c.l.b16 %v10150
    %v10487 = vunpack.c.h.b16 %v10150
    %v10488 = vunpack.c.l.b16 %v10151
    %v10489 = vunpack.c.h.b16 %v10151
    %v10490 = vunpack.c.l.b16 %v10152
    %v10491 = vunpack.c.h.b16 %v10152
    %v10492 = vunpack.c.l.b16 %v10153
    %v10493 = vunpack.c.h.b16 %v10153
    %v10494 = vunpack.c.l.b16 %v10154
    %v10495 = vunpack.c.h.b16 %v10154
    %v10496 = vunpack.c.l.b16 %v10155
    %v10497 = vunpack.c.h.b16 %v10155
    %v10498 = vunpack.c.l.b16 %v10156
    %v10499 = vunpack.c.h.b16 %v10156
    %v10500 = vunpack.c.l.b16 %v10157
    %v10501 = vunpack.c.h.b16 %v10157
    %v10502 = vunpack.c.l.b16 %v10158
    %v10503 = vunpack.c.h.b16 %v10158
    %v10504 = vunpack.c.l.b16 %v10159
    %v10505 = vunpack.c.h.b16 %v10159
    %v10506 = vunpack.c.l.b16 %v10160
    %v10507 = vunpack.c.h.b16 %v10160
    %v10508 = vunpack.c.l.b16 %v10161
    %v10509 = vunpack.c.h.b16 %v10161
    %v10510 = vunpack.c.l.b16 %v10162
    %v10511 = vunpack.c.h.b16 %v10162
    %v10512 = vunpack.c.l.b16 %v10163
    %v10513 = vunpack.c.h.b16 %v10163
    %v10514 = vunpack.c.l.b16 %v10164
    %v10515 = vunpack.c.h.b16 %v10164
    %v10516 = vunpack.c.l.b16 %v10165
    %v10517 = vunpack.c.h.b16 %v10165
    %v10518 = vunpack.c.l.b16 %v10166
    %v10519 = vunpack.c.h.b16 %v10166
    %v10520 = vunpack.c.l.b16 %v10167
    %v10521 = vunpack.c.h.b16 %v10167
    %v10522 = vunpack.c.l.b16 %v10168
    %v10523 = vunpack.c.h.b16 %v10168
    %v10524 = vunpack.c.l.b16 %v10169
    %v10525 = vunpack.c.h.b16 %v10169
    %v10526 = vunpack.c.l.b16 %v10170
    %v10527 = vunpack.c.h.b16 %v10170
    %v10528 = vunpack.c.l.b16 %v10171
    %v10529 = vunpack.c.h.b16 %v10171
    %v10530 = vunpack.c.l.b16 %v10172
    %v10531 = vunpack.c.h.b16 %v10172
    %v10532 = vunpack.c.l.b16 %v10173
    %v10533 = vunpack.c.h.b16 %v10173
    %v10534 = vunpack.c.l.b16 %v10174
    %v10535 = vunpack.c.h.b16 %v10174
    %v10536 = vunpack.c.l.b16 %v10175
    %v10537 = vunpack.c.h.b16 %v10175
    %v10538 = vunpack.c.l.b16 %v10176
    %v10539 = vunpack.c.h.b16 %v10176
    %v10540 = vunpack.c.l.b16 %v10177
    %v10541 = vunpack.c.h.b16 %v10177
    %v10542 = vunpack.c.l.b16 %v10178
    %v10543 = vunpack.c.h.b16 %v10178
    %v10544 = vunpack.c.l.b16 %v10179
    %v10545 = vunpack.c.h.b16 %v10179
    %v10546 = vunpack.c.l.b16 %v10180
    %v10547 = vunpack.c.h.b16 %v10180
    %v10548 = vunpack.c.l.b16 %v10181
    %v10549 = vunpack.c.h.b16 %v10181
    %v10550 = vunpack.c.l.b16 %v10182
    %v10551 = vunpack.c.h.b16 %v10182
    %v10552 = vunpack.c.l.b16 %v10183
    %v10553 = vunpack.c.h.b16 %v10183
    %v10554 = vunpack.c.l.b16 %v10184
    %v10555 = vunpack.c.h.b16 %v10184
    %v10556 = vunpack.c.l.b16 %v10185
    %v10557 = vunpack.c.h.b16 %v10185
    %v10558 = vunpack.c.l.b16 %v10186
    %v10559 = vunpack.c.h.b16 %v10186
    %v10560 = vunpack.c.l.b16 %v10187
    %v10561 = vunpack.c.h.b16 %v10187
    %v10562 = vunpack.c.l.b16 %v10188
    %v10563 = vunpack.c.h.b16 %v10188
    %v10564 = vunpack.c.l.b16 %v10189
    %v10565 = vunpack.c.h.b16 %v10189
    %v10566 = vunpack.c.l.b16 %v10190
    %v10567 = vunpack.c.h.b16 %v10190
    %v10568 = vunpack.c.l.b16 %v10191
    %v10569 = vunpack.c.h.b16 %v10191
    %v10570 = vunpack.c.l.b16 %v10192
    %v10571 = vunpack.c.h.b16 %v10192
    %v10572 = vunpack.c.l.b16 %v10193
    %v10573 = vunpack.c.h.b16 %v10193
    %v10574 = vunpack.c.l.b16 %v10194
    %v10575 = vunpack.c.h.b16 %v10194
    %v10576 = vunpack.c.l.b16 %v10195
    %v10577 = vunpack.c.h.b16 %v10195
    %v10578 = vunpack.c.l.b16 %v10196
    %v10579 = vunpack.c.h.b16 %v10196
    %v10580 = vunpack.c.l.b16 %v10197
    %v10581 = vunpack.c.h.b16 %v10197
    %v10582 = vunpack.c.l.b16 %v10198
    %v10583 = vunpack.c.h.b16 %v10198
    %v10584 = vunpack.c.l.b16 %v10199
    %v10585 = vunpack.c.h.b16 %v10199
    %v10586 = vunpack.c.l.b16 %v10200
    %v10587 = vunpack.c.h.b16 %v10200
    %v10588 = vunpack.c.l.b16 %v10201
    %v10589 = vunpack.c.h.b16 %v10201
    %v10590 = vunpack.c.l.b16 %v10202
    %v10591 = vunpack.c.h.b16 %v10202
    %v10592 = vunpack.c.l.b16 %v10203
    %v10593 = vunpack.c.h.b16 %v10203
    %v10594 = vunpack.c.l.b16 %v10204
    %v10595 = vunpack.c.h.b16 %v10204
    %v10596 = vunpack.c.l.b16 %v10205
    %v10597 = vunpack.c.h.b16 %v10205
    %v10598 = vunpack.c.l.b16 %v10206
    %v10599 = vunpack.c.h.b16 %v10206
    %v10600 = vunpack.c.l.b16 %v10207
    %v10601 = vunpack.c.h.b16 %v10207
    %v10602 = vpack.c.b16 %v10350, %v10346
    %v10603 = vpack.c.b16 %v10351, %v10347
    %v10604 = vpack.c.b16 %v10352, %v10348
    %v10605 = vpack.c.b16 %v10353, %v10349
    %v10606 = vpack.c.b16 %v10358, %v10354
    %v10607 = vpack.c.b16 %v10359, %v10355
    %v10608 = vpack.c.b16 %v10360, %v10356
    %v10609 = vpack.c.b16 %v10361, %v10357
    %v10610 = vpack.c.b16 %v10366, %v10362
    %v10611 = vpack.c.b16 %v10367, %v10363
    %v10612 = vpack.c.b16 %v10368, %v10364
    %v10613 = vpack.c.b16 %v10369, %v10365
    %v10614 = vpack.c.b16 %v10374, %v10370
    %v10615 = vpack.c.b16 %v10375, %v10371
    %v10616 = vpack.c.b16 %v10376, %v10372
    %v10617 = vpack.c.b16 %v10377, %v10373
    %v10618 = vpack.c.b16 %v10382, %v10378
    %v10619 = vpack.c.b16 %v10383, %v10379
    %v10620 = vpack.c.b16 %v10384, %v10380
    %v10621 = vpack.c.b16 %v10385, %v10381
    %v10622 = vpack.c.b16 %v10390, %v10386
    %v10623 = vpack.c.b16 %v10391, %v10387
    %v10624 = vpack.c.b16 %v10392, %v10388
    %v10625 = vpack.c.b16 %v10393, %v10389
    %v10626 = vpack.c.b16 %v10398, %v10394
    %v10627 = vpack.c.b16 %v10399, %v10395
    %v10628 = vpack.c.b16 %v10400, %v10396
    %v10629 = vpack.c.b16 %v10401, %v10397
    %v10630 = vpack.c.b16 %v10406, %v10402
    %v10631 = vpack.c.b16 %v10407, %v10403
    %v10632 = vpack.c.b16 %v10408, %v10404
    %v10633 = vpack.c.b16 %v10409, %v10405
    %v10634 = vpack.c.b16 %v10414, %v10410
    %v10635 = vpack.c.b16 %v10415, %v10411
    %v10636 = vpack.c.b16 %v10416, %v10412
    %v10637 = vpack.c.b16 %v10417, %v10413
    %v10638 = vpack.c.b16 %v10422, %v10418
    %v10639 = vpack.c.b16 %v10423, %v10419
    %v10640 = vpack.c.b16 %v10424, %v10420
    %v10641 = vpack.c.b16 %v10425, %v10421
    %v10642 = vpack.c.b16 %v10430, %v10426
    %v10643 = vpack.c.b16 %v10431, %v10427
    %v10644 = vpack.c.b16 %v10432, %v10428
    %v10645 = vpack.c.b16 %v10433, %v10429
    %v10646 = vpack.c.b16 %v10438, %v10434
    %v10647 = vpack.c.b16 %v10439, %v10435
    %v10648 = vpack.c.b16 %v10440, %v10436
    %v10649 = vpack.c.b16 %v10441, %v10437
    %v10650 = vpack.c.b16 %v10446, %v10442
    %v10651 = vpack.c.b16 %v10447, %v10443
    %v10652 = vpack.c.b16 %v10448, %v10444
    %v10653 = vpack.c.b16 %v10449, %v10445
    %v10654 = vpack.c.b16 %v10454, %v10450
    %v10655 = vpack.c.b16 %v10455, %v10451
    %v10656 = vpack.c.b16 %v10456, %v10452
    %v10657 = vpack.c.b16 %v10457, %v10453
    %v10658 = vpack.c.b16 %v10462, %v10458
    %v10659 = vpack.c.b16 %v10463, %v10459
    %v10660 = vpack.c.b16 %v10464, %v10460
    %v10661 = vpack.c.b16 %v10465, %v10461
    %v10662 = vpack.c.b16 %v10470, %v10466
    %v10663 = vpack.c.b16 %v10471, %v10467
    %v10664 = vpack.c.b16 %v10472, %v10468
    %v10665 = vpack.c.b16 %v10473, %v10469
    %v10666 = vpack.c.b16 %v10478, %v10474
    %v10667 = vpack.c.b16 %v10479, %v10475
    %v10668 = vpack.c.b16 %v10480, %v10476
    %v10669 = vpack.c.b16 %v10481, %v10477
    %v10670 = vpack.c.b16 %v10486, %v10482
    %v10671 = vpack.c.b16 %v10487, %v10483
    %v10672 = vpack.c.b16 %v10488, %v10484
    %v10673 = vpack.c.b16 %v10489, %v10485
    %v10674 = vpack.c.b16 %v10494, %v10490
    %v10675 = vpack.c.b16 %v10495, %v10491
    %v10676 = vpack.c.b16 %v10496, %v10492
    %v10677 = vpack.c.b16 %v10497, %v10493
    %v10678 = vpack.c.b16 %v10502, %v10498
    %v10679 = vpack.c.b16 %v10503, %v10499
    %v10680 = vpack.c.b16 %v10504, %v10500
    %v10681 = vpack.c.b16 %v10505, %v10501
    %v10682 = vpack.c.b16 %v10510, %v10506
    %v10683 = vpack.c.b16 %v10511, %v10507
    %v10684 = vpack.c.b16 %v10512, %v10508
    %v10685 = vpack.c.b16 %v10513, %v10509
    %v10686 = vpack.c.b16 %v10518, %v10514
    %v10687 = vpack.c.b16 %v10519, %v10515
    %v10688 = vpack.c.b16 %v10520, %v10516
    %v10689 = vpack.c.b16 %v10521, %v10517
    %v10690 = vpack.c.b16 %v10526, %v10522
    %v10691 = vpack.c.b16 %v10527, %v10523
    %v10692 = vpack.c.b16 %v10528, %v10524
    %v10693 = vpack.c.b16 %v10529, %v10525
    %v10694 = vpack.c.b16 %v10534, %v10530
    %v10695 = vpack.c.b16 %v10535, %v10531
    %v10696 = vpack.c.b16 %v10536, %v10532
    %v10697 = vpack.c.b16 %v10537, %v10533
    %v10698 = vpack.c.b16 %v10542, %v10538
    %v10699 = vpack.c.b16 %v10543, %v10539
    %v10700 = vpack.c.b16 %v10544, %v10540
    %v10701 = vpack.c.b16 %v10545, %v10541
    %v10702 = vpack.c.b16 %v10550, %v10546
    %v10703 = vpack.c.b16 %v10551, %v10547
    %v10704 = vpack.c.b16 %v10552, %v10548
    %v10705 = vpack.c.b16 %v10553, %v10549
    %v10706 = vpack.c.b16 %v10558, %v10554
    %v10707 = vpack.c.b16 %v10559, %v10555
    %v10708 = vpack.c.b16 %v10560, %v10556
    %v10709 = vpack.c.b16 %v10561, %v10557
    %v10710 = vpack.c.b16 %v10566, %v10562
    %v10711 = vpack.c.b16 %v10567, %v10563
    %v10712 = vpack.c.b16 %v10568, %v10564
    %v10713 = vpack.c.b16 %v10569, %v10565
    %v10714 = vpack.c.b16 %v10574, %v10570
    %v10715 = vpack.c.b16 %v10575, %v10571
    %v10716 = vpack.c.b16 %v10576, %v10572
    %v10717 = vpack.c.b16 %v10577, %v10573
    %v10718 = vpack.c.b16 %v10582, %v10578
    %v10719 = vpack.c.b16 %v10583, %v10579
    %v10720 = vpack.c.b16 %v10584, %v10580
    %v10721 = vpack.c.b16 %v10585, %v10581
    %v10722 = vpack.c.b16 %v10590, %v10586
    %v10723 = vpack.c.b16 %v10591, %v10587
    %v10724 = vpack.c.b16 %v10592, %v10588
    %v10725 = vpack.c.b16 %v10593, %v10589
    %v10726 = vpack.c.b16 %v10598, %v10594
    %v10727 = vpack.c.b16 %v10599, %v10595
    %v10728 = vpack.c.b16 %v10600, %v10596
    %v10729 = vpack.c.b16 %v10601, %v10597
    %10858 = vmatpush.bf16.msra.mxu0 %v10630
    %10859 = vmatpush.bf16.msra.mxu0 %v10626
    %10860 = vmatpush.bf16.msra.mxu0 %v10622
    %10861 = vmatpush.bf16.msra.mxu0 %v10618
    %10862 = vmatpush.bf16.msra.mxu0 %v10614
    %10863 = vmatpush.bf16.msra.mxu0 %v10610
    %10864 = vmatpush.bf16.msra.mxu0 %v10606
    %10865 = vmatpush.bf16.msra.mxu0 %v10602
    %10866 = vmatmul.bf16.gmra.mxu0 %v10076
    %v10867 = vpop.f32.mrf.mxu0
    %v10868 = vadd.f32 %v10210, %v10867
    %v10869 = vpop.f32.mrf.mxu0
    %v10870 = vadd.f32 %v10210, %v10869
    %10871 = vdwg.mxu0
    %10872 = vmatpush.bf16.msra.mxu0 %v10662
    %10873 = vmatpush.bf16.msra.mxu0 %v10658
    %10874 = vmatpush.bf16.msra.mxu0 %v10654
    %10875 = vmatpush.bf16.msra.mxu0 %v10650
    %10876 = vmatpush.bf16.msra.mxu0 %v10646
    %10877 = vmatpush.bf16.msra.mxu0 %v10642
    %10878 = vmatpush.bf16.msra.mxu0 %v10638
    %10879 = vmatpush.bf16.msra.mxu0 %v10634
    %10880 = vmatmul.bf16.gmra.mxu0 %v10077
    %v10881 = vpop.f32.mrf.mxu0
    %v10882 = vadd.f32 %v10868, %v10881
    %v10883 = vpop.f32.mrf.mxu0
    %v10884 = vadd.f32 %v10870, %v10883
    %10885 = vdwg.mxu0
    %10886 = vmatpush.bf16.msra.mxu0 %v10694
    %10887 = vmatpush.bf16.msra.mxu0 %v10690
    %10888 = vmatpush.bf16.msra.mxu0 %v10686
    %10889 = vmatpush.bf16.msra.mxu0 %v10682
    %10890 = vmatpush.bf16.msra.mxu0 %v10678
    %10891 = vmatpush.bf16.msra.mxu0 %v10674
    %10892 = vmatpush.bf16.msra.mxu0 %v10670
    %10893 = vmatpush.bf16.msra.mxu0 %v10666
    %10894 = vmatmul.bf16.gmra.mxu0 %v10078
    %v10895 = vpop.f32.mrf.mxu0
    %v10896 = vadd.f32 %v10882, %v10895
    %v10897 = vpop.f32.mrf.mxu0
    %v10898 = vadd.f32 %v10884, %v10897
    %10899 = vdwg.mxu0
    %10900 = vmatpush.bf16.msra.mxu0 %v10726
    %10901 = vmatpush.bf16.msra.mxu0 %v10722
    %10902 = vmatpush.bf16.msra.mxu0 %v10718
    %10903 = vmatpush.bf16.msra.mxu0 %v10714
    %10904 = vmatpush.bf16.msra.mxu0 %v10710
    %10905 = vmatpush.bf16.msra.mxu0 %v10706
    %10906 = vmatpush.bf16.msra.mxu0 %v10702
    %10907 = vmatpush.bf16.msra.mxu0 %v10698
    %10908 = vmatmul.bf16.gmra.mxu0 %v10079
    %v10909 = vpop.f32.mrf.mxu0
    %v10910 = vadd.f32 %v10896, %v10909
    %v10911 = vpop.f32.mrf.mxu0
    %v10912 = vadd.f32 %v10898, %v10911
    %10913 = vdwg.mxu0
    %10914 = vmatpush.bf16.msra.mxu0 %v10631
    %10915 = vmatpush.bf16.msra.mxu0 %v10627
    %10916 = vmatpush.bf16.msra.mxu0 %v10623
    %10917 = vmatpush.bf16.msra.mxu0 %v10619
    %10918 = vmatpush.bf16.msra.mxu0 %v10615
    %10919 = vmatpush.bf16.msra.mxu0 %v10611
    %10920 = vmatpush.bf16.msra.mxu0 %v10607
    %10921 = vmatpush.bf16.msra.mxu0 %v10603
    %10922 = vmatmul.bf16.gmra.mxu0 %v10076
    %v10923 = vpop.f32.mrf.mxu0
    %v10924 = vadd.f32 %v10211, %v10923
    %v10925 = vpop.f32.mrf.mxu0
    %v10926 = vadd.f32 %v10211, %v10925
    %10927 = vdwg.mxu0
    %10928 = vmatpush.bf16.msra.mxu0 %v10663
    %10929 = vmatpush.bf16.msra.mxu0 %v10659
    %10930 = vmatpush.bf16.msra.mxu0 %v10655
    %10931 = vmatpush.bf16.msra.mxu0 %v10651
    %10932 = vmatpush.bf16.msra.mxu0 %v10647
    %10933 = vmatpush.bf16.msra.mxu0 %v10643
    %10934 = vmatpush.bf16.msra.mxu0 %v10639
    %10935 = vmatpush.bf16.msra.mxu0 %v10635
    %10936 = vmatmul.bf16.gmra.mxu0 %v10077
    %v10937 = vpop.f32.mrf.mxu0
    %v10938 = vadd.f32 %v10924, %v10937
    %v10939 = vpop.f32.mrf.mxu0
    %v10940 = vadd.f32 %v10926, %v10939
    %10941 = vdwg.mxu0
    %10942 = vmatpush.bf16.msra.mxu0 %v10695
    %10943 = vmatpush.bf16.msra.mxu0 %v10691
    %10944 = vmatpush.bf16.msra.mxu0 %v10687
    %10945 = vmatpush.bf16.msra.mxu0 %v10683
    %10946 = vmatpush.bf16.msra.mxu0 %v10679
    %10947 = vmatpush.bf16.msra.mxu0 %v10675
    %10948 = vmatpush.bf16.msra.mxu0 %v10671
    %10949 = vmatpush.bf16.msra.mxu0 %v10667
    %10950 = vmatmul.bf16.gmra.mxu0 %v10078
    %v10951 = vpop.f32.mrf.mxu0
    %v10952 = vadd.f32 %v10938, %v10951
    %v10953 = vpop.f32.mrf.mxu0
    %v10954 = vadd.f32 %v10940, %v10953
    %10955 = vdwg.mxu0
    %10956 = vmatpush.bf16.msra.mxu0 %v10727
    %10957 = vmatpush.bf16.msra.mxu0 %v10723
    %10958 = vmatpush.bf16.msra.mxu0 %v10719
    %10959 = vmatpush.bf16.msra.mxu0 %v10715
    %10960 = vmatpush.bf16.msra.mxu0 %v10711
    %10961 = vmatpush.bf16.msra.mxu0 %v10707
    %10962 = vmatpush.bf16.msra.mxu0 %v10703
    %10963 = vmatpush.bf16.msra.mxu0 %v10699
    %10964 = vmatmul.bf16.gmra.mxu0 %v10079
    %v10965 = vpop.f32.mrf.mxu0
    %v10966 = vadd.f32 %v10952, %v10965
    %v10967 = vpop.f32.mrf.mxu0
    %v10968 = vadd.f32 %v10954, %v10967
    %10969 = vdwg.mxu0
    %10970 = vmatpush.bf16.msra.mxu0 %v10632
    %10971 = vmatpush.bf16.msra.mxu0 %v10628
    %10972 = vmatpush.bf16.msra.mxu0 %v10624
    %10973 = vmatpush.bf16.msra.mxu0 %v10620
    %10974 = vmatpush.bf16.msra.mxu0 %v10616
    %10975 = vmatpush.bf16.msra.mxu0 %v10612
    %10976 = vmatpush.bf16.msra.mxu0 %v10608
    %10977 = vmatpush.bf16.msra.mxu0 %v10604
    %10978 = vmatmul.bf16.gmra.mxu0 %v10076
    %v10979 = vpop.f32.mrf.mxu0
    %v10980 = vadd.f32 %v10212, %v10979
    %v10981 = vpop.f32.mrf.mxu0
    %v10982 = vadd.f32 %v10212, %v10981
    %10983 = vdwg.mxu0
    %10984 = vmatpush.bf16.msra.mxu0 %v10664
    %10985 = vmatpush.bf16.msra.mxu0 %v10660
    %10986 = vmatpush.bf16.msra.mxu0 %v10656
    %10987 = vmatpush.bf16.msra.mxu0 %v10652
    %10988 = vmatpush.bf16.msra.mxu0 %v10648
    %10989 = vmatpush.bf16.msra.mxu0 %v10644
    %10990 = vmatpush.bf16.msra.mxu0 %v10640
    %10991 = vmatpush.bf16.msra.mxu0 %v10636
    %10992 = vmatmul.bf16.gmra.mxu0 %v10077
    %v10993 = vpop.f32.mrf.mxu0
    %v10994 = vadd.f32 %v10980, %v10993
    %v10995 = vpop.f32.mrf.mxu0
    %v10996 = vadd.f32 %v10982, %v10995
    %10997 = vdwg.mxu0
    %10998 = vmatpush.bf16.msra.mxu0 %v10696
    %10999 = vmatpush.bf16.msra.mxu0 %v10692
    %11000 = vmatpush.bf16.msra.mxu0 %v10688
    %11001 = vmatpush.bf16.msra.mxu0 %v10684
    %11002 = vmatpush.bf16.msra.mxu0 %v10680
    %11003 = vmatpush.bf16.msra.mxu0 %v10676
    %11004 = vmatpush.bf16.msra.mxu0 %v10672
    %11005 = vmatpush.bf16.msra.mxu0 %v10668
    %11006 = vmatmul.bf16.gmra.mxu0 %v10078
    %v11007 = vpop.f32.mrf.mxu0
    %v11008 = vadd.f32 %v10994, %v11007
    %v11009 = vpop.f32.mrf.mxu0
    %v11010 = vadd.f32 %v10996, %v11009
    %11011 = vdwg.mxu0
    %11012 = vmatpush.bf16.msra.mxu0 %v10728
    %11013 = vmatpush.bf16.msra.mxu0 %v10724
    %11014 = vmatpush.bf16.msra.mxu0 %v10720
    %11015 = vmatpush.bf16.msra.mxu0 %v10716
    %11016 = vmatpush.bf16.msra.mxu0 %v10712
    %11017 = vmatpush.bf16.msra.mxu0 %v10708
    %11018 = vmatpush.bf16.msra.mxu0 %v10704
    %11019 = vmatpush.bf16.msra.mxu0 %v10700
    %11020 = vmatmul.bf16.gmra.mxu0 %v10079
    %v11021 = vpop.f32.mrf.mxu0
    %v11022 = vadd.f32 %v11008, %v11021
    %v11023 = vpop.f32.mrf.mxu0
    %v11024 = vadd.f32 %v11010, %v11023
    %11025 = vdwg.mxu0
    %11026 = vmatpush.bf16.msra.mxu0 %v10633
    %11027 = vmatpush.bf16.msra.mxu0 %v10629
    %11028 = vmatpush.bf16.msra.mxu0 %v10625
    %11029 = vmatpush.bf16.msra.mxu0 %v10621
    %11030 = vmatpush.bf16.msra.mxu0 %v10617
    %11031 = vmatpush.bf16.msra.mxu0 %v10613
    %11032 = vmatpush.bf16.msra.mxu0 %v10609
    %11033 = vmatpush.bf16.msra.mxu0 %v10605
    %11034 = vmatmul.bf16.gmra.mxu0 %v10076
    %v11035 = vpop.f32.mrf.mxu0
    %v11036 = vadd.f32 %v10213, %v11035
    %v11037 = vpop.f32.mrf.mxu0
    %v11038 = vadd.f32 %v10213, %v11037
    %11039 = vdwg.mxu0
    %11040 = vmatpush.bf16.msra.mxu0 %v10665
    %11041 = vmatpush.bf16.msra.mxu0 %v10661
    %11042 = vmatpush.bf16.msra.mxu0 %v10657
    %11043 = vmatpush.bf16.msra.mxu0 %v10653
    %11044 = vmatpush.bf16.msra.mxu0 %v10649
    %11045 = vmatpush.bf16.msra.mxu0 %v10645
    %11046 = vmatpush.bf16.msra.mxu0 %v10641
    %11047 = vmatpush.bf16.msra.mxu0 %v10637
    %11048 = vmatmul.bf16.gmra.mxu0 %v10077
    %v11049 = vpop.f32.mrf.mxu0
    %v11050 = vadd.f32 %v11036, %v11049
    %v11051 = vpop.f32.mrf.mxu0
    %v11052 = vadd.f32 %v11038, %v11051
    %11053 = vdwg.mxu0
    %11054 = vmatpush.bf16.msra.mxu0 %v10697
    %11055 = vmatpush.bf16.msra.mxu0 %v10693
    %11056 = vmatpush.bf16.msra.mxu0 %v10689
    %11057 = vmatpush.bf16.msra.mxu0 %v10685
    %11058 = vmatpush.bf16.msra.mxu0 %v10681
    %11059 = vmatpush.bf16.msra.mxu0 %v10677
    %11060 = vmatpush.bf16.msra.mxu0 %v10673
    %11061 = vmatpush.bf16.msra.mxu0 %v10669
    %11062 = vmatmul.bf16.gmra.mxu0 %v10078
    %v11063 = vpop.f32.mrf.mxu0
    %v11064 = vadd.f32 %v11050, %v11063
    %v11065 = vpop.f32.mrf.mxu0
    %v11066 = vadd.f32 %v11052, %v11065
    %11067 = vdwg.mxu0
    %11068 = vmatpush.bf16.msra.mxu0 %v10729
    %11069 = vmatpush.bf16.msra.mxu0 %v10725
    %11070 = vmatpush.bf16.msra.mxu0 %v10721
    %11071 = vmatpush.bf16.msra.mxu0 %v10717
    %11072 = vmatpush.bf16.msra.mxu0 %v10713
    %11073 = vmatpush.bf16.msra.mxu0 %v10709
    %11074 = vmatpush.bf16.msra.mxu0 %v10705
    %11075 = vmatpush.bf16.msra.mxu0 %v10701
    %11076 = vmatmul.bf16.gmra.mxu0 %v10079
    %v11077 = vpop.f32.mrf.mxu0
    %v11078 = vadd.f32 %v11064, %v11077
    %v11079 = vpop.f32.mrf.mxu0
    %v11080 = vadd.f32 %v11066, %v11079
    %11081 = vdwg.mxu0
    %v11082 = vmax.f32 %v10910, 0.0
    %v11083 = vmax.f32 %v10966, 0.0
    %v11084 = vmax.f32 %v11022, 0.0
    %v11085 = vmax.f32 %v11078, 0.0
    %v11086 = vmax.f32 %v10912, 0.0
    %v11087 = vmax.f32 %v10968, 0.0
    %v11088 = vmax.f32 %v11024, 0.0
    %v11089 = vmax.f32 %v11080, 0.0
    %v11090 = vpack.c.bf16 %v11086, %v11082
    %v11091 = vpack.c.bf16 %v11087, %v11083
    %v11092 = vpack.c.bf16 %v11088, %v11084
    %v11093 = vpack.c.bf16 %v11089, %v11085
    %v11094 = vld [vmem:[#allocation14] sm:$0xf]
    %v11095 = vld [vmem:[#allocation14 + $0x4] sm:$0xf]
    %v11096 = vld [vmem:[#allocation14 + $0x8] sm:$0xf]
    %v11097 = vld [vmem:[#allocation14 + $0xc] sm:$0xf]
    %v11098 = vld [vmem:[#allocation14 + $0x10] sm:$0xf]
    %v11099 = vld [vmem:[#allocation14 + $0x14] sm:$0xf]
    %v11100 = vld [vmem:[#allocation14 + $0x18] sm:$0xf]
    %v11101 = vld [vmem:[#allocation14 + $0x1c] sm:$0xf]
    %v11102 = vld [vmem:[#allocation14 + $0x20] sm:$0xf]
    %v11103 = vld [vmem:[#allocation14 + $0x24] sm:$0xf]
    %v11104 = vld [vmem:[#allocation14 + $0x28] sm:$0xf]
    %v11105 = vld [vmem:[#allocation14 + $0x2c] sm:$0xf]
    %v11106 = vld [vmem:[#allocation14 + $0x30] sm:$0xf]
    %v11107 = vld [vmem:[#allocation14 + $0x34] sm:$0xf]
    %v11108 = vld [vmem:[#allocation14 + $0x38] sm:$0xf]
    %v11109 = vld [vmem:[#allocation14 + $0x3c] sm:$0xf]
    %v11110 = vld [vmem:[#allocation14 + $0x40] sm:$0xf]
    %v11111 = vld [vmem:[#allocation14 + $0x44] sm:$0xf]
    %v11112 = vld [vmem:[#allocation14 + $0x48] sm:$0xf]
    %v11113 = vld [vmem:[#allocation14 + $0x4c] sm:$0xf]
    %v11114 = vld [vmem:[#allocation14 + $0x50] sm:$0xf]
    %v11115 = vld [vmem:[#allocation14 + $0x54] sm:$0xf]
    %v11116 = vld [vmem:[#allocation14 + $0x58] sm:$0xf]
    %v11117 = vld [vmem:[#allocation14 + $0x5c] sm:$0xf]
    %v11118 = vld [vmem:[#allocation14 + $0x60] sm:$0xf]
    %v11119 = vld [vmem:[#allocation14 + $0x64] sm:$0xf]
    %v11120 = vld [vmem:[#allocation14 + $0x68] sm:$0xf]
    %v11121 = vld [vmem:[#allocation14 + $0x6c] sm:$0xf]
    %v11122 = vld [vmem:[#allocation14 + $0x70] sm:$0xf]
    %v11123 = vld [vmem:[#allocation14 + $0x74] sm:$0xf]
    %v11124 = vld [vmem:[#allocation14 + $0x78] sm:$0xf]
    %v11125 = vld [vmem:[#allocation14 + $0x7c] sm:$0xf]
    %v11126 = vld [vmem:[#allocation14 + $0x80] sm:$0xf]
    %v11127 = vld [vmem:[#allocation14 + $0x84] sm:$0xf]
    %v11128 = vld [vmem:[#allocation14 + $0x88] sm:$0xf]
    %v11129 = vld [vmem:[#allocation14 + $0x8c] sm:$0xf]
    %v11130 = vld [vmem:[#allocation14 + $0x90] sm:$0xf]
    %v11131 = vld [vmem:[#allocation14 + $0x94] sm:$0xf]
    %v11132 = vld [vmem:[#allocation14 + $0x98] sm:$0xf]
    %v11133 = vld [vmem:[#allocation14 + $0x9c] sm:$0xf]
    %v11134 = vld [vmem:[#allocation14 + $0xa0] sm:$0xf]
    %v11135 = vld [vmem:[#allocation14 + $0xa4] sm:$0xf]
    %v11136 = vld [vmem:[#allocation14 + $0xa8] sm:$0xf]
    %v11137 = vld [vmem:[#allocation14 + $0xac] sm:$0xf]
    %v11138 = vld [vmem:[#allocation14 + $0xb0] sm:$0xf]
    %v11139 = vld [vmem:[#allocation14 + $0xb4] sm:$0xf]
    %v11140 = vld [vmem:[#allocation14 + $0xb8] sm:$0xf]
    %v11141 = vld [vmem:[#allocation14 + $0xbc] sm:$0xf]
    %v11142 = vld [vmem:[#allocation14 + $0xc0] sm:$0xf]
    %v11143 = vld [vmem:[#allocation14 + $0xc4] sm:$0xf]
    %v11144 = vld [vmem:[#allocation14 + $0xc8] sm:$0xf]
    %v11145 = vld [vmem:[#allocation14 + $0xcc] sm:$0xf]
    %v11146 = vld [vmem:[#allocation14 + $0xd0] sm:$0xf]
    %v11147 = vld [vmem:[#allocation14 + $0xd4] sm:$0xf]
    %v11148 = vld [vmem:[#allocation14 + $0xd8] sm:$0xf]
    %v11149 = vld [vmem:[#allocation14 + $0xdc] sm:$0xf]
    %v11150 = vld [vmem:[#allocation14 + $0xe0] sm:$0xf]
    %v11151 = vld [vmem:[#allocation14 + $0xe4] sm:$0xf]
    %v11152 = vld [vmem:[#allocation14 + $0xe8] sm:$0xf]
    %v11153 = vld [vmem:[#allocation14 + $0xec] sm:$0xf]
    %v11154 = vld [vmem:[#allocation14 + $0xf0] sm:$0xf]
    %v11155 = vld [vmem:[#allocation14 + $0xf4] sm:$0xf]
    %v11156 = vld [vmem:[#allocation14 + $0xf8] sm:$0xf]
    %v11157 = vld [vmem:[#allocation14 + $0xfc] sm:$0xf]
    %v11158 = vld [vmem:[#allocation16] sm:$0x1]
    %v11160 = vperm.slane %v11158, 0
    %v11226 = vunpack.c.l.b16 %v11094
    %v11227 = vunpack.c.l.b16 %v11095
    %v11228 = vunpack.c.l.b16 %v11096
    %v11229 = vunpack.c.l.b16 %v11097
    %v11230 = vunpack.c.l.b16 %v11098
    %v11231 = vunpack.c.l.b16 %v11099
    %v11232 = vunpack.c.l.b16 %v11100
    %v11233 = vunpack.c.l.b16 %v11101
    %v11234 = vunpack.c.l.b16 %v11102
    %v11235 = vunpack.c.l.b16 %v11103
    %v11236 = vunpack.c.l.b16 %v11104
    %v11237 = vunpack.c.l.b16 %v11105
    %v11238 = vunpack.c.l.b16 %v11106
    %v11239 = vunpack.c.l.b16 %v11107
    %v11240 = vunpack.c.l.b16 %v11108
    %v11241 = vunpack.c.l.b16 %v11109
    %v11242 = vunpack.c.l.b16 %v11110
    %v11243 = vunpack.c.l.b16 %v11111
    %v11244 = vunpack.c.l.b16 %v11112
    %v11245 = vunpack.c.l.b16 %v11113
    %v11246 = vunpack.c.l.b16 %v11114
    %v11247 = vunpack.c.l.b16 %v11115
    %v11248 = vunpack.c.l.b16 %v11116
    %v11249 = vunpack.c.l.b16 %v11117
    %v11250 = vunpack.c.l.b16 %v11118
    %v11251 = vunpack.c.l.b16 %v11119
    %v11252 = vunpack.c.l.b16 %v11120
    %v11253 = vunpack.c.l.b16 %v11121
    %v11254 = vunpack.c.l.b16 %v11122
    %v11255 = vunpack.c.l.b16 %v11123
    %v11256 = vunpack.c.l.b16 %v11124
    %v11257 = vunpack.c.l.b16 %v11125
    %v11258 = vunpack.c.l.b16 %v11126
    %v11259 = vunpack.c.l.b16 %v11127
    %v11260 = vunpack.c.l.b16 %v11128
    %v11261 = vunpack.c.l.b16 %v11129
    %v11262 = vunpack.c.l.b16 %v11130
    %v11263 = vunpack.c.l.b16 %v11131
    %v11264 = vunpack.c.l.b16 %v11132
    %v11265 = vunpack.c.l.b16 %v11133
    %v11266 = vunpack.c.l.b16 %v11134
    %v11267 = vunpack.c.l.b16 %v11135
    %v11268 = vunpack.c.l.b16 %v11136
    %v11269 = vunpack.c.l.b16 %v11137
    %v11270 = vunpack.c.l.b16 %v11138
    %v11271 = vunpack.c.l.b16 %v11139
    %v11272 = vunpack.c.l.b16 %v11140
    %v11273 = vunpack.c.l.b16 %v11141
    %v11274 = vunpack.c.l.b16 %v11142
    %v11275 = vunpack.c.l.b16 %v11143
    %v11276 = vunpack.c.l.b16 %v11144
    %v11277 = vunpack.c.l.b16 %v11145
    %v11278 = vunpack.c.l.b16 %v11146
    %v11279 = vunpack.c.l.b16 %v11147
    %v11280 = vunpack.c.l.b16 %v11148
    %v11281 = vunpack.c.l.b16 %v11149
    %v11282 = vunpack.c.l.b16 %v11150
    %v11283 = vunpack.c.l.b16 %v11151
    %v11284 = vunpack.c.l.b16 %v11152
    %v11285 = vunpack.c.l.b16 %v11153
    %v11286 = vunpack.c.l.b16 %v11154
    %v11287 = vunpack.c.l.b16 %v11155
    %v11288 = vunpack.c.l.b16 %v11156
    %v11289 = vunpack.c.l.b16 %v11157
    %v11290 = vpack.c.b16 %v11227, %v11226
    %v11291 = vpack.c.b16 %v11229, %v11228
    %v11292 = vpack.c.b16 %v11231, %v11230
    %v11293 = vpack.c.b16 %v11233, %v11232
    %v11294 = vpack.c.b16 %v11235, %v11234
    %v11295 = vpack.c.b16 %v11237, %v11236
    %v11296 = vpack.c.b16 %v11239, %v11238
    %v11297 = vpack.c.b16 %v11241, %v11240
    %v11298 = vpack.c.b16 %v11243, %v11242
    %v11299 = vpack.c.b16 %v11245, %v11244
    %v11300 = vpack.c.b16 %v11247, %v11246
    %v11301 = vpack.c.b16 %v11249, %v11248
    %v11302 = vpack.c.b16 %v11251, %v11250
    %v11303 = vpack.c.b16 %v11253, %v11252
    %v11304 = vpack.c.b16 %v11255, %v11254
    %v11305 = vpack.c.b16 %v11257, %v11256
    %v11306 = vpack.c.b16 %v11259, %v11258
    %v11307 = vpack.c.b16 %v11261, %v11260
    %v11308 = vpack.c.b16 %v11263, %v11262
    %v11309 = vpack.c.b16 %v11265, %v11264
    %v11310 = vpack.c.b16 %v11267, %v11266
    %v11311 = vpack.c.b16 %v11269, %v11268
    %v11312 = vpack.c.b16 %v11271, %v11270
    %v11313 = vpack.c.b16 %v11273, %v11272
    %v11314 = vpack.c.b16 %v11275, %v11274
    %v11315 = vpack.c.b16 %v11277, %v11276
    %v11316 = vpack.c.b16 %v11279, %v11278
    %v11317 = vpack.c.b16 %v11281, %v11280
    %v11318 = vpack.c.b16 %v11283, %v11282
    %v11319 = vpack.c.b16 %v11285, %v11284
    %v11320 = vpack.c.b16 %v11287, %v11286
    %v11321 = vpack.c.b16 %v11289, %v11288
    %11354 = vmatpush.bf16.msra.mxu0 %v11297
    %11355 = vmatpush.bf16.msra.mxu0 %v11296
    %11356 = vmatpush.bf16.msra.mxu0 %v11295
    %11357 = vmatpush.bf16.msra.mxu0 %v11294
    %11358 = vmatpush.bf16.msra.mxu0 %v11293
    %11359 = vmatpush.bf16.msra.mxu0 %v11292
    %11360 = vmatpush.bf16.msra.mxu0 %v11291
    %11361 = vmatpush.bf16.msra.mxu0 %v11290
    %11362 = vmatmul.bf16.gmra.mxu0 %v11090
    %v11363 = vpop.f32.mrf.mxu0
    %v11364 = vadd.f32 %v11160, %v11363
    %v11365 = vpop.f32.mrf.mxu0
    %v11366 = vadd.f32 %v11160, %v11365
    %11367 = vdwg.mxu0
    %11368 = vmatpush.bf16.msra.mxu0 %v11305
    %11369 = vmatpush.bf16.msra.mxu0 %v11304
    %11370 = vmatpush.bf16.msra.mxu0 %v11303
    %11371 = vmatpush.bf16.msra.mxu0 %v11302
    %11372 = vmatpush.bf16.msra.mxu0 %v11301
    %11373 = vmatpush.bf16.msra.mxu0 %v11300
    %11374 = vmatpush.bf16.msra.mxu0 %v11299
    %11375 = vmatpush.bf16.msra.mxu0 %v11298
    %11376 = vmatmul.bf16.gmra.mxu0 %v11091
    %v11377 = vpop.f32.mrf.mxu0
    %v11378 = vadd.f32 %v11364, %v11377
    %v11379 = vpop.f32.mrf.mxu0
    %v11380 = vadd.f32 %v11366, %v11379
    %11381 = vdwg.mxu0
    %11382 = vmatpush.bf16.msra.mxu0 %v11313
    %11383 = vmatpush.bf16.msra.mxu0 %v11312
    %11384 = vmatpush.bf16.msra.mxu0 %v11311
    %11385 = vmatpush.bf16.msra.mxu0 %v11310
    %11386 = vmatpush.bf16.msra.mxu0 %v11309
    %11387 = vmatpush.bf16.msra.mxu0 %v11308
    %11388 = vmatpush.bf16.msra.mxu0 %v11307
    %11389 = vmatpush.bf16.msra.mxu0 %v11306
    %11390 = vmatmul.bf16.gmra.mxu0 %v11092
    %v11391 = vpop.f32.mrf.mxu0
    %v11392 = vadd.f32 %v11378, %v11391
    %v11393 = vpop.f32.mrf.mxu0
    %v11394 = vadd.f32 %v11380, %v11393
    %11395 = vdwg.mxu0
    %11396 = vmatpush.bf16.msra.mxu0 %v11321
    %11397 = vmatpush.bf16.msra.mxu0 %v11320
    %11398 = vmatpush.bf16.msra.mxu0 %v11319
    %11399 = vmatpush.bf16.msra.mxu0 %v11318
    %11400 = vmatpush.bf16.msra.mxu0 %v11317
    %11401 = vmatpush.bf16.msra.mxu0 %v11316
    %11402 = vmatpush.bf16.msra.mxu0 %v11315
    %11403 = vmatpush.bf16.msra.mxu0 %v11314
    %11404 = vmatmul.bf16.gmra.mxu0 %v11093
    %v11405 = vpop.f32.mrf.mxu0
    %v11406 = vadd.f32 %v11392, %v11405
    %v11407 = vpop.f32.mrf.mxu0
    %v11408 = vadd.f32 %v11394, %v11407
    %11409 = vdwg.mxu0
    %v11410 = vpack.c.bf16 %v11406, %v11406
    %v11411 = vpack.c.bf16 %v11408, %v11408
    %11412 = vst [vmem:[#allocation17] sm:$0xf] %v11410
    %11413 = vst [vmem:[#allocation17 + $0x4] sm:$0xf] %v11411
    // Predicated region
    $region74: #{tpu_custom_call.1} parent=1 // pred_check
      _
    $region75: #{tpu_custom_call.1} parent=1 // pred_check_branch
      %11415 = sbr.rel (0) target = $region77
    $region76: #{tpu_custom_call.1} parent=1 // pred_region
      %11417 = vsyncadd [#allocation4], 0
      %s11418 = sshll.u32 [#allocation17], 4
      %s11419 = int_to_ptr.vmem [resolvable:$true] %s11418
      %s11420 = sshll.u32 %s9, 4
      %s11421 = int_to_ptr.hbm [resolvable:$true] %s11420
      %11426 = dma.vmem_to_hbm [thread:$0]  %s11419, 128, %s11421, [#allocation4], 64, 64, 4
    $region77: #{tpu_custom_call.1} parent=1 // pred_fallthru
      _
    // Predicated region
    $region78: #{tpu_custom_call.1} parent=1 // pred_check
      _
    $region79: #{tpu_custom_call.1} parent=1 // pred_check_branch
      %11428 = sbr.rel (0) target = $region81
    $region80: #{tpu_custom_call.1} parent=1 // pred_region
      %11430 = dma.done [#allocation4], 128
    $region81: #{tpu_custom_call.1} parent=1 // pred_fallthru
      _
    %11431 = vsyncpa [#allocation3], 1
    %11432 = vsyncpa [#allocation6], 1
    %11433 = vsyncpa [#allocation9], 1
    %11434 = vsyncpa [#allocation12], 1
    %11435 = vsyncpa [#allocation15], 1
    %11436 = vsyncpa [#allocation4], 1

</llo_original>
